<compile_context>
chip_gen: v7x
topology: tpu7x:2x2x1
jax: 0.10.0
libtpu: 0.0.40
codegen_flags: <defaults>
</compile_context>

<pallas_src>
import functools

import jax
import jax.numpy as jnp
from jax.experimental import pallas as pl
from jax.experimental.pallas import tpu as pltpu

LANE = 128          # lane width; also the padded hidden / gate-block size
HP = LANE           # padded hidden dim for every LSTM layer


# ----------------------------------------------------------------------------
# Fused Pallas kernel
# ----------------------------------------------------------------------------
def _fused_autoencoder_kernel(
    x_ref,                                   # (T*B, LANE)  time-major, feature-padded input
    wih1_ref, whh1_ref, b1_ref,              # enc rnn1:  (LANE,4*HP), (HP,4*HP), (1,4*HP)
    wih2_ref, whh2_ref, b2_ref,              # enc rnn2
    wih3_ref, whh3_ref, b3_ref,              # dec rnn1
    wih4_ref, whh4_ref, b4_ref,              # dec rnn2
    wout_ref, bout_ref,                      # output linear: (HP, LANE), (1, LANE)
    out_ref,                                 # (T*B, LANE)  lane-dense output slab
    hbuf,                                    # VMEM (T*B, HP)    per-layer hidden history
    pbuf,                                    # VMEM (T*B, 4*HP)  hoisted input projections
    *, seq_len, batch,
):
    T, B = seq_len, batch
    hp = hbuf.shape[1]

    def run_lstm(whh_ref, proj_at):
        """Sequential LSTM recurrence (PyTorch gate order i, f, g, o).

        proj_at(t) -> (B, 4*hp) precomputed x_t @ W_ih^T + (b_ih + b_hh).
        Writes the hidden history into hbuf; returns the final hidden state.
        Padded gate columns have zero weights/bias, so padded h/c stay 0.
        """
        h = jnp.zeros((B, hp), jnp.float32)
        c = jnp.zeros((B, hp), jnp.float32)
        for t in range(T):  # small static trip count -> fully unrolled
            gates = proj_at(t) + jnp.dot(
                h, whh_ref[...], preferred_element_type=jnp.float32)
            i_g = jax.nn.sigmoid(gates[:, 0 * hp:1 * hp])
            f_g = jax.nn.sigmoid(gates[:, 1 * hp:2 * hp])
            g_g = jnp.tanh(gates[:, 2 * hp:3 * hp])
            o_g = jax.nn.sigmoid(gates[:, 3 * hp:4 * hp])
            c = f_g * c + i_g * g_g
            h = o_g * jnp.tanh(c)
            hbuf[t * B:(t + 1) * B, :] = h
        return h

    def proj_from_pbuf(t):
        return pbuf[t * B:(t + 1) * B, :]

    # ---- Encoder rnn1 (F -> 2E): hoist input projection over all T steps ----
    pbuf[...] = jnp.dot(x_ref[...], wih1_ref[...],
                        preferred_element_type=jnp.float32) + b1_ref[...]
    run_lstm(whh1_ref, proj_from_pbuf)

    # ---- Encoder rnn2 (2E -> E) ----
    pbuf[...] = jnp.dot(hbuf[...], wih2_ref[...],
                        preferred_element_type=jnp.float32) + b2_ref[...]
    emb = run_lstm(whh2_ref, proj_from_pbuf)      # (B, HP): == x[:, -1, :] padded

    # ---- Decoder rnn1 (E -> E): the decoder repeats the same embedding at
    # every timestep, so the hoisted input projection is a single (B, 4*HP)
    # block reused at each step.
    p_dec1 = jnp.dot(emb, wih3_ref[...],
                     preferred_element_type=jnp.float32) + b3_ref[...]
    run_lstm(whh3_ref, lambda t: p_dec1)

    # ---- Decoder rnn2 (E -> 2E) ----
    pbuf[...] = jnp.dot(hbuf[...], wih4_ref[...],
                        preferred_element_type=jnp.float32) + b4_ref[...]
    run_lstm(whh4_ref, proj_from_pbuf)

    # ---- TimeDistributed Linear (2E -> F), single lane-dense store ----
    out_ref[...] = jnp.dot(hbuf[...], wout_ref[...],
                           preferred_element_type=jnp.float32) + bout_ref[...]


# ----------------------------------------------------------------------------
# Weight packing: pad each gate block to 128 lanes, zero-fill padding.
# ----------------------------------------------------------------------------
def _pack_gate_matrix(w, d_pad, hp=HP):
    """PyTorch-layout (4H, D) weight -> (d_pad, 4*hp) transposed, gate-padded."""
    h4, d = w.shape
    h = h4 // 4
    wt = jnp.asarray(w, jnp.float32).T                       # (D, 4H)
    out = jnp.zeros((d_pad, 4 * hp), jnp.float32)
    for g in range(4):
        out = out.at[:d, g * hp:g * hp + h].set(wt[:, g * h:(g + 1) * h])
    return out


def _pack_gate_bias(b_ih, b_hh, hp=HP):
    b = jnp.asarray(b_ih, jnp.float32) + jnp.asarray(b_hh, jnp.float32)
    h = b.shape[0] // 4
    out = jnp.zeros((1, 4 * hp), jnp.float32)
    for g in range(4):
        out = out.at[0, g * hp:g * hp + h].set(b[g * h:(g + 1) * h])
    return out


# ----------------------------------------------------------------------------
# Parameter construction (deterministic, PyTorch-style uniform init)
# ----------------------------------------------------------------------------
def _uniform(key, shape, k):
    return jax.random.uniform(key, shape, jnp.float32, -k, k)


def make_lstm_params(key, input_size, hidden_size):
    k = 1.0 / jnp.sqrt(hidden_size)
    k1, k2, k3, k4 = jax.random.split(key, 4)
    return {
        "w_ih": _uniform(k1, (4 * hidden_size, input_size), k),
        "w_hh": _uniform(k2, (4 * hidden_size, hidden_size), k),
        "b_ih": _uniform(k3, (4 * hidden_size,), k),
        "b_hh": _uniform(k4, (4 * hidden_size,), k),
    }


def make_linear_params(key, in_features, out_features):
    k = 1.0 / jnp.sqrt(in_features)
    k1, k2 = jax.random.split(key)
    return {
        "w": _uniform(k1, (out_features, in_features), k),
        "b": _uniform(k2, (out_features,), k),
    }


def make_recurrent_autoencoder_params(key, seq_len, n_features, embedding_dim):
    ks = jax.random.split(key, 5)
    hidden = 2 * embedding_dim
    return {
        "enc_rnn1": make_lstm_params(ks[0], n_features, hidden),            # F -> 2E
        "enc_rnn2": make_lstm_params(ks[1], hidden, embedding_dim),         # 2E -> E
        "dec_rnn1": make_lstm_params(ks[2], embedding_dim, embedding_dim),  # E -> E
        "dec_rnn2": make_lstm_params(ks[3], embedding_dim, hidden),         # E -> 2E
        "out_lin": make_linear_params(ks[4], hidden, n_features),           # 2E -> F
    }


# ----------------------------------------------------------------------------
# Forward pass (RecurrentAutoencoder), single fused pallas_call
# ----------------------------------------------------------------------------
@functools.partial(jax.jit, static_argnums=(2, 3, 4))
def recurrent_autoencoder_forward(params, x_btf, seq_len, n_features, embedding_dim):
    """x_btf: (B, T, F) batch-first, like the PyTorch module. Returns (B, T, F)."""
    B, T, F = x_btf.shape
    assert T == seq_len and F == n_features
    assert 2 * embedding_dim <= HP and n_features <= LANE

    p = params
    wih1 = _pack_gate_matrix(p["enc_rnn1"]["w_ih"], LANE)   # input dim = F, padded to LANE
    whh1 = _pack_gate_matrix(p["enc_rnn1"]["w_hh"], HP)
    b1 = _pack_gate_bias(p["enc_rnn1"]["b_ih"], p["enc_rnn1"]["b_hh"])
    wih2 = _pack_gate_matrix(p["enc_rnn2"]["w_ih"], HP)
    whh2 = _pack_gate_matrix(p["enc_rnn2"]["w_hh"], HP)
    b2 = _pack_gate_bias(p["enc_rnn2"]["b_ih"], p["enc_rnn2"]["b_hh"])
    wih3 = _pack_gate_matrix(p["dec_rnn1"]["w_ih"], HP)
    whh3 = _pack_gate_matrix(p["dec_rnn1"]["w_hh"], HP)
    b3 = _pack_gate_bias(p["dec_rnn1"]["b_ih"], p["dec_rnn1"]["b_hh"])
    wih4 = _pack_gate_matrix(p["dec_rnn2"]["w_ih"], HP)
    whh4 = _pack_gate_matrix(p["dec_rnn2"]["w_hh"], HP)
    b4 = _pack_gate_bias(p["dec_rnn2"]["b_ih"], p["dec_rnn2"]["b_hh"])

    # Output linear, padded to a lane-dense (HP, LANE) block.
    wout = jnp.zeros((HP, LANE), jnp.float32)
    wout = wout.at[:2 * embedding_dim, :F].set(jnp.asarray(p["out_lin"]["w"], jnp.float32).T)
    bout = jnp.zeros((1, LANE), jnp.float32).at[0, :F].set(
        jnp.asarray(p["out_lin"]["b"], jnp.float32))

    # Time-major, feature-padded input slab: row t*B + b == x[b, t].
    x_tm = jnp.transpose(x_btf.astype(jnp.float32), (1, 0, 2)).reshape(T * B, F)
    x_pad = jnp.zeros((T * B, LANE), jnp.float32).at[:, :F].set(x_tm)

    y_pad = pl.pallas_call(
        functools.partial(_fused_autoencoder_kernel, seq_len=T, batch=B),
        out_shape=jax.ShapeDtypeStruct((T * B, LANE), jnp.float32),
        scratch_shapes=[
            pltpu.VMEM((T * B, HP), jnp.float32),        # hidden history (reused per layer)
            pltpu.VMEM((T * B, 4 * HP), jnp.float32),    # hoisted input projections
        ],
        compiler_params=pltpu.CompilerParams(
            vmem_limit_bytes=16 * 1024 * 1024,
        ),
    )(x_pad,
      wih1, whh1, b1,
      wih2, whh2, b2,
      wih3, whh3, b3,
      wih4, whh4, b4,
      wout, bout)

    y = y_pad[:, :F].reshape(T, B, F)
    return jnp.transpose(y, (1, 0, 2))                       # (B, T, F)


# ----------------------------------------------------------------------------
if __name__ == "__main__":
    # Small shapes consistent with the module: batch=2, seq=8, features=4, emb=32.
    B, SEQ_LEN, N_FEATURES, EMBEDDING_DIM = 2, 8, 4, 32

    key = jax.random.PRNGKey(0)
    pkey, xkey = jax.random.split(key)
    params = make_recurrent_autoencoder_params(pkey, SEQ_LEN, N_FEATURES, EMBEDDING_DIM)
    x = jax.random.normal(xkey, (B, SEQ_LEN, N_FEATURES), jnp.float32)

    out = recurrent_autoencoder_forward(params, x, SEQ_LEN, N_FEATURES, EMBEDDING_DIM)
    out = jax.block_until_ready(out)

    assert out.shape == (B, SEQ_LEN, N_FEATURES), out.shape
    assert out.dtype == jnp.float32
    print("KERNEL_OK")
</pallas_src>

<mosaic_0001>
module attributes {stable_mosaic.version = 11 : i64} {
  func.func @_fused_autoencoder_kernel(%arg0: memref<16x128xf32, #tpu.memory_space<vmem>>, %arg1: memref<128x512xf32, #tpu.memory_space<vmem>>, %arg2: memref<128x512xf32, #tpu.memory_space<vmem>>, %arg3: memref<1x512xf32, #tpu.memory_space<vmem>>, %arg4: memref<128x512xf32, #tpu.memory_space<vmem>>, %arg5: memref<128x512xf32, #tpu.memory_space<vmem>>, %arg6: memref<1x512xf32, #tpu.memory_space<vmem>>, %arg7: memref<128x512xf32, #tpu.memory_space<vmem>>, %arg8: memref<128x512xf32, #tpu.memory_space<vmem>>, %arg9: memref<1x512xf32, #tpu.memory_space<vmem>>, %arg10: memref<128x512xf32, #tpu.memory_space<vmem>>, %arg11: memref<128x512xf32, #tpu.memory_space<vmem>>, %arg12: memref<1x512xf32, #tpu.memory_space<vmem>>, %arg13: memref<128x128xf32, #tpu.memory_space<vmem>>, %arg14: memref<1x128xf32, #tpu.memory_space<vmem>>, %arg15: memref<16x128xf32, #tpu.memory_space<vmem>>, %arg16: memref<16x128xf32, #tpu.memory_space<vmem>>, %arg17: memref<16x512xf32, #tpu.memory_space<vmem>>) attributes {dimension_semantics = [], scalar_prefetch = 0 : i64, scratch_operands = 2 : i64, tpu.core_type = #tpu.core_type<tc>} {
    %c0 = arith.constant 0 : index
    %c0_0 = arith.constant 0 : index
    %0 = vector.load %arg0[%c0, %c0_0] : memref<16x128xf32, #tpu.memory_space<vmem>>, vector<16x128xf32>
    %c0_1 = arith.constant 0 : index
    %c0_2 = arith.constant 0 : index
    %1 = vector.load %arg1[%c0_1, %c0_2] : memref<128x512xf32, #tpu.memory_space<vmem>>, vector<128x512xf32>
    %cst = arith.constant dense<0.000000e+00> : vector<16x512xf32>
    %2 = tpu.matmul %0, %1, %cst {dimension_numbers = #tpu.dot_dimension_numbers<[1], [0], [0], [1], [0, 0, 1, 1], [], []>} : vector<16x128xf32>, vector<128x512xf32>, vector<16x512xf32> -> vector<16x512xf32>
    %c0_3 = arith.constant 0 : index
    %c0_4 = arith.constant 0 : index
    %3 = vector.load %arg3[%c0_3, %c0_4] : memref<1x512xf32, #tpu.memory_space<vmem>>, vector<1x512xf32>
    %4 = vector.broadcast %3 : vector<1x512xf32> to vector<16x512xf32>
    %5 = arith.addf %2, %4 : vector<16x512xf32>
    %c0_5 = arith.constant 0 : index
    %c0_6 = arith.constant 0 : index
    %6 = vector.load %arg17[%c0_5, %c0_6] : memref<16x512xf32, #tpu.memory_space<vmem>>, vector<16x512xf32>
    tpu.vector_store %arg17[%c0_5, %c0_6], %5 {strides = array<i32>} : memref<16x512xf32, #tpu.memory_space<vmem>>, vector<16x512xf32>,
    %cst_7 = arith.constant 0.000000e+00 : f32
    %7 = vector.broadcast %cst_7 : f32 to vector<2x128xf32>
    %cst_8 = arith.constant 0.000000e+00 : f32
    %8 = vector.broadcast %cst_8 : f32 to vector<2x128xf32>
    %c0_9 = arith.constant 0 : index
    %c0_10 = arith.constant 0 : index
    %9 = vector.load %arg17[%c0_9, %c0_10] : memref<16x512xf32, #tpu.memory_space<vmem>>, vector<2x512xf32>
    %c0_11 = arith.constant 0 : index
    %c0_12 = arith.constant 0 : index
    %10 = vector.load %arg2[%c0_11, %c0_12] : memref<128x512xf32, #tpu.memory_space<vmem>>, vector<128x512xf32>
    %cst_13 = arith.constant dense<0.000000e+00> : vector<2x512xf32>
    %11 = tpu.matmul %7, %10, %cst_13 {dimension_numbers = #tpu.dot_dimension_numbers<[1], [0], [0], [1], [0, 0, 1, 1], [], []>} : vector<2x128xf32>, vector<128x512xf32>, vector<2x512xf32> -> vector<2x512xf32>
    %12 = arith.addf %9, %11 : vector<2x512xf32>
    %13 = vector.extract_strided_slice %12 {offsets = [0, 0], sizes = [2, 128], strides = [1, 1]} : vector<2x512xf32> to vector<2x128xf32>
    %14 = arith.negf %13 : vector<2x128xf32>
    %15 = math.exp %14 : vector<2x128xf32>
    %cst_14 = arith.constant 1.000000e+00 : f32
    %16 = vector.broadcast %cst_14 : f32 to vector<2x128xf32>
    %17 = arith.addf %16, %15 : vector<2x128xf32>
    %18 = arith.divf %16, %17 : vector<2x128xf32>
    %19 = vector.extract_strided_slice %12 {offsets = [0, 128], sizes = [2, 128], strides = [1, 1]} : vector<2x512xf32> to vector<2x128xf32>
    %20 = arith.negf %19 : vector<2x128xf32>
    %21 = math.exp %20 : vector<2x128xf32>
    %cst_15 = arith.constant 1.000000e+00 : f32
    %22 = vector.broadcast %cst_15 : f32 to vector<2x128xf32>
    %23 = arith.addf %22, %21 : vector<2x128xf32>
    %24 = arith.divf %22, %23 : vector<2x128xf32>
    %25 = vector.extract_strided_slice %12 {offsets = [0, 256], sizes = [2, 128], strides = [1, 1]} : vector<2x512xf32> to vector<2x128xf32>
    %26 = math.tanh %25 : vector<2x128xf32>
    %27 = vector.extract_strided_slice %12 {offsets = [0, 384], sizes = [2, 128], strides = [1, 1]} : vector<2x512xf32> to vector<2x128xf32>
    %28 = arith.negf %27 : vector<2x128xf32>
    %29 = math.exp %28 : vector<2x128xf32>
    %cst_16 = arith.constant 1.000000e+00 : f32
    %30 = vector.broadcast %cst_16 : f32 to vector<2x128xf32>
    %31 = arith.addf %30, %29 : vector<2x128xf32>
    %32 = arith.divf %30, %31 : vector<2x128xf32>
    %33 = arith.mulf %24, %8 : vector<2x128xf32>
    %34 = arith.mulf %18, %26 : vector<2x128xf32>
    %35 = arith.addf %33, %34 : vector<2x128xf32>
    %36 = math.tanh %35 : vector<2x128xf32>
    %37 = arith.mulf %32, %36 : vector<2x128xf32>
    %c0_17 = arith.constant 0 : index
    %c0_18 = arith.constant 0 : index
    %38 = vector.load %arg16[%c0_17, %c0_18] : memref<16x128xf32, #tpu.memory_space<vmem>>, vector<2x128xf32>
    tpu.vector_store %arg16[%c0_17, %c0_18], %37 {strides = array<i32>} : memref<16x128xf32, #tpu.memory_space<vmem>>, vector<2x128xf32>,
    %c2 = arith.constant 2 : index
    %c0_19 = arith.constant 0 : index
    %39 = vector.load %arg17[%c2, %c0_19] : memref<16x512xf32, #tpu.memory_space<vmem>>, vector<2x512xf32>
    %c0_20 = arith.constant 0 : index
    %c0_21 = arith.constant 0 : index
    %40 = vector.load %arg2[%c0_20, %c0_21] : memref<128x512xf32, #tpu.memory_space<vmem>>, vector<128x512xf32>
    %cst_22 = arith.constant dense<0.000000e+00> : vector<2x512xf32>
    %41 = tpu.matmul %37, %40, %cst_22 {dimension_numbers = #tpu.dot_dimension_numbers<[1], [0], [0], [1], [0, 0, 1, 1], [], []>} : vector<2x128xf32>, vector<128x512xf32>, vector<2x512xf32> -> vector<2x512xf32>
    %42 = arith.addf %39, %41 : vector<2x512xf32>
    %43 = vector.extract_strided_slice %42 {offsets = [0, 0], sizes = [2, 128], strides = [1, 1]} : vector<2x512xf32> to vector<2x128xf32>
    %44 = arith.negf %43 : vector<2x128xf32>
    %45 = math.exp %44 : vector<2x128xf32>
    %cst_23 = arith.constant 1.000000e+00 : f32
    %46 = vector.broadcast %cst_23 : f32 to vector<2x128xf32>
    %47 = arith.addf %46, %45 : vector<2x128xf32>
    %48 = arith.divf %46, %47 : vector<2x128xf32>
    %49 = vector.extract_strided_slice %42 {offsets = [0, 128], sizes = [2, 128], strides = [1, 1]} : vector<2x512xf32> to vector<2x128xf32>
    %50 = arith.negf %49 : vector<2x128xf32>
    %51 = math.exp %50 : vector<2x128xf32>
    %cst_24 = arith.constant 1.000000e+00 : f32
    %52 = vector.broadcast %cst_24 : f32 to vector<2x128xf32>
    %53 = arith.addf %52, %51 : vector<2x128xf32>
    %54 = arith.divf %52, %53 : vector<2x128xf32>
    %55 = vector.extract_strided_slice %42 {offsets = [0, 256], sizes = [2, 128], strides = [1, 1]} : vector<2x512xf32> to vector<2x128xf32>
    %56 = math.tanh %55 : vector<2x128xf32>
    %57 = vector.extract_strided_slice %42 {offsets = [0, 384], sizes = [2, 128], strides = [1, 1]} : vector<2x512xf32> to vector<2x128xf32>
    %58 = arith.negf %57 : vector<2x128xf32>
    %59 = math.exp %58 : vector<2x128xf32>
    %cst_25 = arith.constant 1.000000e+00 : f32
    %60 = vector.broadcast %cst_25 : f32 to vector<2x128xf32>
    %61 = arith.addf %60, %59 : vector<2x128xf32>
    %62 = arith.divf %60, %61 : vector<2x128xf32>
    %63 = arith.mulf %54, %35 : vector<2x128xf32>
    %64 = arith.mulf %48, %56 : vector<2x128xf32>
    %65 = arith.addf %63, %64 : vector<2x128xf32>
    %66 = math.tanh %65 : vector<2x128xf32>
    %67 = arith.mulf %62, %66 : vector<2x128xf32>
    %c2_26 = arith.constant 2 : index
    %c0_27 = arith.constant 0 : index
    %68 = vector.load %arg16[%c2_26, %c0_27] : memref<16x128xf32, #tpu.memory_space<vmem>>, vector<2x128xf32>
    tpu.vector_store %arg16[%c2_26, %c0_27], %67 {strides = array<i32>} : memref<16x128xf32, #tpu.memory_space<vmem>>, vector<2x128xf32>,
    %c4 = arith.constant 4 : index
    %c0_28 = arith.constant 0 : index
    %69 = vector.load %arg17[%c4, %c0_28] : memref<16x512xf32, #tpu.memory_space<vmem>>, vector<2x512xf32>
    %c0_29 = arith.constant 0 : index
    %c0_30 = arith.constant 0 : index
    %70 = vector.load %arg2[%c0_29, %c0_30] : memref<128x512xf32, #tpu.memory_space<vmem>>, vector<128x512xf32>
    %cst_31 = arith.constant dense<0.000000e+00> : vector<2x512xf32>
    %71 = tpu.matmul %67, %70, %cst_31 {dimension_numbers = #tpu.dot_dimension_numbers<[1], [0], [0], [1], [0, 0, 1, 1], [], []>} : vector<2x128xf32>, vector<128x512xf32>, vector<2x512xf32> -> vector<2x512xf32>
    %72 = arith.addf %69, %71 : vector<2x512xf32>
    %73 = vector.extract_strided_slice %72 {offsets = [0, 0], sizes = [2, 128], strides = [1, 1]} : vector<2x512xf32> to vector<2x128xf32>
    %74 = arith.negf %73 : vector<2x128xf32>
    %75 = math.exp %74 : vector<2x128xf32>
    %cst_32 = arith.constant 1.000000e+00 : f32
    %76 = vector.broadcast %cst_32 : f32 to vector<2x128xf32>
    %77 = arith.addf %76, %75 : vector<2x128xf32>
    %78 = arith.divf %76, %77 : vector<2x128xf32>
    %79 = vector.extract_strided_slice %72 {offsets = [0, 128], sizes = [2, 128], strides = [1, 1]} : vector<2x512xf32> to vector<2x128xf32>
    %80 = arith.negf %79 : vector<2x128xf32>
    %81 = math.exp %80 : vector<2x128xf32>
    %cst_33 = arith.constant 1.000000e+00 : f32
    %82 = vector.broadcast %cst_33 : f32 to vector<2x128xf32>
    %83 = arith.addf %82, %81 : vector<2x128xf32>
    %84 = arith.divf %82, %83 : vector<2x128xf32>
    %85 = vector.extract_strided_slice %72 {offsets = [0, 256], sizes = [2, 128], strides = [1, 1]} : vector<2x512xf32> to vector<2x128xf32>
    %86 = math.tanh %85 : vector<2x128xf32>
    %87 = vector.extract_strided_slice %72 {offsets = [0, 384], sizes = [2, 128], strides = [1, 1]} : vector<2x512xf32> to vector<2x128xf32>
    %88 = arith.negf %87 : vector<2x128xf32>
    %89 = math.exp %88 : vector<2x128xf32>
    %cst_34 = arith.constant 1.000000e+00 : f32
    %90 = vector.broadcast %cst_34 : f32 to vector<2x128xf32>
    %91 = arith.addf %90, %89 : vector<2x128xf32>
    %92 = arith.divf %90, %91 : vector<2x128xf32>
    %93 = arith.mulf %84, %65 : vector<2x128xf32>
    %94 = arith.mulf %78, %86 : vector<2x128xf32>
    %95 = arith.addf %93, %94 : vector<2x128xf32>
    %96 = math.tanh %95 : vector<2x128xf32>
    %97 = arith.mulf %92, %96 : vector<2x128xf32>
    %c4_35 = arith.constant 4 : index
    %c0_36 = arith.constant 0 : index
    %98 = vector.load %arg16[%c4_35, %c0_36] : memref<16x128xf32, #tpu.memory_space<vmem>>, vector<2x128xf32>
    tpu.vector_store %arg16[%c4_35, %c0_36], %97 {strides = array<i32>} : memref<16x128xf32, #tpu.memory_space<vmem>>, vector<2x128xf32>,
    %c6 = arith.constant 6 : index
    %c0_37 = arith.constant 0 : index
    %99 = vector.load %arg17[%c6, %c0_37] : memref<16x512xf32, #tpu.memory_space<vmem>>, vector<2x512xf32>
    %c0_38 = arith.constant 0 : index
    %c0_39 = arith.constant 0 : index
    %100 = vector.load %arg2[%c0_38, %c0_39] : memref<128x512xf32, #tpu.memory_space<vmem>>, vector<128x512xf32>
    %cst_40 = arith.constant dense<0.000000e+00> : vector<2x512xf32>
    %101 = tpu.matmul %97, %100, %cst_40 {dimension_numbers = #tpu.dot_dimension_numbers<[1], [0], [0], [1], [0, 0, 1, 1], [], []>} : vector<2x128xf32>, vector<128x512xf32>, vector<2x512xf32> -> vector<2x512xf32>
    %102 = arith.addf %99, %101 : vector<2x512xf32>
    %103 = vector.extract_strided_slice %102 {offsets = [0, 0], sizes = [2, 128], strides = [1, 1]} : vector<2x512xf32> to vector<2x128xf32>
    %104 = arith.negf %103 : vector<2x128xf32>
    %105 = math.exp %104 : vector<2x128xf32>
    %cst_41 = arith.constant 1.000000e+00 : f32
    %106 = vector.broadcast %cst_41 : f32 to vector<2x128xf32>
    %107 = arith.addf %106, %105 : vector<2x128xf32>
    %108 = arith.divf %106, %107 : vector<2x128xf32>
    %109 = vector.extract_strided_slice %102 {offsets = [0, 128], sizes = [2, 128], strides = [1, 1]} : vector<2x512xf32> to vector<2x128xf32>
    %110 = arith.negf %109 : vector<2x128xf32>
    %111 = math.exp %110 : vector<2x128xf32>
    %cst_42 = arith.constant 1.000000e+00 : f32
    %112 = vector.broadcast %cst_42 : f32 to vector<2x128xf32>
    %113 = arith.addf %112, %111 : vector<2x128xf32>
    %114 = arith.divf %112, %113 : vector<2x128xf32>
    %115 = vector.extract_strided_slice %102 {offsets = [0, 256], sizes = [2, 128], strides = [1, 1]} : vector<2x512xf32> to vector<2x128xf32>
    %116 = math.tanh %115 : vector<2x128xf32>
    %117 = vector.extract_strided_slice %102 {offsets = [0, 384], sizes = [2, 128], strides = [1, 1]} : vector<2x512xf32> to vector<2x128xf32>
    %118 = arith.negf %117 : vector<2x128xf32>
    %119 = math.exp %118 : vector<2x128xf32>
    %cst_43 = arith.constant 1.000000e+00 : f32
    %120 = vector.broadcast %cst_43 : f32 to vector<2x128xf32>
    %121 = arith.addf %120, %119 : vector<2x128xf32>
    %122 = arith.divf %120, %121 : vector<2x128xf32>
    %123 = arith.mulf %114, %95 : vector<2x128xf32>
    %124 = arith.mulf %108, %116 : vector<2x128xf32>
    %125 = arith.addf %123, %124 : vector<2x128xf32>
    %126 = math.tanh %125 : vector<2x128xf32>
    %127 = arith.mulf %122, %126 : vector<2x128xf32>
    %c6_44 = arith.constant 6 : index
    %c0_45 = arith.constant 0 : index
    %128 = vector.load %arg16[%c6_44, %c0_45] : memref<16x128xf32, #tpu.memory_space<vmem>>, vector<2x128xf32>
    tpu.vector_store %arg16[%c6_44, %c0_45], %127 {strides = array<i32>} : memref<16x128xf32, #tpu.memory_space<vmem>>, vector<2x128xf32>,
    %c8 = arith.constant 8 : index
    %c0_46 = arith.constant 0 : index
    %129 = vector.load %arg17[%c8, %c0_46] : memref<16x512xf32, #tpu.memory_space<vmem>>, vector<2x512xf32>
    %c0_47 = arith.constant 0 : index
    %c0_48 = arith.constant 0 : index
    %130 = vector.load %arg2[%c0_47, %c0_48] : memref<128x512xf32, #tpu.memory_space<vmem>>, vector<128x512xf32>
    %cst_49 = arith.constant dense<0.000000e+00> : vector<2x512xf32>
    %131 = tpu.matmul %127, %130, %cst_49 {dimension_numbers = #tpu.dot_dimension_numbers<[1], [0], [0], [1], [0, 0, 1, 1], [], []>} : vector<2x128xf32>, vector<128x512xf32>, vector<2x512xf32> -> vector<2x512xf32>
    %132 = arith.addf %129, %131 : vector<2x512xf32>
    %133 = vector.extract_strided_slice %132 {offsets = [0, 0], sizes = [2, 128], strides = [1, 1]} : vector<2x512xf32> to vector<2x128xf32>
    %134 = arith.negf %133 : vector<2x128xf32>
    %135 = math.exp %134 : vector<2x128xf32>
    %cst_50 = arith.constant 1.000000e+00 : f32
    %136 = vector.broadcast %cst_50 : f32 to vector<2x128xf32>
    %137 = arith.addf %136, %135 : vector<2x128xf32>
    %138 = arith.divf %136, %137 : vector<2x128xf32>
    %139 = vector.extract_strided_slice %132 {offsets = [0, 128], sizes = [2, 128], strides = [1, 1]} : vector<2x512xf32> to vector<2x128xf32>
    %140 = arith.negf %139 : vector<2x128xf32>
    %141 = math.exp %140 : vector<2x128xf32>
    %cst_51 = arith.constant 1.000000e+00 : f32
    %142 = vector.broadcast %cst_51 : f32 to vector<2x128xf32>
    %143 = arith.addf %142, %141 : vector<2x128xf32>
    %144 = arith.divf %142, %143 : vector<2x128xf32>
    %145 = vector.extract_strided_slice %132 {offsets = [0, 256], sizes = [2, 128], strides = [1, 1]} : vector<2x512xf32> to vector<2x128xf32>
    %146 = math.tanh %145 : vector<2x128xf32>
    %147 = vector.extract_strided_slice %132 {offsets = [0, 384], sizes = [2, 128], strides = [1, 1]} : vector<2x512xf32> to vector<2x128xf32>
    %148 = arith.negf %147 : vector<2x128xf32>
    %149 = math.exp %148 : vector<2x128xf32>
    %cst_52 = arith.constant 1.000000e+00 : f32
    %150 = vector.broadcast %cst_52 : f32 to vector<2x128xf32>
    %151 = arith.addf %150, %149 : vector<2x128xf32>
    %152 = arith.divf %150, %151 : vector<2x128xf32>
    %153 = arith.mulf %144, %125 : vector<2x128xf32>
    %154 = arith.mulf %138, %146 : vector<2x128xf32>
    %155 = arith.addf %153, %154 : vector<2x128xf32>
    %156 = math.tanh %155 : vector<2x128xf32>
    %157 = arith.mulf %152, %156 : vector<2x128xf32>
    %c8_53 = arith.constant 8 : index
    %c0_54 = arith.constant 0 : index
    %158 = vector.load %arg16[%c8_53, %c0_54] : memref<16x128xf32, #tpu.memory_space<vmem>>, vector<2x128xf32>
    tpu.vector_store %arg16[%c8_53, %c0_54], %157 {strides = array<i32>} : memref<16x128xf32, #tpu.memory_space<vmem>>, vector<2x128xf32>,
    %c10 = arith.constant 10 : index
    %c0_55 = arith.constant 0 : index
    %159 = vector.load %arg17[%c10, %c0_55] : memref<16x512xf32, #tpu.memory_space<vmem>>, vector<2x512xf32>
    %c0_56 = arith.constant 0 : index
    %c0_57 = arith.constant 0 : index
    %160 = vector.load %arg2[%c0_56, %c0_57] : memref<128x512xf32, #tpu.memory_space<vmem>>, vector<128x512xf32>
    %cst_58 = arith.constant dense<0.000000e+00> : vector<2x512xf32>
    %161 = tpu.matmul %157, %160, %cst_58 {dimension_numbers = #tpu.dot_dimension_numbers<[1], [0], [0], [1], [0, 0, 1, 1], [], []>} : vector<2x128xf32>, vector<128x512xf32>, vector<2x512xf32> -> vector<2x512xf32>
    %162 = arith.addf %159, %161 : vector<2x512xf32>
    %163 = vector.extract_strided_slice %162 {offsets = [0, 0], sizes = [2, 128], strides = [1, 1]} : vector<2x512xf32> to vector<2x128xf32>
    %164 = arith.negf %163 : vector<2x128xf32>
    %165 = math.exp %164 : vector<2x128xf32>
    %cst_59 = arith.constant 1.000000e+00 : f32
    %166 = vector.broadcast %cst_59 : f32 to vector<2x128xf32>
    %167 = arith.addf %166, %165 : vector<2x128xf32>
    %168 = arith.divf %166, %167 : vector<2x128xf32>
    %169 = vector.extract_strided_slice %162 {offsets = [0, 128], sizes = [2, 128], strides = [1, 1]} : vector<2x512xf32> to vector<2x128xf32>
    %170 = arith.negf %169 : vector<2x128xf32>
    %171 = math.exp %170 : vector<2x128xf32>
    %cst_60 = arith.constant 1.000000e+00 : f32
    %172 = vector.broadcast %cst_60 : f32 to vector<2x128xf32>
    %173 = arith.addf %172, %171 : vector<2x128xf32>
    %174 = arith.divf %172, %173 : vector<2x128xf32>
    %175 = vector.extract_strided_slice %162 {offsets = [0, 256], sizes = [2, 128], strides = [1, 1]} : vector<2x512xf32> to vector<2x128xf32>
    %176 = math.tanh %175 : vector<2x128xf32>
    %177 = vector.extract_strided_slice %162 {offsets = [0, 384], sizes = [2, 128], strides = [1, 1]} : vector<2x512xf32> to vector<2x128xf32>
    %178 = arith.negf %177 : vector<2x128xf32>
    %179 = math.exp %178 : vector<2x128xf32>
    %cst_61 = arith.constant 1.000000e+00 : f32
    %180 = vector.broadcast %cst_61 : f32 to vector<2x128xf32>
    %181 = arith.addf %180, %179 : vector<2x128xf32>
    %182 = arith.divf %180, %181 : vector<2x128xf32>
    %183 = arith.mulf %174, %155 : vector<2x128xf32>
    %184 = arith.mulf %168, %176 : vector<2x128xf32>
    %185 = arith.addf %183, %184 : vector<2x128xf32>
    %186 = math.tanh %185 : vector<2x128xf32>
    %187 = arith.mulf %182, %186 : vector<2x128xf32>
    %c10_62 = arith.constant 10 : index
    %c0_63 = arith.constant 0 : index
    %188 = vector.load %arg16[%c10_62, %c0_63] : memref<16x128xf32, #tpu.memory_space<vmem>>, vector<2x128xf32>
    tpu.vector_store %arg16[%c10_62, %c0_63], %187 {strides = array<i32>} : memref<16x128xf32, #tpu.memory_space<vmem>>, vector<2x128xf32>,
    %c12 = arith.constant 12 : index
    %c0_64 = arith.constant 0 : index
    %189 = vector.load %arg17[%c12, %c0_64] : memref<16x512xf32, #tpu.memory_space<vmem>>, vector<2x512xf32>
    %c0_65 = arith.constant 0 : index
    %c0_66 = arith.constant 0 : index
    %190 = vector.load %arg2[%c0_65, %c0_66] : memref<128x512xf32, #tpu.memory_space<vmem>>, vector<128x512xf32>
    %cst_67 = arith.constant dense<0.000000e+00> : vector<2x512xf32>
    %191 = tpu.matmul %187, %190, %cst_67 {dimension_numbers = #tpu.dot_dimension_numbers<[1], [0], [0], [1], [0, 0, 1, 1], [], []>} : vector<2x128xf32>, vector<128x512xf32>, vector<2x512xf32> -> vector<2x512xf32>
    %192 = arith.addf %189, %191 : vector<2x512xf32>
    %193 = vector.extract_strided_slice %192 {offsets = [0, 0], sizes = [2, 128], strides = [1, 1]} : vector<2x512xf32> to vector<2x128xf32>
    %194 = arith.negf %193 : vector<2x128xf32>
    %195 = math.exp %194 : vector<2x128xf32>
    %cst_68 = arith.constant 1.000000e+00 : f32
    %196 = vector.broadcast %cst_68 : f32 to vector<2x128xf32>
    %197 = arith.addf %196, %195 : vector<2x128xf32>
    %198 = arith.divf %196, %197 : vector<2x128xf32>
    %199 = vector.extract_strided_slice %192 {offsets = [0, 128], sizes = [2, 128], strides = [1, 1]} : vector<2x512xf32> to vector<2x128xf32>
    %200 = arith.negf %199 : vector<2x128xf32>
    %201 = math.exp %200 : vector<2x128xf32>
    %cst_69 = arith.constant 1.000000e+00 : f32
    %202 = vector.broadcast %cst_69 : f32 to vector<2x128xf32>
    %203 = arith.addf %202, %201 : vector<2x128xf32>
    %204 = arith.divf %202, %203 : vector<2x128xf32>
    %205 = vector.extract_strided_slice %192 {offsets = [0, 256], sizes = [2, 128], strides = [1, 1]} : vector<2x512xf32> to vector<2x128xf32>
    %206 = math.tanh %205 : vector<2x128xf32>
    %207 = vector.extract_strided_slice %192 {offsets = [0, 384], sizes = [2, 128], strides = [1, 1]} : vector<2x512xf32> to vector<2x128xf32>
    %208 = arith.negf %207 : vector<2x128xf32>
    %209 = math.exp %208 : vector<2x128xf32>
    %cst_70 = arith.constant 1.000000e+00 : f32
    %210 = vector.broadcast %cst_70 : f32 to vector<2x128xf32>
    %211 = arith.addf %210, %209 : vector<2x128xf32>
    %212 = arith.divf %210, %211 : vector<2x128xf32>
    %213 = arith.mulf %204, %185 : vector<2x128xf32>
    %214 = arith.mulf %198, %206 : vector<2x128xf32>
    %215 = arith.addf %213, %214 : vector<2x128xf32>
    %216 = math.tanh %215 : vector<2x128xf32>
    %217 = arith.mulf %212, %216 : vector<2x128xf32>
    %c12_71 = arith.constant 12 : index
    %c0_72 = arith.constant 0 : index
    %218 = vector.load %arg16[%c12_71, %c0_72] : memref<16x128xf32, #tpu.memory_space<vmem>>, vector<2x128xf32>
    tpu.vector_store %arg16[%c12_71, %c0_72], %217 {strides = array<i32>} : memref<16x128xf32, #tpu.memory_space<vmem>>, vector<2x128xf32>,
    %c14 = arith.constant 14 : index
    %c0_73 = arith.constant 0 : index
    %219 = vector.load %arg17[%c14, %c0_73] : memref<16x512xf32, #tpu.memory_space<vmem>>, vector<2x512xf32>
    %c0_74 = arith.constant 0 : index
    %c0_75 = arith.constant 0 : index
    %220 = vector.load %arg2[%c0_74, %c0_75] : memref<128x512xf32, #tpu.memory_space<vmem>>, vector<128x512xf32>
    %cst_76 = arith.constant dense<0.000000e+00> : vector<2x512xf32>
    %221 = tpu.matmul %217, %220, %cst_76 {dimension_numbers = #tpu.dot_dimension_numbers<[1], [0], [0], [1], [0, 0, 1, 1], [], []>} : vector<2x128xf32>, vector<128x512xf32>, vector<2x512xf32> -> vector<2x512xf32>
    %222 = arith.addf %219, %221 : vector<2x512xf32>
    %223 = vector.extract_strided_slice %222 {offsets = [0, 0], sizes = [2, 128], strides = [1, 1]} : vector<2x512xf32> to vector<2x128xf32>
    %224 = arith.negf %223 : vector<2x128xf32>
    %225 = math.exp %224 : vector<2x128xf32>
    %cst_77 = arith.constant 1.000000e+00 : f32
    %226 = vector.broadcast %cst_77 : f32 to vector<2x128xf32>
    %227 = arith.addf %226, %225 : vector<2x128xf32>
    %228 = arith.divf %226, %227 : vector<2x128xf32>
    %229 = vector.extract_strided_slice %222 {offsets = [0, 128], sizes = [2, 128], strides = [1, 1]} : vector<2x512xf32> to vector<2x128xf32>
    %230 = arith.negf %229 : vector<2x128xf32>
    %231 = math.exp %230 : vector<2x128xf32>
    %cst_78 = arith.constant 1.000000e+00 : f32
    %232 = vector.broadcast %cst_78 : f32 to vector<2x128xf32>
    %233 = arith.addf %232, %231 : vector<2x128xf32>
    %234 = arith.divf %232, %233 : vector<2x128xf32>
    %235 = vector.extract_strided_slice %222 {offsets = [0, 256], sizes = [2, 128], strides = [1, 1]} : vector<2x512xf32> to vector<2x128xf32>
    %236 = math.tanh %235 : vector<2x128xf32>
    %237 = vector.extract_strided_slice %222 {offsets = [0, 384], sizes = [2, 128], strides = [1, 1]} : vector<2x512xf32> to vector<2x128xf32>
    %238 = arith.negf %237 : vector<2x128xf32>
    %239 = math.exp %238 : vector<2x128xf32>
    %cst_79 = arith.constant 1.000000e+00 : f32
    %240 = vector.broadcast %cst_79 : f32 to vector<2x128xf32>
    %241 = arith.addf %240, %239 : vector<2x128xf32>
    %242 = arith.divf %240, %241 : vector<2x128xf32>
    %243 = arith.mulf %234, %215 : vector<2x128xf32>
    %244 = arith.mulf %228, %236 : vector<2x128xf32>
    %245 = arith.addf %243, %244 : vector<2x128xf32>
    %246 = math.tanh %245 : vector<2x128xf32>
    %247 = arith.mulf %242, %246 : vector<2x128xf32>
    %c14_80 = arith.constant 14 : index
    %c0_81 = arith.constant 0 : index
    %248 = vector.load %arg16[%c14_80, %c0_81] : memref<16x128xf32, #tpu.memory_space<vmem>>, vector<2x128xf32>
    tpu.vector_store %arg16[%c14_80, %c0_81], %247 {strides = array<i32>} : memref<16x128xf32, #tpu.memory_space<vmem>>, vector<2x128xf32>,
    %c0_82 = arith.constant 0 : index
    %c0_83 = arith.constant 0 : index
    %249 = vector.load %arg16[%c0_82, %c0_83] : memref<16x128xf32, #tpu.memory_space<vmem>>, vector<16x128xf32>
    %c0_84 = arith.constant 0 : index
    %c0_85 = arith.constant 0 : index
    %250 = vector.load %arg4[%c0_84, %c0_85] : memref<128x512xf32, #tpu.memory_space<vmem>>, vector<128x512xf32>
    %cst_86 = arith.constant dense<0.000000e+00> : vector<16x512xf32>
    %251 = tpu.matmul %249, %250, %cst_86 {dimension_numbers = #tpu.dot_dimension_numbers<[1], [0], [0], [1], [0, 0, 1, 1], [], []>} : vector<16x128xf32>, vector<128x512xf32>, vector<16x512xf32> -> vector<16x512xf32>
    %c0_87 = arith.constant 0 : index
    %c0_88 = arith.constant 0 : index
    %252 = vector.load %arg6[%c0_87, %c0_88] : memref<1x512xf32, #tpu.memory_space<vmem>>, vector<1x512xf32>
    %253 = vector.broadcast %252 : vector<1x512xf32> to vector<16x512xf32>
    %254 = arith.addf %251, %253 : vector<16x512xf32>
    %c0_89 = arith.constant 0 : index
    %c0_90 = arith.constant 0 : index
    %255 = vector.load %arg17[%c0_89, %c0_90] : memref<16x512xf32, #tpu.memory_space<vmem>>, vector<16x512xf32>
    tpu.vector_store %arg17[%c0_89, %c0_90], %254 {strides = array<i32>} : memref<16x512xf32, #tpu.memory_space<vmem>>, vector<16x512xf32>,
    %cst_91 = arith.constant 0.000000e+00 : f32
    %256 = vector.broadcast %cst_91 : f32 to vector<2x128xf32>
    %cst_92 = arith.constant 0.000000e+00 : f32
    %257 = vector.broadcast %cst_92 : f32 to vector<2x128xf32>
    %c0_93 = arith.constant 0 : index
    %c0_94 = arith.constant 0 : index
    %258 = vector.load %arg17[%c0_93, %c0_94] : memref<16x512xf32, #tpu.memory_space<vmem>>, vector<2x512xf32>
    %c0_95 = arith.constant 0 : index
    %c0_96 = arith.constant 0 : index
    %259 = vector.load %arg5[%c0_95, %c0_96] : memref<128x512xf32, #tpu.memory_space<vmem>>, vector<128x512xf32>
    %cst_97 = arith.constant dense<0.000000e+00> : vector<2x512xf32>
    %260 = tpu.matmul %256, %259, %cst_97 {dimension_numbers = #tpu.dot_dimension_numbers<[1], [0], [0], [1], [0, 0, 1, 1], [], []>} : vector<2x128xf32>, vector<128x512xf32>, vector<2x512xf32> -> vector<2x512xf32>
    %261 = arith.addf %258, %260 : vector<2x512xf32>
    %262 = vector.extract_strided_slice %261 {offsets = [0, 0], sizes = [2, 128], strides = [1, 1]} : vector<2x512xf32> to vector<2x128xf32>
    %263 = arith.negf %262 : vector<2x128xf32>
    %264 = math.exp %263 : vector<2x128xf32>
    %cst_98 = arith.constant 1.000000e+00 : f32
    %265 = vector.broadcast %cst_98 : f32 to vector<2x128xf32>
    %266 = arith.addf %265, %264 : vector<2x128xf32>
    %267 = arith.divf %265, %266 : vector<2x128xf32>
    %268 = vector.extract_strided_slice %261 {offsets = [0, 128], sizes = [2, 128], strides = [1, 1]} : vector<2x512xf32> to vector<2x128xf32>
    %269 = arith.negf %268 : vector<2x128xf32>
    %270 = math.exp %269 : vector<2x128xf32>
    %cst_99 = arith.constant 1.000000e+00 : f32
    %271 = vector.broadcast %cst_99 : f32 to vector<2x128xf32>
    %272 = arith.addf %271, %270 : vector<2x128xf32>
    %273 = arith.divf %271, %272 : vector<2x128xf32>
    %274 = vector.extract_strided_slice %261 {offsets = [0, 256], sizes = [2, 128], strides = [1, 1]} : vector<2x512xf32> to vector<2x128xf32>
    %275 = math.tanh %274 : vector<2x128xf32>
    %276 = vector.extract_strided_slice %261 {offsets = [0, 384], sizes = [2, 128], strides = [1, 1]} : vector<2x512xf32> to vector<2x128xf32>
    %277 = arith.negf %276 : vector<2x128xf32>
    %278 = math.exp %277 : vector<2x128xf32>
    %cst_100 = arith.constant 1.000000e+00 : f32
    %279 = vector.broadcast %cst_100 : f32 to vector<2x128xf32>
    %280 = arith.addf %279, %278 : vector<2x128xf32>
    %281 = arith.divf %279, %280 : vector<2x128xf32>
    %282 = arith.mulf %273, %257 : vector<2x128xf32>
    %283 = arith.mulf %267, %275 : vector<2x128xf32>
    %284 = arith.addf %282, %283 : vector<2x128xf32>
    %285 = math.tanh %284 : vector<2x128xf32>
    %286 = arith.mulf %281, %285 : vector<2x128xf32>
    %c0_101 = arith.constant 0 : index
    %c0_102 = arith.constant 0 : index
    %287 = vector.load %arg16[%c0_101, %c0_102] : memref<16x128xf32, #tpu.memory_space<vmem>>, vector<2x128xf32>
    tpu.vector_store %arg16[%c0_101, %c0_102], %286 {strides = array<i32>} : memref<16x128xf32, #tpu.memory_space<vmem>>, vector<2x128xf32>,
    %c2_103 = arith.constant 2 : index
    %c0_104 = arith.constant 0 : index
    %288 = vector.load %arg17[%c2_103, %c0_104] : memref<16x512xf32, #tpu.memory_space<vmem>>, vector<2x512xf32>
    %c0_105 = arith.constant 0 : index
    %c0_106 = arith.constant 0 : index
    %289 = vector.load %arg5[%c0_105, %c0_106] : memref<128x512xf32, #tpu.memory_space<vmem>>, vector<128x512xf32>
    %cst_107 = arith.constant dense<0.000000e+00> : vector<2x512xf32>
    %290 = tpu.matmul %286, %289, %cst_107 {dimension_numbers = #tpu.dot_dimension_numbers<[1], [0], [0], [1], [0, 0, 1, 1], [], []>} : vector<2x128xf32>, vector<128x512xf32>, vector<2x512xf32> -> vector<2x512xf32>
    %291 = arith.addf %288, %290 : vector<2x512xf32>
    %292 = vector.extract_strided_slice %291 {offsets = [0, 0], sizes = [2, 128], strides = [1, 1]} : vector<2x512xf32> to vector<2x128xf32>
    %293 = arith.negf %292 : vector<2x128xf32>
    %294 = math.exp %293 : vector<2x128xf32>
    %cst_108 = arith.constant 1.000000e+00 : f32
    %295 = vector.broadcast %cst_108 : f32 to vector<2x128xf32>
    %296 = arith.addf %295, %294 : vector<2x128xf32>
    %297 = arith.divf %295, %296 : vector<2x128xf32>
    %298 = vector.extract_strided_slice %291 {offsets = [0, 128], sizes = [2, 128], strides = [1, 1]} : vector<2x512xf32> to vector<2x128xf32>
    %299 = arith.negf %298 : vector<2x128xf32>
    %300 = math.exp %299 : vector<2x128xf32>
    %cst_109 = arith.constant 1.000000e+00 : f32
    %301 = vector.broadcast %cst_109 : f32 to vector<2x128xf32>
    %302 = arith.addf %301, %300 : vector<2x128xf32>
    %303 = arith.divf %301, %302 : vector<2x128xf32>
    %304 = vector.extract_strided_slice %291 {offsets = [0, 256], sizes = [2, 128], strides = [1, 1]} : vector<2x512xf32> to vector<2x128xf32>
    %305 = math.tanh %304 : vector<2x128xf32>
    %306 = vector.extract_strided_slice %291 {offsets = [0, 384], sizes = [2, 128], strides = [1, 1]} : vector<2x512xf32> to vector<2x128xf32>
    %307 = arith.negf %306 : vector<2x128xf32>
    %308 = math.exp %307 : vector<2x128xf32>
    %cst_110 = arith.constant 1.000000e+00 : f32
    %309 = vector.broadcast %cst_110 : f32 to vector<2x128xf32>
    %310 = arith.addf %309, %308 : vector<2x128xf32>
    %311 = arith.divf %309, %310 : vector<2x128xf32>
    %312 = arith.mulf %303, %284 : vector<2x128xf32>
    %313 = arith.mulf %297, %305 : vector<2x128xf32>
    %314 = arith.addf %312, %313 : vector<2x128xf32>
    %315 = math.tanh %314 : vector<2x128xf32>
    %316 = arith.mulf %311, %315 : vector<2x128xf32>
    %c2_111 = arith.constant 2 : index
    %c0_112 = arith.constant 0 : index
    %317 = vector.load %arg16[%c2_111, %c0_112] : memref<16x128xf32, #tpu.memory_space<vmem>>, vector<2x128xf32>
    tpu.vector_store %arg16[%c2_111, %c0_112], %316 {strides = array<i32>} : memref<16x128xf32, #tpu.memory_space<vmem>>, vector<2x128xf32>,
    %c4_113 = arith.constant 4 : index
    %c0_114 = arith.constant 0 : index
    %318 = vector.load %arg17[%c4_113, %c0_114] : memref<16x512xf32, #tpu.memory_space<vmem>>, vector<2x512xf32>
    %c0_115 = arith.constant 0 : index
    %c0_116 = arith.constant 0 : index
    %319 = vector.load %arg5[%c0_115, %c0_116] : memref<128x512xf32, #tpu.memory_space<vmem>>, vector<128x512xf32>
    %cst_117 = arith.constant dense<0.000000e+00> : vector<2x512xf32>
    %320 = tpu.matmul %316, %319, %cst_117 {dimension_numbers = #tpu.dot_dimension_numbers<[1], [0], [0], [1], [0, 0, 1, 1], [], []>} : vector<2x128xf32>, vector<128x512xf32>, vector<2x512xf32> -> vector<2x512xf32>
    %321 = arith.addf %318, %320 : vector<2x512xf32>
    %322 = vector.extract_strided_slice %321 {offsets = [0, 0], sizes = [2, 128], strides = [1, 1]} : vector<2x512xf32> to vector<2x128xf32>
    %323 = arith.negf %322 : vector<2x128xf32>
    %324 = math.exp %323 : vector<2x128xf32>
    %cst_118 = arith.constant 1.000000e+00 : f32
    %325 = vector.broadcast %cst_118 : f32 to vector<2x128xf32>
    %326 = arith.addf %325, %324 : vector<2x128xf32>
    %327 = arith.divf %325, %326 : vector<2x128xf32>
    %328 = vector.extract_strided_slice %321 {offsets = [0, 128], sizes = [2, 128], strides = [1, 1]} : vector<2x512xf32> to vector<2x128xf32>
    %329 = arith.negf %328 : vector<2x128xf32>
    %330 = math.exp %329 : vector<2x128xf32>
    %cst_119 = arith.constant 1.000000e+00 : f32
    %331 = vector.broadcast %cst_119 : f32 to vector<2x128xf32>
    %332 = arith.addf %331, %330 : vector<2x128xf32>
    %333 = arith.divf %331, %332 : vector<2x128xf32>
    %334 = vector.extract_strided_slice %321 {offsets = [0, 256], sizes = [2, 128], strides = [1, 1]} : vector<2x512xf32> to vector<2x128xf32>
    %335 = math.tanh %334 : vector<2x128xf32>
    %336 = vector.extract_strided_slice %321 {offsets = [0, 384], sizes = [2, 128], strides = [1, 1]} : vector<2x512xf32> to vector<2x128xf32>
    %337 = arith.negf %336 : vector<2x128xf32>
    %338 = math.exp %337 : vector<2x128xf32>
    %cst_120 = arith.constant 1.000000e+00 : f32
    %339 = vector.broadcast %cst_120 : f32 to vector<2x128xf32>
    %340 = arith.addf %339, %338 : vector<2x128xf32>
    %341 = arith.divf %339, %340 : vector<2x128xf32>
    %342 = arith.mulf %333, %314 : vector<2x128xf32>
    %343 = arith.mulf %327, %335 : vector<2x128xf32>
    %344 = arith.addf %342, %343 : vector<2x128xf32>
    %345 = math.tanh %344 : vector<2x128xf32>
    %346 = arith.mulf %341, %345 : vector<2x128xf32>
    %c4_121 = arith.constant 4 : index
    %c0_122 = arith.constant 0 : index
    %347 = vector.load %arg16[%c4_121, %c0_122] : memref<16x128xf32, #tpu.memory_space<vmem>>, vector<2x128xf32>
    tpu.vector_store %arg16[%c4_121, %c0_122], %346 {strides = array<i32>} : memref<16x128xf32, #tpu.memory_space<vmem>>, vector<2x128xf32>,
    %c6_123 = arith.constant 6 : index
    %c0_124 = arith.constant 0 : index
    %348 = vector.load %arg17[%c6_123, %c0_124] : memref<16x512xf32, #tpu.memory_space<vmem>>, vector<2x512xf32>
    %c0_125 = arith.constant 0 : index
    %c0_126 = arith.constant 0 : index
    %349 = vector.load %arg5[%c0_125, %c0_126] : memref<128x512xf32, #tpu.memory_space<vmem>>, vector<128x512xf32>
    %cst_127 = arith.constant dense<0.000000e+00> : vector<2x512xf32>
    %350 = tpu.matmul %346, %349, %cst_127 {dimension_numbers = #tpu.dot_dimension_numbers<[1], [0], [0], [1], [0, 0, 1, 1], [], []>} : vector<2x128xf32>, vector<128x512xf32>, vector<2x512xf32> -> vector<2x512xf32>
    %351 = arith.addf %348, %350 : vector<2x512xf32>
    %352 = vector.extract_strided_slice %351 {offsets = [0, 0], sizes = [2, 128], strides = [1, 1]} : vector<2x512xf32> to vector<2x128xf32>
    %353 = arith.negf %352 : vector<2x128xf32>
    %354 = math.exp %353 : vector<2x128xf32>
    %cst_128 = arith.constant 1.000000e+00 : f32
    %355 = vector.broadcast %cst_128 : f32 to vector<2x128xf32>
    %356 = arith.addf %355, %354 : vector<2x128xf32>
    %357 = arith.divf %355, %356 : vector<2x128xf32>
    %358 = vector.extract_strided_slice %351 {offsets = [0, 128], sizes = [2, 128], strides = [1, 1]} : vector<2x512xf32> to vector<2x128xf32>
    %359 = arith.negf %358 : vector<2x128xf32>
    %360 = math.exp %359 : vector<2x128xf32>
    %cst_129 = arith.constant 1.000000e+00 : f32
    %361 = vector.broadcast %cst_129 : f32 to vector<2x128xf32>
    %362 = arith.addf %361, %360 : vector<2x128xf32>
    %363 = arith.divf %361, %362 : vector<2x128xf32>
    %364 = vector.extract_strided_slice %351 {offsets = [0, 256], sizes = [2, 128], strides = [1, 1]} : vector<2x512xf32> to vector<2x128xf32>
    %365 = math.tanh %364 : vector<2x128xf32>
    %366 = vector.extract_strided_slice %351 {offsets = [0, 384], sizes = [2, 128], strides = [1, 1]} : vector<2x512xf32> to vector<2x128xf32>
    %367 = arith.negf %366 : vector<2x128xf32>
    %368 = math.exp %367 : vector<2x128xf32>
    %cst_130 = arith.constant 1.000000e+00 : f32
    %369 = vector.broadcast %cst_130 : f32 to vector<2x128xf32>
    %370 = arith.addf %369, %368 : vector<2x128xf32>
    %371 = arith.divf %369, %370 : vector<2x128xf32>
    %372 = arith.mulf %363, %344 : vector<2x128xf32>
    %373 = arith.mulf %357, %365 : vector<2x128xf32>
    %374 = arith.addf %372, %373 : vector<2x128xf32>
    %375 = math.tanh %374 : vector<2x128xf32>
    %376 = arith.mulf %371, %375 : vector<2x128xf32>
    %c6_131 = arith.constant 6 : index
    %c0_132 = arith.constant 0 : index
    %377 = vector.load %arg16[%c6_131, %c0_132] : memref<16x128xf32, #tpu.memory_space<vmem>>, vector<2x128xf32>
    tpu.vector_store %arg16[%c6_131, %c0_132], %376 {strides = array<i32>} : memref<16x128xf32, #tpu.memory_space<vmem>>, vector<2x128xf32>,
    %c8_133 = arith.constant 8 : index
    %c0_134 = arith.constant 0 : index
    %378 = vector.load %arg17[%c8_133, %c0_134] : memref<16x512xf32, #tpu.memory_space<vmem>>, vector<2x512xf32>
    %c0_135 = arith.constant 0 : index
    %c0_136 = arith.constant 0 : index
    %379 = vector.load %arg5[%c0_135, %c0_136] : memref<128x512xf32, #tpu.memory_space<vmem>>, vector<128x512xf32>
    %cst_137 = arith.constant dense<0.000000e+00> : vector<2x512xf32>
    %380 = tpu.matmul %376, %379, %cst_137 {dimension_numbers = #tpu.dot_dimension_numbers<[1], [0], [0], [1], [0, 0, 1, 1], [], []>} : vector<2x128xf32>, vector<128x512xf32>, vector<2x512xf32> -> vector<2x512xf32>
    %381 = arith.addf %378, %380 : vector<2x512xf32>
    %382 = vector.extract_strided_slice %381 {offsets = [0, 0], sizes = [2, 128], strides = [1, 1]} : vector<2x512xf32> to vector<2x128xf32>
    %383 = arith.negf %382 : vector<2x128xf32>
    %384 = math.exp %383 : vector<2x128xf32>
    %cst_138 = arith.constant 1.000000e+00 : f32
    %385 = vector.broadcast %cst_138 : f32 to vector<2x128xf32>
    %386 = arith.addf %385, %384 : vector<2x128xf32>
    %387 = arith.divf %385, %386 : vector<2x128xf32>
    %388 = vector.extract_strided_slice %381 {offsets = [0, 128], sizes = [2, 128], strides = [1, 1]} : vector<2x512xf32> to vector<2x128xf32>
    %389 = arith.negf %388 : vector<2x128xf32>
    %390 = math.exp %389 : vector<2x128xf32>
    %cst_139 = arith.constant 1.000000e+00 : f32
    %391 = vector.broadcast %cst_139 : f32 to vector<2x128xf32>
    %392 = arith.addf %391, %390 : vector<2x128xf32>
    %393 = arith.divf %391, %392 : vector<2x128xf32>
    %394 = vector.extract_strided_slice %381 {offsets = [0, 256], sizes = [2, 128], strides = [1, 1]} : vector<2x512xf32> to vector<2x128xf32>
    %395 = math.tanh %394 : vector<2x128xf32>
    %396 = vector.extract_strided_slice %381 {offsets = [0, 384], sizes = [2, 128], strides = [1, 1]} : vector<2x512xf32> to vector<2x128xf32>
    %397 = arith.negf %396 : vector<2x128xf32>
    %398 = math.exp %397 : vector<2x128xf32>
    %cst_140 = arith.constant 1.000000e+00 : f32
    %399 = vector.broadcast %cst_140 : f32 to vector<2x128xf32>
    %400 = arith.addf %399, %398 : vector<2x128xf32>
    %401 = arith.divf %399, %400 : vector<2x128xf32>
    %402 = arith.mulf %393, %374 : vector<2x128xf32>
    %403 = arith.mulf %387, %395 : vector<2x128xf32>
    %404 = arith.addf %402, %403 : vector<2x128xf32>
    %405 = math.tanh %404 : vector<2x128xf32>
    %406 = arith.mulf %401, %405 : vector<2x128xf32>
    %c8_141 = arith.constant 8 : index
    %c0_142 = arith.constant 0 : index
    %407 = vector.load %arg16[%c8_141, %c0_142] : memref<16x128xf32, #tpu.memory_space<vmem>>, vector<2x128xf32>
    tpu.vector_store %arg16[%c8_141, %c0_142], %406 {strides = array<i32>} : memref<16x128xf32, #tpu.memory_space<vmem>>, vector<2x128xf32>,
    %c10_143 = arith.constant 10 : index
    %c0_144 = arith.constant 0 : index
    %408 = vector.load %arg17[%c10_143, %c0_144] : memref<16x512xf32, #tpu.memory_space<vmem>>, vector<2x512xf32>
    %c0_145 = arith.constant 0 : index
    %c0_146 = arith.constant 0 : index
    %409 = vector.load %arg5[%c0_145, %c0_146] : memref<128x512xf32, #tpu.memory_space<vmem>>, vector<128x512xf32>
    %cst_147 = arith.constant dense<0.000000e+00> : vector<2x512xf32>
    %410 = tpu.matmul %406, %409, %cst_147 {dimension_numbers = #tpu.dot_dimension_numbers<[1], [0], [0], [1], [0, 0, 1, 1], [], []>} : vector<2x128xf32>, vector<128x512xf32>, vector<2x512xf32> -> vector<2x512xf32>
    %411 = arith.addf %408, %410 : vector<2x512xf32>
    %412 = vector.extract_strided_slice %411 {offsets = [0, 0], sizes = [2, 128], strides = [1, 1]} : vector<2x512xf32> to vector<2x128xf32>
    %413 = arith.negf %412 : vector<2x128xf32>
    %414 = math.exp %413 : vector<2x128xf32>
    %cst_148 = arith.constant 1.000000e+00 : f32
    %415 = vector.broadcast %cst_148 : f32 to vector<2x128xf32>
    %416 = arith.addf %415, %414 : vector<2x128xf32>
    %417 = arith.divf %415, %416 : vector<2x128xf32>
    %418 = vector.extract_strided_slice %411 {offsets = [0, 128], sizes = [2, 128], strides = [1, 1]} : vector<2x512xf32> to vector<2x128xf32>
    %419 = arith.negf %418 : vector<2x128xf32>
    %420 = math.exp %419 : vector<2x128xf32>
    %cst_149 = arith.constant 1.000000e+00 : f32
    %421 = vector.broadcast %cst_149 : f32 to vector<2x128xf32>
    %422 = arith.addf %421, %420 : vector<2x128xf32>
    %423 = arith.divf %421, %422 : vector<2x128xf32>
    %424 = vector.extract_strided_slice %411 {offsets = [0, 256], sizes = [2, 128], strides = [1, 1]} : vector<2x512xf32> to vector<2x128xf32>
    %425 = math.tanh %424 : vector<2x128xf32>
    %426 = vector.extract_strided_slice %411 {offsets = [0, 384], sizes = [2, 128], strides = [1, 1]} : vector<2x512xf32> to vector<2x128xf32>
    %427 = arith.negf %426 : vector<2x128xf32>
    %428 = math.exp %427 : vector<2x128xf32>
    %cst_150 = arith.constant 1.000000e+00 : f32
    %429 = vector.broadcast %cst_150 : f32 to vector<2x128xf32>
    %430 = arith.addf %429, %428 : vector<2x128xf32>
    %431 = arith.divf %429, %430 : vector<2x128xf32>
    %432 = arith.mulf %423, %404 : vector<2x128xf32>
    %433 = arith.mulf %417, %425 : vector<2x128xf32>
    %434 = arith.addf %432, %433 : vector<2x128xf32>
    %435 = math.tanh %434 : vector<2x128xf32>
    %436 = arith.mulf %431, %435 : vector<2x128xf32>
    %c10_151 = arith.constant 10 : index
    %c0_152 = arith.constant 0 : index
    %437 = vector.load %arg16[%c10_151, %c0_152] : memref<16x128xf32, #tpu.memory_space<vmem>>, vector<2x128xf32>
    tpu.vector_store %arg16[%c10_151, %c0_152], %436 {strides = array<i32>} : memref<16x128xf32, #tpu.memory_space<vmem>>, vector<2x128xf32>,
    %c12_153 = arith.constant 12 : index
    %c0_154 = arith.constant 0 : index
    %438 = vector.load %arg17[%c12_153, %c0_154] : memref<16x512xf32, #tpu.memory_space<vmem>>, vector<2x512xf32>
    %c0_155 = arith.constant 0 : index
    %c0_156 = arith.constant 0 : index
    %439 = vector.load %arg5[%c0_155, %c0_156] : memref<128x512xf32, #tpu.memory_space<vmem>>, vector<128x512xf32>
    %cst_157 = arith.constant dense<0.000000e+00> : vector<2x512xf32>
    %440 = tpu.matmul %436, %439, %cst_157 {dimension_numbers = #tpu.dot_dimension_numbers<[1], [0], [0], [1], [0, 0, 1, 1], [], []>} : vector<2x128xf32>, vector<128x512xf32>, vector<2x512xf32> -> vector<2x512xf32>
    %441 = arith.addf %438, %440 : vector<2x512xf32>
    %442 = vector.extract_strided_slice %441 {offsets = [0, 0], sizes = [2, 128], strides = [1, 1]} : vector<2x512xf32> to vector<2x128xf32>
    %443 = arith.negf %442 : vector<2x128xf32>
    %444 = math.exp %443 : vector<2x128xf32>
    %cst_158 = arith.constant 1.000000e+00 : f32
    %445 = vector.broadcast %cst_158 : f32 to vector<2x128xf32>
    %446 = arith.addf %445, %444 : vector<2x128xf32>
    %447 = arith.divf %445, %446 : vector<2x128xf32>
    %448 = vector.extract_strided_slice %441 {offsets = [0, 128], sizes = [2, 128], strides = [1, 1]} : vector<2x512xf32> to vector<2x128xf32>
    %449 = arith.negf %448 : vector<2x128xf32>
    %450 = math.exp %449 : vector<2x128xf32>
    %cst_159 = arith.constant 1.000000e+00 : f32
    %451 = vector.broadcast %cst_159 : f32 to vector<2x128xf32>
    %452 = arith.addf %451, %450 : vector<2x128xf32>
    %453 = arith.divf %451, %452 : vector<2x128xf32>
    %454 = vector.extract_strided_slice %441 {offsets = [0, 256], sizes = [2, 128], strides = [1, 1]} : vector<2x512xf32> to vector<2x128xf32>
    %455 = math.tanh %454 : vector<2x128xf32>
    %456 = vector.extract_strided_slice %441 {offsets = [0, 384], sizes = [2, 128], strides = [1, 1]} : vector<2x512xf32> to vector<2x128xf32>
    %457 = arith.negf %456 : vector<2x128xf32>
    %458 = math.exp %457 : vector<2x128xf32>
    %cst_160 = arith.constant 1.000000e+00 : f32
    %459 = vector.broadcast %cst_160 : f32 to vector<2x128xf32>
    %460 = arith.addf %459, %458 : vector<2x128xf32>
    %461 = arith.divf %459, %460 : vector<2x128xf32>
    %462 = arith.mulf %453, %434 : vector<2x128xf32>
    %463 = arith.mulf %447, %455 : vector<2x128xf32>
    %464 = arith.addf %462, %463 : vector<2x128xf32>
    %465 = math.tanh %464 : vector<2x128xf32>
    %466 = arith.mulf %461, %465 : vector<2x128xf32>
    %c12_161 = arith.constant 12 : index
    %c0_162 = arith.constant 0 : index
    %467 = vector.load %arg16[%c12_161, %c0_162] : memref<16x128xf32, #tpu.memory_space<vmem>>, vector<2x128xf32>
    tpu.vector_store %arg16[%c12_161, %c0_162], %466 {strides = array<i32>} : memref<16x128xf32, #tpu.memory_space<vmem>>, vector<2x128xf32>,
    %c14_163 = arith.constant 14 : index
    %c0_164 = arith.constant 0 : index
    %468 = vector.load %arg17[%c14_163, %c0_164] : memref<16x512xf32, #tpu.memory_space<vmem>>, vector<2x512xf32>
    %c0_165 = arith.constant 0 : index
    %c0_166 = arith.constant 0 : index
    %469 = vector.load %arg5[%c0_165, %c0_166] : memref<128x512xf32, #tpu.memory_space<vmem>>, vector<128x512xf32>
    %cst_167 = arith.constant dense<0.000000e+00> : vector<2x512xf32>
    %470 = tpu.matmul %466, %469, %cst_167 {dimension_numbers = #tpu.dot_dimension_numbers<[1], [0], [0], [1], [0, 0, 1, 1], [], []>} : vector<2x128xf32>, vector<128x512xf32>, vector<2x512xf32> -> vector<2x512xf32>
    %471 = arith.addf %468, %470 : vector<2x512xf32>
    %472 = vector.extract_strided_slice %471 {offsets = [0, 0], sizes = [2, 128], strides = [1, 1]} : vector<2x512xf32> to vector<2x128xf32>
    %473 = arith.negf %472 : vector<2x128xf32>
    %474 = math.exp %473 : vector<2x128xf32>
    %cst_168 = arith.constant 1.000000e+00 : f32
    %475 = vector.broadcast %cst_168 : f32 to vector<2x128xf32>
    %476 = arith.addf %475, %474 : vector<2x128xf32>
    %477 = arith.divf %475, %476 : vector<2x128xf32>
    %478 = vector.extract_strided_slice %471 {offsets = [0, 128], sizes = [2, 128], strides = [1, 1]} : vector<2x512xf32> to vector<2x128xf32>
    %479 = arith.negf %478 : vector<2x128xf32>
    %480 = math.exp %479 : vector<2x128xf32>
    %cst_169 = arith.constant 1.000000e+00 : f32
    %481 = vector.broadcast %cst_169 : f32 to vector<2x128xf32>
    %482 = arith.addf %481, %480 : vector<2x128xf32>
    %483 = arith.divf %481, %482 : vector<2x128xf32>
    %484 = vector.extract_strided_slice %471 {offsets = [0, 256], sizes = [2, 128], strides = [1, 1]} : vector<2x512xf32> to vector<2x128xf32>
    %485 = math.tanh %484 : vector<2x128xf32>
    %486 = vector.extract_strided_slice %471 {offsets = [0, 384], sizes = [2, 128], strides = [1, 1]} : vector<2x512xf32> to vector<2x128xf32>
    %487 = arith.negf %486 : vector<2x128xf32>
    %488 = math.exp %487 : vector<2x128xf32>
    %cst_170 = arith.constant 1.000000e+00 : f32
    %489 = vector.broadcast %cst_170 : f32 to vector<2x128xf32>
    %490 = arith.addf %489, %488 : vector<2x128xf32>
    %491 = arith.divf %489, %490 : vector<2x128xf32>
    %492 = arith.mulf %483, %464 : vector<2x128xf32>
    %493 = arith.mulf %477, %485 : vector<2x128xf32>
    %494 = arith.addf %492, %493 : vector<2x128xf32>
    %495 = math.tanh %494 : vector<2x128xf32>
    %496 = arith.mulf %491, %495 : vector<2x128xf32>
    %c14_171 = arith.constant 14 : index
    %c0_172 = arith.constant 0 : index
    %497 = vector.load %arg16[%c14_171, %c0_172] : memref<16x128xf32, #tpu.memory_space<vmem>>, vector<2x128xf32>
    tpu.vector_store %arg16[%c14_171, %c0_172], %496 {strides = array<i32>} : memref<16x128xf32, #tpu.memory_space<vmem>>, vector<2x128xf32>,
    %c0_173 = arith.constant 0 : index
    %c0_174 = arith.constant 0 : index
    %498 = vector.load %arg7[%c0_173, %c0_174] : memref<128x512xf32, #tpu.memory_space<vmem>>, vector<128x512xf32>
    %cst_175 = arith.constant dense<0.000000e+00> : vector<2x512xf32>
    %499 = tpu.matmul %496, %498, %cst_175 {dimension_numbers = #tpu.dot_dimension_numbers<[1], [0], [0], [1], [0, 0, 1, 1], [], []>} : vector<2x128xf32>, vector<128x512xf32>, vector<2x512xf32> -> vector<2x512xf32>
    %c0_176 = arith.constant 0 : index
    %c0_177 = arith.constant 0 : index
    %500 = vector.load %arg9[%c0_176, %c0_177] : memref<1x512xf32, #tpu.memory_space<vmem>>, vector<1x512xf32>
    %501 = vector.broadcast %500 : vector<1x512xf32> to vector<2x512xf32>
    %502 = arith.addf %499, %501 : vector<2x512xf32>
    %cst_178 = arith.constant 0.000000e+00 : f32
    %503 = vector.broadcast %cst_178 : f32 to vector<2x128xf32>
    %cst_179 = arith.constant 0.000000e+00 : f32
    %504 = vector.broadcast %cst_179 : f32 to vector<2x128xf32>
    %c0_180 = arith.constant 0 : index
    %c0_181 = arith.constant 0 : index
    %505 = vector.load %arg8[%c0_180, %c0_181] : memref<128x512xf32, #tpu.memory_space<vmem>>, vector<128x512xf32>
    %cst_182 = arith.constant dense<0.000000e+00> : vector<2x512xf32>
    %506 = tpu.matmul %503, %505, %cst_182 {dimension_numbers = #tpu.dot_dimension_numbers<[1], [0], [0], [1], [0, 0, 1, 1], [], []>} : vector<2x128xf32>, vector<128x512xf32>, vector<2x512xf32> -> vector<2x512xf32>
    %507 = arith.addf %502, %506 : vector<2x512xf32>
    %508 = vector.extract_strided_slice %507 {offsets = [0, 0], sizes = [2, 128], strides = [1, 1]} : vector<2x512xf32> to vector<2x128xf32>
    %509 = arith.negf %508 : vector<2x128xf32>
    %510 = math.exp %509 : vector<2x128xf32>
    %cst_183 = arith.constant 1.000000e+00 : f32
    %511 = vector.broadcast %cst_183 : f32 to vector<2x128xf32>
    %512 = arith.addf %511, %510 : vector<2x128xf32>
    %513 = arith.divf %511, %512 : vector<2x128xf32>
    %514 = vector.extract_strided_slice %507 {offsets = [0, 128], sizes = [2, 128], strides = [1, 1]} : vector<2x512xf32> to vector<2x128xf32>
    %515 = arith.negf %514 : vector<2x128xf32>
    %516 = math.exp %515 : vector<2x128xf32>
    %cst_184 = arith.constant 1.000000e+00 : f32
    %517 = vector.broadcast %cst_184 : f32 to vector<2x128xf32>
    %518 = arith.addf %517, %516 : vector<2x128xf32>
    %519 = arith.divf %517, %518 : vector<2x128xf32>
    %520 = vector.extract_strided_slice %507 {offsets = [0, 256], sizes = [2, 128], strides = [1, 1]} : vector<2x512xf32> to vector<2x128xf32>
    %521 = math.tanh %520 : vector<2x128xf32>
    %522 = vector.extract_strided_slice %507 {offsets = [0, 384], sizes = [2, 128], strides = [1, 1]} : vector<2x512xf32> to vector<2x128xf32>
    %523 = arith.negf %522 : vector<2x128xf32>
    %524 = math.exp %523 : vector<2x128xf32>
    %cst_185 = arith.constant 1.000000e+00 : f32
    %525 = vector.broadcast %cst_185 : f32 to vector<2x128xf32>
    %526 = arith.addf %525, %524 : vector<2x128xf32>
    %527 = arith.divf %525, %526 : vector<2x128xf32>
    %528 = arith.mulf %519, %504 : vector<2x128xf32>
    %529 = arith.mulf %513, %521 : vector<2x128xf32>
    %530 = arith.addf %528, %529 : vector<2x128xf32>
    %531 = math.tanh %530 : vector<2x128xf32>
    %532 = arith.mulf %527, %531 : vector<2x128xf32>
    %c0_186 = arith.constant 0 : index
    %c0_187 = arith.constant 0 : index
    %533 = vector.load %arg16[%c0_186, %c0_187] : memref<16x128xf32, #tpu.memory_space<vmem>>, vector<2x128xf32>
    tpu.vector_store %arg16[%c0_186, %c0_187], %532 {strides = array<i32>} : memref<16x128xf32, #tpu.memory_space<vmem>>, vector<2x128xf32>,
    %c0_188 = arith.constant 0 : index
    %c0_189 = arith.constant 0 : index
    %534 = vector.load %arg8[%c0_188, %c0_189] : memref<128x512xf32, #tpu.memory_space<vmem>>, vector<128x512xf32>
    %cst_190 = arith.constant dense<0.000000e+00> : vector<2x512xf32>
    %535 = tpu.matmul %532, %534, %cst_190 {dimension_numbers = #tpu.dot_dimension_numbers<[1], [0], [0], [1], [0, 0, 1, 1], [], []>} : vector<2x128xf32>, vector<128x512xf32>, vector<2x512xf32> -> vector<2x512xf32>
    %536 = arith.addf %502, %535 : vector<2x512xf32>
    %537 = vector.extract_strided_slice %536 {offsets = [0, 0], sizes = [2, 128], strides = [1, 1]} : vector<2x512xf32> to vector<2x128xf32>
    %538 = arith.negf %537 : vector<2x128xf32>
    %539 = math.exp %538 : vector<2x128xf32>
    %cst_191 = arith.constant 1.000000e+00 : f32
    %540 = vector.broadcast %cst_191 : f32 to vector<2x128xf32>
    %541 = arith.addf %540, %539 : vector<2x128xf32>
    %542 = arith.divf %540, %541 : vector<2x128xf32>
    %543 = vector.extract_strided_slice %536 {offsets = [0, 128], sizes = [2, 128], strides = [1, 1]} : vector<2x512xf32> to vector<2x128xf32>
    %544 = arith.negf %543 : vector<2x128xf32>
    %545 = math.exp %544 : vector<2x128xf32>
    %cst_192 = arith.constant 1.000000e+00 : f32
    %546 = vector.broadcast %cst_192 : f32 to vector<2x128xf32>
    %547 = arith.addf %546, %545 : vector<2x128xf32>
    %548 = arith.divf %546, %547 : vector<2x128xf32>
    %549 = vector.extract_strided_slice %536 {offsets = [0, 256], sizes = [2, 128], strides = [1, 1]} : vector<2x512xf32> to vector<2x128xf32>
    %550 = math.tanh %549 : vector<2x128xf32>
    %551 = vector.extract_strided_slice %536 {offsets = [0, 384], sizes = [2, 128], strides = [1, 1]} : vector<2x512xf32> to vector<2x128xf32>
    %552 = arith.negf %551 : vector<2x128xf32>
    %553 = math.exp %552 : vector<2x128xf32>
    %cst_193 = arith.constant 1.000000e+00 : f32
    %554 = vector.broadcast %cst_193 : f32 to vector<2x128xf32>
    %555 = arith.addf %554, %553 : vector<2x128xf32>
    %556 = arith.divf %554, %555 : vector<2x128xf32>
    %557 = arith.mulf %548, %530 : vector<2x128xf32>
    %558 = arith.mulf %542, %550 : vector<2x128xf32>
    %559 = arith.addf %557, %558 : vector<2x128xf32>
    %560 = math.tanh %559 : vector<2x128xf32>
    %561 = arith.mulf %556, %560 : vector<2x128xf32>
    %c2_194 = arith.constant 2 : index
    %c0_195 = arith.constant 0 : index
    %562 = vector.load %arg16[%c2_194, %c0_195] : memref<16x128xf32, #tpu.memory_space<vmem>>, vector<2x128xf32>
    tpu.vector_store %arg16[%c2_194, %c0_195], %561 {strides = array<i32>} : memref<16x128xf32, #tpu.memory_space<vmem>>, vector<2x128xf32>,
    %c0_196 = arith.constant 0 : index
    %c0_197 = arith.constant 0 : index
    %563 = vector.load %arg8[%c0_196, %c0_197] : memref<128x512xf32, #tpu.memory_space<vmem>>, vector<128x512xf32>
    %cst_198 = arith.constant dense<0.000000e+00> : vector<2x512xf32>
    %564 = tpu.matmul %561, %563, %cst_198 {dimension_numbers = #tpu.dot_dimension_numbers<[1], [0], [0], [1], [0, 0, 1, 1], [], []>} : vector<2x128xf32>, vector<128x512xf32>, vector<2x512xf32> -> vector<2x512xf32>
    %565 = arith.addf %502, %564 : vector<2x512xf32>
    %566 = vector.extract_strided_slice %565 {offsets = [0, 0], sizes = [2, 128], strides = [1, 1]} : vector<2x512xf32> to vector<2x128xf32>
    %567 = arith.negf %566 : vector<2x128xf32>
    %568 = math.exp %567 : vector<2x128xf32>
    %cst_199 = arith.constant 1.000000e+00 : f32
    %569 = vector.broadcast %cst_199 : f32 to vector<2x128xf32>
    %570 = arith.addf %569, %568 : vector<2x128xf32>
    %571 = arith.divf %569, %570 : vector<2x128xf32>
    %572 = vector.extract_strided_slice %565 {offsets = [0, 128], sizes = [2, 128], strides = [1, 1]} : vector<2x512xf32> to vector<2x128xf32>
    %573 = arith.negf %572 : vector<2x128xf32>
    %574 = math.exp %573 : vector<2x128xf32>
    %cst_200 = arith.constant 1.000000e+00 : f32
    %575 = vector.broadcast %cst_200 : f32 to vector<2x128xf32>
    %576 = arith.addf %575, %574 : vector<2x128xf32>
    %577 = arith.divf %575, %576 : vector<2x128xf32>
    %578 = vector.extract_strided_slice %565 {offsets = [0, 256], sizes = [2, 128], strides = [1, 1]} : vector<2x512xf32> to vector<2x128xf32>
    %579 = math.tanh %578 : vector<2x128xf32>
    %580 = vector.extract_strided_slice %565 {offsets = [0, 384], sizes = [2, 128], strides = [1, 1]} : vector<2x512xf32> to vector<2x128xf32>
    %581 = arith.negf %580 : vector<2x128xf32>
    %582 = math.exp %581 : vector<2x128xf32>
    %cst_201 = arith.constant 1.000000e+00 : f32
    %583 = vector.broadcast %cst_201 : f32 to vector<2x128xf32>
    %584 = arith.addf %583, %582 : vector<2x128xf32>
    %585 = arith.divf %583, %584 : vector<2x128xf32>
    %586 = arith.mulf %577, %559 : vector<2x128xf32>
    %587 = arith.mulf %571, %579 : vector<2x128xf32>
    %588 = arith.addf %586, %587 : vector<2x128xf32>
    %589 = math.tanh %588 : vector<2x128xf32>
    %590 = arith.mulf %585, %589 : vector<2x128xf32>
    %c4_202 = arith.constant 4 : index
    %c0_203 = arith.constant 0 : index
    %591 = vector.load %arg16[%c4_202, %c0_203] : memref<16x128xf32, #tpu.memory_space<vmem>>, vector<2x128xf32>
    tpu.vector_store %arg16[%c4_202, %c0_203], %590 {strides = array<i32>} : memref<16x128xf32, #tpu.memory_space<vmem>>, vector<2x128xf32>,
    %c0_204 = arith.constant 0 : index
    %c0_205 = arith.constant 0 : index
    %592 = vector.load %arg8[%c0_204, %c0_205] : memref<128x512xf32, #tpu.memory_space<vmem>>, vector<128x512xf32>
    %cst_206 = arith.constant dense<0.000000e+00> : vector<2x512xf32>
    %593 = tpu.matmul %590, %592, %cst_206 {dimension_numbers = #tpu.dot_dimension_numbers<[1], [0], [0], [1], [0, 0, 1, 1], [], []>} : vector<2x128xf32>, vector<128x512xf32>, vector<2x512xf32> -> vector<2x512xf32>
    %594 = arith.addf %502, %593 : vector<2x512xf32>
    %595 = vector.extract_strided_slice %594 {offsets = [0, 0], sizes = [2, 128], strides = [1, 1]} : vector<2x512xf32> to vector<2x128xf32>
    %596 = arith.negf %595 : vector<2x128xf32>
    %597 = math.exp %596 : vector<2x128xf32>
    %cst_207 = arith.constant 1.000000e+00 : f32
    %598 = vector.broadcast %cst_207 : f32 to vector<2x128xf32>
    %599 = arith.addf %598, %597 : vector<2x128xf32>
    %600 = arith.divf %598, %599 : vector<2x128xf32>
    %601 = vector.extract_strided_slice %594 {offsets = [0, 128], sizes = [2, 128], strides = [1, 1]} : vector<2x512xf32> to vector<2x128xf32>
    %602 = arith.negf %601 : vector<2x128xf32>
    %603 = math.exp %602 : vector<2x128xf32>
    %cst_208 = arith.constant 1.000000e+00 : f32
    %604 = vector.broadcast %cst_208 : f32 to vector<2x128xf32>
    %605 = arith.addf %604, %603 : vector<2x128xf32>
    %606 = arith.divf %604, %605 : vector<2x128xf32>
    %607 = vector.extract_strided_slice %594 {offsets = [0, 256], sizes = [2, 128], strides = [1, 1]} : vector<2x512xf32> to vector<2x128xf32>
    %608 = math.tanh %607 : vector<2x128xf32>
    %609 = vector.extract_strided_slice %594 {offsets = [0, 384], sizes = [2, 128], strides = [1, 1]} : vector<2x512xf32> to vector<2x128xf32>
    %610 = arith.negf %609 : vector<2x128xf32>
    %611 = math.exp %610 : vector<2x128xf32>
    %cst_209 = arith.constant 1.000000e+00 : f32
    %612 = vector.broadcast %cst_209 : f32 to vector<2x128xf32>
    %613 = arith.addf %612, %611 : vector<2x128xf32>
    %614 = arith.divf %612, %613 : vector<2x128xf32>
    %615 = arith.mulf %606, %588 : vector<2x128xf32>
    %616 = arith.mulf %600, %608 : vector<2x128xf32>
    %617 = arith.addf %615, %616 : vector<2x128xf32>
    %618 = math.tanh %617 : vector<2x128xf32>
    %619 = arith.mulf %614, %618 : vector<2x128xf32>
    %c6_210 = arith.constant 6 : index
    %c0_211 = arith.constant 0 : index
    %620 = vector.load %arg16[%c6_210, %c0_211] : memref<16x128xf32, #tpu.memory_space<vmem>>, vector<2x128xf32>
    tpu.vector_store %arg16[%c6_210, %c0_211], %619 {strides = array<i32>} : memref<16x128xf32, #tpu.memory_space<vmem>>, vector<2x128xf32>,
    %c0_212 = arith.constant 0 : index
    %c0_213 = arith.constant 0 : index
    %621 = vector.load %arg8[%c0_212, %c0_213] : memref<128x512xf32, #tpu.memory_space<vmem>>, vector<128x512xf32>
    %cst_214 = arith.constant dense<0.000000e+00> : vector<2x512xf32>
    %622 = tpu.matmul %619, %621, %cst_214 {dimension_numbers = #tpu.dot_dimension_numbers<[1], [0], [0], [1], [0, 0, 1, 1], [], []>} : vector<2x128xf32>, vector<128x512xf32>, vector<2x512xf32> -> vector<2x512xf32>
    %623 = arith.addf %502, %622 : vector<2x512xf32>
    %624 = vector.extract_strided_slice %623 {offsets = [0, 0], sizes = [2, 128], strides = [1, 1]} : vector<2x512xf32> to vector<2x128xf32>
    %625 = arith.negf %624 : vector<2x128xf32>
    %626 = math.exp %625 : vector<2x128xf32>
    %cst_215 = arith.constant 1.000000e+00 : f32
    %627 = vector.broadcast %cst_215 : f32 to vector<2x128xf32>
    %628 = arith.addf %627, %626 : vector<2x128xf32>
    %629 = arith.divf %627, %628 : vector<2x128xf32>
    %630 = vector.extract_strided_slice %623 {offsets = [0, 128], sizes = [2, 128], strides = [1, 1]} : vector<2x512xf32> to vector<2x128xf32>
    %631 = arith.negf %630 : vector<2x128xf32>
    %632 = math.exp %631 : vector<2x128xf32>
    %cst_216 = arith.constant 1.000000e+00 : f32
    %633 = vector.broadcast %cst_216 : f32 to vector<2x128xf32>
    %634 = arith.addf %633, %632 : vector<2x128xf32>
    %635 = arith.divf %633, %634 : vector<2x128xf32>
    %636 = vector.extract_strided_slice %623 {offsets = [0, 256], sizes = [2, 128], strides = [1, 1]} : vector<2x512xf32> to vector<2x128xf32>
    %637 = math.tanh %636 : vector<2x128xf32>
    %638 = vector.extract_strided_slice %623 {offsets = [0, 384], sizes = [2, 128], strides = [1, 1]} : vector<2x512xf32> to vector<2x128xf32>
    %639 = arith.negf %638 : vector<2x128xf32>
    %640 = math.exp %639 : vector<2x128xf32>
    %cst_217 = arith.constant 1.000000e+00 : f32
    %641 = vector.broadcast %cst_217 : f32 to vector<2x128xf32>
    %642 = arith.addf %641, %640 : vector<2x128xf32>
    %643 = arith.divf %641, %642 : vector<2x128xf32>
    %644 = arith.mulf %635, %617 : vector<2x128xf32>
    %645 = arith.mulf %629, %637 : vector<2x128xf32>
    %646 = arith.addf %644, %645 : vector<2x128xf32>
    %647 = math.tanh %646 : vector<2x128xf32>
    %648 = arith.mulf %643, %647 : vector<2x128xf32>
    %c8_218 = arith.constant 8 : index
    %c0_219 = arith.constant 0 : index
    %649 = vector.load %arg16[%c8_218, %c0_219] : memref<16x128xf32, #tpu.memory_space<vmem>>, vector<2x128xf32>
    tpu.vector_store %arg16[%c8_218, %c0_219], %648 {strides = array<i32>} : memref<16x128xf32, #tpu.memory_space<vmem>>, vector<2x128xf32>,
    %c0_220 = arith.constant 0 : index
    %c0_221 = arith.constant 0 : index
    %650 = vector.load %arg8[%c0_220, %c0_221] : memref<128x512xf32, #tpu.memory_space<vmem>>, vector<128x512xf32>
    %cst_222 = arith.constant dense<0.000000e+00> : vector<2x512xf32>
    %651 = tpu.matmul %648, %650, %cst_222 {dimension_numbers = #tpu.dot_dimension_numbers<[1], [0], [0], [1], [0, 0, 1, 1], [], []>} : vector<2x128xf32>, vector<128x512xf32>, vector<2x512xf32> -> vector<2x512xf32>
    %652 = arith.addf %502, %651 : vector<2x512xf32>
    %653 = vector.extract_strided_slice %652 {offsets = [0, 0], sizes = [2, 128], strides = [1, 1]} : vector<2x512xf32> to vector<2x128xf32>
    %654 = arith.negf %653 : vector<2x128xf32>
    %655 = math.exp %654 : vector<2x128xf32>
    %cst_223 = arith.constant 1.000000e+00 : f32
    %656 = vector.broadcast %cst_223 : f32 to vector<2x128xf32>
    %657 = arith.addf %656, %655 : vector<2x128xf32>
    %658 = arith.divf %656, %657 : vector<2x128xf32>
    %659 = vector.extract_strided_slice %652 {offsets = [0, 128], sizes = [2, 128], strides = [1, 1]} : vector<2x512xf32> to vector<2x128xf32>
    %660 = arith.negf %659 : vector<2x128xf32>
    %661 = math.exp %660 : vector<2x128xf32>
    %cst_224 = arith.constant 1.000000e+00 : f32
    %662 = vector.broadcast %cst_224 : f32 to vector<2x128xf32>
    %663 = arith.addf %662, %661 : vector<2x128xf32>
    %664 = arith.divf %662, %663 : vector<2x128xf32>
    %665 = vector.extract_strided_slice %652 {offsets = [0, 256], sizes = [2, 128], strides = [1, 1]} : vector<2x512xf32> to vector<2x128xf32>
    %666 = math.tanh %665 : vector<2x128xf32>
    %667 = vector.extract_strided_slice %652 {offsets = [0, 384], sizes = [2, 128], strides = [1, 1]} : vector<2x512xf32> to vector<2x128xf32>
    %668 = arith.negf %667 : vector<2x128xf32>
    %669 = math.exp %668 : vector<2x128xf32>
    %cst_225 = arith.constant 1.000000e+00 : f32
    %670 = vector.broadcast %cst_225 : f32 to vector<2x128xf32>
    %671 = arith.addf %670, %669 : vector<2x128xf32>
    %672 = arith.divf %670, %671 : vector<2x128xf32>
    %673 = arith.mulf %664, %646 : vector<2x128xf32>
    %674 = arith.mulf %658, %666 : vector<2x128xf32>
    %675 = arith.addf %673, %674 : vector<2x128xf32>
    %676 = math.tanh %675 : vector<2x128xf32>
    %677 = arith.mulf %672, %676 : vector<2x128xf32>
    %c10_226 = arith.constant 10 : index
    %c0_227 = arith.constant 0 : index
    %678 = vector.load %arg16[%c10_226, %c0_227] : memref<16x128xf32, #tpu.memory_space<vmem>>, vector<2x128xf32>
    tpu.vector_store %arg16[%c10_226, %c0_227], %677 {strides = array<i32>} : memref<16x128xf32, #tpu.memory_space<vmem>>, vector<2x128xf32>,
    %c0_228 = arith.constant 0 : index
    %c0_229 = arith.constant 0 : index
    %679 = vector.load %arg8[%c0_228, %c0_229] : memref<128x512xf32, #tpu.memory_space<vmem>>, vector<128x512xf32>
    %cst_230 = arith.constant dense<0.000000e+00> : vector<2x512xf32>
    %680 = tpu.matmul %677, %679, %cst_230 {dimension_numbers = #tpu.dot_dimension_numbers<[1], [0], [0], [1], [0, 0, 1, 1], [], []>} : vector<2x128xf32>, vector<128x512xf32>, vector<2x512xf32> -> vector<2x512xf32>
    %681 = arith.addf %502, %680 : vector<2x512xf32>
    %682 = vector.extract_strided_slice %681 {offsets = [0, 0], sizes = [2, 128], strides = [1, 1]} : vector<2x512xf32> to vector<2x128xf32>
    %683 = arith.negf %682 : vector<2x128xf32>
    %684 = math.exp %683 : vector<2x128xf32>
    %cst_231 = arith.constant 1.000000e+00 : f32
    %685 = vector.broadcast %cst_231 : f32 to vector<2x128xf32>
    %686 = arith.addf %685, %684 : vector<2x128xf32>
    %687 = arith.divf %685, %686 : vector<2x128xf32>
    %688 = vector.extract_strided_slice %681 {offsets = [0, 128], sizes = [2, 128], strides = [1, 1]} : vector<2x512xf32> to vector<2x128xf32>
    %689 = arith.negf %688 : vector<2x128xf32>
    %690 = math.exp %689 : vector<2x128xf32>
    %cst_232 = arith.constant 1.000000e+00 : f32
    %691 = vector.broadcast %cst_232 : f32 to vector<2x128xf32>
    %692 = arith.addf %691, %690 : vector<2x128xf32>
    %693 = arith.divf %691, %692 : vector<2x128xf32>
    %694 = vector.extract_strided_slice %681 {offsets = [0, 256], sizes = [2, 128], strides = [1, 1]} : vector<2x512xf32> to vector<2x128xf32>
    %695 = math.tanh %694 : vector<2x128xf32>
    %696 = vector.extract_strided_slice %681 {offsets = [0, 384], sizes = [2, 128], strides = [1, 1]} : vector<2x512xf32> to vector<2x128xf32>
    %697 = arith.negf %696 : vector<2x128xf32>
    %698 = math.exp %697 : vector<2x128xf32>
    %cst_233 = arith.constant 1.000000e+00 : f32
    %699 = vector.broadcast %cst_233 : f32 to vector<2x128xf32>
    %700 = arith.addf %699, %698 : vector<2x128xf32>
    %701 = arith.divf %699, %700 : vector<2x128xf32>
    %702 = arith.mulf %693, %675 : vector<2x128xf32>
    %703 = arith.mulf %687, %695 : vector<2x128xf32>
    %704 = arith.addf %702, %703 : vector<2x128xf32>
    %705 = math.tanh %704 : vector<2x128xf32>
    %706 = arith.mulf %701, %705 : vector<2x128xf32>
    %c12_234 = arith.constant 12 : index
    %c0_235 = arith.constant 0 : index
    %707 = vector.load %arg16[%c12_234, %c0_235] : memref<16x128xf32, #tpu.memory_space<vmem>>, vector<2x128xf32>
    tpu.vector_store %arg16[%c12_234, %c0_235], %706 {strides = array<i32>} : memref<16x128xf32, #tpu.memory_space<vmem>>, vector<2x128xf32>,
    %c0_236 = arith.constant 0 : index
    %c0_237 = arith.constant 0 : index
    %708 = vector.load %arg8[%c0_236, %c0_237] : memref<128x512xf32, #tpu.memory_space<vmem>>, vector<128x512xf32>
    %cst_238 = arith.constant dense<0.000000e+00> : vector<2x512xf32>
    %709 = tpu.matmul %706, %708, %cst_238 {dimension_numbers = #tpu.dot_dimension_numbers<[1], [0], [0], [1], [0, 0, 1, 1], [], []>} : vector<2x128xf32>, vector<128x512xf32>, vector<2x512xf32> -> vector<2x512xf32>
    %710 = arith.addf %502, %709 : vector<2x512xf32>
    %711 = vector.extract_strided_slice %710 {offsets = [0, 0], sizes = [2, 128], strides = [1, 1]} : vector<2x512xf32> to vector<2x128xf32>
    %712 = arith.negf %711 : vector<2x128xf32>
    %713 = math.exp %712 : vector<2x128xf32>
    %cst_239 = arith.constant 1.000000e+00 : f32
    %714 = vector.broadcast %cst_239 : f32 to vector<2x128xf32>
    %715 = arith.addf %714, %713 : vector<2x128xf32>
    %716 = arith.divf %714, %715 : vector<2x128xf32>
    %717 = vector.extract_strided_slice %710 {offsets = [0, 128], sizes = [2, 128], strides = [1, 1]} : vector<2x512xf32> to vector<2x128xf32>
    %718 = arith.negf %717 : vector<2x128xf32>
    %719 = math.exp %718 : vector<2x128xf32>
    %cst_240 = arith.constant 1.000000e+00 : f32
    %720 = vector.broadcast %cst_240 : f32 to vector<2x128xf32>
    %721 = arith.addf %720, %719 : vector<2x128xf32>
    %722 = arith.divf %720, %721 : vector<2x128xf32>
    %723 = vector.extract_strided_slice %710 {offsets = [0, 256], sizes = [2, 128], strides = [1, 1]} : vector<2x512xf32> to vector<2x128xf32>
    %724 = math.tanh %723 : vector<2x128xf32>
    %725 = vector.extract_strided_slice %710 {offsets = [0, 384], sizes = [2, 128], strides = [1, 1]} : vector<2x512xf32> to vector<2x128xf32>
    %726 = arith.negf %725 : vector<2x128xf32>
    %727 = math.exp %726 : vector<2x128xf32>
    %cst_241 = arith.constant 1.000000e+00 : f32
    %728 = vector.broadcast %cst_241 : f32 to vector<2x128xf32>
    %729 = arith.addf %728, %727 : vector<2x128xf32>
    %730 = arith.divf %728, %729 : vector<2x128xf32>
    %731 = arith.mulf %722, %704 : vector<2x128xf32>
    %732 = arith.mulf %716, %724 : vector<2x128xf32>
    %733 = arith.addf %731, %732 : vector<2x128xf32>
    %734 = math.tanh %733 : vector<2x128xf32>
    %735 = arith.mulf %730, %734 : vector<2x128xf32>
    %c14_242 = arith.constant 14 : index
    %c0_243 = arith.constant 0 : index
    %736 = vector.load %arg16[%c14_242, %c0_243] : memref<16x128xf32, #tpu.memory_space<vmem>>, vector<2x128xf32>
    tpu.vector_store %arg16[%c14_242, %c0_243], %735 {strides = array<i32>} : memref<16x128xf32, #tpu.memory_space<vmem>>, vector<2x128xf32>,
    %c0_244 = arith.constant 0 : index
    %c0_245 = arith.constant 0 : index
    %737 = vector.load %arg16[%c0_244, %c0_245] : memref<16x128xf32, #tpu.memory_space<vmem>>, vector<16x128xf32>
    %c0_246 = arith.constant 0 : index
    %c0_247 = arith.constant 0 : index
    %738 = vector.load %arg10[%c0_246, %c0_247] : memref<128x512xf32, #tpu.memory_space<vmem>>, vector<128x512xf32>
    %cst_248 = arith.constant dense<0.000000e+00> : vector<16x512xf32>
    %739 = tpu.matmul %737, %738, %cst_248 {dimension_numbers = #tpu.dot_dimension_numbers<[1], [0], [0], [1], [0, 0, 1, 1], [], []>} : vector<16x128xf32>, vector<128x512xf32>, vector<16x512xf32> -> vector<16x512xf32>
    %c0_249 = arith.constant 0 : index
    %c0_250 = arith.constant 0 : index
    %740 = vector.load %arg12[%c0_249, %c0_250] : memref<1x512xf32, #tpu.memory_space<vmem>>, vector<1x512xf32>
    %741 = vector.broadcast %740 : vector<1x512xf32> to vector<16x512xf32>
    %742 = arith.addf %739, %741 : vector<16x512xf32>
    %c0_251 = arith.constant 0 : index
    %c0_252 = arith.constant 0 : index
    %743 = vector.load %arg17[%c0_251, %c0_252] : memref<16x512xf32, #tpu.memory_space<vmem>>, vector<16x512xf32>
    tpu.vector_store %arg17[%c0_251, %c0_252], %742 {strides = array<i32>} : memref<16x512xf32, #tpu.memory_space<vmem>>, vector<16x512xf32>,
    %cst_253 = arith.constant 0.000000e+00 : f32
    %744 = vector.broadcast %cst_253 : f32 to vector<2x128xf32>
    %cst_254 = arith.constant 0.000000e+00 : f32
    %745 = vector.broadcast %cst_254 : f32 to vector<2x128xf32>
    %c0_255 = arith.constant 0 : index
    %c0_256 = arith.constant 0 : index
    %746 = vector.load %arg17[%c0_255, %c0_256] : memref<16x512xf32, #tpu.memory_space<vmem>>, vector<2x512xf32>
    %c0_257 = arith.constant 0 : index
    %c0_258 = arith.constant 0 : index
    %747 = vector.load %arg11[%c0_257, %c0_258] : memref<128x512xf32, #tpu.memory_space<vmem>>, vector<128x512xf32>
    %cst_259 = arith.constant dense<0.000000e+00> : vector<2x512xf32>
    %748 = tpu.matmul %744, %747, %cst_259 {dimension_numbers = #tpu.dot_dimension_numbers<[1], [0], [0], [1], [0, 0, 1, 1], [], []>} : vector<2x128xf32>, vector<128x512xf32>, vector<2x512xf32> -> vector<2x512xf32>
    %749 = arith.addf %746, %748 : vector<2x512xf32>
    %750 = vector.extract_strided_slice %749 {offsets = [0, 0], sizes = [2, 128], strides = [1, 1]} : vector<2x512xf32> to vector<2x128xf32>
    %751 = arith.negf %750 : vector<2x128xf32>
    %752 = math.exp %751 : vector<2x128xf32>
    %cst_260 = arith.constant 1.000000e+00 : f32
    %753 = vector.broadcast %cst_260 : f32 to vector<2x128xf32>
    %754 = arith.addf %753, %752 : vector<2x128xf32>
    %755 = arith.divf %753, %754 : vector<2x128xf32>
    %756 = vector.extract_strided_slice %749 {offsets = [0, 128], sizes = [2, 128], strides = [1, 1]} : vector<2x512xf32> to vector<2x128xf32>
    %757 = arith.negf %756 : vector<2x128xf32>
    %758 = math.exp %757 : vector<2x128xf32>
    %cst_261 = arith.constant 1.000000e+00 : f32
    %759 = vector.broadcast %cst_261 : f32 to vector<2x128xf32>
    %760 = arith.addf %759, %758 : vector<2x128xf32>
    %761 = arith.divf %759, %760 : vector<2x128xf32>
    %762 = vector.extract_strided_slice %749 {offsets = [0, 256], sizes = [2, 128], strides = [1, 1]} : vector<2x512xf32> to vector<2x128xf32>
    %763 = math.tanh %762 : vector<2x128xf32>
    %764 = vector.extract_strided_slice %749 {offsets = [0, 384], sizes = [2, 128], strides = [1, 1]} : vector<2x512xf32> to vector<2x128xf32>
    %765 = arith.negf %764 : vector<2x128xf32>
    %766 = math.exp %765 : vector<2x128xf32>
    %cst_262 = arith.constant 1.000000e+00 : f32
    %767 = vector.broadcast %cst_262 : f32 to vector<2x128xf32>
    %768 = arith.addf %767, %766 : vector<2x128xf32>
    %769 = arith.divf %767, %768 : vector<2x128xf32>
    %770 = arith.mulf %761, %745 : vector<2x128xf32>
    %771 = arith.mulf %755, %763 : vector<2x128xf32>
    %772 = arith.addf %770, %771 : vector<2x128xf32>
    %773 = math.tanh %772 : vector<2x128xf32>
    %774 = arith.mulf %769, %773 : vector<2x128xf32>
    %c0_263 = arith.constant 0 : index
    %c0_264 = arith.constant 0 : index
    %775 = vector.load %arg16[%c0_263, %c0_264] : memref<16x128xf32, #tpu.memory_space<vmem>>, vector<2x128xf32>
    tpu.vector_store %arg16[%c0_263, %c0_264], %774 {strides = array<i32>} : memref<16x128xf32, #tpu.memory_space<vmem>>, vector<2x128xf32>,
    %c2_265 = arith.constant 2 : index
    %c0_266 = arith.constant 0 : index
    %776 = vector.load %arg17[%c2_265, %c0_266] : memref<16x512xf32, #tpu.memory_space<vmem>>, vector<2x512xf32>
    %c0_267 = arith.constant 0 : index
    %c0_268 = arith.constant 0 : index
    %777 = vector.load %arg11[%c0_267, %c0_268] : memref<128x512xf32, #tpu.memory_space<vmem>>, vector<128x512xf32>
    %cst_269 = arith.constant dense<0.000000e+00> : vector<2x512xf32>
    %778 = tpu.matmul %774, %777, %cst_269 {dimension_numbers = #tpu.dot_dimension_numbers<[1], [0], [0], [1], [0, 0, 1, 1], [], []>} : vector<2x128xf32>, vector<128x512xf32>, vector<2x512xf32> -> vector<2x512xf32>
    %779 = arith.addf %776, %778 : vector<2x512xf32>
    %780 = vector.extract_strided_slice %779 {offsets = [0, 0], sizes = [2, 128], strides = [1, 1]} : vector<2x512xf32> to vector<2x128xf32>
    %781 = arith.negf %780 : vector<2x128xf32>
    %782 = math.exp %781 : vector<2x128xf32>
    %cst_270 = arith.constant 1.000000e+00 : f32
    %783 = vector.broadcast %cst_270 : f32 to vector<2x128xf32>
    %784 = arith.addf %783, %782 : vector<2x128xf32>
    %785 = arith.divf %783, %784 : vector<2x128xf32>
    %786 = vector.extract_strided_slice %779 {offsets = [0, 128], sizes = [2, 128], strides = [1, 1]} : vector<2x512xf32> to vector<2x128xf32>
    %787 = arith.negf %786 : vector<2x128xf32>
    %788 = math.exp %787 : vector<2x128xf32>
    %cst_271 = arith.constant 1.000000e+00 : f32
    %789 = vector.broadcast %cst_271 : f32 to vector<2x128xf32>
    %790 = arith.addf %789, %788 : vector<2x128xf32>
    %791 = arith.divf %789, %790 : vector<2x128xf32>
    %792 = vector.extract_strided_slice %779 {offsets = [0, 256], sizes = [2, 128], strides = [1, 1]} : vector<2x512xf32> to vector<2x128xf32>
    %793 = math.tanh %792 : vector<2x128xf32>
    %794 = vector.extract_strided_slice %779 {offsets = [0, 384], sizes = [2, 128], strides = [1, 1]} : vector<2x512xf32> to vector<2x128xf32>
    %795 = arith.negf %794 : vector<2x128xf32>
    %796 = math.exp %795 : vector<2x128xf32>
    %cst_272 = arith.constant 1.000000e+00 : f32
    %797 = vector.broadcast %cst_272 : f32 to vector<2x128xf32>
    %798 = arith.addf %797, %796 : vector<2x128xf32>
    %799 = arith.divf %797, %798 : vector<2x128xf32>
    %800 = arith.mulf %791, %772 : vector<2x128xf32>
    %801 = arith.mulf %785, %793 : vector<2x128xf32>
    %802 = arith.addf %800, %801 : vector<2x128xf32>
    %803 = math.tanh %802 : vector<2x128xf32>
    %804 = arith.mulf %799, %803 : vector<2x128xf32>
    %c2_273 = arith.constant 2 : index
    %c0_274 = arith.constant 0 : index
    %805 = vector.load %arg16[%c2_273, %c0_274] : memref<16x128xf32, #tpu.memory_space<vmem>>, vector<2x128xf32>
    tpu.vector_store %arg16[%c2_273, %c0_274], %804 {strides = array<i32>} : memref<16x128xf32, #tpu.memory_space<vmem>>, vector<2x128xf32>,
    %c4_275 = arith.constant 4 : index
    %c0_276 = arith.constant 0 : index
    %806 = vector.load %arg17[%c4_275, %c0_276] : memref<16x512xf32, #tpu.memory_space<vmem>>, vector<2x512xf32>
    %c0_277 = arith.constant 0 : index
    %c0_278 = arith.constant 0 : index
    %807 = vector.load %arg11[%c0_277, %c0_278] : memref<128x512xf32, #tpu.memory_space<vmem>>, vector<128x512xf32>
    %cst_279 = arith.constant dense<0.000000e+00> : vector<2x512xf32>
    %808 = tpu.matmul %804, %807, %cst_279 {dimension_numbers = #tpu.dot_dimension_numbers<[1], [0], [0], [1], [0, 0, 1, 1], [], []>} : vector<2x128xf32>, vector<128x512xf32>, vector<2x512xf32> -> vector<2x512xf32>
    %809 = arith.addf %806, %808 : vector<2x512xf32>
    %810 = vector.extract_strided_slice %809 {offsets = [0, 0], sizes = [2, 128], strides = [1, 1]} : vector<2x512xf32> to vector<2x128xf32>
    %811 = arith.negf %810 : vector<2x128xf32>
    %812 = math.exp %811 : vector<2x128xf32>
    %cst_280 = arith.constant 1.000000e+00 : f32
    %813 = vector.broadcast %cst_280 : f32 to vector<2x128xf32>
    %814 = arith.addf %813, %812 : vector<2x128xf32>
    %815 = arith.divf %813, %814 : vector<2x128xf32>
    %816 = vector.extract_strided_slice %809 {offsets = [0, 128], sizes = [2, 128], strides = [1, 1]} : vector<2x512xf32> to vector<2x128xf32>
    %817 = arith.negf %816 : vector<2x128xf32>
    %818 = math.exp %817 : vector<2x128xf32>
    %cst_281 = arith.constant 1.000000e+00 : f32
    %819 = vector.broadcast %cst_281 : f32 to vector<2x128xf32>
    %820 = arith.addf %819, %818 : vector<2x128xf32>
    %821 = arith.divf %819, %820 : vector<2x128xf32>
    %822 = vector.extract_strided_slice %809 {offsets = [0, 256], sizes = [2, 128], strides = [1, 1]} : vector<2x512xf32> to vector<2x128xf32>
    %823 = math.tanh %822 : vector<2x128xf32>
    %824 = vector.extract_strided_slice %809 {offsets = [0, 384], sizes = [2, 128], strides = [1, 1]} : vector<2x512xf32> to vector<2x128xf32>
    %825 = arith.negf %824 : vector<2x128xf32>
    %826 = math.exp %825 : vector<2x128xf32>
    %cst_282 = arith.constant 1.000000e+00 : f32
    %827 = vector.broadcast %cst_282 : f32 to vector<2x128xf32>
    %828 = arith.addf %827, %826 : vector<2x128xf32>
    %829 = arith.divf %827, %828 : vector<2x128xf32>
    %830 = arith.mulf %821, %802 : vector<2x128xf32>
    %831 = arith.mulf %815, %823 : vector<2x128xf32>
    %832 = arith.addf %830, %831 : vector<2x128xf32>
    %833 = math.tanh %832 : vector<2x128xf32>
    %834 = arith.mulf %829, %833 : vector<2x128xf32>
    %c4_283 = arith.constant 4 : index
    %c0_284 = arith.constant 0 : index
    %835 = vector.load %arg16[%c4_283, %c0_284] : memref<16x128xf32, #tpu.memory_space<vmem>>, vector<2x128xf32>
    tpu.vector_store %arg16[%c4_283, %c0_284], %834 {strides = array<i32>} : memref<16x128xf32, #tpu.memory_space<vmem>>, vector<2x128xf32>,
    %c6_285 = arith.constant 6 : index
    %c0_286 = arith.constant 0 : index
    %836 = vector.load %arg17[%c6_285, %c0_286] : memref<16x512xf32, #tpu.memory_space<vmem>>, vector<2x512xf32>
    %c0_287 = arith.constant 0 : index
    %c0_288 = arith.constant 0 : index
    %837 = vector.load %arg11[%c0_287, %c0_288] : memref<128x512xf32, #tpu.memory_space<vmem>>, vector<128x512xf32>
    %cst_289 = arith.constant dense<0.000000e+00> : vector<2x512xf32>
    %838 = tpu.matmul %834, %837, %cst_289 {dimension_numbers = #tpu.dot_dimension_numbers<[1], [0], [0], [1], [0, 0, 1, 1], [], []>} : vector<2x128xf32>, vector<128x512xf32>, vector<2x512xf32> -> vector<2x512xf32>
    %839 = arith.addf %836, %838 : vector<2x512xf32>
    %840 = vector.extract_strided_slice %839 {offsets = [0, 0], sizes = [2, 128], strides = [1, 1]} : vector<2x512xf32> to vector<2x128xf32>
    %841 = arith.negf %840 : vector<2x128xf32>
    %842 = math.exp %841 : vector<2x128xf32>
    %cst_290 = arith.constant 1.000000e+00 : f32
    %843 = vector.broadcast %cst_290 : f32 to vector<2x128xf32>
    %844 = arith.addf %843, %842 : vector<2x128xf32>
    %845 = arith.divf %843, %844 : vector<2x128xf32>
    %846 = vector.extract_strided_slice %839 {offsets = [0, 128], sizes = [2, 128], strides = [1, 1]} : vector<2x512xf32> to vector<2x128xf32>
    %847 = arith.negf %846 : vector<2x128xf32>
    %848 = math.exp %847 : vector<2x128xf32>
    %cst_291 = arith.constant 1.000000e+00 : f32
    %849 = vector.broadcast %cst_291 : f32 to vector<2x128xf32>
    %850 = arith.addf %849, %848 : vector<2x128xf32>
    %851 = arith.divf %849, %850 : vector<2x128xf32>
    %852 = vector.extract_strided_slice %839 {offsets = [0, 256], sizes = [2, 128], strides = [1, 1]} : vector<2x512xf32> to vector<2x128xf32>
    %853 = math.tanh %852 : vector<2x128xf32>
    %854 = vector.extract_strided_slice %839 {offsets = [0, 384], sizes = [2, 128], strides = [1, 1]} : vector<2x512xf32> to vector<2x128xf32>
    %855 = arith.negf %854 : vector<2x128xf32>
    %856 = math.exp %855 : vector<2x128xf32>
    %cst_292 = arith.constant 1.000000e+00 : f32
    %857 = vector.broadcast %cst_292 : f32 to vector<2x128xf32>
    %858 = arith.addf %857, %856 : vector<2x128xf32>
    %859 = arith.divf %857, %858 : vector<2x128xf32>
    %860 = arith.mulf %851, %832 : vector<2x128xf32>
    %861 = arith.mulf %845, %853 : vector<2x128xf32>
    %862 = arith.addf %860, %861 : vector<2x128xf32>
    %863 = math.tanh %862 : vector<2x128xf32>
    %864 = arith.mulf %859, %863 : vector<2x128xf32>
    %c6_293 = arith.constant 6 : index
    %c0_294 = arith.constant 0 : index
    %865 = vector.load %arg16[%c6_293, %c0_294] : memref<16x128xf32, #tpu.memory_space<vmem>>, vector<2x128xf32>
    tpu.vector_store %arg16[%c6_293, %c0_294], %864 {strides = array<i32>} : memref<16x128xf32, #tpu.memory_space<vmem>>, vector<2x128xf32>,
    %c8_295 = arith.constant 8 : index
    %c0_296 = arith.constant 0 : index
    %866 = vector.load %arg17[%c8_295, %c0_296] : memref<16x512xf32, #tpu.memory_space<vmem>>, vector<2x512xf32>
    %c0_297 = arith.constant 0 : index
    %c0_298 = arith.constant 0 : index
    %867 = vector.load %arg11[%c0_297, %c0_298] : memref<128x512xf32, #tpu.memory_space<vmem>>, vector<128x512xf32>
    %cst_299 = arith.constant dense<0.000000e+00> : vector<2x512xf32>
    %868 = tpu.matmul %864, %867, %cst_299 {dimension_numbers = #tpu.dot_dimension_numbers<[1], [0], [0], [1], [0, 0, 1, 1], [], []>} : vector<2x128xf32>, vector<128x512xf32>, vector<2x512xf32> -> vector<2x512xf32>
    %869 = arith.addf %866, %868 : vector<2x512xf32>
    %870 = vector.extract_strided_slice %869 {offsets = [0, 0], sizes = [2, 128], strides = [1, 1]} : vector<2x512xf32> to vector<2x128xf32>
    %871 = arith.negf %870 : vector<2x128xf32>
    %872 = math.exp %871 : vector<2x128xf32>
    %cst_300 = arith.constant 1.000000e+00 : f32
    %873 = vector.broadcast %cst_300 : f32 to vector<2x128xf32>
    %874 = arith.addf %873, %872 : vector<2x128xf32>
    %875 = arith.divf %873, %874 : vector<2x128xf32>
    %876 = vector.extract_strided_slice %869 {offsets = [0, 128], sizes = [2, 128], strides = [1, 1]} : vector<2x512xf32> to vector<2x128xf32>
    %877 = arith.negf %876 : vector<2x128xf32>
    %878 = math.exp %877 : vector<2x128xf32>
    %cst_301 = arith.constant 1.000000e+00 : f32
    %879 = vector.broadcast %cst_301 : f32 to vector<2x128xf32>
    %880 = arith.addf %879, %878 : vector<2x128xf32>
    %881 = arith.divf %879, %880 : vector<2x128xf32>
    %882 = vector.extract_strided_slice %869 {offsets = [0, 256], sizes = [2, 128], strides = [1, 1]} : vector<2x512xf32> to vector<2x128xf32>
    %883 = math.tanh %882 : vector<2x128xf32>
    %884 = vector.extract_strided_slice %869 {offsets = [0, 384], sizes = [2, 128], strides = [1, 1]} : vector<2x512xf32> to vector<2x128xf32>
    %885 = arith.negf %884 : vector<2x128xf32>
    %886 = math.exp %885 : vector<2x128xf32>
    %cst_302 = arith.constant 1.000000e+00 : f32
    %887 = vector.broadcast %cst_302 : f32 to vector<2x128xf32>
    %888 = arith.addf %887, %886 : vector<2x128xf32>
    %889 = arith.divf %887, %888 : vector<2x128xf32>
    %890 = arith.mulf %881, %862 : vector<2x128xf32>
    %891 = arith.mulf %875, %883 : vector<2x128xf32>
    %892 = arith.addf %890, %891 : vector<2x128xf32>
    %893 = math.tanh %892 : vector<2x128xf32>
    %894 = arith.mulf %889, %893 : vector<2x128xf32>
    %c8_303 = arith.constant 8 : index
    %c0_304 = arith.constant 0 : index
    %895 = vector.load %arg16[%c8_303, %c0_304] : memref<16x128xf32, #tpu.memory_space<vmem>>, vector<2x128xf32>
    tpu.vector_store %arg16[%c8_303, %c0_304], %894 {strides = array<i32>} : memref<16x128xf32, #tpu.memory_space<vmem>>, vector<2x128xf32>,
    %c10_305 = arith.constant 10 : index
    %c0_306 = arith.constant 0 : index
    %896 = vector.load %arg17[%c10_305, %c0_306] : memref<16x512xf32, #tpu.memory_space<vmem>>, vector<2x512xf32>
    %c0_307 = arith.constant 0 : index
    %c0_308 = arith.constant 0 : index
    %897 = vector.load %arg11[%c0_307, %c0_308] : memref<128x512xf32, #tpu.memory_space<vmem>>, vector<128x512xf32>
    %cst_309 = arith.constant dense<0.000000e+00> : vector<2x512xf32>
    %898 = tpu.matmul %894, %897, %cst_309 {dimension_numbers = #tpu.dot_dimension_numbers<[1], [0], [0], [1], [0, 0, 1, 1], [], []>} : vector<2x128xf32>, vector<128x512xf32>, vector<2x512xf32> -> vector<2x512xf32>
    %899 = arith.addf %896, %898 : vector<2x512xf32>
    %900 = vector.extract_strided_slice %899 {offsets = [0, 0], sizes = [2, 128], strides = [1, 1]} : vector<2x512xf32> to vector<2x128xf32>
    %901 = arith.negf %900 : vector<2x128xf32>
    %902 = math.exp %901 : vector<2x128xf32>
    %cst_310 = arith.constant 1.000000e+00 : f32
    %903 = vector.broadcast %cst_310 : f32 to vector<2x128xf32>
    %904 = arith.addf %903, %902 : vector<2x128xf32>
    %905 = arith.divf %903, %904 : vector<2x128xf32>
    %906 = vector.extract_strided_slice %899 {offsets = [0, 128], sizes = [2, 128], strides = [1, 1]} : vector<2x512xf32> to vector<2x128xf32>
    %907 = arith.negf %906 : vector<2x128xf32>
    %908 = math.exp %907 : vector<2x128xf32>
    %cst_311 = arith.constant 1.000000e+00 : f32
    %909 = vector.broadcast %cst_311 : f32 to vector<2x128xf32>
    %910 = arith.addf %909, %908 : vector<2x128xf32>
    %911 = arith.divf %909, %910 : vector<2x128xf32>
    %912 = vector.extract_strided_slice %899 {offsets = [0, 256], sizes = [2, 128], strides = [1, 1]} : vector<2x512xf32> to vector<2x128xf32>
    %913 = math.tanh %912 : vector<2x128xf32>
    %914 = vector.extract_strided_slice %899 {offsets = [0, 384], sizes = [2, 128], strides = [1, 1]} : vector<2x512xf32> to vector<2x128xf32>
    %915 = arith.negf %914 : vector<2x128xf32>
    %916 = math.exp %915 : vector<2x128xf32>
    %cst_312 = arith.constant 1.000000e+00 : f32
    %917 = vector.broadcast %cst_312 : f32 to vector<2x128xf32>
    %918 = arith.addf %917, %916 : vector<2x128xf32>
    %919 = arith.divf %917, %918 : vector<2x128xf32>
    %920 = arith.mulf %911, %892 : vector<2x128xf32>
    %921 = arith.mulf %905, %913 : vector<2x128xf32>
    %922 = arith.addf %920, %921 : vector<2x128xf32>
    %923 = math.tanh %922 : vector<2x128xf32>
    %924 = arith.mulf %919, %923 : vector<2x128xf32>
    %c10_313 = arith.constant 10 : index
    %c0_314 = arith.constant 0 : index
    %925 = vector.load %arg16[%c10_313, %c0_314] : memref<16x128xf32, #tpu.memory_space<vmem>>, vector<2x128xf32>
    tpu.vector_store %arg16[%c10_313, %c0_314], %924 {strides = array<i32>} : memref<16x128xf32, #tpu.memory_space<vmem>>, vector<2x128xf32>,
    %c12_315 = arith.constant 12 : index
    %c0_316 = arith.constant 0 : index
    %926 = vector.load %arg17[%c12_315, %c0_316] : memref<16x512xf32, #tpu.memory_space<vmem>>, vector<2x512xf32>
    %c0_317 = arith.constant 0 : index
    %c0_318 = arith.constant 0 : index
    %927 = vector.load %arg11[%c0_317, %c0_318] : memref<128x512xf32, #tpu.memory_space<vmem>>, vector<128x512xf32>
    %cst_319 = arith.constant dense<0.000000e+00> : vector<2x512xf32>
    %928 = tpu.matmul %924, %927, %cst_319 {dimension_numbers = #tpu.dot_dimension_numbers<[1], [0], [0], [1], [0, 0, 1, 1], [], []>} : vector<2x128xf32>, vector<128x512xf32>, vector<2x512xf32> -> vector<2x512xf32>
    %929 = arith.addf %926, %928 : vector<2x512xf32>
    %930 = vector.extract_strided_slice %929 {offsets = [0, 0], sizes = [2, 128], strides = [1, 1]} : vector<2x512xf32> to vector<2x128xf32>
    %931 = arith.negf %930 : vector<2x128xf32>
    %932 = math.exp %931 : vector<2x128xf32>
    %cst_320 = arith.constant 1.000000e+00 : f32
    %933 = vector.broadcast %cst_320 : f32 to vector<2x128xf32>
    %934 = arith.addf %933, %932 : vector<2x128xf32>
    %935 = arith.divf %933, %934 : vector<2x128xf32>
    %936 = vector.extract_strided_slice %929 {offsets = [0, 128], sizes = [2, 128], strides = [1, 1]} : vector<2x512xf32> to vector<2x128xf32>
    %937 = arith.negf %936 : vector<2x128xf32>
    %938 = math.exp %937 : vector<2x128xf32>
    %cst_321 = arith.constant 1.000000e+00 : f32
    %939 = vector.broadcast %cst_321 : f32 to vector<2x128xf32>
    %940 = arith.addf %939, %938 : vector<2x128xf32>
    %941 = arith.divf %939, %940 : vector<2x128xf32>
    %942 = vector.extract_strided_slice %929 {offsets = [0, 256], sizes = [2, 128], strides = [1, 1]} : vector<2x512xf32> to vector<2x128xf32>
    %943 = math.tanh %942 : vector<2x128xf32>
    %944 = vector.extract_strided_slice %929 {offsets = [0, 384], sizes = [2, 128], strides = [1, 1]} : vector<2x512xf32> to vector<2x128xf32>
    %945 = arith.negf %944 : vector<2x128xf32>
    %946 = math.exp %945 : vector<2x128xf32>
    %cst_322 = arith.constant 1.000000e+00 : f32
    %947 = vector.broadcast %cst_322 : f32 to vector<2x128xf32>
    %948 = arith.addf %947, %946 : vector<2x128xf32>
    %949 = arith.divf %947, %948 : vector<2x128xf32>
    %950 = arith.mulf %941, %922 : vector<2x128xf32>
    %951 = arith.mulf %935, %943 : vector<2x128xf32>
    %952 = arith.addf %950, %951 : vector<2x128xf32>
    %953 = math.tanh %952 : vector<2x128xf32>
    %954 = arith.mulf %949, %953 : vector<2x128xf32>
    %c12_323 = arith.constant 12 : index
    %c0_324 = arith.constant 0 : index
    %955 = vector.load %arg16[%c12_323, %c0_324] : memref<16x128xf32, #tpu.memory_space<vmem>>, vector<2x128xf32>
    tpu.vector_store %arg16[%c12_323, %c0_324], %954 {strides = array<i32>} : memref<16x128xf32, #tpu.memory_space<vmem>>, vector<2x128xf32>,
    %c14_325 = arith.constant 14 : index
    %c0_326 = arith.constant 0 : index
    %956 = vector.load %arg17[%c14_325, %c0_326] : memref<16x512xf32, #tpu.memory_space<vmem>>, vector<2x512xf32>
    %c0_327 = arith.constant 0 : index
    %c0_328 = arith.constant 0 : index
    %957 = vector.load %arg11[%c0_327, %c0_328] : memref<128x512xf32, #tpu.memory_space<vmem>>, vector<128x512xf32>
    %cst_329 = arith.constant dense<0.000000e+00> : vector<2x512xf32>
    %958 = tpu.matmul %954, %957, %cst_329 {dimension_numbers = #tpu.dot_dimension_numbers<[1], [0], [0], [1], [0, 0, 1, 1], [], []>} : vector<2x128xf32>, vector<128x512xf32>, vector<2x512xf32> -> vector<2x512xf32>
    %959 = arith.addf %956, %958 : vector<2x512xf32>
    %960 = vector.extract_strided_slice %959 {offsets = [0, 0], sizes = [2, 128], strides = [1, 1]} : vector<2x512xf32> to vector<2x128xf32>
    %961 = arith.negf %960 : vector<2x128xf32>
    %962 = math.exp %961 : vector<2x128xf32>
    %cst_330 = arith.constant 1.000000e+00 : f32
    %963 = vector.broadcast %cst_330 : f32 to vector<2x128xf32>
    %964 = arith.addf %963, %962 : vector<2x128xf32>
    %965 = arith.divf %963, %964 : vector<2x128xf32>
    %966 = vector.extract_strided_slice %959 {offsets = [0, 128], sizes = [2, 128], strides = [1, 1]} : vector<2x512xf32> to vector<2x128xf32>
    %967 = arith.negf %966 : vector<2x128xf32>
    %968 = math.exp %967 : vector<2x128xf32>
    %cst_331 = arith.constant 1.000000e+00 : f32
    %969 = vector.broadcast %cst_331 : f32 to vector<2x128xf32>
    %970 = arith.addf %969, %968 : vector<2x128xf32>
    %971 = arith.divf %969, %970 : vector<2x128xf32>
    %972 = vector.extract_strided_slice %959 {offsets = [0, 256], sizes = [2, 128], strides = [1, 1]} : vector<2x512xf32> to vector<2x128xf32>
    %973 = math.tanh %972 : vector<2x128xf32>
    %974 = vector.extract_strided_slice %959 {offsets = [0, 384], sizes = [2, 128], strides = [1, 1]} : vector<2x512xf32> to vector<2x128xf32>
    %975 = arith.negf %974 : vector<2x128xf32>
    %976 = math.exp %975 : vector<2x128xf32>
    %cst_332 = arith.constant 1.000000e+00 : f32
    %977 = vector.broadcast %cst_332 : f32 to vector<2x128xf32>
    %978 = arith.addf %977, %976 : vector<2x128xf32>
    %979 = arith.divf %977, %978 : vector<2x128xf32>
    %980 = arith.mulf %971, %952 : vector<2x128xf32>
    %981 = arith.mulf %965, %973 : vector<2x128xf32>
    %982 = arith.addf %980, %981 : vector<2x128xf32>
    %983 = math.tanh %982 : vector<2x128xf32>
    %984 = arith.mulf %979, %983 : vector<2x128xf32>
    %c14_333 = arith.constant 14 : index
    %c0_334 = arith.constant 0 : index
    %985 = vector.load %arg16[%c14_333, %c0_334] : memref<16x128xf32, #tpu.memory_space<vmem>>, vector<2x128xf32>
    tpu.vector_store %arg16[%c14_333, %c0_334], %984 {strides = array<i32>} : memref<16x128xf32, #tpu.memory_space<vmem>>, vector<2x128xf32>,
    %c0_335 = arith.constant 0 : index
    %c0_336 = arith.constant 0 : index
    %986 = vector.load %arg16[%c0_335, %c0_336] : memref<16x128xf32, #tpu.memory_space<vmem>>, vector<16x128xf32>
    %c0_337 = arith.constant 0 : index
    %c0_338 = arith.constant 0 : index
    %987 = vector.load %arg13[%c0_337, %c0_338] : memref<128x128xf32, #tpu.memory_space<vmem>>, vector<128x128xf32>
    %cst_339 = arith.constant dense<0.000000e+00> : vector<16x128xf32>
    %988 = tpu.matmul %986, %987, %cst_339 {dimension_numbers = #tpu.dot_dimension_numbers<[1], [0], [0], [1], [0, 0, 1, 1], [], []>} : vector<16x128xf32>, vector<128x128xf32>, vector<16x128xf32> -> vector<16x128xf32>
    %c0_340 = arith.constant 0 : index
    %c0_341 = arith.constant 0 : index
    %989 = vector.load %arg14[%c0_340, %c0_341] : memref<1x128xf32, #tpu.memory_space<vmem>>, vector<1x128xf32>
    %990 = vector.broadcast %989 : vector<1x128xf32> to vector<16x128xf32>
    %991 = arith.addf %988, %990 : vector<16x128xf32>
    %c0_342 = arith.constant 0 : index
    %c0_343 = arith.constant 0 : index
    %992 = vector.load %arg15[%c0_342, %c0_343] : memref<16x128xf32, #tpu.memory_space<vmem>>, vector<16x128xf32>
    tpu.vector_store %arg15[%c0_342, %c0_343], %991 {strides = array<i32>} : memref<16x128xf32, #tpu.memory_space<vmem>>, vector<16x128xf32>,
    return
  }
}

</mosaic_0001>

<llo_original>
// kernel: recurrent_autoencoder_forward.1
$region0: #{recurrent_autoencoder_forward.1}
  #allocation0 [shape = 'u32[]', space=smem, size = 0x4, offset = 0x4, fixed_abs, tag = 'smem constant byte address 0x4 - core index']
  #allocation1 [shape = 'u32[144,128]{1,0:T(1,128)}', space=vmem, size = 0x12000, scoped, tag = 'internal scratch']
  #allocation2 [shape = 'f32[16,128]{1,0:T(8,128)}', space=vmem, size = 0x2000, scoped, tag = 'scratch operand']
  #allocation3 [shape = 'f32[16,512]{1,0:T(8,128)}', space=vmem, size = 0x8000, scoped, tag = 'scratch operand']
  %s0 = inlined_call_operand.vmem [shape: f32[16,128], index: 0, kind: input, shape index: {}]
  %s1 = inlined_call_operand.vmem [shape: f32[128,512], index: 1, kind: input, shape index: {}]
  %s2 = inlined_call_operand.vmem [shape: f32[128,512], index: 2, kind: input, shape index: {}]
  %s3 = inlined_call_operand.vmem [shape: f32[1,512], index: 3, kind: input, shape index: {}]
  %s4 = inlined_call_operand.vmem [shape: f32[128,512], index: 4, kind: input, shape index: {}]
  %s5 = inlined_call_operand.vmem [shape: f32[128,512], index: 5, kind: input, shape index: {}]
  %s6 = inlined_call_operand.vmem [shape: f32[1,512], index: 6, kind: input, shape index: {}]
  %s7 = inlined_call_operand.vmem [shape: f32[128,512], index: 7, kind: input, shape index: {}]
  %s8 = inlined_call_operand.vmem [shape: f32[128,512], index: 8, kind: input, shape index: {}]
  %s9 = inlined_call_operand.vmem [shape: f32[1,512], index: 9, kind: input, shape index: {}]
  %s10 = inlined_call_operand.vmem [shape: f32[128,512], index: 10, kind: input, shape index: {}]
  %s11 = inlined_call_operand.vmem [shape: f32[128,512], index: 11, kind: input, shape index: {}]
  %s12 = inlined_call_operand.vmem [shape: f32[1,512], index: 12, kind: input, shape index: {}]
  %s13 = inlined_call_operand.vmem [shape: f32[128,128], index: 13, kind: input, shape index: {}]
  %s14 = inlined_call_operand.vmem [shape: f32[1,128], index: 14, kind: input, shape index: {}]
  %s15 = inlined_call_operand.vmem [shape: f32[16,128], index: 15, kind: output, shape index: {}]
  %s16 = sld [smem:[#allocation0]]
  $region70: #{recurrent_autoencoder_forward.1} parent=0
    _
  %s18 = ssub.s32 1, %s16
  %s19 = scalar_select 0, %s18, %s16
  // Predicated region
  $region2: #{recurrent_autoencoder_forward.1} parent=0 // pred_check
    _
  $region3: #{recurrent_autoencoder_forward.1} parent=0 // pred_check_branch
    %21 = sbr.rel (0) target = $region5
  $region4: #{recurrent_autoencoder_forward.1} parent=0 // pred_region
    _
  $region5: #{recurrent_autoencoder_forward.1} parent=0 // pred_fallthru
    _
  // Predicated region
  $region6: #{recurrent_autoencoder_forward.1} parent=0 // pred_check
    _
  $region7: #{recurrent_autoencoder_forward.1} parent=0 // pred_check_branch
    %23 = sbr.rel (0) target = $region9
  $region8: #{recurrent_autoencoder_forward.1} parent=0 // pred_region
    _
  $region9: #{recurrent_autoencoder_forward.1} parent=0 // pred_fallthru
    _
  // Predicated region
  $region10: #{recurrent_autoencoder_forward.1} parent=0 // pred_check
    _
  $region11: #{recurrent_autoencoder_forward.1} parent=0 // pred_check_branch
    %25 = sbr.rel (0) target = $region13
  $region12: #{recurrent_autoencoder_forward.1} parent=0 // pred_region
    _
  $region13: #{recurrent_autoencoder_forward.1} parent=0 // pred_fallthru
    _
  // Predicated region
  $region14: #{recurrent_autoencoder_forward.1} parent=0 // pred_check
    _
  $region15: #{recurrent_autoencoder_forward.1} parent=0 // pred_check_branch
    %27 = sbr.rel (0) target = $region17
  $region16: #{recurrent_autoencoder_forward.1} parent=0 // pred_region
    _
  $region17: #{recurrent_autoencoder_forward.1} parent=0 // pred_fallthru
    _
  // Predicated region
  $region18: #{recurrent_autoencoder_forward.1} parent=0 // pred_check
    _
  $region19: #{recurrent_autoencoder_forward.1} parent=0 // pred_check_branch
    %29 = sbr.rel (0) target = $region21
  $region20: #{recurrent_autoencoder_forward.1} parent=0 // pred_region
    _
  $region21: #{recurrent_autoencoder_forward.1} parent=0 // pred_fallthru
    _
  // Predicated region
  $region22: #{recurrent_autoencoder_forward.1} parent=0 // pred_check
    _
  $region23: #{recurrent_autoencoder_forward.1} parent=0 // pred_check_branch
    %31 = sbr.rel (0) target = $region25
  $region24: #{recurrent_autoencoder_forward.1} parent=0 // pred_region
    _
  $region25: #{recurrent_autoencoder_forward.1} parent=0 // pred_fallthru
    _
  // Predicated region
  $region26: #{recurrent_autoencoder_forward.1} parent=0 // pred_check
    _
  $region27: #{recurrent_autoencoder_forward.1} parent=0 // pred_check_branch
    %33 = sbr.rel (0) target = $region29
  $region28: #{recurrent_autoencoder_forward.1} parent=0 // pred_region
    _
  $region29: #{recurrent_autoencoder_forward.1} parent=0 // pred_fallthru
    _
  // Predicated region
  $region30: #{recurrent_autoencoder_forward.1} parent=0 // pred_check
    _
  $region31: #{recurrent_autoencoder_forward.1} parent=0 // pred_check_branch
    %35 = sbr.rel (0) target = $region33
  $region32: #{recurrent_autoencoder_forward.1} parent=0 // pred_region
    _
  $region33: #{recurrent_autoencoder_forward.1} parent=0 // pred_fallthru
    _
  // Predicated region
  $region34: #{recurrent_autoencoder_forward.1} parent=0 // pred_check
    _
  $region35: #{recurrent_autoencoder_forward.1} parent=0 // pred_check_branch
    %37 = sbr.rel (0) target = $region37
  $region36: #{recurrent_autoencoder_forward.1} parent=0 // pred_region
    _
  $region37: #{recurrent_autoencoder_forward.1} parent=0 // pred_fallthru
    _
  // Predicated region
  $region38: #{recurrent_autoencoder_forward.1} parent=0 // pred_check
    _
  $region39: #{recurrent_autoencoder_forward.1} parent=0 // pred_check_branch
    %39 = sbr.rel (0) target = $region41
  $region40: #{recurrent_autoencoder_forward.1} parent=0 // pred_region
    _
  $region41: #{recurrent_autoencoder_forward.1} parent=0 // pred_fallthru
    _
  // Predicated region
  $region42: #{recurrent_autoencoder_forward.1} parent=0 // pred_check
    _
  $region43: #{recurrent_autoencoder_forward.1} parent=0 // pred_check_branch
    %41 = sbr.rel (0) target = $region45
  $region44: #{recurrent_autoencoder_forward.1} parent=0 // pred_region
    _
  $region45: #{recurrent_autoencoder_forward.1} parent=0 // pred_fallthru
    _
  // Predicated region
  $region46: #{recurrent_autoencoder_forward.1} parent=0 // pred_check
    _
  $region47: #{recurrent_autoencoder_forward.1} parent=0 // pred_check_branch
    %43 = sbr.rel (0) target = $region49
  $region48: #{recurrent_autoencoder_forward.1} parent=0 // pred_region
    _
  $region49: #{recurrent_autoencoder_forward.1} parent=0 // pred_fallthru
    _
  // Predicated region
  $region50: #{recurrent_autoencoder_forward.1} parent=0 // pred_check
    _
  $region51: #{recurrent_autoencoder_forward.1} parent=0 // pred_check_branch
    %45 = sbr.rel (0) target = $region53
  $region52: #{recurrent_autoencoder_forward.1} parent=0 // pred_region
    _
  $region53: #{recurrent_autoencoder_forward.1} parent=0 // pred_fallthru
    _
  // Predicated region
  $region54: #{recurrent_autoencoder_forward.1} parent=0 // pred_check
    _
  $region55: #{recurrent_autoencoder_forward.1} parent=0 // pred_check_branch
    %47 = sbr.rel (0) target = $region57
  $region56: #{recurrent_autoencoder_forward.1} parent=0 // pred_region
    _
  $region57: #{recurrent_autoencoder_forward.1} parent=0 // pred_fallthru
    _
  // Predicated region
  $region58: #{recurrent_autoencoder_forward.1} parent=0 // pred_check
    _
  $region59: #{recurrent_autoencoder_forward.1} parent=0 // pred_check_branch
    %49 = sbr.rel (0) target = $region61
  $region60: #{recurrent_autoencoder_forward.1} parent=0 // pred_region
    _
  $region61: #{recurrent_autoencoder_forward.1} parent=0 // pred_fallthru
    _
  %v50 = vld [vmem:[%s0] sm:$0xff]
  %v51 = vld [vmem:[%s0 + $0x8] sm:$0xff]
  %v52 = vld [vmem:[%s1] sm:$0xff]
  %v53 = vld [vmem:[%s1 + $0x8] sm:$0xff]
  %v54 = vld [vmem:[%s1 + $0x10] sm:$0xff]
  %v55 = vld [vmem:[%s1 + $0x18] sm:$0xff]
  %v56 = vld [vmem:[%s1 + $0x20] sm:$0xff]
  %v57 = vld [vmem:[%s1 + $0x28] sm:$0xff]
  %v58 = vld [vmem:[%s1 + $0x30] sm:$0xff]
  %v59 = vld [vmem:[%s1 + $0x38] sm:$0xff]
  %v60 = vld [vmem:[%s1 + $0x40] sm:$0xff]
  %v61 = vld [vmem:[%s1 + $0x48] sm:$0xff]
  %v62 = vld [vmem:[%s1 + $0x50] sm:$0xff]
  %v63 = vld [vmem:[%s1 + $0x58] sm:$0xff]
  %v64 = vld [vmem:[%s1 + $0x60] sm:$0xff]
  %v65 = vld [vmem:[%s1 + $0x68] sm:$0xff]
  %v66 = vld [vmem:[%s1 + $0x70] sm:$0xff]
  %v67 = vld [vmem:[%s1 + $0x78] sm:$0xff]
  %v68 = vld [vmem:[%s1 + $0x80] sm:$0xff]
  %v69 = vld [vmem:[%s1 + $0x88] sm:$0xff]
  %v70 = vld [vmem:[%s1 + $0x90] sm:$0xff]
  %v71 = vld [vmem:[%s1 + $0x98] sm:$0xff]
  %v72 = vld [vmem:[%s1 + $0xa0] sm:$0xff]
  %v73 = vld [vmem:[%s1 + $0xa8] sm:$0xff]
  %v74 = vld [vmem:[%s1 + $0xb0] sm:$0xff]
  %v75 = vld [vmem:[%s1 + $0xb8] sm:$0xff]
  %v76 = vld [vmem:[%s1 + $0xc0] sm:$0xff]
  %v77 = vld [vmem:[%s1 + $0xc8] sm:$0xff]
  %v78 = vld [vmem:[%s1 + $0xd0] sm:$0xff]
  %v79 = vld [vmem:[%s1 + $0xd8] sm:$0xff]
  %v80 = vld [vmem:[%s1 + $0xe0] sm:$0xff]
  %v81 = vld [vmem:[%s1 + $0xe8] sm:$0xff]
  %v82 = vld [vmem:[%s1 + $0xf0] sm:$0xff]
  %v83 = vld [vmem:[%s1 + $0xf8] sm:$0xff]
  %v84 = vld [vmem:[%s1 + $0x100] sm:$0xff]
  %v85 = vld [vmem:[%s1 + $0x108] sm:$0xff]
  %v86 = vld [vmem:[%s1 + $0x110] sm:$0xff]
  %v87 = vld [vmem:[%s1 + $0x118] sm:$0xff]
  %v88 = vld [vmem:[%s1 + $0x120] sm:$0xff]
  %v89 = vld [vmem:[%s1 + $0x128] sm:$0xff]
  %v90 = vld [vmem:[%s1 + $0x130] sm:$0xff]
  %v91 = vld [vmem:[%s1 + $0x138] sm:$0xff]
  %v92 = vld [vmem:[%s1 + $0x140] sm:$0xff]
  %v93 = vld [vmem:[%s1 + $0x148] sm:$0xff]
  %v94 = vld [vmem:[%s1 + $0x150] sm:$0xff]
  %v95 = vld [vmem:[%s1 + $0x158] sm:$0xff]
  %v96 = vld [vmem:[%s1 + $0x160] sm:$0xff]
  %v97 = vld [vmem:[%s1 + $0x168] sm:$0xff]
  %v98 = vld [vmem:[%s1 + $0x170] sm:$0xff]
  %v99 = vld [vmem:[%s1 + $0x178] sm:$0xff]
  %v100 = vld [vmem:[%s1 + $0x180] sm:$0xff]
  %v101 = vld [vmem:[%s1 + $0x188] sm:$0xff]
  %v102 = vld [vmem:[%s1 + $0x190] sm:$0xff]
  %v103 = vld [vmem:[%s1 + $0x198] sm:$0xff]
  %v104 = vld [vmem:[%s1 + $0x1a0] sm:$0xff]
  %v105 = vld [vmem:[%s1 + $0x1a8] sm:$0xff]
  %v106 = vld [vmem:[%s1 + $0x1b0] sm:$0xff]
  %v107 = vld [vmem:[%s1 + $0x1b8] sm:$0xff]
  %v108 = vld [vmem:[%s1 + $0x1c0] sm:$0xff]
  %v109 = vld [vmem:[%s1 + $0x1c8] sm:$0xff]
  %v110 = vld [vmem:[%s1 + $0x1d0] sm:$0xff]
  %v111 = vld [vmem:[%s1 + $0x1d8] sm:$0xff]
  %v112 = vld [vmem:[%s1 + $0x1e0] sm:$0xff]
  %v113 = vld [vmem:[%s1 + $0x1e8] sm:$0xff]
  %v114 = vld [vmem:[%s1 + $0x1f0] sm:$0xff]
  %v115 = vld [vmem:[%s1 + $0x1f8] sm:$0xff]
  %v116 = vld [vmem:[%s3] sm:$0xf]
  %v118 = vlaneseq
  %v119 = vshrl.u32 %v118, 7
  %v120 = vsub.s32 0, %v119
  %v121 = vrot.slane %v116, %v120
  %v122 = vlaneseq
  %v123 = vshrl.u32 %v122, 7
  %v124 = vsub.s32 1, %v123
  %v125 = vrot.slane %v116, %v124
  %v126 = vlaneseq
  %v127 = vshrl.u32 %v126, 7
  %v128 = vsub.s32 2, %v127
  %v129 = vrot.slane %v116, %v128
  %v130 = vlaneseq
  %v131 = vshrl.u32 %v130, 7
  %v132 = vsub.s32 3, %v131
  %v133 = vrot.slane %v116, %v132
  %138 = vmatprep.subr.mxu0 %v53
  %139 = vmatpush1.msra.mxu0 %v52
  %140 = vmatprep.subr.mxu0 %v57
  %141 = vmatpush1.msra.mxu0 %v56
  %142 = vmatprep.subr.mxu0 %v61
  %143 = vmatpush1.msra.mxu0 %v60
  %144 = vmatprep.subr.mxu0 %v65
  %145 = vmatpush1.msra.mxu0 %v64
  %146 = vmatprep.subr.mxu0 %v69
  %147 = vmatpush1.msra.mxu0 %v68
  %148 = vmatprep.subr.mxu0 %v73
  %149 = vmatpush1.msra.mxu0 %v72
  %150 = vmatprep.subr.mxu0 %v77
  %151 = vmatpush1.msra.mxu0 %v76
  %152 = vmatprep.subr.mxu0 %v81
  %153 = vmatpush1.msra.mxu0 %v80
  %154 = vmatprep.subr.mxu0 %v85
  %155 = vmatpush1.msra.mxu0 %v84
  %156 = vmatprep.subr.mxu0 %v89
  %157 = vmatpush1.msra.mxu0 %v88
  %158 = vmatprep.subr.mxu0 %v93
  %159 = vmatpush1.msra.mxu0 %v92
  %160 = vmatprep.subr.mxu0 %v97
  %161 = vmatpush1.msra.mxu0 %v96
  %162 = vmatprep.subr.mxu0 %v101
  %163 = vmatpush1.msra.mxu0 %v100
  %164 = vmatprep.subr.mxu0 %v105
  %165 = vmatpush1.msra.mxu0 %v104
  %166 = vmatprep.subr.mxu0 %v109
  %167 = vmatpush1.msra.mxu0 %v108
  %168 = vmatprep.subr.mxu0 %v113
  %169 = vmatpush1.msra.mxu0 %v112
  %170 = vmatprep.subr.mxu0 0.0
  %171 = vmatpush1.msra.mxu0 0.0
  %172 = vmatprep.subr.mxu0 0.0
  %173 = vmatpush1.msra.mxu0 0.0
  %174 = vmatprep.subr.mxu0 0.0
  %175 = vmatpush1.msra.mxu0 0.0
  %176 = vmatprep.subr.mxu0 0.0
  %177 = vmatpush1.msra.mxu0 0.0
  %178 = vmatprep.subr.mxu0 0.0
  %179 = vmatpush1.msra.mxu0 0.0
  %180 = vmatprep.subr.mxu0 0.0
  %181 = vmatpush1.msra.mxu0 0.0
  %182 = vmatprep.subr.mxu0 0.0
  %183 = vmatpush1.msra.mxu0 0.0
  %184 = vmatprep.subr.mxu0 0.0
  %185 = vmatpush1.msra.mxu0 0.0
  %186 = vmatprep.subr.mxu0 0.0
  %187 = vmatpush1.msra.mxu0 0.0
  %188 = vmatprep.subr.mxu0 0.0
  %189 = vmatpush1.msra.mxu0 0.0
  %190 = vmatprep.subr.mxu0 0.0
  %191 = vmatpush1.msra.mxu0 0.0
  %192 = vmatprep.subr.mxu0 0.0
  %193 = vmatpush1.msra.mxu0 0.0
  %194 = vmatprep.subr.mxu0 0.0
  %195 = vmatpush1.msra.mxu0 0.0
  %196 = vmatprep.subr.mxu0 0.0
  %197 = vmatpush1.msra.mxu0 0.0
  %198 = vmatprep.subr.mxu0 0.0
  %199 = vmatpush1.msra.mxu0 0.0
  %200 = vmatprep.subr.mxu0 0.0
  %201 = vmatpush1.msra.mxu0 0.0
  %202 = vmatprep.mubr.f32.mxu0 0.0
  %203 = vmatmul.mubr.f32.gmra.mrb[0].mxu0 %v50
  %v204 = vpop.f32.mrb[0].mxu0
  %v205 = vadd.f32 %v121, %v204
  %v206 = vpop.f32.mrb[0].mxu0
  %v207 = vadd.f32 %v125, %v206
  %208 = vmatprep.mubr.f32.mxu0 0.0
  %209 = vmatmul.mubr.f32.gmra.mrb[0].mxu0 %v51
  %v210 = vpop.f32.mrb[0].mxu0
  %v211 = vadd.f32 %v121, %v210
  %v212 = vpop.f32.mrb[0].mxu0
  %v213 = vadd.f32 %v125, %v212
  %214 = vdwg.mxu0
  %215 = vmatprep.subr.mxu0 %v55
  %216 = vmatpush1.msra.mxu0 %v54
  %217 = vmatprep.subr.mxu0 %v59
  %218 = vmatpush1.msra.mxu0 %v58
  %219 = vmatprep.subr.mxu0 %v63
  %220 = vmatpush1.msra.mxu0 %v62
  %221 = vmatprep.subr.mxu0 %v67
  %222 = vmatpush1.msra.mxu0 %v66
  %223 = vmatprep.subr.mxu0 %v71
  %224 = vmatpush1.msra.mxu0 %v70
  %225 = vmatprep.subr.mxu0 %v75
  %226 = vmatpush1.msra.mxu0 %v74
  %227 = vmatprep.subr.mxu0 %v79
  %228 = vmatpush1.msra.mxu0 %v78
  %229 = vmatprep.subr.mxu0 %v83
  %230 = vmatpush1.msra.mxu0 %v82
  %231 = vmatprep.subr.mxu0 %v87
  %232 = vmatpush1.msra.mxu0 %v86
  %233 = vmatprep.subr.mxu0 %v91
  %234 = vmatpush1.msra.mxu0 %v90
  %235 = vmatprep.subr.mxu0 %v95
  %236 = vmatpush1.msra.mxu0 %v94
  %237 = vmatprep.subr.mxu0 %v99
  %238 = vmatpush1.msra.mxu0 %v98
  %239 = vmatprep.subr.mxu0 %v103
  %240 = vmatpush1.msra.mxu0 %v102
  %241 = vmatprep.subr.mxu0 %v107
  %242 = vmatpush1.msra.mxu0 %v106
  %243 = vmatprep.subr.mxu0 %v111
  %244 = vmatpush1.msra.mxu0 %v110
  %245 = vmatprep.subr.mxu0 %v115
  %246 = vmatpush1.msra.mxu0 %v114
  %247 = vmatprep.subr.mxu0 0.0
  %248 = vmatpush1.msra.mxu0 0.0
  %249 = vmatprep.subr.mxu0 0.0
  %250 = vmatpush1.msra.mxu0 0.0
  %251 = vmatprep.subr.mxu0 0.0
  %252 = vmatpush1.msra.mxu0 0.0
  %253 = vmatprep.subr.mxu0 0.0
  %254 = vmatpush1.msra.mxu0 0.0
  %255 = vmatprep.subr.mxu0 0.0
  %256 = vmatpush1.msra.mxu0 0.0
  %257 = vmatprep.subr.mxu0 0.0
  %258 = vmatpush1.msra.mxu0 0.0
  %259 = vmatprep.subr.mxu0 0.0
  %260 = vmatpush1.msra.mxu0 0.0
  %261 = vmatprep.subr.mxu0 0.0
  %262 = vmatpush1.msra.mxu0 0.0
  %263 = vmatprep.subr.mxu0 0.0
  %264 = vmatpush1.msra.mxu0 0.0
  %265 = vmatprep.subr.mxu0 0.0
  %266 = vmatpush1.msra.mxu0 0.0
  %267 = vmatprep.subr.mxu0 0.0
  %268 = vmatpush1.msra.mxu0 0.0
  %269 = vmatprep.subr.mxu0 0.0
  %270 = vmatpush1.msra.mxu0 0.0
  %271 = vmatprep.subr.mxu0 0.0
  %272 = vmatpush1.msra.mxu0 0.0
  %273 = vmatprep.subr.mxu0 0.0
  %274 = vmatpush1.msra.mxu0 0.0
  %275 = vmatprep.subr.mxu0 0.0
  %276 = vmatpush1.msra.mxu0 0.0
  %277 = vmatprep.subr.mxu0 0.0
  %278 = vmatpush1.msra.mxu0 0.0
  %279 = vmatprep.mubr.f32.mxu0 0.0
  %280 = vmatmul.mubr.f32.gmra.mrb[0].mxu0 %v50
  %v281 = vpop.f32.mrb[0].mxu0
  %v282 = vadd.f32 %v129, %v281
  %v283 = vpop.f32.mrb[0].mxu0
  %v284 = vadd.f32 %v133, %v283
  %285 = vmatprep.mubr.f32.mxu0 0.0
  %286 = vmatmul.mubr.f32.gmra.mrb[0].mxu0 %v51
  %v287 = vpop.f32.mrb[0].mxu0
  %v288 = vadd.f32 %v129, %v287
  %v289 = vpop.f32.mrb[0].mxu0
  %v290 = vadd.f32 %v133, %v289
  %291 = vdwg.mxu0
  %292 = vst [vmem:[#allocation3] sm:$0xff] %v205
  %293 = vst [vmem:[#allocation3 + $0x8] sm:$0xff] %v207
  %294 = vst [vmem:[#allocation3 + $0x10] sm:$0xff] %v282
  %295 = vst [vmem:[#allocation3 + $0x18] sm:$0xff] %v284
  %296 = vst [vmem:[#allocation3 + $0x20] sm:$0xff] %v211
  %297 = vst [vmem:[#allocation3 + $0x28] sm:$0xff] %v213
  %298 = vst [vmem:[#allocation3 + $0x30] sm:$0xff] %v288
  %299 = vst [vmem:[#allocation3 + $0x38] sm:$0xff] %v290
  %v300 = vld [vmem:[#allocation3] sm:$0x3]
  %v301 = vld [vmem:[#allocation3 + $0x8] sm:$0x3]
  %v302 = vld [vmem:[#allocation3 + $0x10] sm:$0x3]
  %v303 = vld [vmem:[#allocation3 + $0x18] sm:$0x3]
  %v304 = vld [vmem:[%s2] sm:$0xff]
  %v305 = vld [vmem:[%s2 + $0x8] sm:$0xff]
  %v306 = vld [vmem:[%s2 + $0x10] sm:$0xff]
  %v307 = vld [vmem:[%s2 + $0x18] sm:$0xff]
  %v308 = vld [vmem:[%s2 + $0x20] sm:$0xff]
  %v309 = vld [vmem:[%s2 + $0x28] sm:$0xff]
  %v310 = vld [vmem:[%s2 + $0x30] sm:$0xff]
  %v311 = vld [vmem:[%s2 + $0x38] sm:$0xff]
  %v312 = vld [vmem:[%s2 + $0x40] sm:$0xff]
  %v313 = vld [vmem:[%s2 + $0x48] sm:$0xff]
  %v314 = vld [vmem:[%s2 + $0x50] sm:$0xff]
  %v315 = vld [vmem:[%s2 + $0x58] sm:$0xff]
  %v316 = vld [vmem:[%s2 + $0x60] sm:$0xff]
  %v317 = vld [vmem:[%s2 + $0x68] sm:$0xff]
  %v318 = vld [vmem:[%s2 + $0x70] sm:$0xff]
  %v319 = vld [vmem:[%s2 + $0x78] sm:$0xff]
  %v320 = vld [vmem:[%s2 + $0x80] sm:$0xff]
  %v321 = vld [vmem:[%s2 + $0x88] sm:$0xff]
  %v322 = vld [vmem:[%s2 + $0x90] sm:$0xff]
  %v323 = vld [vmem:[%s2 + $0x98] sm:$0xff]
  %v324 = vld [vmem:[%s2 + $0xa0] sm:$0xff]
  %v325 = vld [vmem:[%s2 + $0xa8] sm:$0xff]
  %v326 = vld [vmem:[%s2 + $0xb0] sm:$0xff]
  %v327 = vld [vmem:[%s2 + $0xb8] sm:$0xff]
  %v328 = vld [vmem:[%s2 + $0xc0] sm:$0xff]
  %v329 = vld [vmem:[%s2 + $0xc8] sm:$0xff]
  %v330 = vld [vmem:[%s2 + $0xd0] sm:$0xff]
  %v331 = vld [vmem:[%s2 + $0xd8] sm:$0xff]
  %v332 = vld [vmem:[%s2 + $0xe0] sm:$0xff]
  %v333 = vld [vmem:[%s2 + $0xe8] sm:$0xff]
  %v334 = vld [vmem:[%s2 + $0xf0] sm:$0xff]
  %v335 = vld [vmem:[%s2 + $0xf8] sm:$0xff]
  %v336 = vld [vmem:[%s2 + $0x100] sm:$0xff]
  %v337 = vld [vmem:[%s2 + $0x108] sm:$0xff]
  %v338 = vld [vmem:[%s2 + $0x110] sm:$0xff]
  %v339 = vld [vmem:[%s2 + $0x118] sm:$0xff]
  %v340 = vld [vmem:[%s2 + $0x120] sm:$0xff]
  %v341 = vld [vmem:[%s2 + $0x128] sm:$0xff]
  %v342 = vld [vmem:[%s2 + $0x130] sm:$0xff]
  %v343 = vld [vmem:[%s2 + $0x138] sm:$0xff]
  %v344 = vld [vmem:[%s2 + $0x140] sm:$0xff]
  %v345 = vld [vmem:[%s2 + $0x148] sm:$0xff]
  %v346 = vld [vmem:[%s2 + $0x150] sm:$0xff]
  %v347 = vld [vmem:[%s2 + $0x158] sm:$0xff]
  %v348 = vld [vmem:[%s2 + $0x160] sm:$0xff]
  %v349 = vld [vmem:[%s2 + $0x168] sm:$0xff]
  %v350 = vld [vmem:[%s2 + $0x170] sm:$0xff]
  %v351 = vld [vmem:[%s2 + $0x178] sm:$0xff]
  %v352 = vld [vmem:[%s2 + $0x180] sm:$0xff]
  %v353 = vld [vmem:[%s2 + $0x188] sm:$0xff]
  %v354 = vld [vmem:[%s2 + $0x190] sm:$0xff]
  %v355 = vld [vmem:[%s2 + $0x198] sm:$0xff]
  %v356 = vld [vmem:[%s2 + $0x1a0] sm:$0xff]
  %v357 = vld [vmem:[%s2 + $0x1a8] sm:$0xff]
  %v358 = vld [vmem:[%s2 + $0x1b0] sm:$0xff]
  %v359 = vld [vmem:[%s2 + $0x1b8] sm:$0xff]
  %v360 = vld [vmem:[%s2 + $0x1c0] sm:$0xff]
  %v361 = vld [vmem:[%s2 + $0x1c8] sm:$0xff]
  %v362 = vld [vmem:[%s2 + $0x1d0] sm:$0xff]
  %v363 = vld [vmem:[%s2 + $0x1d8] sm:$0xff]
  %v364 = vld [vmem:[%s2 + $0x1e0] sm:$0xff]
  %v365 = vld [vmem:[%s2 + $0x1e8] sm:$0xff]
  %v366 = vld [vmem:[%s2 + $0x1f0] sm:$0xff]
  %v367 = vld [vmem:[%s2 + $0x1f8] sm:$0xff]
  %368 = vmatprep.subr.mxu0 %v305
  %369 = vmatpush1.msra.mxu0 %v304
  %370 = vmatprep.subr.mxu0 %v309
  %371 = vmatpush1.msra.mxu0 %v308
  %372 = vmatprep.subr.mxu0 %v313
  %373 = vmatpush1.msra.mxu0 %v312
  %374 = vmatprep.subr.mxu0 %v317
  %375 = vmatpush1.msra.mxu0 %v316
  %376 = vmatprep.subr.mxu0 %v321
  %377 = vmatpush1.msra.mxu0 %v320
  %378 = vmatprep.subr.mxu0 %v325
  %379 = vmatpush1.msra.mxu0 %v324
  %380 = vmatprep.subr.mxu0 %v329
  %381 = vmatpush1.msra.mxu0 %v328
  %382 = vmatprep.subr.mxu0 %v333
  %383 = vmatpush1.msra.mxu0 %v332
  %384 = vmatprep.subr.mxu0 %v337
  %385 = vmatpush1.msra.mxu0 %v336
  %386 = vmatprep.subr.mxu0 %v341
  %387 = vmatpush1.msra.mxu0 %v340
  %388 = vmatprep.subr.mxu0 %v345
  %389 = vmatpush1.msra.mxu0 %v344
  %390 = vmatprep.subr.mxu0 %v349
  %391 = vmatpush1.msra.mxu0 %v348
  %392 = vmatprep.subr.mxu0 %v353
  %393 = vmatpush1.msra.mxu0 %v352
  %394 = vmatprep.subr.mxu0 %v357
  %395 = vmatpush1.msra.mxu0 %v356
  %396 = vmatprep.subr.mxu0 %v361
  %397 = vmatpush1.msra.mxu0 %v360
  %398 = vmatprep.subr.mxu0 %v365
  %399 = vmatpush1.msra.mxu0 %v364
  %400 = vmatprep.subr.mxu0 0.0
  %401 = vmatpush1.msra.mxu0 0.0
  %402 = vmatprep.subr.mxu0 0.0
  %403 = vmatpush1.msra.mxu0 0.0
  %404 = vmatprep.subr.mxu0 0.0
  %405 = vmatpush1.msra.mxu0 0.0
  %406 = vmatprep.subr.mxu0 0.0
  %407 = vmatpush1.msra.mxu0 0.0
  %408 = vmatprep.subr.mxu0 0.0
  %409 = vmatpush1.msra.mxu0 0.0
  %410 = vmatprep.subr.mxu0 0.0
  %411 = vmatpush1.msra.mxu0 0.0
  %412 = vmatprep.subr.mxu0 0.0
  %413 = vmatpush1.msra.mxu0 0.0
  %414 = vmatprep.subr.mxu0 0.0
  %415 = vmatpush1.msra.mxu0 0.0
  %416 = vmatprep.subr.mxu0 0.0
  %417 = vmatpush1.msra.mxu0 0.0
  %418 = vmatprep.subr.mxu0 0.0
  %419 = vmatpush1.msra.mxu0 0.0
  %420 = vmatprep.subr.mxu0 0.0
  %421 = vmatpush1.msra.mxu0 0.0
  %422 = vmatprep.subr.mxu0 0.0
  %423 = vmatpush1.msra.mxu0 0.0
  %424 = vmatprep.subr.mxu0 0.0
  %425 = vmatpush1.msra.mxu0 0.0
  %426 = vmatprep.subr.mxu0 0.0
  %427 = vmatpush1.msra.mxu0 0.0
  %428 = vmatprep.subr.mxu0 0.0
  %429 = vmatpush1.msra.mxu0 0.0
  %430 = vmatprep.subr.mxu0 0.0
  %431 = vmatpush1.msra.mxu0 0.0
  %432 = vmatprep.mubr.f32.mxu0 0.0
  %433 = vmatmul.mubr.f32.gmra.mrb[0].mxu0 0.0
  %v434 = vpop.f32.mrb[0].mxu0
  %v435 = vadd.f32 0.0, %v434
  %v436 = vpop.f32.mrb[0].mxu0
  %v437 = vadd.f32 0.0, %v436
  %438 = vdwg.mxu0
  %439 = vmatprep.subr.mxu0 %v307
  %440 = vmatpush1.msra.mxu0 %v306
  %441 = vmatprep.subr.mxu0 %v311
  %442 = vmatpush1.msra.mxu0 %v310
  %443 = vmatprep.subr.mxu0 %v315
  %444 = vmatpush1.msra.mxu0 %v314
  %445 = vmatprep.subr.mxu0 %v319
  %446 = vmatpush1.msra.mxu0 %v318
  %447 = vmatprep.subr.mxu0 %v323
  %448 = vmatpush1.msra.mxu0 %v322
  %449 = vmatprep.subr.mxu0 %v327
  %450 = vmatpush1.msra.mxu0 %v326
  %451 = vmatprep.subr.mxu0 %v331
  %452 = vmatpush1.msra.mxu0 %v330
  %453 = vmatprep.subr.mxu0 %v335
  %454 = vmatpush1.msra.mxu0 %v334
  %455 = vmatprep.subr.mxu0 %v339
  %456 = vmatpush1.msra.mxu0 %v338
  %457 = vmatprep.subr.mxu0 %v343
  %458 = vmatpush1.msra.mxu0 %v342
  %459 = vmatprep.subr.mxu0 %v347
  %460 = vmatpush1.msra.mxu0 %v346
  %461 = vmatprep.subr.mxu0 %v351
  %462 = vmatpush1.msra.mxu0 %v350
  %463 = vmatprep.subr.mxu0 %v355
  %464 = vmatpush1.msra.mxu0 %v354
  %465 = vmatprep.subr.mxu0 %v359
  %466 = vmatpush1.msra.mxu0 %v358
  %467 = vmatprep.subr.mxu0 %v363
  %468 = vmatpush1.msra.mxu0 %v362
  %469 = vmatprep.subr.mxu0 %v367
  %470 = vmatpush1.msra.mxu0 %v366
  %471 = vmatprep.subr.mxu0 0.0
  %472 = vmatpush1.msra.mxu0 0.0
  %473 = vmatprep.subr.mxu0 0.0
  %474 = vmatpush1.msra.mxu0 0.0
  %475 = vmatprep.subr.mxu0 0.0
  %476 = vmatpush1.msra.mxu0 0.0
  %477 = vmatprep.subr.mxu0 0.0
  %478 = vmatpush1.msra.mxu0 0.0
  %479 = vmatprep.subr.mxu0 0.0
  %480 = vmatpush1.msra.mxu0 0.0
  %481 = vmatprep.subr.mxu0 0.0
  %482 = vmatpush1.msra.mxu0 0.0
  %483 = vmatprep.subr.mxu0 0.0
  %484 = vmatpush1.msra.mxu0 0.0
  %485 = vmatprep.subr.mxu0 0.0
  %486 = vmatpush1.msra.mxu0 0.0
  %487 = vmatprep.subr.mxu0 0.0
  %488 = vmatpush1.msra.mxu0 0.0
  %489 = vmatprep.subr.mxu0 0.0
  %490 = vmatpush1.msra.mxu0 0.0
  %491 = vmatprep.subr.mxu0 0.0
  %492 = vmatpush1.msra.mxu0 0.0
  %493 = vmatprep.subr.mxu0 0.0
  %494 = vmatpush1.msra.mxu0 0.0
  %495 = vmatprep.subr.mxu0 0.0
  %496 = vmatpush1.msra.mxu0 0.0
  %497 = vmatprep.subr.mxu0 0.0
  %498 = vmatpush1.msra.mxu0 0.0
  %499 = vmatprep.subr.mxu0 0.0
  %500 = vmatpush1.msra.mxu0 0.0
  %501 = vmatprep.subr.mxu0 0.0
  %502 = vmatpush1.msra.mxu0 0.0
  %503 = vmatprep.mubr.f32.mxu0 0.0
  %504 = vmatmul.mubr.f32.gmra.mrb[0].mxu0 0.0
  %v505 = vpop.f32.mrb[0].mxu0
  %v506 = vadd.f32 0.0, %v505
  %v507 = vpop.f32.mrb[0].mxu0
  %v508 = vadd.f32 0.0, %v507
  %509 = vdwg.mxu0
  %v510 = vadd.f32 %v300, %v435
  %v511 = vadd.f32 %v301, %v437
  %v512 = vadd.f32 %v302, %v506
  %v513 = vadd.f32 %v303, %v508
  %v514 = vxor.u32 %v510, 2147483648
  %v515 = vmul.f32 %v514, 1.442695
  %v516 = vpow.pop %v515
  %v517 = vadd.f32 %v516, 1.0
  %v518 = vrcp.pop %v517
  %v519 = vmul.f32 1.0, %v518
  %v520 = vxor.u32 %v511, 2147483648
  %v521 = vmul.f32 %v520, 1.442695
  %v522 = vpow.pop %v521
  %v523 = vadd.f32 %v522, 1.0
  %v524 = vrcp.pop %v523
  %v525 = vmul.f32 1.0, %v524
  %v526 = vtanh.pop %v512
  %v527 = vxor.u32 %v513, 2147483648
  %v528 = vmul.f32 %v527, 1.442695
  %v529 = vpow.pop %v528
  %v530 = vadd.f32 %v529, 1.0
  %v531 = vrcp.pop %v530
  %v532 = vmul.f32 1.0, %v531
  %v533 = vmul.f32 %v525, 0.0
  %v534 = vmul.f32 %v519, %v526
  %v535 = vadd.f32 %v533, %v534
  %v536 = vtanh.pop %v535
  %v537 = vmul.f32 %v532, %v536
  %538 = vst [vmem:[#allocation2] sm:$0x3] %v537
  %v539 = vld [vmem:[#allocation3] sm:$0xc]
  %v540 = vld [vmem:[#allocation3 + $0x8] sm:$0xc]
  %v541 = vld [vmem:[#allocation3 + $0x10] sm:$0xc]
  %v542 = vld [vmem:[#allocation3 + $0x18] sm:$0xc]
  %v543 = vld [vmem:[%s2] sm:$0xff]
  %v544 = vld [vmem:[%s2 + $0x8] sm:$0xff]
  %v545 = vld [vmem:[%s2 + $0x10] sm:$0xff]
  %v546 = vld [vmem:[%s2 + $0x18] sm:$0xff]
  %v547 = vld [vmem:[%s2 + $0x20] sm:$0xff]
  %v548 = vld [vmem:[%s2 + $0x28] sm:$0xff]
  %v549 = vld [vmem:[%s2 + $0x30] sm:$0xff]
  %v550 = vld [vmem:[%s2 + $0x38] sm:$0xff]
  %v551 = vld [vmem:[%s2 + $0x40] sm:$0xff]
  %v552 = vld [vmem:[%s2 + $0x48] sm:$0xff]
  %v553 = vld [vmem:[%s2 + $0x50] sm:$0xff]
  %v554 = vld [vmem:[%s2 + $0x58] sm:$0xff]
  %v555 = vld [vmem:[%s2 + $0x60] sm:$0xff]
  %v556 = vld [vmem:[%s2 + $0x68] sm:$0xff]
  %v557 = vld [vmem:[%s2 + $0x70] sm:$0xff]
  %v558 = vld [vmem:[%s2 + $0x78] sm:$0xff]
  %v559 = vld [vmem:[%s2 + $0x80] sm:$0xff]
  %v560 = vld [vmem:[%s2 + $0x88] sm:$0xff]
  %v561 = vld [vmem:[%s2 + $0x90] sm:$0xff]
  %v562 = vld [vmem:[%s2 + $0x98] sm:$0xff]
  %v563 = vld [vmem:[%s2 + $0xa0] sm:$0xff]
  %v564 = vld [vmem:[%s2 + $0xa8] sm:$0xff]
  %v565 = vld [vmem:[%s2 + $0xb0] sm:$0xff]
  %v566 = vld [vmem:[%s2 + $0xb8] sm:$0xff]
  %v567 = vld [vmem:[%s2 + $0xc0] sm:$0xff]
  %v568 = vld [vmem:[%s2 + $0xc8] sm:$0xff]
  %v569 = vld [vmem:[%s2 + $0xd0] sm:$0xff]
  %v570 = vld [vmem:[%s2 + $0xd8] sm:$0xff]
  %v571 = vld [vmem:[%s2 + $0xe0] sm:$0xff]
  %v572 = vld [vmem:[%s2 + $0xe8] sm:$0xff]
  %v573 = vld [vmem:[%s2 + $0xf0] sm:$0xff]
  %v574 = vld [vmem:[%s2 + $0xf8] sm:$0xff]
  %v575 = vld [vmem:[%s2 + $0x100] sm:$0xff]
  %v576 = vld [vmem:[%s2 + $0x108] sm:$0xff]
  %v577 = vld [vmem:[%s2 + $0x110] sm:$0xff]
  %v578 = vld [vmem:[%s2 + $0x118] sm:$0xff]
  %v579 = vld [vmem:[%s2 + $0x120] sm:$0xff]
  %v580 = vld [vmem:[%s2 + $0x128] sm:$0xff]
  %v581 = vld [vmem:[%s2 + $0x130] sm:$0xff]
  %v582 = vld [vmem:[%s2 + $0x138] sm:$0xff]
  %v583 = vld [vmem:[%s2 + $0x140] sm:$0xff]
  %v584 = vld [vmem:[%s2 + $0x148] sm:$0xff]
  %v585 = vld [vmem:[%s2 + $0x150] sm:$0xff]
  %v586 = vld [vmem:[%s2 + $0x158] sm:$0xff]
  %v587 = vld [vmem:[%s2 + $0x160] sm:$0xff]
  %v588 = vld [vmem:[%s2 + $0x168] sm:$0xff]
  %v589 = vld [vmem:[%s2 + $0x170] sm:$0xff]
  %v590 = vld [vmem:[%s2 + $0x178] sm:$0xff]
  %v591 = vld [vmem:[%s2 + $0x180] sm:$0xff]
  %v592 = vld [vmem:[%s2 + $0x188] sm:$0xff]
  %v593 = vld [vmem:[%s2 + $0x190] sm:$0xff]
  %v594 = vld [vmem:[%s2 + $0x198] sm:$0xff]
  %v595 = vld [vmem:[%s2 + $0x1a0] sm:$0xff]
  %v596 = vld [vmem:[%s2 + $0x1a8] sm:$0xff]
  %v597 = vld [vmem:[%s2 + $0x1b0] sm:$0xff]
  %v598 = vld [vmem:[%s2 + $0x1b8] sm:$0xff]
  %v599 = vld [vmem:[%s2 + $0x1c0] sm:$0xff]
  %v600 = vld [vmem:[%s2 + $0x1c8] sm:$0xff]
  %v601 = vld [vmem:[%s2 + $0x1d0] sm:$0xff]
  %v602 = vld [vmem:[%s2 + $0x1d8] sm:$0xff]
  %v603 = vld [vmem:[%s2 + $0x1e0] sm:$0xff]
  %v604 = vld [vmem:[%s2 + $0x1e8] sm:$0xff]
  %v605 = vld [vmem:[%s2 + $0x1f0] sm:$0xff]
  %v606 = vld [vmem:[%s2 + $0x1f8] sm:$0xff]
  %607 = vmatprep.subr.mxu0 %v544
  %608 = vmatpush1.msra.mxu0 %v543
  %609 = vmatprep.subr.mxu0 %v548
  %610 = vmatpush1.msra.mxu0 %v547
  %611 = vmatprep.subr.mxu0 %v552
  %612 = vmatpush1.msra.mxu0 %v551
  %613 = vmatprep.subr.mxu0 %v556
  %614 = vmatpush1.msra.mxu0 %v555
  %615 = vmatprep.subr.mxu0 %v560
  %616 = vmatpush1.msra.mxu0 %v559
  %617 = vmatprep.subr.mxu0 %v564
  %618 = vmatpush1.msra.mxu0 %v563
  %619 = vmatprep.subr.mxu0 %v568
  %620 = vmatpush1.msra.mxu0 %v567
  %621 = vmatprep.subr.mxu0 %v572
  %622 = vmatpush1.msra.mxu0 %v571
  %623 = vmatprep.subr.mxu0 %v576
  %624 = vmatpush1.msra.mxu0 %v575
  %625 = vmatprep.subr.mxu0 %v580
  %626 = vmatpush1.msra.mxu0 %v579
  %627 = vmatprep.subr.mxu0 %v584
  %628 = vmatpush1.msra.mxu0 %v583
  %629 = vmatprep.subr.mxu0 %v588
  %630 = vmatpush1.msra.mxu0 %v587
  %631 = vmatprep.subr.mxu0 %v592
  %632 = vmatpush1.msra.mxu0 %v591
  %633 = vmatprep.subr.mxu0 %v596
  %634 = vmatpush1.msra.mxu0 %v595
  %635 = vmatprep.subr.mxu0 %v600
  %636 = vmatpush1.msra.mxu0 %v599
  %637 = vmatprep.subr.mxu0 %v604
  %638 = vmatpush1.msra.mxu0 %v603
  %639 = vmatprep.subr.mxu0 0.0
  %640 = vmatpush1.msra.mxu0 0.0
  %641 = vmatprep.subr.mxu0 0.0
  %642 = vmatpush1.msra.mxu0 0.0
  %643 = vmatprep.subr.mxu0 0.0
  %644 = vmatpush1.msra.mxu0 0.0
  %645 = vmatprep.subr.mxu0 0.0
  %646 = vmatpush1.msra.mxu0 0.0
  %647 = vmatprep.subr.mxu0 0.0
  %648 = vmatpush1.msra.mxu0 0.0
  %649 = vmatprep.subr.mxu0 0.0
  %650 = vmatpush1.msra.mxu0 0.0
  %651 = vmatprep.subr.mxu0 0.0
  %652 = vmatpush1.msra.mxu0 0.0
  %653 = vmatprep.subr.mxu0 0.0
  %654 = vmatpush1.msra.mxu0 0.0
  %655 = vmatprep.subr.mxu0 0.0
  %656 = vmatpush1.msra.mxu0 0.0
  %657 = vmatprep.subr.mxu0 0.0
  %658 = vmatpush1.msra.mxu0 0.0
  %659 = vmatprep.subr.mxu0 0.0
  %660 = vmatpush1.msra.mxu0 0.0
  %661 = vmatprep.subr.mxu0 0.0
  %662 = vmatpush1.msra.mxu0 0.0
  %663 = vmatprep.subr.mxu0 0.0
  %664 = vmatpush1.msra.mxu0 0.0
  %665 = vmatprep.subr.mxu0 0.0
  %666 = vmatpush1.msra.mxu0 0.0
  %667 = vmatprep.subr.mxu0 0.0
  %668 = vmatpush1.msra.mxu0 0.0
  %669 = vmatprep.subr.mxu0 0.0
  %670 = vmatpush1.msra.mxu0 0.0
  %671 = vmatprep.mubr.f32.mxu0 0.0
  %672 = vmatmul.mubr.f32.gmra.mrb[0].mxu0 %v537
  %v673 = vpop.f32.mrb[0].mxu0
  %v674 = vadd.f32 0.0, %v673
  %v675 = vpop.f32.mrb[0].mxu0
  %v676 = vadd.f32 0.0, %v675
  %677 = vdwg.mxu0
  %678 = vmatprep.subr.mxu0 %v546
  %679 = vmatpush1.msra.mxu0 %v545
  %680 = vmatprep.subr.mxu0 %v550
  %681 = vmatpush1.msra.mxu0 %v549
  %682 = vmatprep.subr.mxu0 %v554
  %683 = vmatpush1.msra.mxu0 %v553
  %684 = vmatprep.subr.mxu0 %v558
  %685 = vmatpush1.msra.mxu0 %v557
  %686 = vmatprep.subr.mxu0 %v562
  %687 = vmatpush1.msra.mxu0 %v561
  %688 = vmatprep.subr.mxu0 %v566
  %689 = vmatpush1.msra.mxu0 %v565
  %690 = vmatprep.subr.mxu0 %v570
  %691 = vmatpush1.msra.mxu0 %v569
  %692 = vmatprep.subr.mxu0 %v574
  %693 = vmatpush1.msra.mxu0 %v573
  %694 = vmatprep.subr.mxu0 %v578
  %695 = vmatpush1.msra.mxu0 %v577
  %696 = vmatprep.subr.mxu0 %v582
  %697 = vmatpush1.msra.mxu0 %v581
  %698 = vmatprep.subr.mxu0 %v586
  %699 = vmatpush1.msra.mxu0 %v585
  %700 = vmatprep.subr.mxu0 %v590
  %701 = vmatpush1.msra.mxu0 %v589
  %702 = vmatprep.subr.mxu0 %v594
  %703 = vmatpush1.msra.mxu0 %v593
  %704 = vmatprep.subr.mxu0 %v598
  %705 = vmatpush1.msra.mxu0 %v597
  %706 = vmatprep.subr.mxu0 %v602
  %707 = vmatpush1.msra.mxu0 %v601
  %708 = vmatprep.subr.mxu0 %v606
  %709 = vmatpush1.msra.mxu0 %v605
  %710 = vmatprep.subr.mxu0 0.0
  %711 = vmatpush1.msra.mxu0 0.0
  %712 = vmatprep.subr.mxu0 0.0
  %713 = vmatpush1.msra.mxu0 0.0
  %714 = vmatprep.subr.mxu0 0.0
  %715 = vmatpush1.msra.mxu0 0.0
  %716 = vmatprep.subr.mxu0 0.0
  %717 = vmatpush1.msra.mxu0 0.0
  %718 = vmatprep.subr.mxu0 0.0
  %719 = vmatpush1.msra.mxu0 0.0
  %720 = vmatprep.subr.mxu0 0.0
  %721 = vmatpush1.msra.mxu0 0.0
  %722 = vmatprep.subr.mxu0 0.0
  %723 = vmatpush1.msra.mxu0 0.0
  %724 = vmatprep.subr.mxu0 0.0
  %725 = vmatpush1.msra.mxu0 0.0
  %726 = vmatprep.subr.mxu0 0.0
  %727 = vmatpush1.msra.mxu0 0.0
  %728 = vmatprep.subr.mxu0 0.0
  %729 = vmatpush1.msra.mxu0 0.0
  %730 = vmatprep.subr.mxu0 0.0
  %731 = vmatpush1.msra.mxu0 0.0
  %732 = vmatprep.subr.mxu0 0.0
  %733 = vmatpush1.msra.mxu0 0.0
  %734 = vmatprep.subr.mxu0 0.0
  %735 = vmatpush1.msra.mxu0 0.0
  %736 = vmatprep.subr.mxu0 0.0
  %737 = vmatpush1.msra.mxu0 0.0
  %738 = vmatprep.subr.mxu0 0.0
  %739 = vmatpush1.msra.mxu0 0.0
  %740 = vmatprep.subr.mxu0 0.0
  %741 = vmatpush1.msra.mxu0 0.0
  %742 = vmatprep.mubr.f32.mxu0 0.0
  %743 = vmatmul.mubr.f32.gmra.mrb[0].mxu0 %v537
  %v744 = vpop.f32.mrb[0].mxu0
  %v745 = vadd.f32 0.0, %v744
  %v746 = vpop.f32.mrb[0].mxu0
  %v747 = vadd.f32 0.0, %v746
  %748 = vdwg.mxu0
  %v753 = vrot.slane %v674, 6
  %v754 = vrot.slane %v676, 6
  %v755 = vrot.slane %v745, 6
  %v756 = vrot.slane %v747, 6
  %v761 = vadd.f32 %v539, %v753
  %v762 = vadd.f32 %v540, %v754
  %v763 = vadd.f32 %v541, %v755
  %v764 = vadd.f32 %v542, %v756
  %v765 = vxor.u32 %v761, 2147483648
  %v766 = vmul.f32 %v765, 1.442695
  %v767 = vpow.pop %v766
  %v768 = vadd.f32 %v767, 1.0
  %v769 = vrcp.pop %v768
  %v770 = vmul.f32 1.0, %v769
  %v771 = vxor.u32 %v762, 2147483648
  %v772 = vmul.f32 %v771, 1.442695
  %v773 = vpow.pop %v772
  %v774 = vadd.f32 %v773, 1.0
  %v775 = vrcp.pop %v774
  %v776 = vmul.f32 1.0, %v775
  %v777 = vtanh.pop %v763
  %v778 = vxor.u32 %v764, 2147483648
  %v779 = vmul.f32 %v778, 1.442695
  %v780 = vpow.pop %v779
  %v781 = vadd.f32 %v780, 1.0
  %v782 = vrcp.pop %v781
  %v783 = vmul.f32 1.0, %v782
  %v785 = vrot.slane %v535, 6
  %v787 = vmul.f32 %v776, %v785
  %v788 = vmul.f32 %v770, %v777
  %v789 = vadd.f32 %v787, %v788
  %v790 = vtanh.pop %v789
  %v791 = vmul.f32 %v783, %v790
  %792 = vst [vmem:[#allocation2] sm:$0xc] %v791
  %v793 = vld [vmem:[#allocation3] sm:$0x30]
  %v794 = vld [vmem:[#allocation3 + $0x8] sm:$0x30]
  %v795 = vld [vmem:[#allocation3 + $0x10] sm:$0x30]
  %v796 = vld [vmem:[#allocation3 + $0x18] sm:$0x30]
  %v797 = vld [vmem:[%s2] sm:$0xff]
  %v798 = vld [vmem:[%s2 + $0x8] sm:$0xff]
  %v799 = vld [vmem:[%s2 + $0x10] sm:$0xff]
  %v800 = vld [vmem:[%s2 + $0x18] sm:$0xff]
  %v801 = vld [vmem:[%s2 + $0x20] sm:$0xff]
  %v802 = vld [vmem:[%s2 + $0x28] sm:$0xff]
  %v803 = vld [vmem:[%s2 + $0x30] sm:$0xff]
  %v804 = vld [vmem:[%s2 + $0x38] sm:$0xff]
  %v805 = vld [vmem:[%s2 + $0x40] sm:$0xff]
  %v806 = vld [vmem:[%s2 + $0x48] sm:$0xff]
  %v807 = vld [vmem:[%s2 + $0x50] sm:$0xff]
  %v808 = vld [vmem:[%s2 + $0x58] sm:$0xff]
  %v809 = vld [vmem:[%s2 + $0x60] sm:$0xff]
  %v810 = vld [vmem:[%s2 + $0x68] sm:$0xff]
  %v811 = vld [vmem:[%s2 + $0x70] sm:$0xff]
  %v812 = vld [vmem:[%s2 + $0x78] sm:$0xff]
  %v813 = vld [vmem:[%s2 + $0x80] sm:$0xff]
  %v814 = vld [vmem:[%s2 + $0x88] sm:$0xff]
  %v815 = vld [vmem:[%s2 + $0x90] sm:$0xff]
  %v816 = vld [vmem:[%s2 + $0x98] sm:$0xff]
  %v817 = vld [vmem:[%s2 + $0xa0] sm:$0xff]
  %v818 = vld [vmem:[%s2 + $0xa8] sm:$0xff]
  %v819 = vld [vmem:[%s2 + $0xb0] sm:$0xff]
  %v820 = vld [vmem:[%s2 + $0xb8] sm:$0xff]
  %v821 = vld [vmem:[%s2 + $0xc0] sm:$0xff]
  %v822 = vld [vmem:[%s2 + $0xc8] sm:$0xff]
  %v823 = vld [vmem:[%s2 + $0xd0] sm:$0xff]
  %v824 = vld [vmem:[%s2 + $0xd8] sm:$0xff]
  %v825 = vld [vmem:[%s2 + $0xe0] sm:$0xff]
  %v826 = vld [vmem:[%s2 + $0xe8] sm:$0xff]
  %v827 = vld [vmem:[%s2 + $0xf0] sm:$0xff]
  %v828 = vld [vmem:[%s2 + $0xf8] sm:$0xff]
  %v829 = vld [vmem:[%s2 + $0x100] sm:$0xff]
  %v830 = vld [vmem:[%s2 + $0x108] sm:$0xff]
  %v831 = vld [vmem:[%s2 + $0x110] sm:$0xff]
  %v832 = vld [vmem:[%s2 + $0x118] sm:$0xff]
  %v833 = vld [vmem:[%s2 + $0x120] sm:$0xff]
  %v834 = vld [vmem:[%s2 + $0x128] sm:$0xff]
  %v835 = vld [vmem:[%s2 + $0x130] sm:$0xff]
  %v836 = vld [vmem:[%s2 + $0x138] sm:$0xff]
  %v837 = vld [vmem:[%s2 + $0x140] sm:$0xff]
  %v838 = vld [vmem:[%s2 + $0x148] sm:$0xff]
  %v839 = vld [vmem:[%s2 + $0x150] sm:$0xff]
  %v840 = vld [vmem:[%s2 + $0x158] sm:$0xff]
  %v841 = vld [vmem:[%s2 + $0x160] sm:$0xff]
  %v842 = vld [vmem:[%s2 + $0x168] sm:$0xff]
  %v843 = vld [vmem:[%s2 + $0x170] sm:$0xff]
  %v844 = vld [vmem:[%s2 + $0x178] sm:$0xff]
  %v845 = vld [vmem:[%s2 + $0x180] sm:$0xff]
  %v846 = vld [vmem:[%s2 + $0x188] sm:$0xff]
  %v847 = vld [vmem:[%s2 + $0x190] sm:$0xff]
  %v848 = vld [vmem:[%s2 + $0x198] sm:$0xff]
  %v849 = vld [vmem:[%s2 + $0x1a0] sm:$0xff]
  %v850 = vld [vmem:[%s2 + $0x1a8] sm:$0xff]
  %v851 = vld [vmem:[%s2 + $0x1b0] sm:$0xff]
  %v852 = vld [vmem:[%s2 + $0x1b8] sm:$0xff]
  %v853 = vld [vmem:[%s2 + $0x1c0] sm:$0xff]
  %v854 = vld [vmem:[%s2 + $0x1c8] sm:$0xff]
  %v855 = vld [vmem:[%s2 + $0x1d0] sm:$0xff]
  %v856 = vld [vmem:[%s2 + $0x1d8] sm:$0xff]
  %v857 = vld [vmem:[%s2 + $0x1e0] sm:$0xff]
  %v858 = vld [vmem:[%s2 + $0x1e8] sm:$0xff]
  %v859 = vld [vmem:[%s2 + $0x1f0] sm:$0xff]
  %v860 = vld [vmem:[%s2 + $0x1f8] sm:$0xff]
  %v862 = vrot.slane %v791, 2
  %864 = vmatprep.subr.mxu0 %v798
  %865 = vmatpush1.msra.mxu0 %v797
  %866 = vmatprep.subr.mxu0 %v802
  %867 = vmatpush1.msra.mxu0 %v801
  %868 = vmatprep.subr.mxu0 %v806
  %869 = vmatpush1.msra.mxu0 %v805
  %870 = vmatprep.subr.mxu0 %v810
  %871 = vmatpush1.msra.mxu0 %v809
  %872 = vmatprep.subr.mxu0 %v814
  %873 = vmatpush1.msra.mxu0 %v813
  %874 = vmatprep.subr.mxu0 %v818
  %875 = vmatpush1.msra.mxu0 %v817
  %876 = vmatprep.subr.mxu0 %v822
  %877 = vmatpush1.msra.mxu0 %v821
  %878 = vmatprep.subr.mxu0 %v826
  %879 = vmatpush1.msra.mxu0 %v825
  %880 = vmatprep.subr.mxu0 %v830
  %881 = vmatpush1.msra.mxu0 %v829
  %882 = vmatprep.subr.mxu0 %v834
  %883 = vmatpush1.msra.mxu0 %v833
  %884 = vmatprep.subr.mxu0 %v838
  %885 = vmatpush1.msra.mxu0 %v837
  %886 = vmatprep.subr.mxu0 %v842
  %887 = vmatpush1.msra.mxu0 %v841
  %888 = vmatprep.subr.mxu0 %v846
  %889 = vmatpush1.msra.mxu0 %v845
  %890 = vmatprep.subr.mxu0 %v850
  %891 = vmatpush1.msra.mxu0 %v849
  %892 = vmatprep.subr.mxu0 %v854
  %893 = vmatpush1.msra.mxu0 %v853
  %894 = vmatprep.subr.mxu0 %v858
  %895 = vmatpush1.msra.mxu0 %v857
  %896 = vmatprep.subr.mxu0 0.0
  %897 = vmatpush1.msra.mxu0 0.0
  %898 = vmatprep.subr.mxu0 0.0
  %899 = vmatpush1.msra.mxu0 0.0
  %900 = vmatprep.subr.mxu0 0.0
  %901 = vmatpush1.msra.mxu0 0.0
  %902 = vmatprep.subr.mxu0 0.0
  %903 = vmatpush1.msra.mxu0 0.0
  %904 = vmatprep.subr.mxu0 0.0
  %905 = vmatpush1.msra.mxu0 0.0
  %906 = vmatprep.subr.mxu0 0.0
  %907 = vmatpush1.msra.mxu0 0.0
  %908 = vmatprep.subr.mxu0 0.0
  %909 = vmatpush1.msra.mxu0 0.0
  %910 = vmatprep.subr.mxu0 0.0
  %911 = vmatpush1.msra.mxu0 0.0
  %912 = vmatprep.subr.mxu0 0.0
  %913 = vmatpush1.msra.mxu0 0.0
  %914 = vmatprep.subr.mxu0 0.0
  %915 = vmatpush1.msra.mxu0 0.0
  %916 = vmatprep.subr.mxu0 0.0
  %917 = vmatpush1.msra.mxu0 0.0
  %918 = vmatprep.subr.mxu0 0.0
  %919 = vmatpush1.msra.mxu0 0.0
  %920 = vmatprep.subr.mxu0 0.0
  %921 = vmatpush1.msra.mxu0 0.0
  %922 = vmatprep.subr.mxu0 0.0
  %923 = vmatpush1.msra.mxu0 0.0
  %924 = vmatprep.subr.mxu0 0.0
  %925 = vmatpush1.msra.mxu0 0.0
  %926 = vmatprep.subr.mxu0 0.0
  %927 = vmatpush1.msra.mxu0 0.0
  %928 = vmatprep.mubr.f32.mxu0 0.0
  %929 = vmatmul.mubr.f32.gmra.mrb[0].mxu0 %v862
  %v930 = vpop.f32.mrb[0].mxu0
  %v931 = vadd.f32 0.0, %v930
  %v932 = vpop.f32.mrb[0].mxu0
  %v933 = vadd.f32 0.0, %v932
  %934 = vdwg.mxu0
  %935 = vmatprep.subr.mxu0 %v800
  %936 = vmatpush1.msra.mxu0 %v799
  %937 = vmatprep.subr.mxu0 %v804
  %938 = vmatpush1.msra.mxu0 %v803
  %939 = vmatprep.subr.mxu0 %v808
  %940 = vmatpush1.msra.mxu0 %v807
  %941 = vmatprep.subr.mxu0 %v812
  %942 = vmatpush1.msra.mxu0 %v811
  %943 = vmatprep.subr.mxu0 %v816
  %944 = vmatpush1.msra.mxu0 %v815
  %945 = vmatprep.subr.mxu0 %v820
  %946 = vmatpush1.msra.mxu0 %v819
  %947 = vmatprep.subr.mxu0 %v824
  %948 = vmatpush1.msra.mxu0 %v823
  %949 = vmatprep.subr.mxu0 %v828
  %950 = vmatpush1.msra.mxu0 %v827
  %951 = vmatprep.subr.mxu0 %v832
  %952 = vmatpush1.msra.mxu0 %v831
  %953 = vmatprep.subr.mxu0 %v836
  %954 = vmatpush1.msra.mxu0 %v835
  %955 = vmatprep.subr.mxu0 %v840
  %956 = vmatpush1.msra.mxu0 %v839
  %957 = vmatprep.subr.mxu0 %v844
  %958 = vmatpush1.msra.mxu0 %v843
  %959 = vmatprep.subr.mxu0 %v848
  %960 = vmatpush1.msra.mxu0 %v847
  %961 = vmatprep.subr.mxu0 %v852
  %962 = vmatpush1.msra.mxu0 %v851
  %963 = vmatprep.subr.mxu0 %v856
  %964 = vmatpush1.msra.mxu0 %v855
  %965 = vmatprep.subr.mxu0 %v860
  %966 = vmatpush1.msra.mxu0 %v859
  %967 = vmatprep.subr.mxu0 0.0
  %968 = vmatpush1.msra.mxu0 0.0
  %969 = vmatprep.subr.mxu0 0.0
  %970 = vmatpush1.msra.mxu0 0.0
  %971 = vmatprep.subr.mxu0 0.0
  %972 = vmatpush1.msra.mxu0 0.0
  %973 = vmatprep.subr.mxu0 0.0
  %974 = vmatpush1.msra.mxu0 0.0
  %975 = vmatprep.subr.mxu0 0.0
  %976 = vmatpush1.msra.mxu0 0.0
  %977 = vmatprep.subr.mxu0 0.0
  %978 = vmatpush1.msra.mxu0 0.0
  %979 = vmatprep.subr.mxu0 0.0
  %980 = vmatpush1.msra.mxu0 0.0
  %981 = vmatprep.subr.mxu0 0.0
  %982 = vmatpush1.msra.mxu0 0.0
  %983 = vmatprep.subr.mxu0 0.0
  %984 = vmatpush1.msra.mxu0 0.0
  %985 = vmatprep.subr.mxu0 0.0
  %986 = vmatpush1.msra.mxu0 0.0
  %987 = vmatprep.subr.mxu0 0.0
  %988 = vmatpush1.msra.mxu0 0.0
  %989 = vmatprep.subr.mxu0 0.0
  %990 = vmatpush1.msra.mxu0 0.0
  %991 = vmatprep.subr.mxu0 0.0
  %992 = vmatpush1.msra.mxu0 0.0
  %993 = vmatprep.subr.mxu0 0.0
  %994 = vmatpush1.msra.mxu0 0.0
  %995 = vmatprep.subr.mxu0 0.0
  %996 = vmatpush1.msra.mxu0 0.0
  %997 = vmatprep.subr.mxu0 0.0
  %998 = vmatpush1.msra.mxu0 0.0
  %999 = vmatprep.mubr.f32.mxu0 0.0
  %1000 = vmatmul.mubr.f32.gmra.mrb[0].mxu0 %v862
  %v1001 = vpop.f32.mrb[0].mxu0
  %v1002 = vadd.f32 0.0, %v1001
  %v1003 = vpop.f32.mrb[0].mxu0
  %v1004 = vadd.f32 0.0, %v1003
  %1005 = vdwg.mxu0
  %v1010 = vrot.slane %v931, 4
  %v1011 = vrot.slane %v933, 4
  %v1012 = vrot.slane %v1002, 4
  %v1013 = vrot.slane %v1004, 4
  %v1018 = vadd.f32 %v793, %v1010
  %v1019 = vadd.f32 %v794, %v1011
  %v1020 = vadd.f32 %v795, %v1012
  %v1021 = vadd.f32 %v796, %v1013
  %v1022 = vxor.u32 %v1018, 2147483648
  %v1023 = vmul.f32 %v1022, 1.442695
  %v1024 = vpow.pop %v1023
  %v1025 = vadd.f32 %v1024, 1.0
  %v1026 = vrcp.pop %v1025
  %v1027 = vmul.f32 1.0, %v1026
  %v1028 = vxor.u32 %v1019, 2147483648
  %v1029 = vmul.f32 %v1028, 1.442695
  %v1030 = vpow.pop %v1029
  %v1031 = vadd.f32 %v1030, 1.0
  %v1032 = vrcp.pop %v1031
  %v1033 = vmul.f32 1.0, %v1032
  %v1034 = vtanh.pop %v1020
  %v1035 = vxor.u32 %v1021, 2147483648
  %v1036 = vmul.f32 %v1035, 1.442695
  %v1037 = vpow.pop %v1036
  %v1038 = vadd.f32 %v1037, 1.0
  %v1039 = vrcp.pop %v1038
  %v1040 = vmul.f32 1.0, %v1039
  %v1042 = vrot.slane %v789, 6
  %v1044 = vmul.f32 %v1033, %v1042
  %v1045 = vmul.f32 %v1027, %v1034
  %v1046 = vadd.f32 %v1044, %v1045
  %v1047 = vtanh.pop %v1046
  %v1048 = vmul.f32 %v1040, %v1047
  %1049 = vst [vmem:[#allocation2] sm:$0x30] %v1048
  %v1050 = vld [vmem:[#allocation3] sm:$0xc0]
  %v1051 = vld [vmem:[#allocation3 + $0x8] sm:$0xc0]
  %v1052 = vld [vmem:[#allocation3 + $0x10] sm:$0xc0]
  %v1053 = vld [vmem:[#allocation3 + $0x18] sm:$0xc0]
  %v1054 = vld [vmem:[%s2] sm:$0xff]
  %v1055 = vld [vmem:[%s2 + $0x8] sm:$0xff]
  %v1056 = vld [vmem:[%s2 + $0x10] sm:$0xff]
  %v1057 = vld [vmem:[%s2 + $0x18] sm:$0xff]
  %v1058 = vld [vmem:[%s2 + $0x20] sm:$0xff]
  %v1059 = vld [vmem:[%s2 + $0x28] sm:$0xff]
  %v1060 = vld [vmem:[%s2 + $0x30] sm:$0xff]
  %v1061 = vld [vmem:[%s2 + $0x38] sm:$0xff]
  %v1062 = vld [vmem:[%s2 + $0x40] sm:$0xff]
  %v1063 = vld [vmem:[%s2 + $0x48] sm:$0xff]
  %v1064 = vld [vmem:[%s2 + $0x50] sm:$0xff]
  %v1065 = vld [vmem:[%s2 + $0x58] sm:$0xff]
  %v1066 = vld [vmem:[%s2 + $0x60] sm:$0xff]
  %v1067 = vld [vmem:[%s2 + $0x68] sm:$0xff]
  %v1068 = vld [vmem:[%s2 + $0x70] sm:$0xff]
  %v1069 = vld [vmem:[%s2 + $0x78] sm:$0xff]
  %v1070 = vld [vmem:[%s2 + $0x80] sm:$0xff]
  %v1071 = vld [vmem:[%s2 + $0x88] sm:$0xff]
  %v1072 = vld [vmem:[%s2 + $0x90] sm:$0xff]
  %v1073 = vld [vmem:[%s2 + $0x98] sm:$0xff]
  %v1074 = vld [vmem:[%s2 + $0xa0] sm:$0xff]
  %v1075 = vld [vmem:[%s2 + $0xa8] sm:$0xff]
  %v1076 = vld [vmem:[%s2 + $0xb0] sm:$0xff]
  %v1077 = vld [vmem:[%s2 + $0xb8] sm:$0xff]
  %v1078 = vld [vmem:[%s2 + $0xc0] sm:$0xff]
  %v1079 = vld [vmem:[%s2 + $0xc8] sm:$0xff]
  %v1080 = vld [vmem:[%s2 + $0xd0] sm:$0xff]
  %v1081 = vld [vmem:[%s2 + $0xd8] sm:$0xff]
  %v1082 = vld [vmem:[%s2 + $0xe0] sm:$0xff]
  %v1083 = vld [vmem:[%s2 + $0xe8] sm:$0xff]
  %v1084 = vld [vmem:[%s2 + $0xf0] sm:$0xff]
  %v1085 = vld [vmem:[%s2 + $0xf8] sm:$0xff]
  %v1086 = vld [vmem:[%s2 + $0x100] sm:$0xff]
  %v1087 = vld [vmem:[%s2 + $0x108] sm:$0xff]
  %v1088 = vld [vmem:[%s2 + $0x110] sm:$0xff]
  %v1089 = vld [vmem:[%s2 + $0x118] sm:$0xff]
  %v1090 = vld [vmem:[%s2 + $0x120] sm:$0xff]
  %v1091 = vld [vmem:[%s2 + $0x128] sm:$0xff]
  %v1092 = vld [vmem:[%s2 + $0x130] sm:$0xff]
  %v1093 = vld [vmem:[%s2 + $0x138] sm:$0xff]
  %v1094 = vld [vmem:[%s2 + $0x140] sm:$0xff]
  %v1095 = vld [vmem:[%s2 + $0x148] sm:$0xff]
  %v1096 = vld [vmem:[%s2 + $0x150] sm:$0xff]
  %v1097 = vld [vmem:[%s2 + $0x158] sm:$0xff]
  %v1098 = vld [vmem:[%s2 + $0x160] sm:$0xff]
  %v1099 = vld [vmem:[%s2 + $0x168] sm:$0xff]
  %v1100 = vld [vmem:[%s2 + $0x170] sm:$0xff]
  %v1101 = vld [vmem:[%s2 + $0x178] sm:$0xff]
  %v1102 = vld [vmem:[%s2 + $0x180] sm:$0xff]
  %v1103 = vld [vmem:[%s2 + $0x188] sm:$0xff]
  %v1104 = vld [vmem:[%s2 + $0x190] sm:$0xff]
  %v1105 = vld [vmem:[%s2 + $0x198] sm:$0xff]
  %v1106 = vld [vmem:[%s2 + $0x1a0] sm:$0xff]
  %v1107 = vld [vmem:[%s2 + $0x1a8] sm:$0xff]
  %v1108 = vld [vmem:[%s2 + $0x1b0] sm:$0xff]
  %v1109 = vld [vmem:[%s2 + $0x1b8] sm:$0xff]
  %v1110 = vld [vmem:[%s2 + $0x1c0] sm:$0xff]
  %v1111 = vld [vmem:[%s2 + $0x1c8] sm:$0xff]
  %v1112 = vld [vmem:[%s2 + $0x1d0] sm:$0xff]
  %v1113 = vld [vmem:[%s2 + $0x1d8] sm:$0xff]
  %v1114 = vld [vmem:[%s2 + $0x1e0] sm:$0xff]
  %v1115 = vld [vmem:[%s2 + $0x1e8] sm:$0xff]
  %v1116 = vld [vmem:[%s2 + $0x1f0] sm:$0xff]
  %v1117 = vld [vmem:[%s2 + $0x1f8] sm:$0xff]
  %v1119 = vrot.slane %v1048, 4
  %1121 = vmatprep.subr.mxu0 %v1055
  %1122 = vmatpush1.msra.mxu0 %v1054
  %1123 = vmatprep.subr.mxu0 %v1059
  %1124 = vmatpush1.msra.mxu0 %v1058
  %1125 = vmatprep.subr.mxu0 %v1063
  %1126 = vmatpush1.msra.mxu0 %v1062
  %1127 = vmatprep.subr.mxu0 %v1067
  %1128 = vmatpush1.msra.mxu0 %v1066
  %1129 = vmatprep.subr.mxu0 %v1071
  %1130 = vmatpush1.msra.mxu0 %v1070
  %1131 = vmatprep.subr.mxu0 %v1075
  %1132 = vmatpush1.msra.mxu0 %v1074
  %1133 = vmatprep.subr.mxu0 %v1079
  %1134 = vmatpush1.msra.mxu0 %v1078
  %1135 = vmatprep.subr.mxu0 %v1083
  %1136 = vmatpush1.msra.mxu0 %v1082
  %1137 = vmatprep.subr.mxu0 %v1087
  %1138 = vmatpush1.msra.mxu0 %v1086
  %1139 = vmatprep.subr.mxu0 %v1091
  %1140 = vmatpush1.msra.mxu0 %v1090
  %1141 = vmatprep.subr.mxu0 %v1095
  %1142 = vmatpush1.msra.mxu0 %v1094
  %1143 = vmatprep.subr.mxu0 %v1099
  %1144 = vmatpush1.msra.mxu0 %v1098
  %1145 = vmatprep.subr.mxu0 %v1103
  %1146 = vmatpush1.msra.mxu0 %v1102
  %1147 = vmatprep.subr.mxu0 %v1107
  %1148 = vmatpush1.msra.mxu0 %v1106
  %1149 = vmatprep.subr.mxu0 %v1111
  %1150 = vmatpush1.msra.mxu0 %v1110
  %1151 = vmatprep.subr.mxu0 %v1115
  %1152 = vmatpush1.msra.mxu0 %v1114
  %1153 = vmatprep.subr.mxu0 0.0
  %1154 = vmatpush1.msra.mxu0 0.0
  %1155 = vmatprep.subr.mxu0 0.0
  %1156 = vmatpush1.msra.mxu0 0.0
  %1157 = vmatprep.subr.mxu0 0.0
  %1158 = vmatpush1.msra.mxu0 0.0
  %1159 = vmatprep.subr.mxu0 0.0
  %1160 = vmatpush1.msra.mxu0 0.0
  %1161 = vmatprep.subr.mxu0 0.0
  %1162 = vmatpush1.msra.mxu0 0.0
  %1163 = vmatprep.subr.mxu0 0.0
  %1164 = vmatpush1.msra.mxu0 0.0
  %1165 = vmatprep.subr.mxu0 0.0
  %1166 = vmatpush1.msra.mxu0 0.0
  %1167 = vmatprep.subr.mxu0 0.0
  %1168 = vmatpush1.msra.mxu0 0.0
  %1169 = vmatprep.subr.mxu0 0.0
  %1170 = vmatpush1.msra.mxu0 0.0
  %1171 = vmatprep.subr.mxu0 0.0
  %1172 = vmatpush1.msra.mxu0 0.0
  %1173 = vmatprep.subr.mxu0 0.0
  %1174 = vmatpush1.msra.mxu0 0.0
  %1175 = vmatprep.subr.mxu0 0.0
  %1176 = vmatpush1.msra.mxu0 0.0
  %1177 = vmatprep.subr.mxu0 0.0
  %1178 = vmatpush1.msra.mxu0 0.0
  %1179 = vmatprep.subr.mxu0 0.0
  %1180 = vmatpush1.msra.mxu0 0.0
  %1181 = vmatprep.subr.mxu0 0.0
  %1182 = vmatpush1.msra.mxu0 0.0
  %1183 = vmatprep.subr.mxu0 0.0
  %1184 = vmatpush1.msra.mxu0 0.0
  %1185 = vmatprep.mubr.f32.mxu0 0.0
  %1186 = vmatmul.mubr.f32.gmra.mrb[0].mxu0 %v1119
  %v1187 = vpop.f32.mrb[0].mxu0
  %v1188 = vadd.f32 0.0, %v1187
  %v1189 = vpop.f32.mrb[0].mxu0
  %v1190 = vadd.f32 0.0, %v1189
  %1191 = vdwg.mxu0
  %1192 = vmatprep.subr.mxu0 %v1057
  %1193 = vmatpush1.msra.mxu0 %v1056
  %1194 = vmatprep.subr.mxu0 %v1061
  %1195 = vmatpush1.msra.mxu0 %v1060
  %1196 = vmatprep.subr.mxu0 %v1065
  %1197 = vmatpush1.msra.mxu0 %v1064
  %1198 = vmatprep.subr.mxu0 %v1069
  %1199 = vmatpush1.msra.mxu0 %v1068
  %1200 = vmatprep.subr.mxu0 %v1073
  %1201 = vmatpush1.msra.mxu0 %v1072
  %1202 = vmatprep.subr.mxu0 %v1077
  %1203 = vmatpush1.msra.mxu0 %v1076
  %1204 = vmatprep.subr.mxu0 %v1081
  %1205 = vmatpush1.msra.mxu0 %v1080
  %1206 = vmatprep.subr.mxu0 %v1085
  %1207 = vmatpush1.msra.mxu0 %v1084
  %1208 = vmatprep.subr.mxu0 %v1089
  %1209 = vmatpush1.msra.mxu0 %v1088
  %1210 = vmatprep.subr.mxu0 %v1093
  %1211 = vmatpush1.msra.mxu0 %v1092
  %1212 = vmatprep.subr.mxu0 %v1097
  %1213 = vmatpush1.msra.mxu0 %v1096
  %1214 = vmatprep.subr.mxu0 %v1101
  %1215 = vmatpush1.msra.mxu0 %v1100
  %1216 = vmatprep.subr.mxu0 %v1105
  %1217 = vmatpush1.msra.mxu0 %v1104
  %1218 = vmatprep.subr.mxu0 %v1109
  %1219 = vmatpush1.msra.mxu0 %v1108
  %1220 = vmatprep.subr.mxu0 %v1113
  %1221 = vmatpush1.msra.mxu0 %v1112
  %1222 = vmatprep.subr.mxu0 %v1117
  %1223 = vmatpush1.msra.mxu0 %v1116
  %1224 = vmatprep.subr.mxu0 0.0
  %1225 = vmatpush1.msra.mxu0 0.0
  %1226 = vmatprep.subr.mxu0 0.0
  %1227 = vmatpush1.msra.mxu0 0.0
  %1228 = vmatprep.subr.mxu0 0.0
  %1229 = vmatpush1.msra.mxu0 0.0
  %1230 = vmatprep.subr.mxu0 0.0
  %1231 = vmatpush1.msra.mxu0 0.0
  %1232 = vmatprep.subr.mxu0 0.0
  %1233 = vmatpush1.msra.mxu0 0.0
  %1234 = vmatprep.subr.mxu0 0.0
  %1235 = vmatpush1.msra.mxu0 0.0
  %1236 = vmatprep.subr.mxu0 0.0
  %1237 = vmatpush1.msra.mxu0 0.0
  %1238 = vmatprep.subr.mxu0 0.0
  %1239 = vmatpush1.msra.mxu0 0.0
  %1240 = vmatprep.subr.mxu0 0.0
  %1241 = vmatpush1.msra.mxu0 0.0
  %1242 = vmatprep.subr.mxu0 0.0
  %1243 = vmatpush1.msra.mxu0 0.0
  %1244 = vmatprep.subr.mxu0 0.0
  %1245 = vmatpush1.msra.mxu0 0.0
  %1246 = vmatprep.subr.mxu0 0.0
  %1247 = vmatpush1.msra.mxu0 0.0
  %1248 = vmatprep.subr.mxu0 0.0
  %1249 = vmatpush1.msra.mxu0 0.0
  %1250 = vmatprep.subr.mxu0 0.0
  %1251 = vmatpush1.msra.mxu0 0.0
  %1252 = vmatprep.subr.mxu0 0.0
  %1253 = vmatpush1.msra.mxu0 0.0
  %1254 = vmatprep.subr.mxu0 0.0
  %1255 = vmatpush1.msra.mxu0 0.0
  %1256 = vmatprep.mubr.f32.mxu0 0.0
  %1257 = vmatmul.mubr.f32.gmra.mrb[0].mxu0 %v1119
  %v1258 = vpop.f32.mrb[0].mxu0
  %v1259 = vadd.f32 0.0, %v1258
  %v1260 = vpop.f32.mrb[0].mxu0
  %v1261 = vadd.f32 0.0, %v1260
  %1262 = vdwg.mxu0
  %v1267 = vrot.slane %v1188, 2
  %v1268 = vrot.slane %v1190, 2
  %v1269 = vrot.slane %v1259, 2
  %v1270 = vrot.slane %v1261, 2
  %v1275 = vadd.f32 %v1050, %v1267
  %v1276 = vadd.f32 %v1051, %v1268
  %v1277 = vadd.f32 %v1052, %v1269
  %v1278 = vadd.f32 %v1053, %v1270
  %v1279 = vxor.u32 %v1275, 2147483648
  %v1280 = vmul.f32 %v1279, 1.442695
  %v1281 = vpow.pop %v1280
  %v1282 = vadd.f32 %v1281, 1.0
  %v1283 = vrcp.pop %v1282
  %v1284 = vmul.f32 1.0, %v1283
  %v1285 = vxor.u32 %v1276, 2147483648
  %v1286 = vmul.f32 %v1285, 1.442695
  %v1287 = vpow.pop %v1286
  %v1288 = vadd.f32 %v1287, 1.0
  %v1289 = vrcp.pop %v1288
  %v1290 = vmul.f32 1.0, %v1289
  %v1291 = vtanh.pop %v1277
  %v1292 = vxor.u32 %v1278, 2147483648
  %v1293 = vmul.f32 %v1292, 1.442695
  %v1294 = vpow.pop %v1293
  %v1295 = vadd.f32 %v1294, 1.0
  %v1296 = vrcp.pop %v1295
  %v1297 = vmul.f32 1.0, %v1296
  %v1299 = vrot.slane %v1046, 6
  %v1301 = vmul.f32 %v1290, %v1299
  %v1302 = vmul.f32 %v1284, %v1291
  %v1303 = vadd.f32 %v1301, %v1302
  %v1304 = vtanh.pop %v1303
  %v1305 = vmul.f32 %v1297, %v1304
  %1306 = vst [vmem:[#allocation2] sm:$0xc0] %v1305
  %v1307 = vld [vmem:[#allocation3 + $0x20] sm:$0x3]
  %v1308 = vld [vmem:[#allocation3 + $0x28] sm:$0x3]
  %v1309 = vld [vmem:[#allocation3 + $0x30] sm:$0x3]
  %v1310 = vld [vmem:[#allocation3 + $0x38] sm:$0x3]
  %v1311 = vld [vmem:[%s2] sm:$0xff]
  %v1312 = vld [vmem:[%s2 + $0x8] sm:$0xff]
  %v1313 = vld [vmem:[%s2 + $0x10] sm:$0xff]
  %v1314 = vld [vmem:[%s2 + $0x18] sm:$0xff]
  %v1315 = vld [vmem:[%s2 + $0x20] sm:$0xff]
  %v1316 = vld [vmem:[%s2 + $0x28] sm:$0xff]
  %v1317 = vld [vmem:[%s2 + $0x30] sm:$0xff]
  %v1318 = vld [vmem:[%s2 + $0x38] sm:$0xff]
  %v1319 = vld [vmem:[%s2 + $0x40] sm:$0xff]
  %v1320 = vld [vmem:[%s2 + $0x48] sm:$0xff]
  %v1321 = vld [vmem:[%s2 + $0x50] sm:$0xff]
  %v1322 = vld [vmem:[%s2 + $0x58] sm:$0xff]
  %v1323 = vld [vmem:[%s2 + $0x60] sm:$0xff]
  %v1324 = vld [vmem:[%s2 + $0x68] sm:$0xff]
  %v1325 = vld [vmem:[%s2 + $0x70] sm:$0xff]
  %v1326 = vld [vmem:[%s2 + $0x78] sm:$0xff]
  %v1327 = vld [vmem:[%s2 + $0x80] sm:$0xff]
  %v1328 = vld [vmem:[%s2 + $0x88] sm:$0xff]
  %v1329 = vld [vmem:[%s2 + $0x90] sm:$0xff]
  %v1330 = vld [vmem:[%s2 + $0x98] sm:$0xff]
  %v1331 = vld [vmem:[%s2 + $0xa0] sm:$0xff]
  %v1332 = vld [vmem:[%s2 + $0xa8] sm:$0xff]
  %v1333 = vld [vmem:[%s2 + $0xb0] sm:$0xff]
  %v1334 = vld [vmem:[%s2 + $0xb8] sm:$0xff]
  %v1335 = vld [vmem:[%s2 + $0xc0] sm:$0xff]
  %v1336 = vld [vmem:[%s2 + $0xc8] sm:$0xff]
  %v1337 = vld [vmem:[%s2 + $0xd0] sm:$0xff]
  %v1338 = vld [vmem:[%s2 + $0xd8] sm:$0xff]
  %v1339 = vld [vmem:[%s2 + $0xe0] sm:$0xff]
  %v1340 = vld [vmem:[%s2 + $0xe8] sm:$0xff]
  %v1341 = vld [vmem:[%s2 + $0xf0] sm:$0xff]
  %v1342 = vld [vmem:[%s2 + $0xf8] sm:$0xff]
  %v1343 = vld [vmem:[%s2 + $0x100] sm:$0xff]
  %v1344 = vld [vmem:[%s2 + $0x108] sm:$0xff]
  %v1345 = vld [vmem:[%s2 + $0x110] sm:$0xff]
  %v1346 = vld [vmem:[%s2 + $0x118] sm:$0xff]
  %v1347 = vld [vmem:[%s2 + $0x120] sm:$0xff]
  %v1348 = vld [vmem:[%s2 + $0x128] sm:$0xff]
  %v1349 = vld [vmem:[%s2 + $0x130] sm:$0xff]
  %v1350 = vld [vmem:[%s2 + $0x138] sm:$0xff]
  %v1351 = vld [vmem:[%s2 + $0x140] sm:$0xff]
  %v1352 = vld [vmem:[%s2 + $0x148] sm:$0xff]
  %v1353 = vld [vmem:[%s2 + $0x150] sm:$0xff]
  %v1354 = vld [vmem:[%s2 + $0x158] sm:$0xff]
  %v1355 = vld [vmem:[%s2 + $0x160] sm:$0xff]
  %v1356 = vld [vmem:[%s2 + $0x168] sm:$0xff]
  %v1357 = vld [vmem:[%s2 + $0x170] sm:$0xff]
  %v1358 = vld [vmem:[%s2 + $0x178] sm:$0xff]
  %v1359 = vld [vmem:[%s2 + $0x180] sm:$0xff]
  %v1360 = vld [vmem:[%s2 + $0x188] sm:$0xff]
  %v1361 = vld [vmem:[%s2 + $0x190] sm:$0xff]
  %v1362 = vld [vmem:[%s2 + $0x198] sm:$0xff]
  %v1363 = vld [vmem:[%s2 + $0x1a0] sm:$0xff]
  %v1364 = vld [vmem:[%s2 + $0x1a8] sm:$0xff]
  %v1365 = vld [vmem:[%s2 + $0x1b0] sm:$0xff]
  %v1366 = vld [vmem:[%s2 + $0x1b8] sm:$0xff]
  %v1367 = vld [vmem:[%s2 + $0x1c0] sm:$0xff]
  %v1368 = vld [vmem:[%s2 + $0x1c8] sm:$0xff]
  %v1369 = vld [vmem:[%s2 + $0x1d0] sm:$0xff]
  %v1370 = vld [vmem:[%s2 + $0x1d8] sm:$0xff]
  %v1371 = vld [vmem:[%s2 + $0x1e0] sm:$0xff]
  %v1372 = vld [vmem:[%s2 + $0x1e8] sm:$0xff]
  %v1373 = vld [vmem:[%s2 + $0x1f0] sm:$0xff]
  %v1374 = vld [vmem:[%s2 + $0x1f8] sm:$0xff]
  %v1376 = vrot.slane %v1305, 6
  %1378 = vmatprep.subr.mxu0 %v1312
  %1379 = vmatpush1.msra.mxu0 %v1311
  %1380 = vmatprep.subr.mxu0 %v1316
  %1381 = vmatpush1.msra.mxu0 %v1315
  %1382 = vmatprep.subr.mxu0 %v1320
  %1383 = vmatpush1.msra.mxu0 %v1319
  %1384 = vmatprep.subr.mxu0 %v1324
  %1385 = vmatpush1.msra.mxu0 %v1323
  %1386 = vmatprep.subr.mxu0 %v1328
  %1387 = vmatpush1.msra.mxu0 %v1327
  %1388 = vmatprep.subr.mxu0 %v1332
  %1389 = vmatpush1.msra.mxu0 %v1331
  %1390 = vmatprep.subr.mxu0 %v1336
  %1391 = vmatpush1.msra.mxu0 %v1335
  %1392 = vmatprep.subr.mxu0 %v1340
  %1393 = vmatpush1.msra.mxu0 %v1339
  %1394 = vmatprep.subr.mxu0 %v1344
  %1395 = vmatpush1.msra.mxu0 %v1343
  %1396 = vmatprep.subr.mxu0 %v1348
  %1397 = vmatpush1.msra.mxu0 %v1347
  %1398 = vmatprep.subr.mxu0 %v1352
  %1399 = vmatpush1.msra.mxu0 %v1351
  %1400 = vmatprep.subr.mxu0 %v1356
  %1401 = vmatpush1.msra.mxu0 %v1355
  %1402 = vmatprep.subr.mxu0 %v1360
  %1403 = vmatpush1.msra.mxu0 %v1359
  %1404 = vmatprep.subr.mxu0 %v1364
  %1405 = vmatpush1.msra.mxu0 %v1363
  %1406 = vmatprep.subr.mxu0 %v1368
  %1407 = vmatpush1.msra.mxu0 %v1367
  %1408 = vmatprep.subr.mxu0 %v1372
  %1409 = vmatpush1.msra.mxu0 %v1371
  %1410 = vmatprep.subr.mxu0 0.0
  %1411 = vmatpush1.msra.mxu0 0.0
  %1412 = vmatprep.subr.mxu0 0.0
  %1413 = vmatpush1.msra.mxu0 0.0
  %1414 = vmatprep.subr.mxu0 0.0
  %1415 = vmatpush1.msra.mxu0 0.0
  %1416 = vmatprep.subr.mxu0 0.0
  %1417 = vmatpush1.msra.mxu0 0.0
  %1418 = vmatprep.subr.mxu0 0.0
  %1419 = vmatpush1.msra.mxu0 0.0
  %1420 = vmatprep.subr.mxu0 0.0
  %1421 = vmatpush1.msra.mxu0 0.0
  %1422 = vmatprep.subr.mxu0 0.0
  %1423 = vmatpush1.msra.mxu0 0.0
  %1424 = vmatprep.subr.mxu0 0.0
  %1425 = vmatpush1.msra.mxu0 0.0
  %1426 = vmatprep.subr.mxu0 0.0
  %1427 = vmatpush1.msra.mxu0 0.0
  %1428 = vmatprep.subr.mxu0 0.0
  %1429 = vmatpush1.msra.mxu0 0.0
  %1430 = vmatprep.subr.mxu0 0.0
  %1431 = vmatpush1.msra.mxu0 0.0
  %1432 = vmatprep.subr.mxu0 0.0
  %1433 = vmatpush1.msra.mxu0 0.0
  %1434 = vmatprep.subr.mxu0 0.0
  %1435 = vmatpush1.msra.mxu0 0.0
  %1436 = vmatprep.subr.mxu0 0.0
  %1437 = vmatpush1.msra.mxu0 0.0
  %1438 = vmatprep.subr.mxu0 0.0
  %1439 = vmatpush1.msra.mxu0 0.0
  %1440 = vmatprep.subr.mxu0 0.0
  %1441 = vmatpush1.msra.mxu0 0.0
  %1442 = vmatprep.mubr.f32.mxu0 0.0
  %1443 = vmatmul.mubr.f32.gmra.mrb[0].mxu0 %v1376
  %v1444 = vpop.f32.mrb[0].mxu0
  %v1445 = vadd.f32 0.0, %v1444
  %v1446 = vpop.f32.mrb[0].mxu0
  %v1447 = vadd.f32 0.0, %v1446
  %1448 = vdwg.mxu0
  %1449 = vmatprep.subr.mxu0 %v1314
  %1450 = vmatpush1.msra.mxu0 %v1313
  %1451 = vmatprep.subr.mxu0 %v1318
  %1452 = vmatpush1.msra.mxu0 %v1317
  %1453 = vmatprep.subr.mxu0 %v1322
  %1454 = vmatpush1.msra.mxu0 %v1321
  %1455 = vmatprep.subr.mxu0 %v1326
  %1456 = vmatpush1.msra.mxu0 %v1325
  %1457 = vmatprep.subr.mxu0 %v1330
  %1458 = vmatpush1.msra.mxu0 %v1329
  %1459 = vmatprep.subr.mxu0 %v1334
  %1460 = vmatpush1.msra.mxu0 %v1333
  %1461 = vmatprep.subr.mxu0 %v1338
  %1462 = vmatpush1.msra.mxu0 %v1337
  %1463 = vmatprep.subr.mxu0 %v1342
  %1464 = vmatpush1.msra.mxu0 %v1341
  %1465 = vmatprep.subr.mxu0 %v1346
  %1466 = vmatpush1.msra.mxu0 %v1345
  %1467 = vmatprep.subr.mxu0 %v1350
  %1468 = vmatpush1.msra.mxu0 %v1349
  %1469 = vmatprep.subr.mxu0 %v1354
  %1470 = vmatpush1.msra.mxu0 %v1353
  %1471 = vmatprep.subr.mxu0 %v1358
  %1472 = vmatpush1.msra.mxu0 %v1357
  %1473 = vmatprep.subr.mxu0 %v1362
  %1474 = vmatpush1.msra.mxu0 %v1361
  %1475 = vmatprep.subr.mxu0 %v1366
  %1476 = vmatpush1.msra.mxu0 %v1365
  %1477 = vmatprep.subr.mxu0 %v1370
  %1478 = vmatpush1.msra.mxu0 %v1369
  %1479 = vmatprep.subr.mxu0 %v1374
  %1480 = vmatpush1.msra.mxu0 %v1373
  %1481 = vmatprep.subr.mxu0 0.0
  %1482 = vmatpush1.msra.mxu0 0.0
  %1483 = vmatprep.subr.mxu0 0.0
  %1484 = vmatpush1.msra.mxu0 0.0
  %1485 = vmatprep.subr.mxu0 0.0
  %1486 = vmatpush1.msra.mxu0 0.0
  %1487 = vmatprep.subr.mxu0 0.0
  %1488 = vmatpush1.msra.mxu0 0.0
  %1489 = vmatprep.subr.mxu0 0.0
  %1490 = vmatpush1.msra.mxu0 0.0
  %1491 = vmatprep.subr.mxu0 0.0
  %1492 = vmatpush1.msra.mxu0 0.0
  %1493 = vmatprep.subr.mxu0 0.0
  %1494 = vmatpush1.msra.mxu0 0.0
  %1495 = vmatprep.subr.mxu0 0.0
  %1496 = vmatpush1.msra.mxu0 0.0
  %1497 = vmatprep.subr.mxu0 0.0
  %1498 = vmatpush1.msra.mxu0 0.0
  %1499 = vmatprep.subr.mxu0 0.0
  %1500 = vmatpush1.msra.mxu0 0.0
  %1501 = vmatprep.subr.mxu0 0.0
  %1502 = vmatpush1.msra.mxu0 0.0
  %1503 = vmatprep.subr.mxu0 0.0
  %1504 = vmatpush1.msra.mxu0 0.0
  %1505 = vmatprep.subr.mxu0 0.0
  %1506 = vmatpush1.msra.mxu0 0.0
  %1507 = vmatprep.subr.mxu0 0.0
  %1508 = vmatpush1.msra.mxu0 0.0
  %1509 = vmatprep.subr.mxu0 0.0
  %1510 = vmatpush1.msra.mxu0 0.0
  %1511 = vmatprep.subr.mxu0 0.0
  %1512 = vmatpush1.msra.mxu0 0.0
  %1513 = vmatprep.mubr.f32.mxu0 0.0
  %1514 = vmatmul.mubr.f32.gmra.mrb[0].mxu0 %v1376
  %v1515 = vpop.f32.mrb[0].mxu0
  %v1516 = vadd.f32 0.0, %v1515
  %v1517 = vpop.f32.mrb[0].mxu0
  %v1518 = vadd.f32 0.0, %v1517
  %1519 = vdwg.mxu0
  %v1520 = vadd.f32 %v1307, %v1445
  %v1521 = vadd.f32 %v1308, %v1447
  %v1522 = vadd.f32 %v1309, %v1516
  %v1523 = vadd.f32 %v1310, %v1518
  %v1524 = vxor.u32 %v1520, 2147483648
  %v1525 = vmul.f32 %v1524, 1.442695
  %v1526 = vpow.pop %v1525
  %v1527 = vadd.f32 %v1526, 1.0
  %v1528 = vrcp.pop %v1527
  %v1529 = vmul.f32 1.0, %v1528
  %v1530 = vxor.u32 %v1521, 2147483648
  %v1531 = vmul.f32 %v1530, 1.442695
  %v1532 = vpow.pop %v1531
  %v1533 = vadd.f32 %v1532, 1.0
  %v1534 = vrcp.pop %v1533
  %v1535 = vmul.f32 1.0, %v1534
  %v1536 = vtanh.pop %v1522
  %v1537 = vxor.u32 %v1523, 2147483648
  %v1538 = vmul.f32 %v1537, 1.442695
  %v1539 = vpow.pop %v1538
  %v1540 = vadd.f32 %v1539, 1.0
  %v1541 = vrcp.pop %v1540
  %v1542 = vmul.f32 1.0, %v1541
  %v1544 = vrot.slane %v1303, 6
  %v1546 = vmul.f32 %v1535, %v1544
  %v1547 = vmul.f32 %v1529, %v1536
  %v1548 = vadd.f32 %v1546, %v1547
  %v1549 = vtanh.pop %v1548
  %v1550 = vmul.f32 %v1542, %v1549
  %1551 = vst [vmem:[#allocation2 + $0x8] sm:$0x3] %v1550
  %v1552 = vld [vmem:[#allocation3 + $0x20] sm:$0xc]
  %v1553 = vld [vmem:[#allocation3 + $0x28] sm:$0xc]
  %v1554 = vld [vmem:[#allocation3 + $0x30] sm:$0xc]
  %v1555 = vld [vmem:[#allocation3 + $0x38] sm:$0xc]
  %v1556 = vld [vmem:[%s2] sm:$0xff]
  %v1557 = vld [vmem:[%s2 + $0x8] sm:$0xff]
  %v1558 = vld [vmem:[%s2 + $0x10] sm:$0xff]
  %v1559 = vld [vmem:[%s2 + $0x18] sm:$0xff]
  %v1560 = vld [vmem:[%s2 + $0x20] sm:$0xff]
  %v1561 = vld [vmem:[%s2 + $0x28] sm:$0xff]
  %v1562 = vld [vmem:[%s2 + $0x30] sm:$0xff]
  %v1563 = vld [vmem:[%s2 + $0x38] sm:$0xff]
  %v1564 = vld [vmem:[%s2 + $0x40] sm:$0xff]
  %v1565 = vld [vmem:[%s2 + $0x48] sm:$0xff]
  %v1566 = vld [vmem:[%s2 + $0x50] sm:$0xff]
  %v1567 = vld [vmem:[%s2 + $0x58] sm:$0xff]
  %v1568 = vld [vmem:[%s2 + $0x60] sm:$0xff]
  %v1569 = vld [vmem:[%s2 + $0x68] sm:$0xff]
  %v1570 = vld [vmem:[%s2 + $0x70] sm:$0xff]
  %v1571 = vld [vmem:[%s2 + $0x78] sm:$0xff]
  %v1572 = vld [vmem:[%s2 + $0x80] sm:$0xff]
  %v1573 = vld [vmem:[%s2 + $0x88] sm:$0xff]
  %v1574 = vld [vmem:[%s2 + $0x90] sm:$0xff]
  %v1575 = vld [vmem:[%s2 + $0x98] sm:$0xff]
  %v1576 = vld [vmem:[%s2 + $0xa0] sm:$0xff]
  %v1577 = vld [vmem:[%s2 + $0xa8] sm:$0xff]
  %v1578 = vld [vmem:[%s2 + $0xb0] sm:$0xff]
  %v1579 = vld [vmem:[%s2 + $0xb8] sm:$0xff]
  %v1580 = vld [vmem:[%s2 + $0xc0] sm:$0xff]
  %v1581 = vld [vmem:[%s2 + $0xc8] sm:$0xff]
  %v1582 = vld [vmem:[%s2 + $0xd0] sm:$0xff]
  %v1583 = vld [vmem:[%s2 + $0xd8] sm:$0xff]
  %v1584 = vld [vmem:[%s2 + $0xe0] sm:$0xff]
  %v1585 = vld [vmem:[%s2 + $0xe8] sm:$0xff]
  %v1586 = vld [vmem:[%s2 + $0xf0] sm:$0xff]
  %v1587 = vld [vmem:[%s2 + $0xf8] sm:$0xff]
  %v1588 = vld [vmem:[%s2 + $0x100] sm:$0xff]
  %v1589 = vld [vmem:[%s2 + $0x108] sm:$0xff]
  %v1590 = vld [vmem:[%s2 + $0x110] sm:$0xff]
  %v1591 = vld [vmem:[%s2 + $0x118] sm:$0xff]
  %v1592 = vld [vmem:[%s2 + $0x120] sm:$0xff]
  %v1593 = vld [vmem:[%s2 + $0x128] sm:$0xff]
  %v1594 = vld [vmem:[%s2 + $0x130] sm:$0xff]
  %v1595 = vld [vmem:[%s2 + $0x138] sm:$0xff]
  %v1596 = vld [vmem:[%s2 + $0x140] sm:$0xff]
  %v1597 = vld [vmem:[%s2 + $0x148] sm:$0xff]
  %v1598 = vld [vmem:[%s2 + $0x150] sm:$0xff]
  %v1599 = vld [vmem:[%s2 + $0x158] sm:$0xff]
  %v1600 = vld [vmem:[%s2 + $0x160] sm:$0xff]
  %v1601 = vld [vmem:[%s2 + $0x168] sm:$0xff]
  %v1602 = vld [vmem:[%s2 + $0x170] sm:$0xff]
  %v1603 = vld [vmem:[%s2 + $0x178] sm:$0xff]
  %v1604 = vld [vmem:[%s2 + $0x180] sm:$0xff]
  %v1605 = vld [vmem:[%s2 + $0x188] sm:$0xff]
  %v1606 = vld [vmem:[%s2 + $0x190] sm:$0xff]
  %v1607 = vld [vmem:[%s2 + $0x198] sm:$0xff]
  %v1608 = vld [vmem:[%s2 + $0x1a0] sm:$0xff]
  %v1609 = vld [vmem:[%s2 + $0x1a8] sm:$0xff]
  %v1610 = vld [vmem:[%s2 + $0x1b0] sm:$0xff]
  %v1611 = vld [vmem:[%s2 + $0x1b8] sm:$0xff]
  %v1612 = vld [vmem:[%s2 + $0x1c0] sm:$0xff]
  %v1613 = vld [vmem:[%s2 + $0x1c8] sm:$0xff]
  %v1614 = vld [vmem:[%s2 + $0x1d0] sm:$0xff]
  %v1615 = vld [vmem:[%s2 + $0x1d8] sm:$0xff]
  %v1616 = vld [vmem:[%s2 + $0x1e0] sm:$0xff]
  %v1617 = vld [vmem:[%s2 + $0x1e8] sm:$0xff]
  %v1618 = vld [vmem:[%s2 + $0x1f0] sm:$0xff]
  %v1619 = vld [vmem:[%s2 + $0x1f8] sm:$0xff]
  %1620 = vmatprep.subr.mxu0 %v1557
  %1621 = vmatpush1.msra.mxu0 %v1556
  %1622 = vmatprep.subr.mxu0 %v1561
  %1623 = vmatpush1.msra.mxu0 %v1560
  %1624 = vmatprep.subr.mxu0 %v1565
  %1625 = vmatpush1.msra.mxu0 %v1564
  %1626 = vmatprep.subr.mxu0 %v1569
  %1627 = vmatpush1.msra.mxu0 %v1568
  %1628 = vmatprep.subr.mxu0 %v1573
  %1629 = vmatpush1.msra.mxu0 %v1572
  %1630 = vmatprep.subr.mxu0 %v1577
  %1631 = vmatpush1.msra.mxu0 %v1576
  %1632 = vmatprep.subr.mxu0 %v1581
  %1633 = vmatpush1.msra.mxu0 %v1580
  %1634 = vmatprep.subr.mxu0 %v1585
  %1635 = vmatpush1.msra.mxu0 %v1584
  %1636 = vmatprep.subr.mxu0 %v1589
  %1637 = vmatpush1.msra.mxu0 %v1588
  %1638 = vmatprep.subr.mxu0 %v1593
  %1639 = vmatpush1.msra.mxu0 %v1592
  %1640 = vmatprep.subr.mxu0 %v1597
  %1641 = vmatpush1.msra.mxu0 %v1596
  %1642 = vmatprep.subr.mxu0 %v1601
  %1643 = vmatpush1.msra.mxu0 %v1600
  %1644 = vmatprep.subr.mxu0 %v1605
  %1645 = vmatpush1.msra.mxu0 %v1604
  %1646 = vmatprep.subr.mxu0 %v1609
  %1647 = vmatpush1.msra.mxu0 %v1608
  %1648 = vmatprep.subr.mxu0 %v1613
  %1649 = vmatpush1.msra.mxu0 %v1612
  %1650 = vmatprep.subr.mxu0 %v1617
  %1651 = vmatpush1.msra.mxu0 %v1616
  %1652 = vmatprep.subr.mxu0 0.0
  %1653 = vmatpush1.msra.mxu0 0.0
  %1654 = vmatprep.subr.mxu0 0.0
  %1655 = vmatpush1.msra.mxu0 0.0
  %1656 = vmatprep.subr.mxu0 0.0
  %1657 = vmatpush1.msra.mxu0 0.0
  %1658 = vmatprep.subr.mxu0 0.0
  %1659 = vmatpush1.msra.mxu0 0.0
  %1660 = vmatprep.subr.mxu0 0.0
  %1661 = vmatpush1.msra.mxu0 0.0
  %1662 = vmatprep.subr.mxu0 0.0
  %1663 = vmatpush1.msra.mxu0 0.0
  %1664 = vmatprep.subr.mxu0 0.0
  %1665 = vmatpush1.msra.mxu0 0.0
  %1666 = vmatprep.subr.mxu0 0.0
  %1667 = vmatpush1.msra.mxu0 0.0
  %1668 = vmatprep.subr.mxu0 0.0
  %1669 = vmatpush1.msra.mxu0 0.0
  %1670 = vmatprep.subr.mxu0 0.0
  %1671 = vmatpush1.msra.mxu0 0.0
  %1672 = vmatprep.subr.mxu0 0.0
  %1673 = vmatpush1.msra.mxu0 0.0
  %1674 = vmatprep.subr.mxu0 0.0
  %1675 = vmatpush1.msra.mxu0 0.0
  %1676 = vmatprep.subr.mxu0 0.0
  %1677 = vmatpush1.msra.mxu0 0.0
  %1678 = vmatprep.subr.mxu0 0.0
  %1679 = vmatpush1.msra.mxu0 0.0
  %1680 = vmatprep.subr.mxu0 0.0
  %1681 = vmatpush1.msra.mxu0 0.0
  %1682 = vmatprep.subr.mxu0 0.0
  %1683 = vmatpush1.msra.mxu0 0.0
  %1684 = vmatprep.mubr.f32.mxu0 0.0
  %1685 = vmatmul.mubr.f32.gmra.mrb[0].mxu0 %v1550
  %v1686 = vpop.f32.mrb[0].mxu0
  %v1687 = vadd.f32 0.0, %v1686
  %v1688 = vpop.f32.mrb[0].mxu0
  %v1689 = vadd.f32 0.0, %v1688
  %1690 = vdwg.mxu0
  %1691 = vmatprep.subr.mxu0 %v1559
  %1692 = vmatpush1.msra.mxu0 %v1558
  %1693 = vmatprep.subr.mxu0 %v1563
  %1694 = vmatpush1.msra.mxu0 %v1562
  %1695 = vmatprep.subr.mxu0 %v1567
  %1696 = vmatpush1.msra.mxu0 %v1566
  %1697 = vmatprep.subr.mxu0 %v1571
  %1698 = vmatpush1.msra.mxu0 %v1570
  %1699 = vmatprep.subr.mxu0 %v1575
  %1700 = vmatpush1.msra.mxu0 %v1574
  %1701 = vmatprep.subr.mxu0 %v1579
  %1702 = vmatpush1.msra.mxu0 %v1578
  %1703 = vmatprep.subr.mxu0 %v1583
  %1704 = vmatpush1.msra.mxu0 %v1582
  %1705 = vmatprep.subr.mxu0 %v1587
  %1706 = vmatpush1.msra.mxu0 %v1586
  %1707 = vmatprep.subr.mxu0 %v1591
  %1708 = vmatpush1.msra.mxu0 %v1590
  %1709 = vmatprep.subr.mxu0 %v1595
  %1710 = vmatpush1.msra.mxu0 %v1594
  %1711 = vmatprep.subr.mxu0 %v1599
  %1712 = vmatpush1.msra.mxu0 %v1598
  %1713 = vmatprep.subr.mxu0 %v1603
  %1714 = vmatpush1.msra.mxu0 %v1602
  %1715 = vmatprep.subr.mxu0 %v1607
  %1716 = vmatpush1.msra.mxu0 %v1606
  %1717 = vmatprep.subr.mxu0 %v1611
  %1718 = vmatpush1.msra.mxu0 %v1610
  %1719 = vmatprep.subr.mxu0 %v1615
  %1720 = vmatpush1.msra.mxu0 %v1614
  %1721 = vmatprep.subr.mxu0 %v1619
  %1722 = vmatpush1.msra.mxu0 %v1618
  %1723 = vmatprep.subr.mxu0 0.0
  %1724 = vmatpush1.msra.mxu0 0.0
  %1725 = vmatprep.subr.mxu0 0.0
  %1726 = vmatpush1.msra.mxu0 0.0
  %1727 = vmatprep.subr.mxu0 0.0
  %1728 = vmatpush1.msra.mxu0 0.0
  %1729 = vmatprep.subr.mxu0 0.0
  %1730 = vmatpush1.msra.mxu0 0.0
  %1731 = vmatprep.subr.mxu0 0.0
  %1732 = vmatpush1.msra.mxu0 0.0
  %1733 = vmatprep.subr.mxu0 0.0
  %1734 = vmatpush1.msra.mxu0 0.0
  %1735 = vmatprep.subr.mxu0 0.0
  %1736 = vmatpush1.msra.mxu0 0.0
  %1737 = vmatprep.subr.mxu0 0.0
  %1738 = vmatpush1.msra.mxu0 0.0
  %1739 = vmatprep.subr.mxu0 0.0
  %1740 = vmatpush1.msra.mxu0 0.0
  %1741 = vmatprep.subr.mxu0 0.0
  %1742 = vmatpush1.msra.mxu0 0.0
  %1743 = vmatprep.subr.mxu0 0.0
  %1744 = vmatpush1.msra.mxu0 0.0
  %1745 = vmatprep.subr.mxu0 0.0
  %1746 = vmatpush1.msra.mxu0 0.0
  %1747 = vmatprep.subr.mxu0 0.0
  %1748 = vmatpush1.msra.mxu0 0.0
  %1749 = vmatprep.subr.mxu0 0.0
  %1750 = vmatpush1.msra.mxu0 0.0
  %1751 = vmatprep.subr.mxu0 0.0
  %1752 = vmatpush1.msra.mxu0 0.0
  %1753 = vmatprep.subr.mxu0 0.0
  %1754 = vmatpush1.msra.mxu0 0.0
  %1755 = vmatprep.mubr.f32.mxu0 0.0
  %1756 = vmatmul.mubr.f32.gmra.mrb[0].mxu0 %v1550
  %v1757 = vpop.f32.mrb[0].mxu0
  %v1758 = vadd.f32 0.0, %v1757
  %v1759 = vpop.f32.mrb[0].mxu0
  %v1760 = vadd.f32 0.0, %v1759
  %1761 = vdwg.mxu0
  %v1766 = vrot.slane %v1687, 6
  %v1767 = vrot.slane %v1689, 6
  %v1768 = vrot.slane %v1758, 6
  %v1769 = vrot.slane %v1760, 6
  %v1774 = vadd.f32 %v1552, %v1766
  %v1775 = vadd.f32 %v1553, %v1767
  %v1776 = vadd.f32 %v1554, %v1768
  %v1777 = vadd.f32 %v1555, %v1769
  %v1778 = vxor.u32 %v1774, 2147483648
  %v1779 = vmul.f32 %v1778, 1.442695
  %v1780 = vpow.pop %v1779
  %v1781 = vadd.f32 %v1780, 1.0
  %v1782 = vrcp.pop %v1781
  %v1783 = vmul.f32 1.0, %v1782
  %v1784 = vxor.u32 %v1775, 2147483648
  %v1785 = vmul.f32 %v1784, 1.442695
  %v1786 = vpow.pop %v1785
  %v1787 = vadd.f32 %v1786, 1.0
  %v1788 = vrcp.pop %v1787
  %v1789 = vmul.f32 1.0, %v1788
  %v1790 = vtanh.pop %v1776
  %v1791 = vxor.u32 %v1777, 2147483648
  %v1792 = vmul.f32 %v1791, 1.442695
  %v1793 = vpow.pop %v1792
  %v1794 = vadd.f32 %v1793, 1.0
  %v1795 = vrcp.pop %v1794
  %v1796 = vmul.f32 1.0, %v1795
  %v1798 = vrot.slane %v1548, 6
  %v1800 = vmul.f32 %v1789, %v1798
  %v1801 = vmul.f32 %v1783, %v1790
  %v1802 = vadd.f32 %v1800, %v1801
  %v1803 = vtanh.pop %v1802
  %v1804 = vmul.f32 %v1796, %v1803
  %1805 = vst [vmem:[#allocation2 + $0x8] sm:$0xc] %v1804
  %v1806 = vld [vmem:[#allocation3 + $0x20] sm:$0x30]
  %v1807 = vld [vmem:[#allocation3 + $0x28] sm:$0x30]
  %v1808 = vld [vmem:[#allocation3 + $0x30] sm:$0x30]
  %v1809 = vld [vmem:[#allocation3 + $0x38] sm:$0x30]
  %v1810 = vld [vmem:[%s2] sm:$0xff]
  %v1811 = vld [vmem:[%s2 + $0x8] sm:$0xff]
  %v1812 = vld [vmem:[%s2 + $0x10] sm:$0xff]
  %v1813 = vld [vmem:[%s2 + $0x18] sm:$0xff]
  %v1814 = vld [vmem:[%s2 + $0x20] sm:$0xff]
  %v1815 = vld [vmem:[%s2 + $0x28] sm:$0xff]
  %v1816 = vld [vmem:[%s2 + $0x30] sm:$0xff]
  %v1817 = vld [vmem:[%s2 + $0x38] sm:$0xff]
  %v1818 = vld [vmem:[%s2 + $0x40] sm:$0xff]
  %v1819 = vld [vmem:[%s2 + $0x48] sm:$0xff]
  %v1820 = vld [vmem:[%s2 + $0x50] sm:$0xff]
  %v1821 = vld [vmem:[%s2 + $0x58] sm:$0xff]
  %v1822 = vld [vmem:[%s2 + $0x60] sm:$0xff]
  %v1823 = vld [vmem:[%s2 + $0x68] sm:$0xff]
  %v1824 = vld [vmem:[%s2 + $0x70] sm:$0xff]
  %v1825 = vld [vmem:[%s2 + $0x78] sm:$0xff]
  %v1826 = vld [vmem:[%s2 + $0x80] sm:$0xff]
  %v1827 = vld [vmem:[%s2 + $0x88] sm:$0xff]
  %v1828 = vld [vmem:[%s2 + $0x90] sm:$0xff]
  %v1829 = vld [vmem:[%s2 + $0x98] sm:$0xff]
  %v1830 = vld [vmem:[%s2 + $0xa0] sm:$0xff]
  %v1831 = vld [vmem:[%s2 + $0xa8] sm:$0xff]
  %v1832 = vld [vmem:[%s2 + $0xb0] sm:$0xff]
  %v1833 = vld [vmem:[%s2 + $0xb8] sm:$0xff]
  %v1834 = vld [vmem:[%s2 + $0xc0] sm:$0xff]
  %v1835 = vld [vmem:[%s2 + $0xc8] sm:$0xff]
  %v1836 = vld [vmem:[%s2 + $0xd0] sm:$0xff]
  %v1837 = vld [vmem:[%s2 + $0xd8] sm:$0xff]
  %v1838 = vld [vmem:[%s2 + $0xe0] sm:$0xff]
  %v1839 = vld [vmem:[%s2 + $0xe8] sm:$0xff]
  %v1840 = vld [vmem:[%s2 + $0xf0] sm:$0xff]
  %v1841 = vld [vmem:[%s2 + $0xf8] sm:$0xff]
  %v1842 = vld [vmem:[%s2 + $0x100] sm:$0xff]
  %v1843 = vld [vmem:[%s2 + $0x108] sm:$0xff]
  %v1844 = vld [vmem:[%s2 + $0x110] sm:$0xff]
  %v1845 = vld [vmem:[%s2 + $0x118] sm:$0xff]
  %v1846 = vld [vmem:[%s2 + $0x120] sm:$0xff]
  %v1847 = vld [vmem:[%s2 + $0x128] sm:$0xff]
  %v1848 = vld [vmem:[%s2 + $0x130] sm:$0xff]
  %v1849 = vld [vmem:[%s2 + $0x138] sm:$0xff]
  %v1850 = vld [vmem:[%s2 + $0x140] sm:$0xff]
  %v1851 = vld [vmem:[%s2 + $0x148] sm:$0xff]
  %v1852 = vld [vmem:[%s2 + $0x150] sm:$0xff]
  %v1853 = vld [vmem:[%s2 + $0x158] sm:$0xff]
  %v1854 = vld [vmem:[%s2 + $0x160] sm:$0xff]
  %v1855 = vld [vmem:[%s2 + $0x168] sm:$0xff]
  %v1856 = vld [vmem:[%s2 + $0x170] sm:$0xff]
  %v1857 = vld [vmem:[%s2 + $0x178] sm:$0xff]
  %v1858 = vld [vmem:[%s2 + $0x180] sm:$0xff]
  %v1859 = vld [vmem:[%s2 + $0x188] sm:$0xff]
  %v1860 = vld [vmem:[%s2 + $0x190] sm:$0xff]
  %v1861 = vld [vmem:[%s2 + $0x198] sm:$0xff]
  %v1862 = vld [vmem:[%s2 + $0x1a0] sm:$0xff]
  %v1863 = vld [vmem:[%s2 + $0x1a8] sm:$0xff]
  %v1864 = vld [vmem:[%s2 + $0x1b0] sm:$0xff]
  %v1865 = vld [vmem:[%s2 + $0x1b8] sm:$0xff]
  %v1866 = vld [vmem:[%s2 + $0x1c0] sm:$0xff]
  %v1867 = vld [vmem:[%s2 + $0x1c8] sm:$0xff]
  %v1868 = vld [vmem:[%s2 + $0x1d0] sm:$0xff]
  %v1869 = vld [vmem:[%s2 + $0x1d8] sm:$0xff]
  %v1870 = vld [vmem:[%s2 + $0x1e0] sm:$0xff]
  %v1871 = vld [vmem:[%s2 + $0x1e8] sm:$0xff]
  %v1872 = vld [vmem:[%s2 + $0x1f0] sm:$0xff]
  %v1873 = vld [vmem:[%s2 + $0x1f8] sm:$0xff]
  %v1875 = vrot.slane %v1804, 2
  %1877 = vmatprep.subr.mxu0 %v1811
  %1878 = vmatpush1.msra.mxu0 %v1810
  %1879 = vmatprep.subr.mxu0 %v1815
  %1880 = vmatpush1.msra.mxu0 %v1814
  %1881 = vmatprep.subr.mxu0 %v1819
  %1882 = vmatpush1.msra.mxu0 %v1818
  %1883 = vmatprep.subr.mxu0 %v1823
  %1884 = vmatpush1.msra.mxu0 %v1822
  %1885 = vmatprep.subr.mxu0 %v1827
  %1886 = vmatpush1.msra.mxu0 %v1826
  %1887 = vmatprep.subr.mxu0 %v1831
  %1888 = vmatpush1.msra.mxu0 %v1830
  %1889 = vmatprep.subr.mxu0 %v1835
  %1890 = vmatpush1.msra.mxu0 %v1834
  %1891 = vmatprep.subr.mxu0 %v1839
  %1892 = vmatpush1.msra.mxu0 %v1838
  %1893 = vmatprep.subr.mxu0 %v1843
  %1894 = vmatpush1.msra.mxu0 %v1842
  %1895 = vmatprep.subr.mxu0 %v1847
  %1896 = vmatpush1.msra.mxu0 %v1846
  %1897 = vmatprep.subr.mxu0 %v1851
  %1898 = vmatpush1.msra.mxu0 %v1850
  %1899 = vmatprep.subr.mxu0 %v1855
  %1900 = vmatpush1.msra.mxu0 %v1854
  %1901 = vmatprep.subr.mxu0 %v1859
  %1902 = vmatpush1.msra.mxu0 %v1858
  %1903 = vmatprep.subr.mxu0 %v1863
  %1904 = vmatpush1.msra.mxu0 %v1862
  %1905 = vmatprep.subr.mxu0 %v1867
  %1906 = vmatpush1.msra.mxu0 %v1866
  %1907 = vmatprep.subr.mxu0 %v1871
  %1908 = vmatpush1.msra.mxu0 %v1870
  %1909 = vmatprep.subr.mxu0 0.0
  %1910 = vmatpush1.msra.mxu0 0.0
  %1911 = vmatprep.subr.mxu0 0.0
  %1912 = vmatpush1.msra.mxu0 0.0
  %1913 = vmatprep.subr.mxu0 0.0
  %1914 = vmatpush1.msra.mxu0 0.0
  %1915 = vmatprep.subr.mxu0 0.0
  %1916 = vmatpush1.msra.mxu0 0.0
  %1917 = vmatprep.subr.mxu0 0.0
  %1918 = vmatpush1.msra.mxu0 0.0
  %1919 = vmatprep.subr.mxu0 0.0
  %1920 = vmatpush1.msra.mxu0 0.0
  %1921 = vmatprep.subr.mxu0 0.0
  %1922 = vmatpush1.msra.mxu0 0.0
  %1923 = vmatprep.subr.mxu0 0.0
  %1924 = vmatpush1.msra.mxu0 0.0
  %1925 = vmatprep.subr.mxu0 0.0
  %1926 = vmatpush1.msra.mxu0 0.0
  %1927 = vmatprep.subr.mxu0 0.0
  %1928 = vmatpush1.msra.mxu0 0.0
  %1929 = vmatprep.subr.mxu0 0.0
  %1930 = vmatpush1.msra.mxu0 0.0
  %1931 = vmatprep.subr.mxu0 0.0
  %1932 = vmatpush1.msra.mxu0 0.0
  %1933 = vmatprep.subr.mxu0 0.0
  %1934 = vmatpush1.msra.mxu0 0.0
  %1935 = vmatprep.subr.mxu0 0.0
  %1936 = vmatpush1.msra.mxu0 0.0
  %1937 = vmatprep.subr.mxu0 0.0
  %1938 = vmatpush1.msra.mxu0 0.0
  %1939 = vmatprep.subr.mxu0 0.0
  %1940 = vmatpush1.msra.mxu0 0.0
  %1941 = vmatprep.mubr.f32.mxu0 0.0
  %1942 = vmatmul.mubr.f32.gmra.mrb[0].mxu0 %v1875
  %v1943 = vpop.f32.mrb[0].mxu0
  %v1944 = vadd.f32 0.0, %v1943
  %v1945 = vpop.f32.mrb[0].mxu0
  %v1946 = vadd.f32 0.0, %v1945
  %1947 = vdwg.mxu0
  %1948 = vmatprep.subr.mxu0 %v1813
  %1949 = vmatpush1.msra.mxu0 %v1812
  %1950 = vmatprep.subr.mxu0 %v1817
  %1951 = vmatpush1.msra.mxu0 %v1816
  %1952 = vmatprep.subr.mxu0 %v1821
  %1953 = vmatpush1.msra.mxu0 %v1820
  %1954 = vmatprep.subr.mxu0 %v1825
  %1955 = vmatpush1.msra.mxu0 %v1824
  %1956 = vmatprep.subr.mxu0 %v1829
  %1957 = vmatpush1.msra.mxu0 %v1828
  %1958 = vmatprep.subr.mxu0 %v1833
  %1959 = vmatpush1.msra.mxu0 %v1832
  %1960 = vmatprep.subr.mxu0 %v1837
  %1961 = vmatpush1.msra.mxu0 %v1836
  %1962 = vmatprep.subr.mxu0 %v1841
  %1963 = vmatpush1.msra.mxu0 %v1840
  %1964 = vmatprep.subr.mxu0 %v1845
  %1965 = vmatpush1.msra.mxu0 %v1844
  %1966 = vmatprep.subr.mxu0 %v1849
  %1967 = vmatpush1.msra.mxu0 %v1848
  %1968 = vmatprep.subr.mxu0 %v1853
  %1969 = vmatpush1.msra.mxu0 %v1852
  %1970 = vmatprep.subr.mxu0 %v1857
  %1971 = vmatpush1.msra.mxu0 %v1856
  %1972 = vmatprep.subr.mxu0 %v1861
  %1973 = vmatpush1.msra.mxu0 %v1860
  %1974 = vmatprep.subr.mxu0 %v1865
  %1975 = vmatpush1.msra.mxu0 %v1864
  %1976 = vmatprep.subr.mxu0 %v1869
  %1977 = vmatpush1.msra.mxu0 %v1868
  %1978 = vmatprep.subr.mxu0 %v1873
  %1979 = vmatpush1.msra.mxu0 %v1872
  %1980 = vmatprep.subr.mxu0 0.0
  %1981 = vmatpush1.msra.mxu0 0.0
  %1982 = vmatprep.subr.mxu0 0.0
  %1983 = vmatpush1.msra.mxu0 0.0
  %1984 = vmatprep.subr.mxu0 0.0
  %1985 = vmatpush1.msra.mxu0 0.0
  %1986 = vmatprep.subr.mxu0 0.0
  %1987 = vmatpush1.msra.mxu0 0.0
  %1988 = vmatprep.subr.mxu0 0.0
  %1989 = vmatpush1.msra.mxu0 0.0
  %1990 = vmatprep.subr.mxu0 0.0
  %1991 = vmatpush1.msra.mxu0 0.0
  %1992 = vmatprep.subr.mxu0 0.0
  %1993 = vmatpush1.msra.mxu0 0.0
  %1994 = vmatprep.subr.mxu0 0.0
  %1995 = vmatpush1.msra.mxu0 0.0
  %1996 = vmatprep.subr.mxu0 0.0
  %1997 = vmatpush1.msra.mxu0 0.0
  %1998 = vmatprep.subr.mxu0 0.0
  %1999 = vmatpush1.msra.mxu0 0.0
  %2000 = vmatprep.subr.mxu0 0.0
  %2001 = vmatpush1.msra.mxu0 0.0
  %2002 = vmatprep.subr.mxu0 0.0
  %2003 = vmatpush1.msra.mxu0 0.0
  %2004 = vmatprep.subr.mxu0 0.0
  %2005 = vmatpush1.msra.mxu0 0.0
  %2006 = vmatprep.subr.mxu0 0.0
  %2007 = vmatpush1.msra.mxu0 0.0
  %2008 = vmatprep.subr.mxu0 0.0
  %2009 = vmatpush1.msra.mxu0 0.0
  %2010 = vmatprep.subr.mxu0 0.0
  %2011 = vmatpush1.msra.mxu0 0.0
  %2012 = vmatprep.mubr.f32.mxu0 0.0
  %2013 = vmatmul.mubr.f32.gmra.mrb[0].mxu0 %v1875
  %v2014 = vpop.f32.mrb[0].mxu0
  %v2015 = vadd.f32 0.0, %v2014
  %v2016 = vpop.f32.mrb[0].mxu0
  %v2017 = vadd.f32 0.0, %v2016
  %2018 = vdwg.mxu0
  %v2023 = vrot.slane %v1944, 4
  %v2024 = vrot.slane %v1946, 4
  %v2025 = vrot.slane %v2015, 4
  %v2026 = vrot.slane %v2017, 4
  %v2031 = vadd.f32 %v1806, %v2023
  %v2032 = vadd.f32 %v1807, %v2024
  %v2033 = vadd.f32 %v1808, %v2025
  %v2034 = vadd.f32 %v1809, %v2026
  %v2035 = vxor.u32 %v2031, 2147483648
  %v2036 = vmul.f32 %v2035, 1.442695
  %v2037 = vpow.pop %v2036
  %v2038 = vadd.f32 %v2037, 1.0
  %v2039 = vrcp.pop %v2038
  %v2040 = vmul.f32 1.0, %v2039
  %v2041 = vxor.u32 %v2032, 2147483648
  %v2042 = vmul.f32 %v2041, 1.442695
  %v2043 = vpow.pop %v2042
  %v2044 = vadd.f32 %v2043, 1.0
  %v2045 = vrcp.pop %v2044
  %v2046 = vmul.f32 1.0, %v2045
  %v2047 = vtanh.pop %v2033
  %v2048 = vxor.u32 %v2034, 2147483648
  %v2049 = vmul.f32 %v2048, 1.442695
  %v2050 = vpow.pop %v2049
  %v2051 = vadd.f32 %v2050, 1.0
  %v2052 = vrcp.pop %v2051
  %v2053 = vmul.f32 1.0, %v2052
  %v2055 = vrot.slane %v1802, 6
  %v2057 = vmul.f32 %v2046, %v2055
  %v2058 = vmul.f32 %v2040, %v2047
  %v2059 = vadd.f32 %v2057, %v2058
  %v2060 = vtanh.pop %v2059
  %v2061 = vmul.f32 %v2053, %v2060
  %2062 = vst [vmem:[#allocation2 + $0x8] sm:$0x30] %v2061
  %v2063 = vld [vmem:[#allocation3 + $0x20] sm:$0xc0]
  %v2064 = vld [vmem:[#allocation3 + $0x28] sm:$0xc0]
  %v2065 = vld [vmem:[#allocation3 + $0x30] sm:$0xc0]
  %v2066 = vld [vmem:[#allocation3 + $0x38] sm:$0xc0]
  %v2067 = vld [vmem:[%s2] sm:$0xff]
  %v2068 = vld [vmem:[%s2 + $0x8] sm:$0xff]
  %v2069 = vld [vmem:[%s2 + $0x10] sm:$0xff]
  %v2070 = vld [vmem:[%s2 + $0x18] sm:$0xff]
  %v2071 = vld [vmem:[%s2 + $0x20] sm:$0xff]
  %v2072 = vld [vmem:[%s2 + $0x28] sm:$0xff]
  %v2073 = vld [vmem:[%s2 + $0x30] sm:$0xff]
  %v2074 = vld [vmem:[%s2 + $0x38] sm:$0xff]
  %v2075 = vld [vmem:[%s2 + $0x40] sm:$0xff]
  %v2076 = vld [vmem:[%s2 + $0x48] sm:$0xff]
  %v2077 = vld [vmem:[%s2 + $0x50] sm:$0xff]
  %v2078 = vld [vmem:[%s2 + $0x58] sm:$0xff]
  %v2079 = vld [vmem:[%s2 + $0x60] sm:$0xff]
  %v2080 = vld [vmem:[%s2 + $0x68] sm:$0xff]
  %v2081 = vld [vmem:[%s2 + $0x70] sm:$0xff]
  %v2082 = vld [vmem:[%s2 + $0x78] sm:$0xff]
  %v2083 = vld [vmem:[%s2 + $0x80] sm:$0xff]
  %v2084 = vld [vmem:[%s2 + $0x88] sm:$0xff]
  %v2085 = vld [vmem:[%s2 + $0x90] sm:$0xff]
  %v2086 = vld [vmem:[%s2 + $0x98] sm:$0xff]
  %v2087 = vld [vmem:[%s2 + $0xa0] sm:$0xff]
  %v2088 = vld [vmem:[%s2 + $0xa8] sm:$0xff]
  %v2089 = vld [vmem:[%s2 + $0xb0] sm:$0xff]
  %v2090 = vld [vmem:[%s2 + $0xb8] sm:$0xff]
  %v2091 = vld [vmem:[%s2 + $0xc0] sm:$0xff]
  %v2092 = vld [vmem:[%s2 + $0xc8] sm:$0xff]
  %v2093 = vld [vmem:[%s2 + $0xd0] sm:$0xff]
  %v2094 = vld [vmem:[%s2 + $0xd8] sm:$0xff]
  %v2095 = vld [vmem:[%s2 + $0xe0] sm:$0xff]
  %v2096 = vld [vmem:[%s2 + $0xe8] sm:$0xff]
  %v2097 = vld [vmem:[%s2 + $0xf0] sm:$0xff]
  %v2098 = vld [vmem:[%s2 + $0xf8] sm:$0xff]
  %v2099 = vld [vmem:[%s2 + $0x100] sm:$0xff]
  %v2100 = vld [vmem:[%s2 + $0x108] sm:$0xff]
  %v2101 = vld [vmem:[%s2 + $0x110] sm:$0xff]
  %v2102 = vld [vmem:[%s2 + $0x118] sm:$0xff]
  %v2103 = vld [vmem:[%s2 + $0x120] sm:$0xff]
  %v2104 = vld [vmem:[%s2 + $0x128] sm:$0xff]
  %v2105 = vld [vmem:[%s2 + $0x130] sm:$0xff]
  %v2106 = vld [vmem:[%s2 + $0x138] sm:$0xff]
  %v2107 = vld [vmem:[%s2 + $0x140] sm:$0xff]
  %v2108 = vld [vmem:[%s2 + $0x148] sm:$0xff]
  %v2109 = vld [vmem:[%s2 + $0x150] sm:$0xff]
  %v2110 = vld [vmem:[%s2 + $0x158] sm:$0xff]
  %v2111 = vld [vmem:[%s2 + $0x160] sm:$0xff]
  %v2112 = vld [vmem:[%s2 + $0x168] sm:$0xff]
  %v2113 = vld [vmem:[%s2 + $0x170] sm:$0xff]
  %v2114 = vld [vmem:[%s2 + $0x178] sm:$0xff]
  %v2115 = vld [vmem:[%s2 + $0x180] sm:$0xff]
  %v2116 = vld [vmem:[%s2 + $0x188] sm:$0xff]
  %v2117 = vld [vmem:[%s2 + $0x190] sm:$0xff]
  %v2118 = vld [vmem:[%s2 + $0x198] sm:$0xff]
  %v2119 = vld [vmem:[%s2 + $0x1a0] sm:$0xff]
  %v2120 = vld [vmem:[%s2 + $0x1a8] sm:$0xff]
  %v2121 = vld [vmem:[%s2 + $0x1b0] sm:$0xff]
  %v2122 = vld [vmem:[%s2 + $0x1b8] sm:$0xff]
  %v2123 = vld [vmem:[%s2 + $0x1c0] sm:$0xff]
  %v2124 = vld [vmem:[%s2 + $0x1c8] sm:$0xff]
  %v2125 = vld [vmem:[%s2 + $0x1d0] sm:$0xff]
  %v2126 = vld [vmem:[%s2 + $0x1d8] sm:$0xff]
  %v2127 = vld [vmem:[%s2 + $0x1e0] sm:$0xff]
  %v2128 = vld [vmem:[%s2 + $0x1e8] sm:$0xff]
  %v2129 = vld [vmem:[%s2 + $0x1f0] sm:$0xff]
  %v2130 = vld [vmem:[%s2 + $0x1f8] sm:$0xff]
  %v2132 = vrot.slane %v2061, 4
  %2134 = vmatprep.subr.mxu0 %v2068
  %2135 = vmatpush1.msra.mxu0 %v2067
  %2136 = vmatprep.subr.mxu0 %v2072
  %2137 = vmatpush1.msra.mxu0 %v2071
  %2138 = vmatprep.subr.mxu0 %v2076
  %2139 = vmatpush1.msra.mxu0 %v2075
  %2140 = vmatprep.subr.mxu0 %v2080
  %2141 = vmatpush1.msra.mxu0 %v2079
  %2142 = vmatprep.subr.mxu0 %v2084
  %2143 = vmatpush1.msra.mxu0 %v2083
  %2144 = vmatprep.subr.mxu0 %v2088
  %2145 = vmatpush1.msra.mxu0 %v2087
  %2146 = vmatprep.subr.mxu0 %v2092
  %2147 = vmatpush1.msra.mxu0 %v2091
  %2148 = vmatprep.subr.mxu0 %v2096
  %2149 = vmatpush1.msra.mxu0 %v2095
  %2150 = vmatprep.subr.mxu0 %v2100
  %2151 = vmatpush1.msra.mxu0 %v2099
  %2152 = vmatprep.subr.mxu0 %v2104
  %2153 = vmatpush1.msra.mxu0 %v2103
  %2154 = vmatprep.subr.mxu0 %v2108
  %2155 = vmatpush1.msra.mxu0 %v2107
  %2156 = vmatprep.subr.mxu0 %v2112
  %2157 = vmatpush1.msra.mxu0 %v2111
  %2158 = vmatprep.subr.mxu0 %v2116
  %2159 = vmatpush1.msra.mxu0 %v2115
  %2160 = vmatprep.subr.mxu0 %v2120
  %2161 = vmatpush1.msra.mxu0 %v2119
  %2162 = vmatprep.subr.mxu0 %v2124
  %2163 = vmatpush1.msra.mxu0 %v2123
  %2164 = vmatprep.subr.mxu0 %v2128
  %2165 = vmatpush1.msra.mxu0 %v2127
  %2166 = vmatprep.subr.mxu0 0.0
  %2167 = vmatpush1.msra.mxu0 0.0
  %2168 = vmatprep.subr.mxu0 0.0
  %2169 = vmatpush1.msra.mxu0 0.0
  %2170 = vmatprep.subr.mxu0 0.0
  %2171 = vmatpush1.msra.mxu0 0.0
  %2172 = vmatprep.subr.mxu0 0.0
  %2173 = vmatpush1.msra.mxu0 0.0
  %2174 = vmatprep.subr.mxu0 0.0
  %2175 = vmatpush1.msra.mxu0 0.0
  %2176 = vmatprep.subr.mxu0 0.0
  %2177 = vmatpush1.msra.mxu0 0.0
  %2178 = vmatprep.subr.mxu0 0.0
  %2179 = vmatpush1.msra.mxu0 0.0
  %2180 = vmatprep.subr.mxu0 0.0
  %2181 = vmatpush1.msra.mxu0 0.0
  %2182 = vmatprep.subr.mxu0 0.0
  %2183 = vmatpush1.msra.mxu0 0.0
  %2184 = vmatprep.subr.mxu0 0.0
  %2185 = vmatpush1.msra.mxu0 0.0
  %2186 = vmatprep.subr.mxu0 0.0
  %2187 = vmatpush1.msra.mxu0 0.0
  %2188 = vmatprep.subr.mxu0 0.0
  %2189 = vmatpush1.msra.mxu0 0.0
  %2190 = vmatprep.subr.mxu0 0.0
  %2191 = vmatpush1.msra.mxu0 0.0
  %2192 = vmatprep.subr.mxu0 0.0
  %2193 = vmatpush1.msra.mxu0 0.0
  %2194 = vmatprep.subr.mxu0 0.0
  %2195 = vmatpush1.msra.mxu0 0.0
  %2196 = vmatprep.subr.mxu0 0.0
  %2197 = vmatpush1.msra.mxu0 0.0
  %2198 = vmatprep.mubr.f32.mxu0 0.0
  %2199 = vmatmul.mubr.f32.gmra.mrb[0].mxu0 %v2132
  %v2200 = vpop.f32.mrb[0].mxu0
  %v2201 = vadd.f32 0.0, %v2200
  %v2202 = vpop.f32.mrb[0].mxu0
  %v2203 = vadd.f32 0.0, %v2202
  %2204 = vdwg.mxu0
  %2205 = vmatprep.subr.mxu0 %v2070
  %2206 = vmatpush1.msra.mxu0 %v2069
  %2207 = vmatprep.subr.mxu0 %v2074
  %2208 = vmatpush1.msra.mxu0 %v2073
  %2209 = vmatprep.subr.mxu0 %v2078
  %2210 = vmatpush1.msra.mxu0 %v2077
  %2211 = vmatprep.subr.mxu0 %v2082
  %2212 = vmatpush1.msra.mxu0 %v2081
  %2213 = vmatprep.subr.mxu0 %v2086
  %2214 = vmatpush1.msra.mxu0 %v2085
  %2215 = vmatprep.subr.mxu0 %v2090
  %2216 = vmatpush1.msra.mxu0 %v2089
  %2217 = vmatprep.subr.mxu0 %v2094
  %2218 = vmatpush1.msra.mxu0 %v2093
  %2219 = vmatprep.subr.mxu0 %v2098
  %2220 = vmatpush1.msra.mxu0 %v2097
  %2221 = vmatprep.subr.mxu0 %v2102
  %2222 = vmatpush1.msra.mxu0 %v2101
  %2223 = vmatprep.subr.mxu0 %v2106
  %2224 = vmatpush1.msra.mxu0 %v2105
  %2225 = vmatprep.subr.mxu0 %v2110
  %2226 = vmatpush1.msra.mxu0 %v2109
  %2227 = vmatprep.subr.mxu0 %v2114
  %2228 = vmatpush1.msra.mxu0 %v2113
  %2229 = vmatprep.subr.mxu0 %v2118
  %2230 = vmatpush1.msra.mxu0 %v2117
  %2231 = vmatprep.subr.mxu0 %v2122
  %2232 = vmatpush1.msra.mxu0 %v2121
  %2233 = vmatprep.subr.mxu0 %v2126
  %2234 = vmatpush1.msra.mxu0 %v2125
  %2235 = vmatprep.subr.mxu0 %v2130
  %2236 = vmatpush1.msra.mxu0 %v2129
  %2237 = vmatprep.subr.mxu0 0.0
  %2238 = vmatpush1.msra.mxu0 0.0
  %2239 = vmatprep.subr.mxu0 0.0
  %2240 = vmatpush1.msra.mxu0 0.0
  %2241 = vmatprep.subr.mxu0 0.0
  %2242 = vmatpush1.msra.mxu0 0.0
  %2243 = vmatprep.subr.mxu0 0.0
  %2244 = vmatpush1.msra.mxu0 0.0
  %2245 = vmatprep.subr.mxu0 0.0
  %2246 = vmatpush1.msra.mxu0 0.0
  %2247 = vmatprep.subr.mxu0 0.0
  %2248 = vmatpush1.msra.mxu0 0.0
  %2249 = vmatprep.subr.mxu0 0.0
  %2250 = vmatpush1.msra.mxu0 0.0
  %2251 = vmatprep.subr.mxu0 0.0
  %2252 = vmatpush1.msra.mxu0 0.0
  %2253 = vmatprep.subr.mxu0 0.0
  %2254 = vmatpush1.msra.mxu0 0.0
  %2255 = vmatprep.subr.mxu0 0.0
  %2256 = vmatpush1.msra.mxu0 0.0
  %2257 = vmatprep.subr.mxu0 0.0
  %2258 = vmatpush1.msra.mxu0 0.0
  %2259 = vmatprep.subr.mxu0 0.0
  %2260 = vmatpush1.msra.mxu0 0.0
  %2261 = vmatprep.subr.mxu0 0.0
  %2262 = vmatpush1.msra.mxu0 0.0
  %2263 = vmatprep.subr.mxu0 0.0
  %2264 = vmatpush1.msra.mxu0 0.0
  %2265 = vmatprep.subr.mxu0 0.0
  %2266 = vmatpush1.msra.mxu0 0.0
  %2267 = vmatprep.subr.mxu0 0.0
  %2268 = vmatpush1.msra.mxu0 0.0
  %2269 = vmatprep.mubr.f32.mxu0 0.0
  %2270 = vmatmul.mubr.f32.gmra.mrb[0].mxu0 %v2132
  %v2271 = vpop.f32.mrb[0].mxu0
  %v2272 = vadd.f32 0.0, %v2271
  %v2273 = vpop.f32.mrb[0].mxu0
  %v2274 = vadd.f32 0.0, %v2273
  %2275 = vdwg.mxu0
  %v2280 = vrot.slane %v2201, 2
  %v2281 = vrot.slane %v2203, 2
  %v2282 = vrot.slane %v2272, 2
  %v2283 = vrot.slane %v2274, 2
  %v2288 = vadd.f32 %v2063, %v2280
  %v2289 = vadd.f32 %v2064, %v2281
  %v2290 = vadd.f32 %v2065, %v2282
  %v2291 = vadd.f32 %v2066, %v2283
  %v2292 = vxor.u32 %v2288, 2147483648
  %v2293 = vmul.f32 %v2292, 1.442695
  %v2294 = vpow.pop %v2293
  %v2295 = vadd.f32 %v2294, 1.0
  %v2296 = vrcp.pop %v2295
  %v2297 = vmul.f32 1.0, %v2296
  %v2298 = vxor.u32 %v2289, 2147483648
  %v2299 = vmul.f32 %v2298, 1.442695
  %v2300 = vpow.pop %v2299
  %v2301 = vadd.f32 %v2300, 1.0
  %v2302 = vrcp.pop %v2301
  %v2303 = vmul.f32 1.0, %v2302
  %v2304 = vtanh.pop %v2290
  %v2305 = vxor.u32 %v2291, 2147483648
  %v2306 = vmul.f32 %v2305, 1.442695
  %v2307 = vpow.pop %v2306
  %v2308 = vadd.f32 %v2307, 1.0
  %v2309 = vrcp.pop %v2308
  %v2310 = vmul.f32 1.0, %v2309
  %v2312 = vrot.slane %v2059, 6
  %v2314 = vmul.f32 %v2303, %v2312
  %v2315 = vmul.f32 %v2297, %v2304
  %v2316 = vadd.f32 %v2314, %v2315
  %v2317 = vtanh.pop %v2316
  %v2318 = vmul.f32 %v2310, %v2317
  %2319 = vst [vmem:[#allocation2 + $0x8] sm:$0xc0] %v2318
  %v2320 = vld [vmem:[#allocation2] sm:$0xff]
  %v2321 = vld [vmem:[#allocation2 + $0x8] sm:$0xff]
  %v2322 = vld [vmem:[%s4] sm:$0xff]
  %v2323 = vld [vmem:[%s4 + $0x8] sm:$0xff]
  %v2324 = vld [vmem:[%s4 + $0x10] sm:$0xff]
  %v2325 = vld [vmem:[%s4 + $0x18] sm:$0xff]
  %v2326 = vld [vmem:[%s4 + $0x20] sm:$0xff]
  %v2327 = vld [vmem:[%s4 + $0x28] sm:$0xff]
  %v2328 = vld [vmem:[%s4 + $0x30] sm:$0xff]
  %v2329 = vld [vmem:[%s4 + $0x38] sm:$0xff]
  %v2330 = vld [vmem:[%s4 + $0x40] sm:$0xff]
  %v2331 = vld [vmem:[%s4 + $0x48] sm:$0xff]
  %v2332 = vld [vmem:[%s4 + $0x50] sm:$0xff]
  %v2333 = vld [vmem:[%s4 + $0x58] sm:$0xff]
  %v2334 = vld [vmem:[%s4 + $0x60] sm:$0xff]
  %v2335 = vld [vmem:[%s4 + $0x68] sm:$0xff]
  %v2336 = vld [vmem:[%s4 + $0x70] sm:$0xff]
  %v2337 = vld [vmem:[%s4 + $0x78] sm:$0xff]
  %v2338 = vld [vmem:[%s4 + $0x80] sm:$0xff]
  %v2339 = vld [vmem:[%s4 + $0x88] sm:$0xff]
  %v2340 = vld [vmem:[%s4 + $0x90] sm:$0xff]
  %v2341 = vld [vmem:[%s4 + $0x98] sm:$0xff]
  %v2342 = vld [vmem:[%s4 + $0xa0] sm:$0xff]
  %v2343 = vld [vmem:[%s4 + $0xa8] sm:$0xff]
  %v2344 = vld [vmem:[%s4 + $0xb0] sm:$0xff]
  %v2345 = vld [vmem:[%s4 + $0xb8] sm:$0xff]
  %v2346 = vld [vmem:[%s4 + $0xc0] sm:$0xff]
  %v2347 = vld [vmem:[%s4 + $0xc8] sm:$0xff]
  %v2348 = vld [vmem:[%s4 + $0xd0] sm:$0xff]
  %v2349 = vld [vmem:[%s4 + $0xd8] sm:$0xff]
  %v2350 = vld [vmem:[%s4 + $0xe0] sm:$0xff]
  %v2351 = vld [vmem:[%s4 + $0xe8] sm:$0xff]
  %v2352 = vld [vmem:[%s4 + $0xf0] sm:$0xff]
  %v2353 = vld [vmem:[%s4 + $0xf8] sm:$0xff]
  %v2354 = vld [vmem:[%s4 + $0x100] sm:$0xff]
  %v2355 = vld [vmem:[%s4 + $0x108] sm:$0xff]
  %v2356 = vld [vmem:[%s4 + $0x110] sm:$0xff]
  %v2357 = vld [vmem:[%s4 + $0x118] sm:$0xff]
  %v2358 = vld [vmem:[%s4 + $0x120] sm:$0xff]
  %v2359 = vld [vmem:[%s4 + $0x128] sm:$0xff]
  %v2360 = vld [vmem:[%s4 + $0x130] sm:$0xff]
  %v2361 = vld [vmem:[%s4 + $0x138] sm:$0xff]
  %v2362 = vld [vmem:[%s4 + $0x140] sm:$0xff]
  %v2363 = vld [vmem:[%s4 + $0x148] sm:$0xff]
  %v2364 = vld [vmem:[%s4 + $0x150] sm:$0xff]
  %v2365 = vld [vmem:[%s4 + $0x158] sm:$0xff]
  %v2366 = vld [vmem:[%s4 + $0x160] sm:$0xff]
  %v2367 = vld [vmem:[%s4 + $0x168] sm:$0xff]
  %v2368 = vld [vmem:[%s4 + $0x170] sm:$0xff]
  %v2369 = vld [vmem:[%s4 + $0x178] sm:$0xff]
  %v2370 = vld [vmem:[%s4 + $0x180] sm:$0xff]
  %v2371 = vld [vmem:[%s4 + $0x188] sm:$0xff]
  %v2372 = vld [vmem:[%s4 + $0x190] sm:$0xff]
  %v2373 = vld [vmem:[%s4 + $0x198] sm:$0xff]
  %v2374 = vld [vmem:[%s4 + $0x1a0] sm:$0xff]
  %v2375 = vld [vmem:[%s4 + $0x1a8] sm:$0xff]
  %v2376 = vld [vmem:[%s4 + $0x1b0] sm:$0xff]
  %v2377 = vld [vmem:[%s4 + $0x1b8] sm:$0xff]
  %v2378 = vld [vmem:[%s4 + $0x1c0] sm:$0xff]
  %v2379 = vld [vmem:[%s4 + $0x1c8] sm:$0xff]
  %v2380 = vld [vmem:[%s4 + $0x1d0] sm:$0xff]
  %v2381 = vld [vmem:[%s4 + $0x1d8] sm:$0xff]
  %v2382 = vld [vmem:[%s4 + $0x1e0] sm:$0xff]
  %v2383 = vld [vmem:[%s4 + $0x1e8] sm:$0xff]
  %v2384 = vld [vmem:[%s4 + $0x1f0] sm:$0xff]
  %v2385 = vld [vmem:[%s4 + $0x1f8] sm:$0xff]
  %v2386 = vld [vmem:[%s6] sm:$0xf]
  %v2388 = vlaneseq
  %v2389 = vshrl.u32 %v2388, 7
  %v2390 = vsub.s32 0, %v2389
  %v2391 = vrot.slane %v2386, %v2390
  %v2392 = vlaneseq
  %v2393 = vshrl.u32 %v2392, 7
  %v2394 = vsub.s32 1, %v2393
  %v2395 = vrot.slane %v2386, %v2394
  %v2396 = vlaneseq
  %v2397 = vshrl.u32 %v2396, 7
  %v2398 = vsub.s32 2, %v2397
  %v2399 = vrot.slane %v2386, %v2398
  %v2400 = vlaneseq
  %v2401 = vshrl.u32 %v2400, 7
  %v2402 = vsub.s32 3, %v2401
  %v2403 = vrot.slane %v2386, %v2402
  %2408 = vmatprep.subr.mxu0 %v2323
  %2409 = vmatpush1.msra.mxu0 %v2322
  %2410 = vmatprep.subr.mxu0 %v2327
  %2411 = vmatpush1.msra.mxu0 %v2326
  %2412 = vmatprep.subr.mxu0 %v2331
  %2413 = vmatpush1.msra.mxu0 %v2330
  %2414 = vmatprep.subr.mxu0 %v2335
  %2415 = vmatpush1.msra.mxu0 %v2334
  %2416 = vmatprep.subr.mxu0 %v2339
  %2417 = vmatpush1.msra.mxu0 %v2338
  %2418 = vmatprep.subr.mxu0 %v2343
  %2419 = vmatpush1.msra.mxu0 %v2342
  %2420 = vmatprep.subr.mxu0 %v2347
  %2421 = vmatpush1.msra.mxu0 %v2346
  %2422 = vmatprep.subr.mxu0 %v2351
  %2423 = vmatpush1.msra.mxu0 %v2350
  %2424 = vmatprep.subr.mxu0 %v2355
  %2425 = vmatpush1.msra.mxu0 %v2354
  %2426 = vmatprep.subr.mxu0 %v2359
  %2427 = vmatpush1.msra.mxu0 %v2358
  %2428 = vmatprep.subr.mxu0 %v2363
  %2429 = vmatpush1.msra.mxu0 %v2362
  %2430 = vmatprep.subr.mxu0 %v2367
  %2431 = vmatpush1.msra.mxu0 %v2366
  %2432 = vmatprep.subr.mxu0 %v2371
  %2433 = vmatpush1.msra.mxu0 %v2370
  %2434 = vmatprep.subr.mxu0 %v2375
  %2435 = vmatpush1.msra.mxu0 %v2374
  %2436 = vmatprep.subr.mxu0 %v2379
  %2437 = vmatpush1.msra.mxu0 %v2378
  %2438 = vmatprep.subr.mxu0 %v2383
  %2439 = vmatpush1.msra.mxu0 %v2382
  %2440 = vmatprep.subr.mxu0 0.0
  %2441 = vmatpush1.msra.mxu0 0.0
  %2442 = vmatprep.subr.mxu0 0.0
  %2443 = vmatpush1.msra.mxu0 0.0
  %2444 = vmatprep.subr.mxu0 0.0
  %2445 = vmatpush1.msra.mxu0 0.0
  %2446 = vmatprep.subr.mxu0 0.0
  %2447 = vmatpush1.msra.mxu0 0.0
  %2448 = vmatprep.subr.mxu0 0.0
  %2449 = vmatpush1.msra.mxu0 0.0
  %2450 = vmatprep.subr.mxu0 0.0
  %2451 = vmatpush1.msra.mxu0 0.0
  %2452 = vmatprep.subr.mxu0 0.0
  %2453 = vmatpush1.msra.mxu0 0.0
  %2454 = vmatprep.subr.mxu0 0.0
  %2455 = vmatpush1.msra.mxu0 0.0
  %2456 = vmatprep.subr.mxu0 0.0
  %2457 = vmatpush1.msra.mxu0 0.0
  %2458 = vmatprep.subr.mxu0 0.0
  %2459 = vmatpush1.msra.mxu0 0.0
  %2460 = vmatprep.subr.mxu0 0.0
  %2461 = vmatpush1.msra.mxu0 0.0
  %2462 = vmatprep.subr.mxu0 0.0
  %2463 = vmatpush1.msra.mxu0 0.0
  %2464 = vmatprep.subr.mxu0 0.0
  %2465 = vmatpush1.msra.mxu0 0.0
  %2466 = vmatprep.subr.mxu0 0.0
  %2467 = vmatpush1.msra.mxu0 0.0
  %2468 = vmatprep.subr.mxu0 0.0
  %2469 = vmatpush1.msra.mxu0 0.0
  %2470 = vmatprep.subr.mxu0 0.0
  %2471 = vmatpush1.msra.mxu0 0.0
  %2472 = vmatprep.mubr.f32.mxu0 0.0
  %2473 = vmatmul.mubr.f32.gmra.mrb[0].mxu0 %v2320
  %v2474 = vpop.f32.mrb[0].mxu0
  %v2475 = vadd.f32 %v2391, %v2474
  %v2476 = vpop.f32.mrb[0].mxu0
  %v2477 = vadd.f32 %v2395, %v2476
  %2478 = vmatprep.mubr.f32.mxu0 0.0
  %2479 = vmatmul.mubr.f32.gmra.mrb[0].mxu0 %v2321
  %v2480 = vpop.f32.mrb[0].mxu0
  %v2481 = vadd.f32 %v2391, %v2480
  %v2482 = vpop.f32.mrb[0].mxu0
  %v2483 = vadd.f32 %v2395, %v2482
  %2484 = vdwg.mxu0
  %2485 = vmatprep.subr.mxu0 %v2325
  %2486 = vmatpush1.msra.mxu0 %v2324
  %2487 = vmatprep.subr.mxu0 %v2329
  %2488 = vmatpush1.msra.mxu0 %v2328
  %2489 = vmatprep.subr.mxu0 %v2333
  %2490 = vmatpush1.msra.mxu0 %v2332
  %2491 = vmatprep.subr.mxu0 %v2337
  %2492 = vmatpush1.msra.mxu0 %v2336
  %2493 = vmatprep.subr.mxu0 %v2341
  %2494 = vmatpush1.msra.mxu0 %v2340
  %2495 = vmatprep.subr.mxu0 %v2345
  %2496 = vmatpush1.msra.mxu0 %v2344
  %2497 = vmatprep.subr.mxu0 %v2349
  %2498 = vmatpush1.msra.mxu0 %v2348
  %2499 = vmatprep.subr.mxu0 %v2353
  %2500 = vmatpush1.msra.mxu0 %v2352
  %2501 = vmatprep.subr.mxu0 %v2357
  %2502 = vmatpush1.msra.mxu0 %v2356
  %2503 = vmatprep.subr.mxu0 %v2361
  %2504 = vmatpush1.msra.mxu0 %v2360
  %2505 = vmatprep.subr.mxu0 %v2365
  %2506 = vmatpush1.msra.mxu0 %v2364
  %2507 = vmatprep.subr.mxu0 %v2369
  %2508 = vmatpush1.msra.mxu0 %v2368
  %2509 = vmatprep.subr.mxu0 %v2373
  %2510 = vmatpush1.msra.mxu0 %v2372
  %2511 = vmatprep.subr.mxu0 %v2377
  %2512 = vmatpush1.msra.mxu0 %v2376
  %2513 = vmatprep.subr.mxu0 %v2381
  %2514 = vmatpush1.msra.mxu0 %v2380
  %2515 = vmatprep.subr.mxu0 %v2385
  %2516 = vmatpush1.msra.mxu0 %v2384
  %2517 = vmatprep.subr.mxu0 0.0
  %2518 = vmatpush1.msra.mxu0 0.0
  %2519 = vmatprep.subr.mxu0 0.0
  %2520 = vmatpush1.msra.mxu0 0.0
  %2521 = vmatprep.subr.mxu0 0.0
  %2522 = vmatpush1.msra.mxu0 0.0
  %2523 = vmatprep.subr.mxu0 0.0
  %2524 = vmatpush1.msra.mxu0 0.0
  %2525 = vmatprep.subr.mxu0 0.0
  %2526 = vmatpush1.msra.mxu0 0.0
  %2527 = vmatprep.subr.mxu0 0.0
  %2528 = vmatpush1.msra.mxu0 0.0
  %2529 = vmatprep.subr.mxu0 0.0
  %2530 = vmatpush1.msra.mxu0 0.0
  %2531 = vmatprep.subr.mxu0 0.0
  %2532 = vmatpush1.msra.mxu0 0.0
  %2533 = vmatprep.subr.mxu0 0.0
  %2534 = vmatpush1.msra.mxu0 0.0
  %2535 = vmatprep.subr.mxu0 0.0
  %2536 = vmatpush1.msra.mxu0 0.0
  %2537 = vmatprep.subr.mxu0 0.0
  %2538 = vmatpush1.msra.mxu0 0.0
  %2539 = vmatprep.subr.mxu0 0.0
  %2540 = vmatpush1.msra.mxu0 0.0
  %2541 = vmatprep.subr.mxu0 0.0
  %2542 = vmatpush1.msra.mxu0 0.0
  %2543 = vmatprep.subr.mxu0 0.0
  %2544 = vmatpush1.msra.mxu0 0.0
  %2545 = vmatprep.subr.mxu0 0.0
  %2546 = vmatpush1.msra.mxu0 0.0
  %2547 = vmatprep.subr.mxu0 0.0
  %2548 = vmatpush1.msra.mxu0 0.0
  %2549 = vmatprep.mubr.f32.mxu0 0.0
  %2550 = vmatmul.mubr.f32.gmra.mrb[0].mxu0 %v2320
  %v2551 = vpop.f32.mrb[0].mxu0
  %v2552 = vadd.f32 %v2399, %v2551
  %v2553 = vpop.f32.mrb[0].mxu0
  %v2554 = vadd.f32 %v2403, %v2553
  %2555 = vmatprep.mubr.f32.mxu0 0.0
  %2556 = vmatmul.mubr.f32.gmra.mrb[0].mxu0 %v2321
  %v2557 = vpop.f32.mrb[0].mxu0
  %v2558 = vadd.f32 %v2399, %v2557
  %v2559 = vpop.f32.mrb[0].mxu0
  %v2560 = vadd.f32 %v2403, %v2559
  %2561 = vdwg.mxu0
  %2562 = vst [vmem:[#allocation3] sm:$0xff] %v2475
  %2563 = vst [vmem:[#allocation3 + $0x8] sm:$0xff] %v2477
  %2564 = vst [vmem:[#allocation3 + $0x10] sm:$0xff] %v2552
  %2565 = vst [vmem:[#allocation3 + $0x18] sm:$0xff] %v2554
  %2566 = vst [vmem:[#allocation3 + $0x20] sm:$0xff] %v2481
  %2567 = vst [vmem:[#allocation3 + $0x28] sm:$0xff] %v2483
  %2568 = vst [vmem:[#allocation3 + $0x30] sm:$0xff] %v2558
  %2569 = vst [vmem:[#allocation3 + $0x38] sm:$0xff] %v2560
  %v2570 = vld [vmem:[#allocation3] sm:$0x3]
  %v2571 = vld [vmem:[#allocation3 + $0x8] sm:$0x3]
  %v2572 = vld [vmem:[#allocation3 + $0x10] sm:$0x3]
  %v2573 = vld [vmem:[#allocation3 + $0x18] sm:$0x3]
  %v2574 = vld [vmem:[%s5] sm:$0xff]
  %v2575 = vld [vmem:[%s5 + $0x8] sm:$0xff]
  %v2576 = vld [vmem:[%s5 + $0x10] sm:$0xff]
  %v2577 = vld [vmem:[%s5 + $0x18] sm:$0xff]
  %v2578 = vld [vmem:[%s5 + $0x20] sm:$0xff]
  %v2579 = vld [vmem:[%s5 + $0x28] sm:$0xff]
  %v2580 = vld [vmem:[%s5 + $0x30] sm:$0xff]
  %v2581 = vld [vmem:[%s5 + $0x38] sm:$0xff]
  %v2582 = vld [vmem:[%s5 + $0x40] sm:$0xff]
  %v2583 = vld [vmem:[%s5 + $0x48] sm:$0xff]
  %v2584 = vld [vmem:[%s5 + $0x50] sm:$0xff]
  %v2585 = vld [vmem:[%s5 + $0x58] sm:$0xff]
  %v2586 = vld [vmem:[%s5 + $0x60] sm:$0xff]
  %v2587 = vld [vmem:[%s5 + $0x68] sm:$0xff]
  %v2588 = vld [vmem:[%s5 + $0x70] sm:$0xff]
  %v2589 = vld [vmem:[%s5 + $0x78] sm:$0xff]
  %v2590 = vld [vmem:[%s5 + $0x80] sm:$0xff]
  %v2591 = vld [vmem:[%s5 + $0x88] sm:$0xff]
  %v2592 = vld [vmem:[%s5 + $0x90] sm:$0xff]
  %v2593 = vld [vmem:[%s5 + $0x98] sm:$0xff]
  %v2594 = vld [vmem:[%s5 + $0xa0] sm:$0xff]
  %v2595 = vld [vmem:[%s5 + $0xa8] sm:$0xff]
  %v2596 = vld [vmem:[%s5 + $0xb0] sm:$0xff]
  %v2597 = vld [vmem:[%s5 + $0xb8] sm:$0xff]
  %v2598 = vld [vmem:[%s5 + $0xc0] sm:$0xff]
  %v2599 = vld [vmem:[%s5 + $0xc8] sm:$0xff]
  %v2600 = vld [vmem:[%s5 + $0xd0] sm:$0xff]
  %v2601 = vld [vmem:[%s5 + $0xd8] sm:$0xff]
  %v2602 = vld [vmem:[%s5 + $0xe0] sm:$0xff]
  %v2603 = vld [vmem:[%s5 + $0xe8] sm:$0xff]
  %v2604 = vld [vmem:[%s5 + $0xf0] sm:$0xff]
  %v2605 = vld [vmem:[%s5 + $0xf8] sm:$0xff]
  %v2606 = vld [vmem:[%s5 + $0x100] sm:$0xff]
  %v2607 = vld [vmem:[%s5 + $0x108] sm:$0xff]
  %v2608 = vld [vmem:[%s5 + $0x110] sm:$0xff]
  %v2609 = vld [vmem:[%s5 + $0x118] sm:$0xff]
  %v2610 = vld [vmem:[%s5 + $0x120] sm:$0xff]
  %v2611 = vld [vmem:[%s5 + $0x128] sm:$0xff]
  %v2612 = vld [vmem:[%s5 + $0x130] sm:$0xff]
  %v2613 = vld [vmem:[%s5 + $0x138] sm:$0xff]
  %v2614 = vld [vmem:[%s5 + $0x140] sm:$0xff]
  %v2615 = vld [vmem:[%s5 + $0x148] sm:$0xff]
  %v2616 = vld [vmem:[%s5 + $0x150] sm:$0xff]
  %v2617 = vld [vmem:[%s5 + $0x158] sm:$0xff]
  %v2618 = vld [vmem:[%s5 + $0x160] sm:$0xff]
  %v2619 = vld [vmem:[%s5 + $0x168] sm:$0xff]
  %v2620 = vld [vmem:[%s5 + $0x170] sm:$0xff]
  %v2621 = vld [vmem:[%s5 + $0x178] sm:$0xff]
  %v2622 = vld [vmem:[%s5 + $0x180] sm:$0xff]
  %v2623 = vld [vmem:[%s5 + $0x188] sm:$0xff]
  %v2624 = vld [vmem:[%s5 + $0x190] sm:$0xff]
  %v2625 = vld [vmem:[%s5 + $0x198] sm:$0xff]
  %v2626 = vld [vmem:[%s5 + $0x1a0] sm:$0xff]
  %v2627 = vld [vmem:[%s5 + $0x1a8] sm:$0xff]
  %v2628 = vld [vmem:[%s5 + $0x1b0] sm:$0xff]
  %v2629 = vld [vmem:[%s5 + $0x1b8] sm:$0xff]
  %v2630 = vld [vmem:[%s5 + $0x1c0] sm:$0xff]
  %v2631 = vld [vmem:[%s5 + $0x1c8] sm:$0xff]
  %v2632 = vld [vmem:[%s5 + $0x1d0] sm:$0xff]
  %v2633 = vld [vmem:[%s5 + $0x1d8] sm:$0xff]
  %v2634 = vld [vmem:[%s5 + $0x1e0] sm:$0xff]
  %v2635 = vld [vmem:[%s5 + $0x1e8] sm:$0xff]
  %v2636 = vld [vmem:[%s5 + $0x1f0] sm:$0xff]
  %v2637 = vld [vmem:[%s5 + $0x1f8] sm:$0xff]
  %2638 = vmatprep.subr.mxu0 %v2575
  %2639 = vmatpush1.msra.mxu0 %v2574
  %2640 = vmatprep.subr.mxu0 %v2579
  %2641 = vmatpush1.msra.mxu0 %v2578
  %2642 = vmatprep.subr.mxu0 %v2583
  %2643 = vmatpush1.msra.mxu0 %v2582
  %2644 = vmatprep.subr.mxu0 %v2587
  %2645 = vmatpush1.msra.mxu0 %v2586
  %2646 = vmatprep.subr.mxu0 %v2591
  %2647 = vmatpush1.msra.mxu0 %v2590
  %2648 = vmatprep.subr.mxu0 %v2595
  %2649 = vmatpush1.msra.mxu0 %v2594
  %2650 = vmatprep.subr.mxu0 %v2599
  %2651 = vmatpush1.msra.mxu0 %v2598
  %2652 = vmatprep.subr.mxu0 %v2603
  %2653 = vmatpush1.msra.mxu0 %v2602
  %2654 = vmatprep.subr.mxu0 %v2607
  %2655 = vmatpush1.msra.mxu0 %v2606
  %2656 = vmatprep.subr.mxu0 %v2611
  %2657 = vmatpush1.msra.mxu0 %v2610
  %2658 = vmatprep.subr.mxu0 %v2615
  %2659 = vmatpush1.msra.mxu0 %v2614
  %2660 = vmatprep.subr.mxu0 %v2619
  %2661 = vmatpush1.msra.mxu0 %v2618
  %2662 = vmatprep.subr.mxu0 %v2623
  %2663 = vmatpush1.msra.mxu0 %v2622
  %2664 = vmatprep.subr.mxu0 %v2627
  %2665 = vmatpush1.msra.mxu0 %v2626
  %2666 = vmatprep.subr.mxu0 %v2631
  %2667 = vmatpush1.msra.mxu0 %v2630
  %2668 = vmatprep.subr.mxu0 %v2635
  %2669 = vmatpush1.msra.mxu0 %v2634
  %2670 = vmatprep.subr.mxu0 0.0
  %2671 = vmatpush1.msra.mxu0 0.0
  %2672 = vmatprep.subr.mxu0 0.0
  %2673 = vmatpush1.msra.mxu0 0.0
  %2674 = vmatprep.subr.mxu0 0.0
  %2675 = vmatpush1.msra.mxu0 0.0
  %2676 = vmatprep.subr.mxu0 0.0
  %2677 = vmatpush1.msra.mxu0 0.0
  %2678 = vmatprep.subr.mxu0 0.0
  %2679 = vmatpush1.msra.mxu0 0.0
  %2680 = vmatprep.subr.mxu0 0.0
  %2681 = vmatpush1.msra.mxu0 0.0
  %2682 = vmatprep.subr.mxu0 0.0
  %2683 = vmatpush1.msra.mxu0 0.0
  %2684 = vmatprep.subr.mxu0 0.0
  %2685 = vmatpush1.msra.mxu0 0.0
  %2686 = vmatprep.subr.mxu0 0.0
  %2687 = vmatpush1.msra.mxu0 0.0
  %2688 = vmatprep.subr.mxu0 0.0
  %2689 = vmatpush1.msra.mxu0 0.0
  %2690 = vmatprep.subr.mxu0 0.0
  %2691 = vmatpush1.msra.mxu0 0.0
  %2692 = vmatprep.subr.mxu0 0.0
  %2693 = vmatpush1.msra.mxu0 0.0
  %2694 = vmatprep.subr.mxu0 0.0
  %2695 = vmatpush1.msra.mxu0 0.0
  %2696 = vmatprep.subr.mxu0 0.0
  %2697 = vmatpush1.msra.mxu0 0.0
  %2698 = vmatprep.subr.mxu0 0.0
  %2699 = vmatpush1.msra.mxu0 0.0
  %2700 = vmatprep.subr.mxu0 0.0
  %2701 = vmatpush1.msra.mxu0 0.0
  %2702 = vmatprep.mubr.f32.mxu0 0.0
  %2703 = vmatmul.mubr.f32.gmra.mrb[0].mxu0 0.0
  %v2704 = vpop.f32.mrb[0].mxu0
  %v2705 = vadd.f32 0.0, %v2704
  %v2706 = vpop.f32.mrb[0].mxu0
  %v2707 = vadd.f32 0.0, %v2706
  %2708 = vdwg.mxu0
  %2709 = vmatprep.subr.mxu0 %v2577
  %2710 = vmatpush1.msra.mxu0 %v2576
  %2711 = vmatprep.subr.mxu0 %v2581
  %2712 = vmatpush1.msra.mxu0 %v2580
  %2713 = vmatprep.subr.mxu0 %v2585
  %2714 = vmatpush1.msra.mxu0 %v2584
  %2715 = vmatprep.subr.mxu0 %v2589
  %2716 = vmatpush1.msra.mxu0 %v2588
  %2717 = vmatprep.subr.mxu0 %v2593
  %2718 = vmatpush1.msra.mxu0 %v2592
  %2719 = vmatprep.subr.mxu0 %v2597
  %2720 = vmatpush1.msra.mxu0 %v2596
  %2721 = vmatprep.subr.mxu0 %v2601
  %2722 = vmatpush1.msra.mxu0 %v2600
  %2723 = vmatprep.subr.mxu0 %v2605
  %2724 = vmatpush1.msra.mxu0 %v2604
  %2725 = vmatprep.subr.mxu0 %v2609
  %2726 = vmatpush1.msra.mxu0 %v2608
  %2727 = vmatprep.subr.mxu0 %v2613
  %2728 = vmatpush1.msra.mxu0 %v2612
  %2729 = vmatprep.subr.mxu0 %v2617
  %2730 = vmatpush1.msra.mxu0 %v2616
  %2731 = vmatprep.subr.mxu0 %v2621
  %2732 = vmatpush1.msra.mxu0 %v2620
  %2733 = vmatprep.subr.mxu0 %v2625
  %2734 = vmatpush1.msra.mxu0 %v2624
  %2735 = vmatprep.subr.mxu0 %v2629
  %2736 = vmatpush1.msra.mxu0 %v2628
  %2737 = vmatprep.subr.mxu0 %v2633
  %2738 = vmatpush1.msra.mxu0 %v2632
  %2739 = vmatprep.subr.mxu0 %v2637
  %2740 = vmatpush1.msra.mxu0 %v2636
  %2741 = vmatprep.subr.mxu0 0.0
  %2742 = vmatpush1.msra.mxu0 0.0
  %2743 = vmatprep.subr.mxu0 0.0
  %2744 = vmatpush1.msra.mxu0 0.0
  %2745 = vmatprep.subr.mxu0 0.0
  %2746 = vmatpush1.msra.mxu0 0.0
  %2747 = vmatprep.subr.mxu0 0.0
  %2748 = vmatpush1.msra.mxu0 0.0
  %2749 = vmatprep.subr.mxu0 0.0
  %2750 = vmatpush1.msra.mxu0 0.0
  %2751 = vmatprep.subr.mxu0 0.0
  %2752 = vmatpush1.msra.mxu0 0.0
  %2753 = vmatprep.subr.mxu0 0.0
  %2754 = vmatpush1.msra.mxu0 0.0
  %2755 = vmatprep.subr.mxu0 0.0
  %2756 = vmatpush1.msra.mxu0 0.0
  %2757 = vmatprep.subr.mxu0 0.0
  %2758 = vmatpush1.msra.mxu0 0.0
  %2759 = vmatprep.subr.mxu0 0.0
  %2760 = vmatpush1.msra.mxu0 0.0
  %2761 = vmatprep.subr.mxu0 0.0
  %2762 = vmatpush1.msra.mxu0 0.0
  %2763 = vmatprep.subr.mxu0 0.0
  %2764 = vmatpush1.msra.mxu0 0.0
  %2765 = vmatprep.subr.mxu0 0.0
  %2766 = vmatpush1.msra.mxu0 0.0
  %2767 = vmatprep.subr.mxu0 0.0
  %2768 = vmatpush1.msra.mxu0 0.0
  %2769 = vmatprep.subr.mxu0 0.0
  %2770 = vmatpush1.msra.mxu0 0.0
  %2771 = vmatprep.subr.mxu0 0.0
  %2772 = vmatpush1.msra.mxu0 0.0
  %2773 = vmatprep.mubr.f32.mxu0 0.0
  %2774 = vmatmul.mubr.f32.gmra.mrb[0].mxu0 0.0
  %v2775 = vpop.f32.mrb[0].mxu0
  %v2776 = vadd.f32 0.0, %v2775
  %v2777 = vpop.f32.mrb[0].mxu0
  %v2778 = vadd.f32 0.0, %v2777
  %2779 = vdwg.mxu0
  %v2780 = vadd.f32 %v2570, %v2705
  %v2781 = vadd.f32 %v2571, %v2707
  %v2782 = vadd.f32 %v2572, %v2776
  %v2783 = vadd.f32 %v2573, %v2778
  %v2784 = vxor.u32 %v2780, 2147483648
  %v2785 = vmul.f32 %v2784, 1.442695
  %v2786 = vpow.pop %v2785
  %v2787 = vadd.f32 %v2786, 1.0
  %v2788 = vrcp.pop %v2787
  %v2789 = vmul.f32 1.0, %v2788
  %v2790 = vxor.u32 %v2781, 2147483648
  %v2791 = vmul.f32 %v2790, 1.442695
  %v2792 = vpow.pop %v2791
  %v2793 = vadd.f32 %v2792, 1.0
  %v2794 = vrcp.pop %v2793
  %v2795 = vmul.f32 1.0, %v2794
  %v2796 = vtanh.pop %v2782
  %v2797 = vxor.u32 %v2783, 2147483648
  %v2798 = vmul.f32 %v2797, 1.442695
  %v2799 = vpow.pop %v2798
  %v2800 = vadd.f32 %v2799, 1.0
  %v2801 = vrcp.pop %v2800
  %v2802 = vmul.f32 1.0, %v2801
  %v2803 = vmul.f32 %v2795, 0.0
  %v2804 = vmul.f32 %v2789, %v2796
  %v2805 = vadd.f32 %v2803, %v2804
  %v2806 = vtanh.pop %v2805
  %v2807 = vmul.f32 %v2802, %v2806
  %2808 = vst [vmem:[#allocation2] sm:$0x3] %v2807
  %v2809 = vld [vmem:[#allocation3] sm:$0xc]
  %v2810 = vld [vmem:[#allocation3 + $0x8] sm:$0xc]
  %v2811 = vld [vmem:[#allocation3 + $0x10] sm:$0xc]
  %v2812 = vld [vmem:[#allocation3 + $0x18] sm:$0xc]
  %v2813 = vld [vmem:[%s5] sm:$0xff]
  %v2814 = vld [vmem:[%s5 + $0x8] sm:$0xff]
  %v2815 = vld [vmem:[%s5 + $0x10] sm:$0xff]
  %v2816 = vld [vmem:[%s5 + $0x18] sm:$0xff]
  %v2817 = vld [vmem:[%s5 + $0x20] sm:$0xff]
  %v2818 = vld [vmem:[%s5 + $0x28] sm:$0xff]
  %v2819 = vld [vmem:[%s5 + $0x30] sm:$0xff]
  %v2820 = vld [vmem:[%s5 + $0x38] sm:$0xff]
  %v2821 = vld [vmem:[%s5 + $0x40] sm:$0xff]
  %v2822 = vld [vmem:[%s5 + $0x48] sm:$0xff]
  %v2823 = vld [vmem:[%s5 + $0x50] sm:$0xff]
  %v2824 = vld [vmem:[%s5 + $0x58] sm:$0xff]
  %v2825 = vld [vmem:[%s5 + $0x60] sm:$0xff]
  %v2826 = vld [vmem:[%s5 + $0x68] sm:$0xff]
  %v2827 = vld [vmem:[%s5 + $0x70] sm:$0xff]
  %v2828 = vld [vmem:[%s5 + $0x78] sm:$0xff]
  %v2829 = vld [vmem:[%s5 + $0x80] sm:$0xff]
  %v2830 = vld [vmem:[%s5 + $0x88] sm:$0xff]
  %v2831 = vld [vmem:[%s5 + $0x90] sm:$0xff]
  %v2832 = vld [vmem:[%s5 + $0x98] sm:$0xff]
  %v2833 = vld [vmem:[%s5 + $0xa0] sm:$0xff]
  %v2834 = vld [vmem:[%s5 + $0xa8] sm:$0xff]
  %v2835 = vld [vmem:[%s5 + $0xb0] sm:$0xff]
  %v2836 = vld [vmem:[%s5 + $0xb8] sm:$0xff]
  %v2837 = vld [vmem:[%s5 + $0xc0] sm:$0xff]
  %v2838 = vld [vmem:[%s5 + $0xc8] sm:$0xff]
  %v2839 = vld [vmem:[%s5 + $0xd0] sm:$0xff]
  %v2840 = vld [vmem:[%s5 + $0xd8] sm:$0xff]
  %v2841 = vld [vmem:[%s5 + $0xe0] sm:$0xff]
  %v2842 = vld [vmem:[%s5 + $0xe8] sm:$0xff]
  %v2843 = vld [vmem:[%s5 + $0xf0] sm:$0xff]
  %v2844 = vld [vmem:[%s5 + $0xf8] sm:$0xff]
  %v2845 = vld [vmem:[%s5 + $0x100] sm:$0xff]
  %v2846 = vld [vmem:[%s5 + $0x108] sm:$0xff]
  %v2847 = vld [vmem:[%s5 + $0x110] sm:$0xff]
  %v2848 = vld [vmem:[%s5 + $0x118] sm:$0xff]
  %v2849 = vld [vmem:[%s5 + $0x120] sm:$0xff]
  %v2850 = vld [vmem:[%s5 + $0x128] sm:$0xff]
  %v2851 = vld [vmem:[%s5 + $0x130] sm:$0xff]
  %v2852 = vld [vmem:[%s5 + $0x138] sm:$0xff]
  %v2853 = vld [vmem:[%s5 + $0x140] sm:$0xff]
  %v2854 = vld [vmem:[%s5 + $0x148] sm:$0xff]
  %v2855 = vld [vmem:[%s5 + $0x150] sm:$0xff]
  %v2856 = vld [vmem:[%s5 + $0x158] sm:$0xff]
  %v2857 = vld [vmem:[%s5 + $0x160] sm:$0xff]
  %v2858 = vld [vmem:[%s5 + $0x168] sm:$0xff]
  %v2859 = vld [vmem:[%s5 + $0x170] sm:$0xff]
  %v2860 = vld [vmem:[%s5 + $0x178] sm:$0xff]
  %v2861 = vld [vmem:[%s5 + $0x180] sm:$0xff]
  %v2862 = vld [vmem:[%s5 + $0x188] sm:$0xff]
  %v2863 = vld [vmem:[%s5 + $0x190] sm:$0xff]
  %v2864 = vld [vmem:[%s5 + $0x198] sm:$0xff]
  %v2865 = vld [vmem:[%s5 + $0x1a0] sm:$0xff]
  %v2866 = vld [vmem:[%s5 + $0x1a8] sm:$0xff]
  %v2867 = vld [vmem:[%s5 + $0x1b0] sm:$0xff]
  %v2868 = vld [vmem:[%s5 + $0x1b8] sm:$0xff]
  %v2869 = vld [vmem:[%s5 + $0x1c0] sm:$0xff]
  %v2870 = vld [vmem:[%s5 + $0x1c8] sm:$0xff]
  %v2871 = vld [vmem:[%s5 + $0x1d0] sm:$0xff]
  %v2872 = vld [vmem:[%s5 + $0x1d8] sm:$0xff]
  %v2873 = vld [vmem:[%s5 + $0x1e0] sm:$0xff]
  %v2874 = vld [vmem:[%s5 + $0x1e8] sm:$0xff]
  %v2875 = vld [vmem:[%s5 + $0x1f0] sm:$0xff]
  %v2876 = vld [vmem:[%s5 + $0x1f8] sm:$0xff]
  %2877 = vmatprep.subr.mxu0 %v2814
  %2878 = vmatpush1.msra.mxu0 %v2813
  %2879 = vmatprep.subr.mxu0 %v2818
  %2880 = vmatpush1.msra.mxu0 %v2817
  %2881 = vmatprep.subr.mxu0 %v2822
  %2882 = vmatpush1.msra.mxu0 %v2821
  %2883 = vmatprep.subr.mxu0 %v2826
  %2884 = vmatpush1.msra.mxu0 %v2825
  %2885 = vmatprep.subr.mxu0 %v2830
  %2886 = vmatpush1.msra.mxu0 %v2829
  %2887 = vmatprep.subr.mxu0 %v2834
  %2888 = vmatpush1.msra.mxu0 %v2833
  %2889 = vmatprep.subr.mxu0 %v2838
  %2890 = vmatpush1.msra.mxu0 %v2837
  %2891 = vmatprep.subr.mxu0 %v2842
  %2892 = vmatpush1.msra.mxu0 %v2841
  %2893 = vmatprep.subr.mxu0 %v2846
  %2894 = vmatpush1.msra.mxu0 %v2845
  %2895 = vmatprep.subr.mxu0 %v2850
  %2896 = vmatpush1.msra.mxu0 %v2849
  %2897 = vmatprep.subr.mxu0 %v2854
  %2898 = vmatpush1.msra.mxu0 %v2853
  %2899 = vmatprep.subr.mxu0 %v2858
  %2900 = vmatpush1.msra.mxu0 %v2857
  %2901 = vmatprep.subr.mxu0 %v2862
  %2902 = vmatpush1.msra.mxu0 %v2861
  %2903 = vmatprep.subr.mxu0 %v2866
  %2904 = vmatpush1.msra.mxu0 %v2865
  %2905 = vmatprep.subr.mxu0 %v2870
  %2906 = vmatpush1.msra.mxu0 %v2869
  %2907 = vmatprep.subr.mxu0 %v2874
  %2908 = vmatpush1.msra.mxu0 %v2873
  %2909 = vmatprep.subr.mxu0 0.0
  %2910 = vmatpush1.msra.mxu0 0.0
  %2911 = vmatprep.subr.mxu0 0.0
  %2912 = vmatpush1.msra.mxu0 0.0
  %2913 = vmatprep.subr.mxu0 0.0
  %2914 = vmatpush1.msra.mxu0 0.0
  %2915 = vmatprep.subr.mxu0 0.0
  %2916 = vmatpush1.msra.mxu0 0.0
  %2917 = vmatprep.subr.mxu0 0.0
  %2918 = vmatpush1.msra.mxu0 0.0
  %2919 = vmatprep.subr.mxu0 0.0
  %2920 = vmatpush1.msra.mxu0 0.0
  %2921 = vmatprep.subr.mxu0 0.0
  %2922 = vmatpush1.msra.mxu0 0.0
  %2923 = vmatprep.subr.mxu0 0.0
  %2924 = vmatpush1.msra.mxu0 0.0
  %2925 = vmatprep.subr.mxu0 0.0
  %2926 = vmatpush1.msra.mxu0 0.0
  %2927 = vmatprep.subr.mxu0 0.0
  %2928 = vmatpush1.msra.mxu0 0.0
  %2929 = vmatprep.subr.mxu0 0.0
  %2930 = vmatpush1.msra.mxu0 0.0
  %2931 = vmatprep.subr.mxu0 0.0
  %2932 = vmatpush1.msra.mxu0 0.0
  %2933 = vmatprep.subr.mxu0 0.0
  %2934 = vmatpush1.msra.mxu0 0.0
  %2935 = vmatprep.subr.mxu0 0.0
  %2936 = vmatpush1.msra.mxu0 0.0
  %2937 = vmatprep.subr.mxu0 0.0
  %2938 = vmatpush1.msra.mxu0 0.0
  %2939 = vmatprep.subr.mxu0 0.0
  %2940 = vmatpush1.msra.mxu0 0.0
  %2941 = vmatprep.mubr.f32.mxu0 0.0
  %2942 = vmatmul.mubr.f32.gmra.mrb[0].mxu0 %v2807
  %v2943 = vpop.f32.mrb[0].mxu0
  %v2944 = vadd.f32 0.0, %v2943
  %v2945 = vpop.f32.mrb[0].mxu0
  %v2946 = vadd.f32 0.0, %v2945
  %2947 = vdwg.mxu0
  %2948 = vmatprep.subr.mxu0 %v2816
  %2949 = vmatpush1.msra.mxu0 %v2815
  %2950 = vmatprep.subr.mxu0 %v2820
  %2951 = vmatpush1.msra.mxu0 %v2819
  %2952 = vmatprep.subr.mxu0 %v2824
  %2953 = vmatpush1.msra.mxu0 %v2823
  %2954 = vmatprep.subr.mxu0 %v2828
  %2955 = vmatpush1.msra.mxu0 %v2827
  %2956 = vmatprep.subr.mxu0 %v2832
  %2957 = vmatpush1.msra.mxu0 %v2831
  %2958 = vmatprep.subr.mxu0 %v2836
  %2959 = vmatpush1.msra.mxu0 %v2835
  %2960 = vmatprep.subr.mxu0 %v2840
  %2961 = vmatpush1.msra.mxu0 %v2839
  %2962 = vmatprep.subr.mxu0 %v2844
  %2963 = vmatpush1.msra.mxu0 %v2843
  %2964 = vmatprep.subr.mxu0 %v2848
  %2965 = vmatpush1.msra.mxu0 %v2847
  %2966 = vmatprep.subr.mxu0 %v2852
  %2967 = vmatpush1.msra.mxu0 %v2851
  %2968 = vmatprep.subr.mxu0 %v2856
  %2969 = vmatpush1.msra.mxu0 %v2855
  %2970 = vmatprep.subr.mxu0 %v2860
  %2971 = vmatpush1.msra.mxu0 %v2859
  %2972 = vmatprep.subr.mxu0 %v2864
  %2973 = vmatpush1.msra.mxu0 %v2863
  %2974 = vmatprep.subr.mxu0 %v2868
  %2975 = vmatpush1.msra.mxu0 %v2867
  %2976 = vmatprep.subr.mxu0 %v2872
  %2977 = vmatpush1.msra.mxu0 %v2871
  %2978 = vmatprep.subr.mxu0 %v2876
  %2979 = vmatpush1.msra.mxu0 %v2875
  %2980 = vmatprep.subr.mxu0 0.0
  %2981 = vmatpush1.msra.mxu0 0.0
  %2982 = vmatprep.subr.mxu0 0.0
  %2983 = vmatpush1.msra.mxu0 0.0
  %2984 = vmatprep.subr.mxu0 0.0
  %2985 = vmatpush1.msra.mxu0 0.0
  %2986 = vmatprep.subr.mxu0 0.0
  %2987 = vmatpush1.msra.mxu0 0.0
  %2988 = vmatprep.subr.mxu0 0.0
  %2989 = vmatpush1.msra.mxu0 0.0
  %2990 = vmatprep.subr.mxu0 0.0
  %2991 = vmatpush1.msra.mxu0 0.0
  %2992 = vmatprep.subr.mxu0 0.0
  %2993 = vmatpush1.msra.mxu0 0.0
  %2994 = vmatprep.subr.mxu0 0.0
  %2995 = vmatpush1.msra.mxu0 0.0
  %2996 = vmatprep.subr.mxu0 0.0
  %2997 = vmatpush1.msra.mxu0 0.0
  %2998 = vmatprep.subr.mxu0 0.0
  %2999 = vmatpush1.msra.mxu0 0.0
  %3000 = vmatprep.subr.mxu0 0.0
  %3001 = vmatpush1.msra.mxu0 0.0
  %3002 = vmatprep.subr.mxu0 0.0
  %3003 = vmatpush1.msra.mxu0 0.0
  %3004 = vmatprep.subr.mxu0 0.0
  %3005 = vmatpush1.msra.mxu0 0.0
  %3006 = vmatprep.subr.mxu0 0.0
  %3007 = vmatpush1.msra.mxu0 0.0
  %3008 = vmatprep.subr.mxu0 0.0
  %3009 = vmatpush1.msra.mxu0 0.0
  %3010 = vmatprep.subr.mxu0 0.0
  %3011 = vmatpush1.msra.mxu0 0.0
  %3012 = vmatprep.mubr.f32.mxu0 0.0
  %3013 = vmatmul.mubr.f32.gmra.mrb[0].mxu0 %v2807
  %v3014 = vpop.f32.mrb[0].mxu0
  %v3015 = vadd.f32 0.0, %v3014
  %v3016 = vpop.f32.mrb[0].mxu0
  %v3017 = vadd.f32 0.0, %v3016
  %3018 = vdwg.mxu0
  %v3023 = vrot.slane %v2944, 6
  %v3024 = vrot.slane %v2946, 6
  %v3025 = vrot.slane %v3015, 6
  %v3026 = vrot.slane %v3017, 6
  %v3031 = vadd.f32 %v2809, %v3023
  %v3032 = vadd.f32 %v2810, %v3024
  %v3033 = vadd.f32 %v2811, %v3025
  %v3034 = vadd.f32 %v2812, %v3026
  %v3035 = vxor.u32 %v3031, 2147483648
  %v3036 = vmul.f32 %v3035, 1.442695
  %v3037 = vpow.pop %v3036
  %v3038 = vadd.f32 %v3037, 1.0
  %v3039 = vrcp.pop %v3038
  %v3040 = vmul.f32 1.0, %v3039
  %v3041 = vxor.u32 %v3032, 2147483648
  %v3042 = vmul.f32 %v3041, 1.442695
  %v3043 = vpow.pop %v3042
  %v3044 = vadd.f32 %v3043, 1.0
  %v3045 = vrcp.pop %v3044
  %v3046 = vmul.f32 1.0, %v3045
  %v3047 = vtanh.pop %v3033
  %v3048 = vxor.u32 %v3034, 2147483648
  %v3049 = vmul.f32 %v3048, 1.442695
  %v3050 = vpow.pop %v3049
  %v3051 = vadd.f32 %v3050, 1.0
  %v3052 = vrcp.pop %v3051
  %v3053 = vmul.f32 1.0, %v3052
  %v3055 = vrot.slane %v2805, 6
  %v3057 = vmul.f32 %v3046, %v3055
  %v3058 = vmul.f32 %v3040, %v3047
  %v3059 = vadd.f32 %v3057, %v3058
  %v3060 = vtanh.pop %v3059
  %v3061 = vmul.f32 %v3053, %v3060
  %3062 = vst [vmem:[#allocation2] sm:$0xc] %v3061
  %v3063 = vld [vmem:[#allocation3] sm:$0x30]
  %v3064 = vld [vmem:[#allocation3 + $0x8] sm:$0x30]
  %v3065 = vld [vmem:[#allocation3 + $0x10] sm:$0x30]
  %v3066 = vld [vmem:[#allocation3 + $0x18] sm:$0x30]
  %v3067 = vld [vmem:[%s5] sm:$0xff]
  %v3068 = vld [vmem:[%s5 + $0x8] sm:$0xff]
  %v3069 = vld [vmem:[%s5 + $0x10] sm:$0xff]
  %v3070 = vld [vmem:[%s5 + $0x18] sm:$0xff]
  %v3071 = vld [vmem:[%s5 + $0x20] sm:$0xff]
  %v3072 = vld [vmem:[%s5 + $0x28] sm:$0xff]
  %v3073 = vld [vmem:[%s5 + $0x30] sm:$0xff]
  %v3074 = vld [vmem:[%s5 + $0x38] sm:$0xff]
  %v3075 = vld [vmem:[%s5 + $0x40] sm:$0xff]
  %v3076 = vld [vmem:[%s5 + $0x48] sm:$0xff]
  %v3077 = vld [vmem:[%s5 + $0x50] sm:$0xff]
  %v3078 = vld [vmem:[%s5 + $0x58] sm:$0xff]
  %v3079 = vld [vmem:[%s5 + $0x60] sm:$0xff]
  %v3080 = vld [vmem:[%s5 + $0x68] sm:$0xff]
  %v3081 = vld [vmem:[%s5 + $0x70] sm:$0xff]
  %v3082 = vld [vmem:[%s5 + $0x78] sm:$0xff]
  %v3083 = vld [vmem:[%s5 + $0x80] sm:$0xff]
  %v3084 = vld [vmem:[%s5 + $0x88] sm:$0xff]
  %v3085 = vld [vmem:[%s5 + $0x90] sm:$0xff]
  %v3086 = vld [vmem:[%s5 + $0x98] sm:$0xff]
  %v3087 = vld [vmem:[%s5 + $0xa0] sm:$0xff]
  %v3088 = vld [vmem:[%s5 + $0xa8] sm:$0xff]
  %v3089 = vld [vmem:[%s5 + $0xb0] sm:$0xff]
  %v3090 = vld [vmem:[%s5 + $0xb8] sm:$0xff]
  %v3091 = vld [vmem:[%s5 + $0xc0] sm:$0xff]
  %v3092 = vld [vmem:[%s5 + $0xc8] sm:$0xff]
  %v3093 = vld [vmem:[%s5 + $0xd0] sm:$0xff]
  %v3094 = vld [vmem:[%s5 + $0xd8] sm:$0xff]
  %v3095 = vld [vmem:[%s5 + $0xe0] sm:$0xff]
  %v3096 = vld [vmem:[%s5 + $0xe8] sm:$0xff]
  %v3097 = vld [vmem:[%s5 + $0xf0] sm:$0xff]
  %v3098 = vld [vmem:[%s5 + $0xf8] sm:$0xff]
  %v3099 = vld [vmem:[%s5 + $0x100] sm:$0xff]
  %v3100 = vld [vmem:[%s5 + $0x108] sm:$0xff]
  %v3101 = vld [vmem:[%s5 + $0x110] sm:$0xff]
  %v3102 = vld [vmem:[%s5 + $0x118] sm:$0xff]
  %v3103 = vld [vmem:[%s5 + $0x120] sm:$0xff]
  %v3104 = vld [vmem:[%s5 + $0x128] sm:$0xff]
  %v3105 = vld [vmem:[%s5 + $0x130] sm:$0xff]
  %v3106 = vld [vmem:[%s5 + $0x138] sm:$0xff]
  %v3107 = vld [vmem:[%s5 + $0x140] sm:$0xff]
  %v3108 = vld [vmem:[%s5 + $0x148] sm:$0xff]
  %v3109 = vld [vmem:[%s5 + $0x150] sm:$0xff]
  %v3110 = vld [vmem:[%s5 + $0x158] sm:$0xff]
  %v3111 = vld [vmem:[%s5 + $0x160] sm:$0xff]
  %v3112 = vld [vmem:[%s5 + $0x168] sm:$0xff]
  %v3113 = vld [vmem:[%s5 + $0x170] sm:$0xff]
  %v3114 = vld [vmem:[%s5 + $0x178] sm:$0xff]
  %v3115 = vld [vmem:[%s5 + $0x180] sm:$0xff]
  %v3116 = vld [vmem:[%s5 + $0x188] sm:$0xff]
  %v3117 = vld [vmem:[%s5 + $0x190] sm:$0xff]
  %v3118 = vld [vmem:[%s5 + $0x198] sm:$0xff]
  %v3119 = vld [vmem:[%s5 + $0x1a0] sm:$0xff]
  %v3120 = vld [vmem:[%s5 + $0x1a8] sm:$0xff]
  %v3121 = vld [vmem:[%s5 + $0x1b0] sm:$0xff]
  %v3122 = vld [vmem:[%s5 + $0x1b8] sm:$0xff]
  %v3123 = vld [vmem:[%s5 + $0x1c0] sm:$0xff]
  %v3124 = vld [vmem:[%s5 + $0x1c8] sm:$0xff]
  %v3125 = vld [vmem:[%s5 + $0x1d0] sm:$0xff]
  %v3126 = vld [vmem:[%s5 + $0x1d8] sm:$0xff]
  %v3127 = vld [vmem:[%s5 + $0x1e0] sm:$0xff]
  %v3128 = vld [vmem:[%s5 + $0x1e8] sm:$0xff]
  %v3129 = vld [vmem:[%s5 + $0x1f0] sm:$0xff]
  %v3130 = vld [vmem:[%s5 + $0x1f8] sm:$0xff]
  %v3132 = vrot.slane %v3061, 2
  %3134 = vmatprep.subr.mxu0 %v3068
  %3135 = vmatpush1.msra.mxu0 %v3067
  %3136 = vmatprep.subr.mxu0 %v3072
  %3137 = vmatpush1.msra.mxu0 %v3071
  %3138 = vmatprep.subr.mxu0 %v3076
  %3139 = vmatpush1.msra.mxu0 %v3075
  %3140 = vmatprep.subr.mxu0 %v3080
  %3141 = vmatpush1.msra.mxu0 %v3079
  %3142 = vmatprep.subr.mxu0 %v3084
  %3143 = vmatpush1.msra.mxu0 %v3083
  %3144 = vmatprep.subr.mxu0 %v3088
  %3145 = vmatpush1.msra.mxu0 %v3087
  %3146 = vmatprep.subr.mxu0 %v3092
  %3147 = vmatpush1.msra.mxu0 %v3091
  %3148 = vmatprep.subr.mxu0 %v3096
  %3149 = vmatpush1.msra.mxu0 %v3095
  %3150 = vmatprep.subr.mxu0 %v3100
  %3151 = vmatpush1.msra.mxu0 %v3099
  %3152 = vmatprep.subr.mxu0 %v3104
  %3153 = vmatpush1.msra.mxu0 %v3103
  %3154 = vmatprep.subr.mxu0 %v3108
  %3155 = vmatpush1.msra.mxu0 %v3107
  %3156 = vmatprep.subr.mxu0 %v3112
  %3157 = vmatpush1.msra.mxu0 %v3111
  %3158 = vmatprep.subr.mxu0 %v3116
  %3159 = vmatpush1.msra.mxu0 %v3115
  %3160 = vmatprep.subr.mxu0 %v3120
  %3161 = vmatpush1.msra.mxu0 %v3119
  %3162 = vmatprep.subr.mxu0 %v3124
  %3163 = vmatpush1.msra.mxu0 %v3123
  %3164 = vmatprep.subr.mxu0 %v3128
  %3165 = vmatpush1.msra.mxu0 %v3127
  %3166 = vmatprep.subr.mxu0 0.0
  %3167 = vmatpush1.msra.mxu0 0.0
  %3168 = vmatprep.subr.mxu0 0.0
  %3169 = vmatpush1.msra.mxu0 0.0
  %3170 = vmatprep.subr.mxu0 0.0
  %3171 = vmatpush1.msra.mxu0 0.0
  %3172 = vmatprep.subr.mxu0 0.0
  %3173 = vmatpush1.msra.mxu0 0.0
  %3174 = vmatprep.subr.mxu0 0.0
  %3175 = vmatpush1.msra.mxu0 0.0
  %3176 = vmatprep.subr.mxu0 0.0
  %3177 = vmatpush1.msra.mxu0 0.0
  %3178 = vmatprep.subr.mxu0 0.0
  %3179 = vmatpush1.msra.mxu0 0.0
  %3180 = vmatprep.subr.mxu0 0.0
  %3181 = vmatpush1.msra.mxu0 0.0
  %3182 = vmatprep.subr.mxu0 0.0
  %3183 = vmatpush1.msra.mxu0 0.0
  %3184 = vmatprep.subr.mxu0 0.0
  %3185 = vmatpush1.msra.mxu0 0.0
  %3186 = vmatprep.subr.mxu0 0.0
  %3187 = vmatpush1.msra.mxu0 0.0
  %3188 = vmatprep.subr.mxu0 0.0
  %3189 = vmatpush1.msra.mxu0 0.0
  %3190 = vmatprep.subr.mxu0 0.0
  %3191 = vmatpush1.msra.mxu0 0.0
  %3192 = vmatprep.subr.mxu0 0.0
  %3193 = vmatpush1.msra.mxu0 0.0
  %3194 = vmatprep.subr.mxu0 0.0
  %3195 = vmatpush1.msra.mxu0 0.0
  %3196 = vmatprep.subr.mxu0 0.0
  %3197 = vmatpush1.msra.mxu0 0.0
  %3198 = vmatprep.mubr.f32.mxu0 0.0
  %3199 = vmatmul.mubr.f32.gmra.mrb[0].mxu0 %v3132
  %v3200 = vpop.f32.mrb[0].mxu0
  %v3201 = vadd.f32 0.0, %v3200
  %v3202 = vpop.f32.mrb[0].mxu0
  %v3203 = vadd.f32 0.0, %v3202
  %3204 = vdwg.mxu0
  %3205 = vmatprep.subr.mxu0 %v3070
  %3206 = vmatpush1.msra.mxu0 %v3069
  %3207 = vmatprep.subr.mxu0 %v3074
  %3208 = vmatpush1.msra.mxu0 %v3073
  %3209 = vmatprep.subr.mxu0 %v3078
  %3210 = vmatpush1.msra.mxu0 %v3077
  %3211 = vmatprep.subr.mxu0 %v3082
  %3212 = vmatpush1.msra.mxu0 %v3081
  %3213 = vmatprep.subr.mxu0 %v3086
  %3214 = vmatpush1.msra.mxu0 %v3085
  %3215 = vmatprep.subr.mxu0 %v3090
  %3216 = vmatpush1.msra.mxu0 %v3089
  %3217 = vmatprep.subr.mxu0 %v3094
  %3218 = vmatpush1.msra.mxu0 %v3093
  %3219 = vmatprep.subr.mxu0 %v3098
  %3220 = vmatpush1.msra.mxu0 %v3097
  %3221 = vmatprep.subr.mxu0 %v3102
  %3222 = vmatpush1.msra.mxu0 %v3101
  %3223 = vmatprep.subr.mxu0 %v3106
  %3224 = vmatpush1.msra.mxu0 %v3105
  %3225 = vmatprep.subr.mxu0 %v3110
  %3226 = vmatpush1.msra.mxu0 %v3109
  %3227 = vmatprep.subr.mxu0 %v3114
  %3228 = vmatpush1.msra.mxu0 %v3113
  %3229 = vmatprep.subr.mxu0 %v3118
  %3230 = vmatpush1.msra.mxu0 %v3117
  %3231 = vmatprep.subr.mxu0 %v3122
  %3232 = vmatpush1.msra.mxu0 %v3121
  %3233 = vmatprep.subr.mxu0 %v3126
  %3234 = vmatpush1.msra.mxu0 %v3125
  %3235 = vmatprep.subr.mxu0 %v3130
  %3236 = vmatpush1.msra.mxu0 %v3129
  %3237 = vmatprep.subr.mxu0 0.0
  %3238 = vmatpush1.msra.mxu0 0.0
  %3239 = vmatprep.subr.mxu0 0.0
  %3240 = vmatpush1.msra.mxu0 0.0
  %3241 = vmatprep.subr.mxu0 0.0
  %3242 = vmatpush1.msra.mxu0 0.0
  %3243 = vmatprep.subr.mxu0 0.0
  %3244 = vmatpush1.msra.mxu0 0.0
  %3245 = vmatprep.subr.mxu0 0.0
  %3246 = vmatpush1.msra.mxu0 0.0
  %3247 = vmatprep.subr.mxu0 0.0
  %3248 = vmatpush1.msra.mxu0 0.0
  %3249 = vmatprep.subr.mxu0 0.0
  %3250 = vmatpush1.msra.mxu0 0.0
  %3251 = vmatprep.subr.mxu0 0.0
  %3252 = vmatpush1.msra.mxu0 0.0
  %3253 = vmatprep.subr.mxu0 0.0
  %3254 = vmatpush1.msra.mxu0 0.0
  %3255 = vmatprep.subr.mxu0 0.0
  %3256 = vmatpush1.msra.mxu0 0.0
  %3257 = vmatprep.subr.mxu0 0.0
  %3258 = vmatpush1.msra.mxu0 0.0
  %3259 = vmatprep.subr.mxu0 0.0
  %3260 = vmatpush1.msra.mxu0 0.0
  %3261 = vmatprep.subr.mxu0 0.0
  %3262 = vmatpush1.msra.mxu0 0.0
  %3263 = vmatprep.subr.mxu0 0.0
  %3264 = vmatpush1.msra.mxu0 0.0
  %3265 = vmatprep.subr.mxu0 0.0
  %3266 = vmatpush1.msra.mxu0 0.0
  %3267 = vmatprep.subr.mxu0 0.0
  %3268 = vmatpush1.msra.mxu0 0.0
  %3269 = vmatprep.mubr.f32.mxu0 0.0
  %3270 = vmatmul.mubr.f32.gmra.mrb[0].mxu0 %v3132
  %v3271 = vpop.f32.mrb[0].mxu0
  %v3272 = vadd.f32 0.0, %v3271
  %v3273 = vpop.f32.mrb[0].mxu0
  %v3274 = vadd.f32 0.0, %v3273
  %3275 = vdwg.mxu0
  %v3280 = vrot.slane %v3201, 4
  %v3281 = vrot.slane %v3203, 4
  %v3282 = vrot.slane %v3272, 4
  %v3283 = vrot.slane %v3274, 4
  %v3288 = vadd.f32 %v3063, %v3280
  %v3289 = vadd.f32 %v3064, %v3281
  %v3290 = vadd.f32 %v3065, %v3282
  %v3291 = vadd.f32 %v3066, %v3283
  %v3292 = vxor.u32 %v3288, 2147483648
  %v3293 = vmul.f32 %v3292, 1.442695
  %v3294 = vpow.pop %v3293
  %v3295 = vadd.f32 %v3294, 1.0
  %v3296 = vrcp.pop %v3295
  %v3297 = vmul.f32 1.0, %v3296
  %v3298 = vxor.u32 %v3289, 2147483648
  %v3299 = vmul.f32 %v3298, 1.442695
  %v3300 = vpow.pop %v3299
  %v3301 = vadd.f32 %v3300, 1.0
  %v3302 = vrcp.pop %v3301
  %v3303 = vmul.f32 1.0, %v3302
  %v3304 = vtanh.pop %v3290
  %v3305 = vxor.u32 %v3291, 2147483648
  %v3306 = vmul.f32 %v3305, 1.442695
  %v3307 = vpow.pop %v3306
  %v3308 = vadd.f32 %v3307, 1.0
  %v3309 = vrcp.pop %v3308
  %v3310 = vmul.f32 1.0, %v3309
  %v3312 = vrot.slane %v3059, 6
  %v3314 = vmul.f32 %v3303, %v3312
  %v3315 = vmul.f32 %v3297, %v3304
  %v3316 = vadd.f32 %v3314, %v3315
  %v3317 = vtanh.pop %v3316
  %v3318 = vmul.f32 %v3310, %v3317
  %3319 = vst [vmem:[#allocation2] sm:$0x30] %v3318
  %v3320 = vld [vmem:[#allocation3] sm:$0xc0]
  %v3321 = vld [vmem:[#allocation3 + $0x8] sm:$0xc0]
  %v3322 = vld [vmem:[#allocation3 + $0x10] sm:$0xc0]
  %v3323 = vld [vmem:[#allocation3 + $0x18] sm:$0xc0]
  %v3324 = vld [vmem:[%s5] sm:$0xff]
  %v3325 = vld [vmem:[%s5 + $0x8] sm:$0xff]
  %v3326 = vld [vmem:[%s5 + $0x10] sm:$0xff]
  %v3327 = vld [vmem:[%s5 + $0x18] sm:$0xff]
  %v3328 = vld [vmem:[%s5 + $0x20] sm:$0xff]
  %v3329 = vld [vmem:[%s5 + $0x28] sm:$0xff]
  %v3330 = vld [vmem:[%s5 + $0x30] sm:$0xff]
  %v3331 = vld [vmem:[%s5 + $0x38] sm:$0xff]
  %v3332 = vld [vmem:[%s5 + $0x40] sm:$0xff]
  %v3333 = vld [vmem:[%s5 + $0x48] sm:$0xff]
  %v3334 = vld [vmem:[%s5 + $0x50] sm:$0xff]
  %v3335 = vld [vmem:[%s5 + $0x58] sm:$0xff]
  %v3336 = vld [vmem:[%s5 + $0x60] sm:$0xff]
  %v3337 = vld [vmem:[%s5 + $0x68] sm:$0xff]
  %v3338 = vld [vmem:[%s5 + $0x70] sm:$0xff]
  %v3339 = vld [vmem:[%s5 + $0x78] sm:$0xff]
  %v3340 = vld [vmem:[%s5 + $0x80] sm:$0xff]
  %v3341 = vld [vmem:[%s5 + $0x88] sm:$0xff]
  %v3342 = vld [vmem:[%s5 + $0x90] sm:$0xff]
  %v3343 = vld [vmem:[%s5 + $0x98] sm:$0xff]
  %v3344 = vld [vmem:[%s5 + $0xa0] sm:$0xff]
  %v3345 = vld [vmem:[%s5 + $0xa8] sm:$0xff]
  %v3346 = vld [vmem:[%s5 + $0xb0] sm:$0xff]
  %v3347 = vld [vmem:[%s5 + $0xb8] sm:$0xff]
  %v3348 = vld [vmem:[%s5 + $0xc0] sm:$0xff]
  %v3349 = vld [vmem:[%s5 + $0xc8] sm:$0xff]
  %v3350 = vld [vmem:[%s5 + $0xd0] sm:$0xff]
  %v3351 = vld [vmem:[%s5 + $0xd8] sm:$0xff]
  %v3352 = vld [vmem:[%s5 + $0xe0] sm:$0xff]
  %v3353 = vld [vmem:[%s5 + $0xe8] sm:$0xff]
  %v3354 = vld [vmem:[%s5 + $0xf0] sm:$0xff]
  %v3355 = vld [vmem:[%s5 + $0xf8] sm:$0xff]
  %v3356 = vld [vmem:[%s5 + $0x100] sm:$0xff]
  %v3357 = vld [vmem:[%s5 + $0x108] sm:$0xff]
  %v3358 = vld [vmem:[%s5 + $0x110] sm:$0xff]
  %v3359 = vld [vmem:[%s5 + $0x118] sm:$0xff]
  %v3360 = vld [vmem:[%s5 + $0x120] sm:$0xff]
  %v3361 = vld [vmem:[%s5 + $0x128] sm:$0xff]
  %v3362 = vld [vmem:[%s5 + $0x130] sm:$0xff]
  %v3363 = vld [vmem:[%s5 + $0x138] sm:$0xff]
  %v3364 = vld [vmem:[%s5 + $0x140] sm:$0xff]
  %v3365 = vld [vmem:[%s5 + $0x148] sm:$0xff]
  %v3366 = vld [vmem:[%s5 + $0x150] sm:$0xff]
  %v3367 = vld [vmem:[%s5 + $0x158] sm:$0xff]
  %v3368 = vld [vmem:[%s5 + $0x160] sm:$0xff]
  %v3369 = vld [vmem:[%s5 + $0x168] sm:$0xff]
  %v3370 = vld [vmem:[%s5 + $0x170] sm:$0xff]
  %v3371 = vld [vmem:[%s5 + $0x178] sm:$0xff]
  %v3372 = vld [vmem:[%s5 + $0x180] sm:$0xff]
  %v3373 = vld [vmem:[%s5 + $0x188] sm:$0xff]
  %v3374 = vld [vmem:[%s5 + $0x190] sm:$0xff]
  %v3375 = vld [vmem:[%s5 + $0x198] sm:$0xff]
  %v3376 = vld [vmem:[%s5 + $0x1a0] sm:$0xff]
  %v3377 = vld [vmem:[%s5 + $0x1a8] sm:$0xff]
  %v3378 = vld [vmem:[%s5 + $0x1b0] sm:$0xff]
  %v3379 = vld [vmem:[%s5 + $0x1b8] sm:$0xff]
  %v3380 = vld [vmem:[%s5 + $0x1c0] sm:$0xff]
  %v3381 = vld [vmem:[%s5 + $0x1c8] sm:$0xff]
  %v3382 = vld [vmem:[%s5 + $0x1d0] sm:$0xff]
  %v3383 = vld [vmem:[%s5 + $0x1d8] sm:$0xff]
  %v3384 = vld [vmem:[%s5 + $0x1e0] sm:$0xff]
  %v3385 = vld [vmem:[%s5 + $0x1e8] sm:$0xff]
  %v3386 = vld [vmem:[%s5 + $0x1f0] sm:$0xff]
  %v3387 = vld [vmem:[%s5 + $0x1f8] sm:$0xff]
  %v3389 = vrot.slane %v3318, 4
  %3391 = vmatprep.subr.mxu0 %v3325
  %3392 = vmatpush1.msra.mxu0 %v3324
  %3393 = vmatprep.subr.mxu0 %v3329
  %3394 = vmatpush1.msra.mxu0 %v3328
  %3395 = vmatprep.subr.mxu0 %v3333
  %3396 = vmatpush1.msra.mxu0 %v3332
  %3397 = vmatprep.subr.mxu0 %v3337
  %3398 = vmatpush1.msra.mxu0 %v3336
  %3399 = vmatprep.subr.mxu0 %v3341
  %3400 = vmatpush1.msra.mxu0 %v3340
  %3401 = vmatprep.subr.mxu0 %v3345
  %3402 = vmatpush1.msra.mxu0 %v3344
  %3403 = vmatprep.subr.mxu0 %v3349
  %3404 = vmatpush1.msra.mxu0 %v3348
  %3405 = vmatprep.subr.mxu0 %v3353
  %3406 = vmatpush1.msra.mxu0 %v3352
  %3407 = vmatprep.subr.mxu0 %v3357
  %3408 = vmatpush1.msra.mxu0 %v3356
  %3409 = vmatprep.subr.mxu0 %v3361
  %3410 = vmatpush1.msra.mxu0 %v3360
  %3411 = vmatprep.subr.mxu0 %v3365
  %3412 = vmatpush1.msra.mxu0 %v3364
  %3413 = vmatprep.subr.mxu0 %v3369
  %3414 = vmatpush1.msra.mxu0 %v3368
  %3415 = vmatprep.subr.mxu0 %v3373
  %3416 = vmatpush1.msra.mxu0 %v3372
  %3417 = vmatprep.subr.mxu0 %v3377
  %3418 = vmatpush1.msra.mxu0 %v3376
  %3419 = vmatprep.subr.mxu0 %v3381
  %3420 = vmatpush1.msra.mxu0 %v3380
  %3421 = vmatprep.subr.mxu0 %v3385
  %3422 = vmatpush1.msra.mxu0 %v3384
  %3423 = vmatprep.subr.mxu0 0.0
  %3424 = vmatpush1.msra.mxu0 0.0
  %3425 = vmatprep.subr.mxu0 0.0
  %3426 = vmatpush1.msra.mxu0 0.0
  %3427 = vmatprep.subr.mxu0 0.0
  %3428 = vmatpush1.msra.mxu0 0.0
  %3429 = vmatprep.subr.mxu0 0.0
  %3430 = vmatpush1.msra.mxu0 0.0
  %3431 = vmatprep.subr.mxu0 0.0
  %3432 = vmatpush1.msra.mxu0 0.0
  %3433 = vmatprep.subr.mxu0 0.0
  %3434 = vmatpush1.msra.mxu0 0.0
  %3435 = vmatprep.subr.mxu0 0.0
  %3436 = vmatpush1.msra.mxu0 0.0
  %3437 = vmatprep.subr.mxu0 0.0
  %3438 = vmatpush1.msra.mxu0 0.0
  %3439 = vmatprep.subr.mxu0 0.0
  %3440 = vmatpush1.msra.mxu0 0.0
  %3441 = vmatprep.subr.mxu0 0.0
  %3442 = vmatpush1.msra.mxu0 0.0
  %3443 = vmatprep.subr.mxu0 0.0
  %3444 = vmatpush1.msra.mxu0 0.0
  %3445 = vmatprep.subr.mxu0 0.0
  %3446 = vmatpush1.msra.mxu0 0.0
  %3447 = vmatprep.subr.mxu0 0.0
  %3448 = vmatpush1.msra.mxu0 0.0
  %3449 = vmatprep.subr.mxu0 0.0
  %3450 = vmatpush1.msra.mxu0 0.0
  %3451 = vmatprep.subr.mxu0 0.0
  %3452 = vmatpush1.msra.mxu0 0.0
  %3453 = vmatprep.subr.mxu0 0.0
  %3454 = vmatpush1.msra.mxu0 0.0
  %3455 = vmatprep.mubr.f32.mxu0 0.0
  %3456 = vmatmul.mubr.f32.gmra.mrb[0].mxu0 %v3389
  %v3457 = vpop.f32.mrb[0].mxu0
  %v3458 = vadd.f32 0.0, %v3457
  %v3459 = vpop.f32.mrb[0].mxu0
  %v3460 = vadd.f32 0.0, %v3459
  %3461 = vdwg.mxu0
  %3462 = vmatprep.subr.mxu0 %v3327
  %3463 = vmatpush1.msra.mxu0 %v3326
  %3464 = vmatprep.subr.mxu0 %v3331
  %3465 = vmatpush1.msra.mxu0 %v3330
  %3466 = vmatprep.subr.mxu0 %v3335
  %3467 = vmatpush1.msra.mxu0 %v3334
  %3468 = vmatprep.subr.mxu0 %v3339
  %3469 = vmatpush1.msra.mxu0 %v3338
  %3470 = vmatprep.subr.mxu0 %v3343
  %3471 = vmatpush1.msra.mxu0 %v3342
  %3472 = vmatprep.subr.mxu0 %v3347
  %3473 = vmatpush1.msra.mxu0 %v3346
  %3474 = vmatprep.subr.mxu0 %v3351
  %3475 = vmatpush1.msra.mxu0 %v3350
  %3476 = vmatprep.subr.mxu0 %v3355
  %3477 = vmatpush1.msra.mxu0 %v3354
  %3478 = vmatprep.subr.mxu0 %v3359
  %3479 = vmatpush1.msra.mxu0 %v3358
  %3480 = vmatprep.subr.mxu0 %v3363
  %3481 = vmatpush1.msra.mxu0 %v3362
  %3482 = vmatprep.subr.mxu0 %v3367
  %3483 = vmatpush1.msra.mxu0 %v3366
  %3484 = vmatprep.subr.mxu0 %v3371
  %3485 = vmatpush1.msra.mxu0 %v3370
  %3486 = vmatprep.subr.mxu0 %v3375
  %3487 = vmatpush1.msra.mxu0 %v3374
  %3488 = vmatprep.subr.mxu0 %v3379
  %3489 = vmatpush1.msra.mxu0 %v3378
  %3490 = vmatprep.subr.mxu0 %v3383
  %3491 = vmatpush1.msra.mxu0 %v3382
  %3492 = vmatprep.subr.mxu0 %v3387
  %3493 = vmatpush1.msra.mxu0 %v3386
  %3494 = vmatprep.subr.mxu0 0.0
  %3495 = vmatpush1.msra.mxu0 0.0
  %3496 = vmatprep.subr.mxu0 0.0
  %3497 = vmatpush1.msra.mxu0 0.0
  %3498 = vmatprep.subr.mxu0 0.0
  %3499 = vmatpush1.msra.mxu0 0.0
  %3500 = vmatprep.subr.mxu0 0.0
  %3501 = vmatpush1.msra.mxu0 0.0
  %3502 = vmatprep.subr.mxu0 0.0
  %3503 = vmatpush1.msra.mxu0 0.0
  %3504 = vmatprep.subr.mxu0 0.0
  %3505 = vmatpush1.msra.mxu0 0.0
  %3506 = vmatprep.subr.mxu0 0.0
  %3507 = vmatpush1.msra.mxu0 0.0
  %3508 = vmatprep.subr.mxu0 0.0
  %3509 = vmatpush1.msra.mxu0 0.0
  %3510 = vmatprep.subr.mxu0 0.0
  %3511 = vmatpush1.msra.mxu0 0.0
  %3512 = vmatprep.subr.mxu0 0.0
  %3513 = vmatpush1.msra.mxu0 0.0
  %3514 = vmatprep.subr.mxu0 0.0
  %3515 = vmatpush1.msra.mxu0 0.0
  %3516 = vmatprep.subr.mxu0 0.0
  %3517 = vmatpush1.msra.mxu0 0.0
  %3518 = vmatprep.subr.mxu0 0.0
  %3519 = vmatpush1.msra.mxu0 0.0
  %3520 = vmatprep.subr.mxu0 0.0
  %3521 = vmatpush1.msra.mxu0 0.0
  %3522 = vmatprep.subr.mxu0 0.0
  %3523 = vmatpush1.msra.mxu0 0.0
  %3524 = vmatprep.subr.mxu0 0.0
  %3525 = vmatpush1.msra.mxu0 0.0
  %3526 = vmatprep.mubr.f32.mxu0 0.0
  %3527 = vmatmul.mubr.f32.gmra.mrb[0].mxu0 %v3389
  %v3528 = vpop.f32.mrb[0].mxu0
  %v3529 = vadd.f32 0.0, %v3528
  %v3530 = vpop.f32.mrb[0].mxu0
  %v3531 = vadd.f32 0.0, %v3530
  %3532 = vdwg.mxu0
  %v3537 = vrot.slane %v3458, 2
  %v3538 = vrot.slane %v3460, 2
  %v3539 = vrot.slane %v3529, 2
  %v3540 = vrot.slane %v3531, 2
  %v3545 = vadd.f32 %v3320, %v3537
  %v3546 = vadd.f32 %v3321, %v3538
  %v3547 = vadd.f32 %v3322, %v3539
  %v3548 = vadd.f32 %v3323, %v3540
  %v3549 = vxor.u32 %v3545, 2147483648
  %v3550 = vmul.f32 %v3549, 1.442695
  %v3551 = vpow.pop %v3550
  %v3552 = vadd.f32 %v3551, 1.0
  %v3553 = vrcp.pop %v3552
  %v3554 = vmul.f32 1.0, %v3553
  %v3555 = vxor.u32 %v3546, 2147483648
  %v3556 = vmul.f32 %v3555, 1.442695
  %v3557 = vpow.pop %v3556
  %v3558 = vadd.f32 %v3557, 1.0
  %v3559 = vrcp.pop %v3558
  %v3560 = vmul.f32 1.0, %v3559
  %v3561 = vtanh.pop %v3547
  %v3562 = vxor.u32 %v3548, 2147483648
  %v3563 = vmul.f32 %v3562, 1.442695
  %v3564 = vpow.pop %v3563
  %v3565 = vadd.f32 %v3564, 1.0
  %v3566 = vrcp.pop %v3565
  %v3567 = vmul.f32 1.0, %v3566
  %v3569 = vrot.slane %v3316, 6
  %v3571 = vmul.f32 %v3560, %v3569
  %v3572 = vmul.f32 %v3554, %v3561
  %v3573 = vadd.f32 %v3571, %v3572
  %v3574 = vtanh.pop %v3573
  %v3575 = vmul.f32 %v3567, %v3574
  %3576 = vst [vmem:[#allocation2] sm:$0xc0] %v3575
  %v3577 = vld [vmem:[#allocation3 + $0x20] sm:$0x3]
  %v3578 = vld [vmem:[#allocation3 + $0x28] sm:$0x3]
  %v3579 = vld [vmem:[#allocation3 + $0x30] sm:$0x3]
  %v3580 = vld [vmem:[#allocation3 + $0x38] sm:$0x3]
  %v3581 = vld [vmem:[%s5] sm:$0xff]
  %v3582 = vld [vmem:[%s5 + $0x8] sm:$0xff]
  %v3583 = vld [vmem:[%s5 + $0x10] sm:$0xff]
  %v3584 = vld [vmem:[%s5 + $0x18] sm:$0xff]
  %v3585 = vld [vmem:[%s5 + $0x20] sm:$0xff]
  %v3586 = vld [vmem:[%s5 + $0x28] sm:$0xff]
  %v3587 = vld [vmem:[%s5 + $0x30] sm:$0xff]
  %v3588 = vld [vmem:[%s5 + $0x38] sm:$0xff]
  %v3589 = vld [vmem:[%s5 + $0x40] sm:$0xff]
  %v3590 = vld [vmem:[%s5 + $0x48] sm:$0xff]
  %v3591 = vld [vmem:[%s5 + $0x50] sm:$0xff]
  %v3592 = vld [vmem:[%s5 + $0x58] sm:$0xff]
  %v3593 = vld [vmem:[%s5 + $0x60] sm:$0xff]
  %v3594 = vld [vmem:[%s5 + $0x68] sm:$0xff]
  %v3595 = vld [vmem:[%s5 + $0x70] sm:$0xff]
  %v3596 = vld [vmem:[%s5 + $0x78] sm:$0xff]
  %v3597 = vld [vmem:[%s5 + $0x80] sm:$0xff]
  %v3598 = vld [vmem:[%s5 + $0x88] sm:$0xff]
  %v3599 = vld [vmem:[%s5 + $0x90] sm:$0xff]
  %v3600 = vld [vmem:[%s5 + $0x98] sm:$0xff]
  %v3601 = vld [vmem:[%s5 + $0xa0] sm:$0xff]
  %v3602 = vld [vmem:[%s5 + $0xa8] sm:$0xff]
  %v3603 = vld [vmem:[%s5 + $0xb0] sm:$0xff]
  %v3604 = vld [vmem:[%s5 + $0xb8] sm:$0xff]
  %v3605 = vld [vmem:[%s5 + $0xc0] sm:$0xff]
  %v3606 = vld [vmem:[%s5 + $0xc8] sm:$0xff]
  %v3607 = vld [vmem:[%s5 + $0xd0] sm:$0xff]
  %v3608 = vld [vmem:[%s5 + $0xd8] sm:$0xff]
  %v3609 = vld [vmem:[%s5 + $0xe0] sm:$0xff]
  %v3610 = vld [vmem:[%s5 + $0xe8] sm:$0xff]
  %v3611 = vld [vmem:[%s5 + $0xf0] sm:$0xff]
  %v3612 = vld [vmem:[%s5 + $0xf8] sm:$0xff]
  %v3613 = vld [vmem:[%s5 + $0x100] sm:$0xff]
  %v3614 = vld [vmem:[%s5 + $0x108] sm:$0xff]
  %v3615 = vld [vmem:[%s5 + $0x110] sm:$0xff]
  %v3616 = vld [vmem:[%s5 + $0x118] sm:$0xff]
  %v3617 = vld [vmem:[%s5 + $0x120] sm:$0xff]
  %v3618 = vld [vmem:[%s5 + $0x128] sm:$0xff]
  %v3619 = vld [vmem:[%s5 + $0x130] sm:$0xff]
  %v3620 = vld [vmem:[%s5 + $0x138] sm:$0xff]
  %v3621 = vld [vmem:[%s5 + $0x140] sm:$0xff]
  %v3622 = vld [vmem:[%s5 + $0x148] sm:$0xff]
  %v3623 = vld [vmem:[%s5 + $0x150] sm:$0xff]
  %v3624 = vld [vmem:[%s5 + $0x158] sm:$0xff]
  %v3625 = vld [vmem:[%s5 + $0x160] sm:$0xff]
  %v3626 = vld [vmem:[%s5 + $0x168] sm:$0xff]
  %v3627 = vld [vmem:[%s5 + $0x170] sm:$0xff]
  %v3628 = vld [vmem:[%s5 + $0x178] sm:$0xff]
  %v3629 = vld [vmem:[%s5 + $0x180] sm:$0xff]
  %v3630 = vld [vmem:[%s5 + $0x188] sm:$0xff]
  %v3631 = vld [vmem:[%s5 + $0x190] sm:$0xff]
  %v3632 = vld [vmem:[%s5 + $0x198] sm:$0xff]
  %v3633 = vld [vmem:[%s5 + $0x1a0] sm:$0xff]
  %v3634 = vld [vmem:[%s5 + $0x1a8] sm:$0xff]
  %v3635 = vld [vmem:[%s5 + $0x1b0] sm:$0xff]
  %v3636 = vld [vmem:[%s5 + $0x1b8] sm:$0xff]
  %v3637 = vld [vmem:[%s5 + $0x1c0] sm:$0xff]
  %v3638 = vld [vmem:[%s5 + $0x1c8] sm:$0xff]
  %v3639 = vld [vmem:[%s5 + $0x1d0] sm:$0xff]
  %v3640 = vld [vmem:[%s5 + $0x1d8] sm:$0xff]
  %v3641 = vld [vmem:[%s5 + $0x1e0] sm:$0xff]
  %v3642 = vld [vmem:[%s5 + $0x1e8] sm:$0xff]
  %v3643 = vld [vmem:[%s5 + $0x1f0] sm:$0xff]
  %v3644 = vld [vmem:[%s5 + $0x1f8] sm:$0xff]
  %v3646 = vrot.slane %v3575, 6
  %3648 = vmatprep.subr.mxu0 %v3582
  %3649 = vmatpush1.msra.mxu0 %v3581
  %3650 = vmatprep.subr.mxu0 %v3586
  %3651 = vmatpush1.msra.mxu0 %v3585
  %3652 = vmatprep.subr.mxu0 %v3590
  %3653 = vmatpush1.msra.mxu0 %v3589
  %3654 = vmatprep.subr.mxu0 %v3594
  %3655 = vmatpush1.msra.mxu0 %v3593
  %3656 = vmatprep.subr.mxu0 %v3598
  %3657 = vmatpush1.msra.mxu0 %v3597
  %3658 = vmatprep.subr.mxu0 %v3602
  %3659 = vmatpush1.msra.mxu0 %v3601
  %3660 = vmatprep.subr.mxu0 %v3606
  %3661 = vmatpush1.msra.mxu0 %v3605
  %3662 = vmatprep.subr.mxu0 %v3610
  %3663 = vmatpush1.msra.mxu0 %v3609
  %3664 = vmatprep.subr.mxu0 %v3614
  %3665 = vmatpush1.msra.mxu0 %v3613
  %3666 = vmatprep.subr.mxu0 %v3618
  %3667 = vmatpush1.msra.mxu0 %v3617
  %3668 = vmatprep.subr.mxu0 %v3622
  %3669 = vmatpush1.msra.mxu0 %v3621
  %3670 = vmatprep.subr.mxu0 %v3626
  %3671 = vmatpush1.msra.mxu0 %v3625
  %3672 = vmatprep.subr.mxu0 %v3630
  %3673 = vmatpush1.msra.mxu0 %v3629
  %3674 = vmatprep.subr.mxu0 %v3634
  %3675 = vmatpush1.msra.mxu0 %v3633
  %3676 = vmatprep.subr.mxu0 %v3638
  %3677 = vmatpush1.msra.mxu0 %v3637
  %3678 = vmatprep.subr.mxu0 %v3642
  %3679 = vmatpush1.msra.mxu0 %v3641
  %3680 = vmatprep.subr.mxu0 0.0
  %3681 = vmatpush1.msra.mxu0 0.0
  %3682 = vmatprep.subr.mxu0 0.0
  %3683 = vmatpush1.msra.mxu0 0.0
  %3684 = vmatprep.subr.mxu0 0.0
  %3685 = vmatpush1.msra.mxu0 0.0
  %3686 = vmatprep.subr.mxu0 0.0
  %3687 = vmatpush1.msra.mxu0 0.0
  %3688 = vmatprep.subr.mxu0 0.0
  %3689 = vmatpush1.msra.mxu0 0.0
  %3690 = vmatprep.subr.mxu0 0.0
  %3691 = vmatpush1.msra.mxu0 0.0
  %3692 = vmatprep.subr.mxu0 0.0
  %3693 = vmatpush1.msra.mxu0 0.0
  %3694 = vmatprep.subr.mxu0 0.0
  %3695 = vmatpush1.msra.mxu0 0.0
  %3696 = vmatprep.subr.mxu0 0.0
  %3697 = vmatpush1.msra.mxu0 0.0
  %3698 = vmatprep.subr.mxu0 0.0
  %3699 = vmatpush1.msra.mxu0 0.0
  %3700 = vmatprep.subr.mxu0 0.0
  %3701 = vmatpush1.msra.mxu0 0.0
  %3702 = vmatprep.subr.mxu0 0.0
  %3703 = vmatpush1.msra.mxu0 0.0
  %3704 = vmatprep.subr.mxu0 0.0
  %3705 = vmatpush1.msra.mxu0 0.0
  %3706 = vmatprep.subr.mxu0 0.0
  %3707 = vmatpush1.msra.mxu0 0.0
  %3708 = vmatprep.subr.mxu0 0.0
  %3709 = vmatpush1.msra.mxu0 0.0
  %3710 = vmatprep.subr.mxu0 0.0
  %3711 = vmatpush1.msra.mxu0 0.0
  %3712 = vmatprep.mubr.f32.mxu0 0.0
  %3713 = vmatmul.mubr.f32.gmra.mrb[0].mxu0 %v3646
  %v3714 = vpop.f32.mrb[0].mxu0
  %v3715 = vadd.f32 0.0, %v3714
  %v3716 = vpop.f32.mrb[0].mxu0
  %v3717 = vadd.f32 0.0, %v3716
  %3718 = vdwg.mxu0
  %3719 = vmatprep.subr.mxu0 %v3584
  %3720 = vmatpush1.msra.mxu0 %v3583
  %3721 = vmatprep.subr.mxu0 %v3588
  %3722 = vmatpush1.msra.mxu0 %v3587
  %3723 = vmatprep.subr.mxu0 %v3592
  %3724 = vmatpush1.msra.mxu0 %v3591
  %3725 = vmatprep.subr.mxu0 %v3596
  %3726 = vmatpush1.msra.mxu0 %v3595
  %3727 = vmatprep.subr.mxu0 %v3600
  %3728 = vmatpush1.msra.mxu0 %v3599
  %3729 = vmatprep.subr.mxu0 %v3604
  %3730 = vmatpush1.msra.mxu0 %v3603
  %3731 = vmatprep.subr.mxu0 %v3608
  %3732 = vmatpush1.msra.mxu0 %v3607
  %3733 = vmatprep.subr.mxu0 %v3612
  %3734 = vmatpush1.msra.mxu0 %v3611
  %3735 = vmatprep.subr.mxu0 %v3616
  %3736 = vmatpush1.msra.mxu0 %v3615
  %3737 = vmatprep.subr.mxu0 %v3620
  %3738 = vmatpush1.msra.mxu0 %v3619
  %3739 = vmatprep.subr.mxu0 %v3624
  %3740 = vmatpush1.msra.mxu0 %v3623
  %3741 = vmatprep.subr.mxu0 %v3628
  %3742 = vmatpush1.msra.mxu0 %v3627
  %3743 = vmatprep.subr.mxu0 %v3632
  %3744 = vmatpush1.msra.mxu0 %v3631
  %3745 = vmatprep.subr.mxu0 %v3636
  %3746 = vmatpush1.msra.mxu0 %v3635
  %3747 = vmatprep.subr.mxu0 %v3640
  %3748 = vmatpush1.msra.mxu0 %v3639
  %3749 = vmatprep.subr.mxu0 %v3644
  %3750 = vmatpush1.msra.mxu0 %v3643
  %3751 = vmatprep.subr.mxu0 0.0
  %3752 = vmatpush1.msra.mxu0 0.0
  %3753 = vmatprep.subr.mxu0 0.0
  %3754 = vmatpush1.msra.mxu0 0.0
  %3755 = vmatprep.subr.mxu0 0.0
  %3756 = vmatpush1.msra.mxu0 0.0
  %3757 = vmatprep.subr.mxu0 0.0
  %3758 = vmatpush1.msra.mxu0 0.0
  %3759 = vmatprep.subr.mxu0 0.0
  %3760 = vmatpush1.msra.mxu0 0.0
  %3761 = vmatprep.subr.mxu0 0.0
  %3762 = vmatpush1.msra.mxu0 0.0
  %3763 = vmatprep.subr.mxu0 0.0
  %3764 = vmatpush1.msra.mxu0 0.0
  %3765 = vmatprep.subr.mxu0 0.0
  %3766 = vmatpush1.msra.mxu0 0.0
  %3767 = vmatprep.subr.mxu0 0.0
  %3768 = vmatpush1.msra.mxu0 0.0
  %3769 = vmatprep.subr.mxu0 0.0
  %3770 = vmatpush1.msra.mxu0 0.0
  %3771 = vmatprep.subr.mxu0 0.0
  %3772 = vmatpush1.msra.mxu0 0.0
  %3773 = vmatprep.subr.mxu0 0.0
  %3774 = vmatpush1.msra.mxu0 0.0
  %3775 = vmatprep.subr.mxu0 0.0
  %3776 = vmatpush1.msra.mxu0 0.0
  %3777 = vmatprep.subr.mxu0 0.0
  %3778 = vmatpush1.msra.mxu0 0.0
  %3779 = vmatprep.subr.mxu0 0.0
  %3780 = vmatpush1.msra.mxu0 0.0
  %3781 = vmatprep.subr.mxu0 0.0
  %3782 = vmatpush1.msra.mxu0 0.0
  %3783 = vmatprep.mubr.f32.mxu0 0.0
  %3784 = vmatmul.mubr.f32.gmra.mrb[0].mxu0 %v3646
  %v3785 = vpop.f32.mrb[0].mxu0
  %v3786 = vadd.f32 0.0, %v3785
  %v3787 = vpop.f32.mrb[0].mxu0
  %v3788 = vadd.f32 0.0, %v3787
  %3789 = vdwg.mxu0
  %v3790 = vadd.f32 %v3577, %v3715
  %v3791 = vadd.f32 %v3578, %v3717
  %v3792 = vadd.f32 %v3579, %v3786
  %v3793 = vadd.f32 %v3580, %v3788
  %v3794 = vxor.u32 %v3790, 2147483648
  %v3795 = vmul.f32 %v3794, 1.442695
  %v3796 = vpow.pop %v3795
  %v3797 = vadd.f32 %v3796, 1.0
  %v3798 = vrcp.pop %v3797
  %v3799 = vmul.f32 1.0, %v3798
  %v3800 = vxor.u32 %v3791, 2147483648
  %v3801 = vmul.f32 %v3800, 1.442695
  %v3802 = vpow.pop %v3801
  %v3803 = vadd.f32 %v3802, 1.0
  %v3804 = vrcp.pop %v3803
  %v3805 = vmul.f32 1.0, %v3804
  %v3806 = vtanh.pop %v3792
  %v3807 = vxor.u32 %v3793, 2147483648
  %v3808 = vmul.f32 %v3807, 1.442695
  %v3809 = vpow.pop %v3808
  %v3810 = vadd.f32 %v3809, 1.0
  %v3811 = vrcp.pop %v3810
  %v3812 = vmul.f32 1.0, %v3811
  %v3814 = vrot.slane %v3573, 6
  %v3816 = vmul.f32 %v3805, %v3814
  %v3817 = vmul.f32 %v3799, %v3806
  %v3818 = vadd.f32 %v3816, %v3817
  %v3819 = vtanh.pop %v3818
  %v3820 = vmul.f32 %v3812, %v3819
  %3821 = vst [vmem:[#allocation2 + $0x8] sm:$0x3] %v3820
  %v3822 = vld [vmem:[#allocation3 + $0x20] sm:$0xc]
  %v3823 = vld [vmem:[#allocation3 + $0x28] sm:$0xc]
  %v3824 = vld [vmem:[#allocation3 + $0x30] sm:$0xc]
  %v3825 = vld [vmem:[#allocation3 + $0x38] sm:$0xc]
  %v3826 = vld [vmem:[%s5] sm:$0xff]
  %v3827 = vld [vmem:[%s5 + $0x8] sm:$0xff]
  %v3828 = vld [vmem:[%s5 + $0x10] sm:$0xff]
  %v3829 = vld [vmem:[%s5 + $0x18] sm:$0xff]
  %v3830 = vld [vmem:[%s5 + $0x20] sm:$0xff]
  %v3831 = vld [vmem:[%s5 + $0x28] sm:$0xff]
  %v3832 = vld [vmem:[%s5 + $0x30] sm:$0xff]
  %v3833 = vld [vmem:[%s5 + $0x38] sm:$0xff]
  %v3834 = vld [vmem:[%s5 + $0x40] sm:$0xff]
  %v3835 = vld [vmem:[%s5 + $0x48] sm:$0xff]
  %v3836 = vld [vmem:[%s5 + $0x50] sm:$0xff]
  %v3837 = vld [vmem:[%s5 + $0x58] sm:$0xff]
  %v3838 = vld [vmem:[%s5 + $0x60] sm:$0xff]
  %v3839 = vld [vmem:[%s5 + $0x68] sm:$0xff]
  %v3840 = vld [vmem:[%s5 + $0x70] sm:$0xff]
  %v3841 = vld [vmem:[%s5 + $0x78] sm:$0xff]
  %v3842 = vld [vmem:[%s5 + $0x80] sm:$0xff]
  %v3843 = vld [vmem:[%s5 + $0x88] sm:$0xff]
  %v3844 = vld [vmem:[%s5 + $0x90] sm:$0xff]
  %v3845 = vld [vmem:[%s5 + $0x98] sm:$0xff]
  %v3846 = vld [vmem:[%s5 + $0xa0] sm:$0xff]
  %v3847 = vld [vmem:[%s5 + $0xa8] sm:$0xff]
  %v3848 = vld [vmem:[%s5 + $0xb0] sm:$0xff]
  %v3849 = vld [vmem:[%s5 + $0xb8] sm:$0xff]
  %v3850 = vld [vmem:[%s5 + $0xc0] sm:$0xff]
  %v3851 = vld [vmem:[%s5 + $0xc8] sm:$0xff]
  %v3852 = vld [vmem:[%s5 + $0xd0] sm:$0xff]
  %v3853 = vld [vmem:[%s5 + $0xd8] sm:$0xff]
  %v3854 = vld [vmem:[%s5 + $0xe0] sm:$0xff]
  %v3855 = vld [vmem:[%s5 + $0xe8] sm:$0xff]
  %v3856 = vld [vmem:[%s5 + $0xf0] sm:$0xff]
  %v3857 = vld [vmem:[%s5 + $0xf8] sm:$0xff]
  %v3858 = vld [vmem:[%s5 + $0x100] sm:$0xff]
  %v3859 = vld [vmem:[%s5 + $0x108] sm:$0xff]
  %v3860 = vld [vmem:[%s5 + $0x110] sm:$0xff]
  %v3861 = vld [vmem:[%s5 + $0x118] sm:$0xff]
  %v3862 = vld [vmem:[%s5 + $0x120] sm:$0xff]
  %v3863 = vld [vmem:[%s5 + $0x128] sm:$0xff]
  %v3864 = vld [vmem:[%s5 + $0x130] sm:$0xff]
  %v3865 = vld [vmem:[%s5 + $0x138] sm:$0xff]
  %v3866 = vld [vmem:[%s5 + $0x140] sm:$0xff]
  %v3867 = vld [vmem:[%s5 + $0x148] sm:$0xff]
  %v3868 = vld [vmem:[%s5 + $0x150] sm:$0xff]
  %v3869 = vld [vmem:[%s5 + $0x158] sm:$0xff]
  %v3870 = vld [vmem:[%s5 + $0x160] sm:$0xff]
  %v3871 = vld [vmem:[%s5 + $0x168] sm:$0xff]
  %v3872 = vld [vmem:[%s5 + $0x170] sm:$0xff]
  %v3873 = vld [vmem:[%s5 + $0x178] sm:$0xff]
  %v3874 = vld [vmem:[%s5 + $0x180] sm:$0xff]
  %v3875 = vld [vmem:[%s5 + $0x188] sm:$0xff]
  %v3876 = vld [vmem:[%s5 + $0x190] sm:$0xff]
  %v3877 = vld [vmem:[%s5 + $0x198] sm:$0xff]
  %v3878 = vld [vmem:[%s5 + $0x1a0] sm:$0xff]
  %v3879 = vld [vmem:[%s5 + $0x1a8] sm:$0xff]
  %v3880 = vld [vmem:[%s5 + $0x1b0] sm:$0xff]
  %v3881 = vld [vmem:[%s5 + $0x1b8] sm:$0xff]
  %v3882 = vld [vmem:[%s5 + $0x1c0] sm:$0xff]
  %v3883 = vld [vmem:[%s5 + $0x1c8] sm:$0xff]
  %v3884 = vld [vmem:[%s5 + $0x1d0] sm:$0xff]
  %v3885 = vld [vmem:[%s5 + $0x1d8] sm:$0xff]
  %v3886 = vld [vmem:[%s5 + $0x1e0] sm:$0xff]
  %v3887 = vld [vmem:[%s5 + $0x1e8] sm:$0xff]
  %v3888 = vld [vmem:[%s5 + $0x1f0] sm:$0xff]
  %v3889 = vld [vmem:[%s5 + $0x1f8] sm:$0xff]
  %3890 = vmatprep.subr.mxu0 %v3827
  %3891 = vmatpush1.msra.mxu0 %v3826
  %3892 = vmatprep.subr.mxu0 %v3831
  %3893 = vmatpush1.msra.mxu0 %v3830
  %3894 = vmatprep.subr.mxu0 %v3835
  %3895 = vmatpush1.msra.mxu0 %v3834
  %3896 = vmatprep.subr.mxu0 %v3839
  %3897 = vmatpush1.msra.mxu0 %v3838
  %3898 = vmatprep.subr.mxu0 %v3843
  %3899 = vmatpush1.msra.mxu0 %v3842
  %3900 = vmatprep.subr.mxu0 %v3847
  %3901 = vmatpush1.msra.mxu0 %v3846
  %3902 = vmatprep.subr.mxu0 %v3851
  %3903 = vmatpush1.msra.mxu0 %v3850
  %3904 = vmatprep.subr.mxu0 %v3855
  %3905 = vmatpush1.msra.mxu0 %v3854
  %3906 = vmatprep.subr.mxu0 %v3859
  %3907 = vmatpush1.msra.mxu0 %v3858
  %3908 = vmatprep.subr.mxu0 %v3863
  %3909 = vmatpush1.msra.mxu0 %v3862
  %3910 = vmatprep.subr.mxu0 %v3867
  %3911 = vmatpush1.msra.mxu0 %v3866
  %3912 = vmatprep.subr.mxu0 %v3871
  %3913 = vmatpush1.msra.mxu0 %v3870
  %3914 = vmatprep.subr.mxu0 %v3875
  %3915 = vmatpush1.msra.mxu0 %v3874
  %3916 = vmatprep.subr.mxu0 %v3879
  %3917 = vmatpush1.msra.mxu0 %v3878
  %3918 = vmatprep.subr.mxu0 %v3883
  %3919 = vmatpush1.msra.mxu0 %v3882
  %3920 = vmatprep.subr.mxu0 %v3887
  %3921 = vmatpush1.msra.mxu0 %v3886
  %3922 = vmatprep.subr.mxu0 0.0
  %3923 = vmatpush1.msra.mxu0 0.0
  %3924 = vmatprep.subr.mxu0 0.0
  %3925 = vmatpush1.msra.mxu0 0.0
  %3926 = vmatprep.subr.mxu0 0.0
  %3927 = vmatpush1.msra.mxu0 0.0
  %3928 = vmatprep.subr.mxu0 0.0
  %3929 = vmatpush1.msra.mxu0 0.0
  %3930 = vmatprep.subr.mxu0 0.0
  %3931 = vmatpush1.msra.mxu0 0.0
  %3932 = vmatprep.subr.mxu0 0.0
  %3933 = vmatpush1.msra.mxu0 0.0
  %3934 = vmatprep.subr.mxu0 0.0
  %3935 = vmatpush1.msra.mxu0 0.0
  %3936 = vmatprep.subr.mxu0 0.0
  %3937 = vmatpush1.msra.mxu0 0.0
  %3938 = vmatprep.subr.mxu0 0.0
  %3939 = vmatpush1.msra.mxu0 0.0
  %3940 = vmatprep.subr.mxu0 0.0
  %3941 = vmatpush1.msra.mxu0 0.0
  %3942 = vmatprep.subr.mxu0 0.0
  %3943 = vmatpush1.msra.mxu0 0.0
  %3944 = vmatprep.subr.mxu0 0.0
  %3945 = vmatpush1.msra.mxu0 0.0
  %3946 = vmatprep.subr.mxu0 0.0
  %3947 = vmatpush1.msra.mxu0 0.0
  %3948 = vmatprep.subr.mxu0 0.0
  %3949 = vmatpush1.msra.mxu0 0.0
  %3950 = vmatprep.subr.mxu0 0.0
  %3951 = vmatpush1.msra.mxu0 0.0
  %3952 = vmatprep.subr.mxu0 0.0
  %3953 = vmatpush1.msra.mxu0 0.0
  %3954 = vmatprep.mubr.f32.mxu0 0.0
  %3955 = vmatmul.mubr.f32.gmra.mrb[0].mxu0 %v3820
  %v3956 = vpop.f32.mrb[0].mxu0
  %v3957 = vadd.f32 0.0, %v3956
  %v3958 = vpop.f32.mrb[0].mxu0
  %v3959 = vadd.f32 0.0, %v3958
  %3960 = vdwg.mxu0
  %3961 = vmatprep.subr.mxu0 %v3829
  %3962 = vmatpush1.msra.mxu0 %v3828
  %3963 = vmatprep.subr.mxu0 %v3833
  %3964 = vmatpush1.msra.mxu0 %v3832
  %3965 = vmatprep.subr.mxu0 %v3837
  %3966 = vmatpush1.msra.mxu0 %v3836
  %3967 = vmatprep.subr.mxu0 %v3841
  %3968 = vmatpush1.msra.mxu0 %v3840
  %3969 = vmatprep.subr.mxu0 %v3845
  %3970 = vmatpush1.msra.mxu0 %v3844
  %3971 = vmatprep.subr.mxu0 %v3849
  %3972 = vmatpush1.msra.mxu0 %v3848
  %3973 = vmatprep.subr.mxu0 %v3853
  %3974 = vmatpush1.msra.mxu0 %v3852
  %3975 = vmatprep.subr.mxu0 %v3857
  %3976 = vmatpush1.msra.mxu0 %v3856
  %3977 = vmatprep.subr.mxu0 %v3861
  %3978 = vmatpush1.msra.mxu0 %v3860
  %3979 = vmatprep.subr.mxu0 %v3865
  %3980 = vmatpush1.msra.mxu0 %v3864
  %3981 = vmatprep.subr.mxu0 %v3869
  %3982 = vmatpush1.msra.mxu0 %v3868
  %3983 = vmatprep.subr.mxu0 %v3873
  %3984 = vmatpush1.msra.mxu0 %v3872
  %3985 = vmatprep.subr.mxu0 %v3877
  %3986 = vmatpush1.msra.mxu0 %v3876
  %3987 = vmatprep.subr.mxu0 %v3881
  %3988 = vmatpush1.msra.mxu0 %v3880
  %3989 = vmatprep.subr.mxu0 %v3885
  %3990 = vmatpush1.msra.mxu0 %v3884
  %3991 = vmatprep.subr.mxu0 %v3889
  %3992 = vmatpush1.msra.mxu0 %v3888
  %3993 = vmatprep.subr.mxu0 0.0
  %3994 = vmatpush1.msra.mxu0 0.0
  %3995 = vmatprep.subr.mxu0 0.0
  %3996 = vmatpush1.msra.mxu0 0.0
  %3997 = vmatprep.subr.mxu0 0.0
  %3998 = vmatpush1.msra.mxu0 0.0
  %3999 = vmatprep.subr.mxu0 0.0
  %4000 = vmatpush1.msra.mxu0 0.0
  %4001 = vmatprep.subr.mxu0 0.0
  %4002 = vmatpush1.msra.mxu0 0.0
  %4003 = vmatprep.subr.mxu0 0.0
  %4004 = vmatpush1.msra.mxu0 0.0
  %4005 = vmatprep.subr.mxu0 0.0
  %4006 = vmatpush1.msra.mxu0 0.0
  %4007 = vmatprep.subr.mxu0 0.0
  %4008 = vmatpush1.msra.mxu0 0.0
  %4009 = vmatprep.subr.mxu0 0.0
  %4010 = vmatpush1.msra.mxu0 0.0
  %4011 = vmatprep.subr.mxu0 0.0
  %4012 = vmatpush1.msra.mxu0 0.0
  %4013 = vmatprep.subr.mxu0 0.0
  %4014 = vmatpush1.msra.mxu0 0.0
  %4015 = vmatprep.subr.mxu0 0.0
  %4016 = vmatpush1.msra.mxu0 0.0
  %4017 = vmatprep.subr.mxu0 0.0
  %4018 = vmatpush1.msra.mxu0 0.0
  %4019 = vmatprep.subr.mxu0 0.0
  %4020 = vmatpush1.msra.mxu0 0.0
  %4021 = vmatprep.subr.mxu0 0.0
  %4022 = vmatpush1.msra.mxu0 0.0
  %4023 = vmatprep.subr.mxu0 0.0
  %4024 = vmatpush1.msra.mxu0 0.0
  %4025 = vmatprep.mubr.f32.mxu0 0.0
  %4026 = vmatmul.mubr.f32.gmra.mrb[0].mxu0 %v3820
  %v4027 = vpop.f32.mrb[0].mxu0
  %v4028 = vadd.f32 0.0, %v4027
  %v4029 = vpop.f32.mrb[0].mxu0
  %v4030 = vadd.f32 0.0, %v4029
  %4031 = vdwg.mxu0
  %v4036 = vrot.slane %v3957, 6
  %v4037 = vrot.slane %v3959, 6
  %v4038 = vrot.slane %v4028, 6
  %v4039 = vrot.slane %v4030, 6
  %v4044 = vadd.f32 %v3822, %v4036
  %v4045 = vadd.f32 %v3823, %v4037
  %v4046 = vadd.f32 %v3824, %v4038
  %v4047 = vadd.f32 %v3825, %v4039
  %v4048 = vxor.u32 %v4044, 2147483648
  %v4049 = vmul.f32 %v4048, 1.442695
  %v4050 = vpow.pop %v4049
  %v4051 = vadd.f32 %v4050, 1.0
  %v4052 = vrcp.pop %v4051
  %v4053 = vmul.f32 1.0, %v4052
  %v4054 = vxor.u32 %v4045, 2147483648
  %v4055 = vmul.f32 %v4054, 1.442695
  %v4056 = vpow.pop %v4055
  %v4057 = vadd.f32 %v4056, 1.0
  %v4058 = vrcp.pop %v4057
  %v4059 = vmul.f32 1.0, %v4058
  %v4060 = vtanh.pop %v4046
  %v4061 = vxor.u32 %v4047, 2147483648
  %v4062 = vmul.f32 %v4061, 1.442695
  %v4063 = vpow.pop %v4062
  %v4064 = vadd.f32 %v4063, 1.0
  %v4065 = vrcp.pop %v4064
  %v4066 = vmul.f32 1.0, %v4065
  %v4068 = vrot.slane %v3818, 6
  %v4070 = vmul.f32 %v4059, %v4068
  %v4071 = vmul.f32 %v4053, %v4060
  %v4072 = vadd.f32 %v4070, %v4071
  %v4073 = vtanh.pop %v4072
  %v4074 = vmul.f32 %v4066, %v4073
  %4075 = vst [vmem:[#allocation2 + $0x8] sm:$0xc] %v4074
  %v4076 = vld [vmem:[#allocation3 + $0x20] sm:$0x30]
  %v4077 = vld [vmem:[#allocation3 + $0x28] sm:$0x30]
  %v4078 = vld [vmem:[#allocation3 + $0x30] sm:$0x30]
  %v4079 = vld [vmem:[#allocation3 + $0x38] sm:$0x30]
  %v4080 = vld [vmem:[%s5] sm:$0xff]
  %v4081 = vld [vmem:[%s5 + $0x8] sm:$0xff]
  %v4082 = vld [vmem:[%s5 + $0x10] sm:$0xff]
  %v4083 = vld [vmem:[%s5 + $0x18] sm:$0xff]
  %v4084 = vld [vmem:[%s5 + $0x20] sm:$0xff]
  %v4085 = vld [vmem:[%s5 + $0x28] sm:$0xff]
  %v4086 = vld [vmem:[%s5 + $0x30] sm:$0xff]
  %v4087 = vld [vmem:[%s5 + $0x38] sm:$0xff]
  %v4088 = vld [vmem:[%s5 + $0x40] sm:$0xff]
  %v4089 = vld [vmem:[%s5 + $0x48] sm:$0xff]
  %v4090 = vld [vmem:[%s5 + $0x50] sm:$0xff]
  %v4091 = vld [vmem:[%s5 + $0x58] sm:$0xff]
  %v4092 = vld [vmem:[%s5 + $0x60] sm:$0xff]
  %v4093 = vld [vmem:[%s5 + $0x68] sm:$0xff]
  %v4094 = vld [vmem:[%s5 + $0x70] sm:$0xff]
  %v4095 = vld [vmem:[%s5 + $0x78] sm:$0xff]
  %v4096 = vld [vmem:[%s5 + $0x80] sm:$0xff]
  %v4097 = vld [vmem:[%s5 + $0x88] sm:$0xff]
  %v4098 = vld [vmem:[%s5 + $0x90] sm:$0xff]
  %v4099 = vld [vmem:[%s5 + $0x98] sm:$0xff]
  %v4100 = vld [vmem:[%s5 + $0xa0] sm:$0xff]
  %v4101 = vld [vmem:[%s5 + $0xa8] sm:$0xff]
  %v4102 = vld [vmem:[%s5 + $0xb0] sm:$0xff]
  %v4103 = vld [vmem:[%s5 + $0xb8] sm:$0xff]
  %v4104 = vld [vmem:[%s5 + $0xc0] sm:$0xff]
  %v4105 = vld [vmem:[%s5 + $0xc8] sm:$0xff]
  %v4106 = vld [vmem:[%s5 + $0xd0] sm:$0xff]
  %v4107 = vld [vmem:[%s5 + $0xd8] sm:$0xff]
  %v4108 = vld [vmem:[%s5 + $0xe0] sm:$0xff]
  %v4109 = vld [vmem:[%s5 + $0xe8] sm:$0xff]
  %v4110 = vld [vmem:[%s5 + $0xf0] sm:$0xff]
  %v4111 = vld [vmem:[%s5 + $0xf8] sm:$0xff]
  %v4112 = vld [vmem:[%s5 + $0x100] sm:$0xff]
  %v4113 = vld [vmem:[%s5 + $0x108] sm:$0xff]
  %v4114 = vld [vmem:[%s5 + $0x110] sm:$0xff]
  %v4115 = vld [vmem:[%s5 + $0x118] sm:$0xff]
  %v4116 = vld [vmem:[%s5 + $0x120] sm:$0xff]
  %v4117 = vld [vmem:[%s5 + $0x128] sm:$0xff]
  %v4118 = vld [vmem:[%s5 + $0x130] sm:$0xff]
  %v4119 = vld [vmem:[%s5 + $0x138] sm:$0xff]
  %v4120 = vld [vmem:[%s5 + $0x140] sm:$0xff]
  %v4121 = vld [vmem:[%s5 + $0x148] sm:$0xff]
  %v4122 = vld [vmem:[%s5 + $0x150] sm:$0xff]
  %v4123 = vld [vmem:[%s5 + $0x158] sm:$0xff]
  %v4124 = vld [vmem:[%s5 + $0x160] sm:$0xff]
  %v4125 = vld [vmem:[%s5 + $0x168] sm:$0xff]
  %v4126 = vld [vmem:[%s5 + $0x170] sm:$0xff]
  %v4127 = vld [vmem:[%s5 + $0x178] sm:$0xff]
  %v4128 = vld [vmem:[%s5 + $0x180] sm:$0xff]
  %v4129 = vld [vmem:[%s5 + $0x188] sm:$0xff]
  %v4130 = vld [vmem:[%s5 + $0x190] sm:$0xff]
  %v4131 = vld [vmem:[%s5 + $0x198] sm:$0xff]
  %v4132 = vld [vmem:[%s5 + $0x1a0] sm:$0xff]
  %v4133 = vld [vmem:[%s5 + $0x1a8] sm:$0xff]
  %v4134 = vld [vmem:[%s5 + $0x1b0] sm:$0xff]
  %v4135 = vld [vmem:[%s5 + $0x1b8] sm:$0xff]
  %v4136 = vld [vmem:[%s5 + $0x1c0] sm:$0xff]
  %v4137 = vld [vmem:[%s5 + $0x1c8] sm:$0xff]
  %v4138 = vld [vmem:[%s5 + $0x1d0] sm:$0xff]
  %v4139 = vld [vmem:[%s5 + $0x1d8] sm:$0xff]
  %v4140 = vld [vmem:[%s5 + $0x1e0] sm:$0xff]
  %v4141 = vld [vmem:[%s5 + $0x1e8] sm:$0xff]
  %v4142 = vld [vmem:[%s5 + $0x1f0] sm:$0xff]
  %v4143 = vld [vmem:[%s5 + $0x1f8] sm:$0xff]
  %v4145 = vrot.slane %v4074, 2
  %4147 = vmatprep.subr.mxu0 %v4081
  %4148 = vmatpush1.msra.mxu0 %v4080
  %4149 = vmatprep.subr.mxu0 %v4085
  %4150 = vmatpush1.msra.mxu0 %v4084
  %4151 = vmatprep.subr.mxu0 %v4089
  %4152 = vmatpush1.msra.mxu0 %v4088
  %4153 = vmatprep.subr.mxu0 %v4093
  %4154 = vmatpush1.msra.mxu0 %v4092
  %4155 = vmatprep.subr.mxu0 %v4097
  %4156 = vmatpush1.msra.mxu0 %v4096
  %4157 = vmatprep.subr.mxu0 %v4101
  %4158 = vmatpush1.msra.mxu0 %v4100
  %4159 = vmatprep.subr.mxu0 %v4105
  %4160 = vmatpush1.msra.mxu0 %v4104
  %4161 = vmatprep.subr.mxu0 %v4109
  %4162 = vmatpush1.msra.mxu0 %v4108
  %4163 = vmatprep.subr.mxu0 %v4113
  %4164 = vmatpush1.msra.mxu0 %v4112
  %4165 = vmatprep.subr.mxu0 %v4117
  %4166 = vmatpush1.msra.mxu0 %v4116
  %4167 = vmatprep.subr.mxu0 %v4121
  %4168 = vmatpush1.msra.mxu0 %v4120
  %4169 = vmatprep.subr.mxu0 %v4125
  %4170 = vmatpush1.msra.mxu0 %v4124
  %4171 = vmatprep.subr.mxu0 %v4129
  %4172 = vmatpush1.msra.mxu0 %v4128
  %4173 = vmatprep.subr.mxu0 %v4133
  %4174 = vmatpush1.msra.mxu0 %v4132
  %4175 = vmatprep.subr.mxu0 %v4137
  %4176 = vmatpush1.msra.mxu0 %v4136
  %4177 = vmatprep.subr.mxu0 %v4141
  %4178 = vmatpush1.msra.mxu0 %v4140
  %4179 = vmatprep.subr.mxu0 0.0
  %4180 = vmatpush1.msra.mxu0 0.0
  %4181 = vmatprep.subr.mxu0 0.0
  %4182 = vmatpush1.msra.mxu0 0.0
  %4183 = vmatprep.subr.mxu0 0.0
  %4184 = vmatpush1.msra.mxu0 0.0
  %4185 = vmatprep.subr.mxu0 0.0
  %4186 = vmatpush1.msra.mxu0 0.0
  %4187 = vmatprep.subr.mxu0 0.0
  %4188 = vmatpush1.msra.mxu0 0.0
  %4189 = vmatprep.subr.mxu0 0.0
  %4190 = vmatpush1.msra.mxu0 0.0
  %4191 = vmatprep.subr.mxu0 0.0
  %4192 = vmatpush1.msra.mxu0 0.0
  %4193 = vmatprep.subr.mxu0 0.0
  %4194 = vmatpush1.msra.mxu0 0.0
  %4195 = vmatprep.subr.mxu0 0.0
  %4196 = vmatpush1.msra.mxu0 0.0
  %4197 = vmatprep.subr.mxu0 0.0
  %4198 = vmatpush1.msra.mxu0 0.0
  %4199 = vmatprep.subr.mxu0 0.0
  %4200 = vmatpush1.msra.mxu0 0.0
  %4201 = vmatprep.subr.mxu0 0.0
  %4202 = vmatpush1.msra.mxu0 0.0
  %4203 = vmatprep.subr.mxu0 0.0
  %4204 = vmatpush1.msra.mxu0 0.0
  %4205 = vmatprep.subr.mxu0 0.0
  %4206 = vmatpush1.msra.mxu0 0.0
  %4207 = vmatprep.subr.mxu0 0.0
  %4208 = vmatpush1.msra.mxu0 0.0
  %4209 = vmatprep.subr.mxu0 0.0
  %4210 = vmatpush1.msra.mxu0 0.0
  %4211 = vmatprep.mubr.f32.mxu0 0.0
  %4212 = vmatmul.mubr.f32.gmra.mrb[0].mxu0 %v4145
  %v4213 = vpop.f32.mrb[0].mxu0
  %v4214 = vadd.f32 0.0, %v4213
  %v4215 = vpop.f32.mrb[0].mxu0
  %v4216 = vadd.f32 0.0, %v4215
  %4217 = vdwg.mxu0
  %4218 = vmatprep.subr.mxu0 %v4083
  %4219 = vmatpush1.msra.mxu0 %v4082
  %4220 = vmatprep.subr.mxu0 %v4087
  %4221 = vmatpush1.msra.mxu0 %v4086
  %4222 = vmatprep.subr.mxu0 %v4091
  %4223 = vmatpush1.msra.mxu0 %v4090
  %4224 = vmatprep.subr.mxu0 %v4095
  %4225 = vmatpush1.msra.mxu0 %v4094
  %4226 = vmatprep.subr.mxu0 %v4099
  %4227 = vmatpush1.msra.mxu0 %v4098
  %4228 = vmatprep.subr.mxu0 %v4103
  %4229 = vmatpush1.msra.mxu0 %v4102
  %4230 = vmatprep.subr.mxu0 %v4107
  %4231 = vmatpush1.msra.mxu0 %v4106
  %4232 = vmatprep.subr.mxu0 %v4111
  %4233 = vmatpush1.msra.mxu0 %v4110
  %4234 = vmatprep.subr.mxu0 %v4115
  %4235 = vmatpush1.msra.mxu0 %v4114
  %4236 = vmatprep.subr.mxu0 %v4119
  %4237 = vmatpush1.msra.mxu0 %v4118
  %4238 = vmatprep.subr.mxu0 %v4123
  %4239 = vmatpush1.msra.mxu0 %v4122
  %4240 = vmatprep.subr.mxu0 %v4127
  %4241 = vmatpush1.msra.mxu0 %v4126
  %4242 = vmatprep.subr.mxu0 %v4131
  %4243 = vmatpush1.msra.mxu0 %v4130
  %4244 = vmatprep.subr.mxu0 %v4135
  %4245 = vmatpush1.msra.mxu0 %v4134
  %4246 = vmatprep.subr.mxu0 %v4139
  %4247 = vmatpush1.msra.mxu0 %v4138
  %4248 = vmatprep.subr.mxu0 %v4143
  %4249 = vmatpush1.msra.mxu0 %v4142
  %4250 = vmatprep.subr.mxu0 0.0
  %4251 = vmatpush1.msra.mxu0 0.0
  %4252 = vmatprep.subr.mxu0 0.0
  %4253 = vmatpush1.msra.mxu0 0.0
  %4254 = vmatprep.subr.mxu0 0.0
  %4255 = vmatpush1.msra.mxu0 0.0
  %4256 = vmatprep.subr.mxu0 0.0
  %4257 = vmatpush1.msra.mxu0 0.0
  %4258 = vmatprep.subr.mxu0 0.0
  %4259 = vmatpush1.msra.mxu0 0.0
  %4260 = vmatprep.subr.mxu0 0.0
  %4261 = vmatpush1.msra.mxu0 0.0
  %4262 = vmatprep.subr.mxu0 0.0
  %4263 = vmatpush1.msra.mxu0 0.0
  %4264 = vmatprep.subr.mxu0 0.0
  %4265 = vmatpush1.msra.mxu0 0.0
  %4266 = vmatprep.subr.mxu0 0.0
  %4267 = vmatpush1.msra.mxu0 0.0
  %4268 = vmatprep.subr.mxu0 0.0
  %4269 = vmatpush1.msra.mxu0 0.0
  %4270 = vmatprep.subr.mxu0 0.0
  %4271 = vmatpush1.msra.mxu0 0.0
  %4272 = vmatprep.subr.mxu0 0.0
  %4273 = vmatpush1.msra.mxu0 0.0
  %4274 = vmatprep.subr.mxu0 0.0
  %4275 = vmatpush1.msra.mxu0 0.0
  %4276 = vmatprep.subr.mxu0 0.0
  %4277 = vmatpush1.msra.mxu0 0.0
  %4278 = vmatprep.subr.mxu0 0.0
  %4279 = vmatpush1.msra.mxu0 0.0
  %4280 = vmatprep.subr.mxu0 0.0
  %4281 = vmatpush1.msra.mxu0 0.0
  %4282 = vmatprep.mubr.f32.mxu0 0.0
  %4283 = vmatmul.mubr.f32.gmra.mrb[0].mxu0 %v4145
  %v4284 = vpop.f32.mrb[0].mxu0
  %v4285 = vadd.f32 0.0, %v4284
  %v4286 = vpop.f32.mrb[0].mxu0
  %v4287 = vadd.f32 0.0, %v4286
  %4288 = vdwg.mxu0
  %v4293 = vrot.slane %v4214, 4
  %v4294 = vrot.slane %v4216, 4
  %v4295 = vrot.slane %v4285, 4
  %v4296 = vrot.slane %v4287, 4
  %v4301 = vadd.f32 %v4076, %v4293
  %v4302 = vadd.f32 %v4077, %v4294
  %v4303 = vadd.f32 %v4078, %v4295
  %v4304 = vadd.f32 %v4079, %v4296
  %v4305 = vxor.u32 %v4301, 2147483648
  %v4306 = vmul.f32 %v4305, 1.442695
  %v4307 = vpow.pop %v4306
  %v4308 = vadd.f32 %v4307, 1.0
  %v4309 = vrcp.pop %v4308
  %v4310 = vmul.f32 1.0, %v4309
  %v4311 = vxor.u32 %v4302, 2147483648
  %v4312 = vmul.f32 %v4311, 1.442695
  %v4313 = vpow.pop %v4312
  %v4314 = vadd.f32 %v4313, 1.0
  %v4315 = vrcp.pop %v4314
  %v4316 = vmul.f32 1.0, %v4315
  %v4317 = vtanh.pop %v4303
  %v4318 = vxor.u32 %v4304, 2147483648
  %v4319 = vmul.f32 %v4318, 1.442695
  %v4320 = vpow.pop %v4319
  %v4321 = vadd.f32 %v4320, 1.0
  %v4322 = vrcp.pop %v4321
  %v4323 = vmul.f32 1.0, %v4322
  %v4325 = vrot.slane %v4072, 6
  %v4327 = vmul.f32 %v4316, %v4325
  %v4328 = vmul.f32 %v4310, %v4317
  %v4329 = vadd.f32 %v4327, %v4328
  %v4330 = vtanh.pop %v4329
  %v4331 = vmul.f32 %v4323, %v4330
  %4332 = vst [vmem:[#allocation2 + $0x8] sm:$0x30] %v4331
  %v4333 = vld [vmem:[#allocation3 + $0x20] sm:$0xc0]
  %v4334 = vld [vmem:[#allocation3 + $0x28] sm:$0xc0]
  %v4335 = vld [vmem:[#allocation3 + $0x30] sm:$0xc0]
  %v4336 = vld [vmem:[#allocation3 + $0x38] sm:$0xc0]
  %v4337 = vld [vmem:[%s5] sm:$0xff]
  %v4338 = vld [vmem:[%s5 + $0x8] sm:$0xff]
  %v4339 = vld [vmem:[%s5 + $0x10] sm:$0xff]
  %v4340 = vld [vmem:[%s5 + $0x18] sm:$0xff]
  %v4341 = vld [vmem:[%s5 + $0x20] sm:$0xff]
  %v4342 = vld [vmem:[%s5 + $0x28] sm:$0xff]
  %v4343 = vld [vmem:[%s5 + $0x30] sm:$0xff]
  %v4344 = vld [vmem:[%s5 + $0x38] sm:$0xff]
  %v4345 = vld [vmem:[%s5 + $0x40] sm:$0xff]
  %v4346 = vld [vmem:[%s5 + $0x48] sm:$0xff]
  %v4347 = vld [vmem:[%s5 + $0x50] sm:$0xff]
  %v4348 = vld [vmem:[%s5 + $0x58] sm:$0xff]
  %v4349 = vld [vmem:[%s5 + $0x60] sm:$0xff]
  %v4350 = vld [vmem:[%s5 + $0x68] sm:$0xff]
  %v4351 = vld [vmem:[%s5 + $0x70] sm:$0xff]
  %v4352 = vld [vmem:[%s5 + $0x78] sm:$0xff]
  %v4353 = vld [vmem:[%s5 + $0x80] sm:$0xff]
  %v4354 = vld [vmem:[%s5 + $0x88] sm:$0xff]
  %v4355 = vld [vmem:[%s5 + $0x90] sm:$0xff]
  %v4356 = vld [vmem:[%s5 + $0x98] sm:$0xff]
  %v4357 = vld [vmem:[%s5 + $0xa0] sm:$0xff]
  %v4358 = vld [vmem:[%s5 + $0xa8] sm:$0xff]
  %v4359 = vld [vmem:[%s5 + $0xb0] sm:$0xff]
  %v4360 = vld [vmem:[%s5 + $0xb8] sm:$0xff]
  %v4361 = vld [vmem:[%s5 + $0xc0] sm:$0xff]
  %v4362 = vld [vmem:[%s5 + $0xc8] sm:$0xff]
  %v4363 = vld [vmem:[%s5 + $0xd0] sm:$0xff]
  %v4364 = vld [vmem:[%s5 + $0xd8] sm:$0xff]
  %v4365 = vld [vmem:[%s5 + $0xe0] sm:$0xff]
  %v4366 = vld [vmem:[%s5 + $0xe8] sm:$0xff]
  %v4367 = vld [vmem:[%s5 + $0xf0] sm:$0xff]
  %v4368 = vld [vmem:[%s5 + $0xf8] sm:$0xff]
  %v4369 = vld [vmem:[%s5 + $0x100] sm:$0xff]
  %v4370 = vld [vmem:[%s5 + $0x108] sm:$0xff]
  %v4371 = vld [vmem:[%s5 + $0x110] sm:$0xff]
  %v4372 = vld [vmem:[%s5 + $0x118] sm:$0xff]
  %v4373 = vld [vmem:[%s5 + $0x120] sm:$0xff]
  %v4374 = vld [vmem:[%s5 + $0x128] sm:$0xff]
  %v4375 = vld [vmem:[%s5 + $0x130] sm:$0xff]
  %v4376 = vld [vmem:[%s5 + $0x138] sm:$0xff]
  %v4377 = vld [vmem:[%s5 + $0x140] sm:$0xff]
  %v4378 = vld [vmem:[%s5 + $0x148] sm:$0xff]
  %v4379 = vld [vmem:[%s5 + $0x150] sm:$0xff]
  %v4380 = vld [vmem:[%s5 + $0x158] sm:$0xff]
  %v4381 = vld [vmem:[%s5 + $0x160] sm:$0xff]
  %v4382 = vld [vmem:[%s5 + $0x168] sm:$0xff]
  %v4383 = vld [vmem:[%s5 + $0x170] sm:$0xff]
  %v4384 = vld [vmem:[%s5 + $0x178] sm:$0xff]
  %v4385 = vld [vmem:[%s5 + $0x180] sm:$0xff]
  %v4386 = vld [vmem:[%s5 + $0x188] sm:$0xff]
  %v4387 = vld [vmem:[%s5 + $0x190] sm:$0xff]
  %v4388 = vld [vmem:[%s5 + $0x198] sm:$0xff]
  %v4389 = vld [vmem:[%s5 + $0x1a0] sm:$0xff]
  %v4390 = vld [vmem:[%s5 + $0x1a8] sm:$0xff]
  %v4391 = vld [vmem:[%s5 + $0x1b0] sm:$0xff]
  %v4392 = vld [vmem:[%s5 + $0x1b8] sm:$0xff]
  %v4393 = vld [vmem:[%s5 + $0x1c0] sm:$0xff]
  %v4394 = vld [vmem:[%s5 + $0x1c8] sm:$0xff]
  %v4395 = vld [vmem:[%s5 + $0x1d0] sm:$0xff]
  %v4396 = vld [vmem:[%s5 + $0x1d8] sm:$0xff]
  %v4397 = vld [vmem:[%s5 + $0x1e0] sm:$0xff]
  %v4398 = vld [vmem:[%s5 + $0x1e8] sm:$0xff]
  %v4399 = vld [vmem:[%s5 + $0x1f0] sm:$0xff]
  %v4400 = vld [vmem:[%s5 + $0x1f8] sm:$0xff]
  %v4402 = vrot.slane %v4331, 4
  %4404 = vmatprep.subr.mxu0 %v4338
  %4405 = vmatpush1.msra.mxu0 %v4337
  %4406 = vmatprep.subr.mxu0 %v4342
  %4407 = vmatpush1.msra.mxu0 %v4341
  %4408 = vmatprep.subr.mxu0 %v4346
  %4409 = vmatpush1.msra.mxu0 %v4345
  %4410 = vmatprep.subr.mxu0 %v4350
  %4411 = vmatpush1.msra.mxu0 %v4349
  %4412 = vmatprep.subr.mxu0 %v4354
  %4413 = vmatpush1.msra.mxu0 %v4353
  %4414 = vmatprep.subr.mxu0 %v4358
  %4415 = vmatpush1.msra.mxu0 %v4357
  %4416 = vmatprep.subr.mxu0 %v4362
  %4417 = vmatpush1.msra.mxu0 %v4361
  %4418 = vmatprep.subr.mxu0 %v4366
  %4419 = vmatpush1.msra.mxu0 %v4365
  %4420 = vmatprep.subr.mxu0 %v4370
  %4421 = vmatpush1.msra.mxu0 %v4369
  %4422 = vmatprep.subr.mxu0 %v4374
  %4423 = vmatpush1.msra.mxu0 %v4373
  %4424 = vmatprep.subr.mxu0 %v4378
  %4425 = vmatpush1.msra.mxu0 %v4377
  %4426 = vmatprep.subr.mxu0 %v4382
  %4427 = vmatpush1.msra.mxu0 %v4381
  %4428 = vmatprep.subr.mxu0 %v4386
  %4429 = vmatpush1.msra.mxu0 %v4385
  %4430 = vmatprep.subr.mxu0 %v4390
  %4431 = vmatpush1.msra.mxu0 %v4389
  %4432 = vmatprep.subr.mxu0 %v4394
  %4433 = vmatpush1.msra.mxu0 %v4393
  %4434 = vmatprep.subr.mxu0 %v4398
  %4435 = vmatpush1.msra.mxu0 %v4397
  %4436 = vmatprep.subr.mxu0 0.0
  %4437 = vmatpush1.msra.mxu0 0.0
  %4438 = vmatprep.subr.mxu0 0.0
  %4439 = vmatpush1.msra.mxu0 0.0
  %4440 = vmatprep.subr.mxu0 0.0
  %4441 = vmatpush1.msra.mxu0 0.0
  %4442 = vmatprep.subr.mxu0 0.0
  %4443 = vmatpush1.msra.mxu0 0.0
  %4444 = vmatprep.subr.mxu0 0.0
  %4445 = vmatpush1.msra.mxu0 0.0
  %4446 = vmatprep.subr.mxu0 0.0
  %4447 = vmatpush1.msra.mxu0 0.0
  %4448 = vmatprep.subr.mxu0 0.0
  %4449 = vmatpush1.msra.mxu0 0.0
  %4450 = vmatprep.subr.mxu0 0.0
  %4451 = vmatpush1.msra.mxu0 0.0
  %4452 = vmatprep.subr.mxu0 0.0
  %4453 = vmatpush1.msra.mxu0 0.0
  %4454 = vmatprep.subr.mxu0 0.0
  %4455 = vmatpush1.msra.mxu0 0.0
  %4456 = vmatprep.subr.mxu0 0.0
  %4457 = vmatpush1.msra.mxu0 0.0
  %4458 = vmatprep.subr.mxu0 0.0
  %4459 = vmatpush1.msra.mxu0 0.0
  %4460 = vmatprep.subr.mxu0 0.0
  %4461 = vmatpush1.msra.mxu0 0.0
  %4462 = vmatprep.subr.mxu0 0.0
  %4463 = vmatpush1.msra.mxu0 0.0
  %4464 = vmatprep.subr.mxu0 0.0
  %4465 = vmatpush1.msra.mxu0 0.0
  %4466 = vmatprep.subr.mxu0 0.0
  %4467 = vmatpush1.msra.mxu0 0.0
  %4468 = vmatprep.mubr.f32.mxu0 0.0
  %4469 = vmatmul.mubr.f32.gmra.mrb[0].mxu0 %v4402
  %v4470 = vpop.f32.mrb[0].mxu0
  %v4471 = vadd.f32 0.0, %v4470
  %v4472 = vpop.f32.mrb[0].mxu0
  %v4473 = vadd.f32 0.0, %v4472
  %4474 = vdwg.mxu0
  %4475 = vmatprep.subr.mxu0 %v4340
  %4476 = vmatpush1.msra.mxu0 %v4339
  %4477 = vmatprep.subr.mxu0 %v4344
  %4478 = vmatpush1.msra.mxu0 %v4343
  %4479 = vmatprep.subr.mxu0 %v4348
  %4480 = vmatpush1.msra.mxu0 %v4347
  %4481 = vmatprep.subr.mxu0 %v4352
  %4482 = vmatpush1.msra.mxu0 %v4351
  %4483 = vmatprep.subr.mxu0 %v4356
  %4484 = vmatpush1.msra.mxu0 %v4355
  %4485 = vmatprep.subr.mxu0 %v4360
  %4486 = vmatpush1.msra.mxu0 %v4359
  %4487 = vmatprep.subr.mxu0 %v4364
  %4488 = vmatpush1.msra.mxu0 %v4363
  %4489 = vmatprep.subr.mxu0 %v4368
  %4490 = vmatpush1.msra.mxu0 %v4367
  %4491 = vmatprep.subr.mxu0 %v4372
  %4492 = vmatpush1.msra.mxu0 %v4371
  %4493 = vmatprep.subr.mxu0 %v4376
  %4494 = vmatpush1.msra.mxu0 %v4375
  %4495 = vmatprep.subr.mxu0 %v4380
  %4496 = vmatpush1.msra.mxu0 %v4379
  %4497 = vmatprep.subr.mxu0 %v4384
  %4498 = vmatpush1.msra.mxu0 %v4383
  %4499 = vmatprep.subr.mxu0 %v4388
  %4500 = vmatpush1.msra.mxu0 %v4387
  %4501 = vmatprep.subr.mxu0 %v4392
  %4502 = vmatpush1.msra.mxu0 %v4391
  %4503 = vmatprep.subr.mxu0 %v4396
  %4504 = vmatpush1.msra.mxu0 %v4395
  %4505 = vmatprep.subr.mxu0 %v4400
  %4506 = vmatpush1.msra.mxu0 %v4399
  %4507 = vmatprep.subr.mxu0 0.0
  %4508 = vmatpush1.msra.mxu0 0.0
  %4509 = vmatprep.subr.mxu0 0.0
  %4510 = vmatpush1.msra.mxu0 0.0
  %4511 = vmatprep.subr.mxu0 0.0
  %4512 = vmatpush1.msra.mxu0 0.0
  %4513 = vmatprep.subr.mxu0 0.0
  %4514 = vmatpush1.msra.mxu0 0.0
  %4515 = vmatprep.subr.mxu0 0.0
  %4516 = vmatpush1.msra.mxu0 0.0
  %4517 = vmatprep.subr.mxu0 0.0
  %4518 = vmatpush1.msra.mxu0 0.0
  %4519 = vmatprep.subr.mxu0 0.0
  %4520 = vmatpush1.msra.mxu0 0.0
  %4521 = vmatprep.subr.mxu0 0.0
  %4522 = vmatpush1.msra.mxu0 0.0
  %4523 = vmatprep.subr.mxu0 0.0
  %4524 = vmatpush1.msra.mxu0 0.0
  %4525 = vmatprep.subr.mxu0 0.0
  %4526 = vmatpush1.msra.mxu0 0.0
  %4527 = vmatprep.subr.mxu0 0.0
  %4528 = vmatpush1.msra.mxu0 0.0
  %4529 = vmatprep.subr.mxu0 0.0
  %4530 = vmatpush1.msra.mxu0 0.0
  %4531 = vmatprep.subr.mxu0 0.0
  %4532 = vmatpush1.msra.mxu0 0.0
  %4533 = vmatprep.subr.mxu0 0.0
  %4534 = vmatpush1.msra.mxu0 0.0
  %4535 = vmatprep.subr.mxu0 0.0
  %4536 = vmatpush1.msra.mxu0 0.0
  %4537 = vmatprep.subr.mxu0 0.0
  %4538 = vmatpush1.msra.mxu0 0.0
  %4539 = vmatprep.mubr.f32.mxu0 0.0
  %4540 = vmatmul.mubr.f32.gmra.mrb[0].mxu0 %v4402
  %v4541 = vpop.f32.mrb[0].mxu0
  %v4542 = vadd.f32 0.0, %v4541
  %v4543 = vpop.f32.mrb[0].mxu0
  %v4544 = vadd.f32 0.0, %v4543
  %4545 = vdwg.mxu0
  %v4550 = vrot.slane %v4471, 2
  %v4551 = vrot.slane %v4473, 2
  %v4552 = vrot.slane %v4542, 2
  %v4553 = vrot.slane %v4544, 2
  %v4558 = vadd.f32 %v4333, %v4550
  %v4559 = vadd.f32 %v4334, %v4551
  %v4560 = vadd.f32 %v4335, %v4552
  %v4561 = vadd.f32 %v4336, %v4553
  %v4562 = vxor.u32 %v4558, 2147483648
  %v4563 = vmul.f32 %v4562, 1.442695
  %v4564 = vpow.pop %v4563
  %v4565 = vadd.f32 %v4564, 1.0
  %v4566 = vrcp.pop %v4565
  %v4567 = vmul.f32 1.0, %v4566
  %v4568 = vxor.u32 %v4559, 2147483648
  %v4569 = vmul.f32 %v4568, 1.442695
  %v4570 = vpow.pop %v4569
  %v4571 = vadd.f32 %v4570, 1.0
  %v4572 = vrcp.pop %v4571
  %v4573 = vmul.f32 1.0, %v4572
  %v4574 = vtanh.pop %v4560
  %v4575 = vxor.u32 %v4561, 2147483648
  %v4576 = vmul.f32 %v4575, 1.442695
  %v4577 = vpow.pop %v4576
  %v4578 = vadd.f32 %v4577, 1.0
  %v4579 = vrcp.pop %v4578
  %v4580 = vmul.f32 1.0, %v4579
  %v4582 = vrot.slane %v4329, 6
  %v4584 = vmul.f32 %v4573, %v4582
  %v4585 = vmul.f32 %v4567, %v4574
  %v4586 = vadd.f32 %v4584, %v4585
  %v4587 = vtanh.pop %v4586
  %v4588 = vmul.f32 %v4580, %v4587
  %4589 = vst [vmem:[#allocation2 + $0x8] sm:$0xc0] %v4588
  %v4590 = vld [vmem:[%s7] sm:$0xff]
  %v4591 = vld [vmem:[%s7 + $0x8] sm:$0xff]
  %v4592 = vld [vmem:[%s7 + $0x10] sm:$0xff]
  %v4593 = vld [vmem:[%s7 + $0x18] sm:$0xff]
  %v4594 = vld [vmem:[%s7 + $0x20] sm:$0xff]
  %v4595 = vld [vmem:[%s7 + $0x28] sm:$0xff]
  %v4596 = vld [vmem:[%s7 + $0x30] sm:$0xff]
  %v4597 = vld [vmem:[%s7 + $0x38] sm:$0xff]
  %v4598 = vld [vmem:[%s7 + $0x40] sm:$0xff]
  %v4599 = vld [vmem:[%s7 + $0x48] sm:$0xff]
  %v4600 = vld [vmem:[%s7 + $0x50] sm:$0xff]
  %v4601 = vld [vmem:[%s7 + $0x58] sm:$0xff]
  %v4602 = vld [vmem:[%s7 + $0x60] sm:$0xff]
  %v4603 = vld [vmem:[%s7 + $0x68] sm:$0xff]
  %v4604 = vld [vmem:[%s7 + $0x70] sm:$0xff]
  %v4605 = vld [vmem:[%s7 + $0x78] sm:$0xff]
  %v4606 = vld [vmem:[%s7 + $0x80] sm:$0xff]
  %v4607 = vld [vmem:[%s7 + $0x88] sm:$0xff]
  %v4608 = vld [vmem:[%s7 + $0x90] sm:$0xff]
  %v4609 = vld [vmem:[%s7 + $0x98] sm:$0xff]
  %v4610 = vld [vmem:[%s7 + $0xa0] sm:$0xff]
  %v4611 = vld [vmem:[%s7 + $0xa8] sm:$0xff]
  %v4612 = vld [vmem:[%s7 + $0xb0] sm:$0xff]
  %v4613 = vld [vmem:[%s7 + $0xb8] sm:$0xff]
  %v4614 = vld [vmem:[%s7 + $0xc0] sm:$0xff]
  %v4615 = vld [vmem:[%s7 + $0xc8] sm:$0xff]
  %v4616 = vld [vmem:[%s7 + $0xd0] sm:$0xff]
  %v4617 = vld [vmem:[%s7 + $0xd8] sm:$0xff]
  %v4618 = vld [vmem:[%s7 + $0xe0] sm:$0xff]
  %v4619 = vld [vmem:[%s7 + $0xe8] sm:$0xff]
  %v4620 = vld [vmem:[%s7 + $0xf0] sm:$0xff]
  %v4621 = vld [vmem:[%s7 + $0xf8] sm:$0xff]
  %v4622 = vld [vmem:[%s7 + $0x100] sm:$0xff]
  %v4623 = vld [vmem:[%s7 + $0x108] sm:$0xff]
  %v4624 = vld [vmem:[%s7 + $0x110] sm:$0xff]
  %v4625 = vld [vmem:[%s7 + $0x118] sm:$0xff]
  %v4626 = vld [vmem:[%s7 + $0x120] sm:$0xff]
  %v4627 = vld [vmem:[%s7 + $0x128] sm:$0xff]
  %v4628 = vld [vmem:[%s7 + $0x130] sm:$0xff]
  %v4629 = vld [vmem:[%s7 + $0x138] sm:$0xff]
  %v4630 = vld [vmem:[%s7 + $0x140] sm:$0xff]
  %v4631 = vld [vmem:[%s7 + $0x148] sm:$0xff]
  %v4632 = vld [vmem:[%s7 + $0x150] sm:$0xff]
  %v4633 = vld [vmem:[%s7 + $0x158] sm:$0xff]
  %v4634 = vld [vmem:[%s7 + $0x160] sm:$0xff]
  %v4635 = vld [vmem:[%s7 + $0x168] sm:$0xff]
  %v4636 = vld [vmem:[%s7 + $0x170] sm:$0xff]
  %v4637 = vld [vmem:[%s7 + $0x178] sm:$0xff]
  %v4638 = vld [vmem:[%s7 + $0x180] sm:$0xff]
  %v4639 = vld [vmem:[%s7 + $0x188] sm:$0xff]
  %v4640 = vld [vmem:[%s7 + $0x190] sm:$0xff]
  %v4641 = vld [vmem:[%s7 + $0x198] sm:$0xff]
  %v4642 = vld [vmem:[%s7 + $0x1a0] sm:$0xff]
  %v4643 = vld [vmem:[%s7 + $0x1a8] sm:$0xff]
  %v4644 = vld [vmem:[%s7 + $0x1b0] sm:$0xff]
  %v4645 = vld [vmem:[%s7 + $0x1b8] sm:$0xff]
  %v4646 = vld [vmem:[%s7 + $0x1c0] sm:$0xff]
  %v4647 = vld [vmem:[%s7 + $0x1c8] sm:$0xff]
  %v4648 = vld [vmem:[%s7 + $0x1d0] sm:$0xff]
  %v4649 = vld [vmem:[%s7 + $0x1d8] sm:$0xff]
  %v4650 = vld [vmem:[%s7 + $0x1e0] sm:$0xff]
  %v4651 = vld [vmem:[%s7 + $0x1e8] sm:$0xff]
  %v4652 = vld [vmem:[%s7 + $0x1f0] sm:$0xff]
  %v4653 = vld [vmem:[%s7 + $0x1f8] sm:$0xff]
  %v4654 = vld [vmem:[%s9] sm:$0xf]
  %v4656 = vlaneseq
  %v4657 = vshrl.u32 %v4656, 7
  %v4658 = vsub.s32 0, %v4657
  %v4659 = vrot.slane %v4654, %v4658
  %v4660 = vlaneseq
  %v4661 = vshrl.u32 %v4660, 7
  %v4662 = vsub.s32 1, %v4661
  %v4663 = vrot.slane %v4654, %v4662
  %v4664 = vlaneseq
  %v4665 = vshrl.u32 %v4664, 7
  %v4666 = vsub.s32 2, %v4665
  %v4667 = vrot.slane %v4654, %v4666
  %v4668 = vlaneseq
  %v4669 = vshrl.u32 %v4668, 7
  %v4670 = vsub.s32 3, %v4669
  %v4671 = vrot.slane %v4654, %v4670
  %v4677 = vrot.slane %v4588, 6
  %4679 = vmatprep.subr.mxu0 %v4591
  %4680 = vmatpush1.msra.mxu0 %v4590
  %4681 = vmatprep.subr.mxu0 %v4595
  %4682 = vmatpush1.msra.mxu0 %v4594
  %4683 = vmatprep.subr.mxu0 %v4599
  %4684 = vmatpush1.msra.mxu0 %v4598
  %4685 = vmatprep.subr.mxu0 %v4603
  %4686 = vmatpush1.msra.mxu0 %v4602
  %4687 = vmatprep.subr.mxu0 %v4607
  %4688 = vmatpush1.msra.mxu0 %v4606
  %4689 = vmatprep.subr.mxu0 %v4611
  %4690 = vmatpush1.msra.mxu0 %v4610
  %4691 = vmatprep.subr.mxu0 %v4615
  %4692 = vmatpush1.msra.mxu0 %v4614
  %4693 = vmatprep.subr.mxu0 %v4619
  %4694 = vmatpush1.msra.mxu0 %v4618
  %4695 = vmatprep.subr.mxu0 %v4623
  %4696 = vmatpush1.msra.mxu0 %v4622
  %4697 = vmatprep.subr.mxu0 %v4627
  %4698 = vmatpush1.msra.mxu0 %v4626
  %4699 = vmatprep.subr.mxu0 %v4631
  %4700 = vmatpush1.msra.mxu0 %v4630
  %4701 = vmatprep.subr.mxu0 %v4635
  %4702 = vmatpush1.msra.mxu0 %v4634
  %4703 = vmatprep.subr.mxu0 %v4639
  %4704 = vmatpush1.msra.mxu0 %v4638
  %4705 = vmatprep.subr.mxu0 %v4643
  %4706 = vmatpush1.msra.mxu0 %v4642
  %4707 = vmatprep.subr.mxu0 %v4647
  %4708 = vmatpush1.msra.mxu0 %v4646
  %4709 = vmatprep.subr.mxu0 %v4651
  %4710 = vmatpush1.msra.mxu0 %v4650
  %4711 = vmatprep.subr.mxu0 0.0
  %4712 = vmatpush1.msra.mxu0 0.0
  %4713 = vmatprep.subr.mxu0 0.0
  %4714 = vmatpush1.msra.mxu0 0.0
  %4715 = vmatprep.subr.mxu0 0.0
  %4716 = vmatpush1.msra.mxu0 0.0
  %4717 = vmatprep.subr.mxu0 0.0
  %4718 = vmatpush1.msra.mxu0 0.0
  %4719 = vmatprep.subr.mxu0 0.0
  %4720 = vmatpush1.msra.mxu0 0.0
  %4721 = vmatprep.subr.mxu0 0.0
  %4722 = vmatpush1.msra.mxu0 0.0
  %4723 = vmatprep.subr.mxu0 0.0
  %4724 = vmatpush1.msra.mxu0 0.0
  %4725 = vmatprep.subr.mxu0 0.0
  %4726 = vmatpush1.msra.mxu0 0.0
  %4727 = vmatprep.subr.mxu0 0.0
  %4728 = vmatpush1.msra.mxu0 0.0
  %4729 = vmatprep.subr.mxu0 0.0
  %4730 = vmatpush1.msra.mxu0 0.0
  %4731 = vmatprep.subr.mxu0 0.0
  %4732 = vmatpush1.msra.mxu0 0.0
  %4733 = vmatprep.subr.mxu0 0.0
  %4734 = vmatpush1.msra.mxu0 0.0
  %4735 = vmatprep.subr.mxu0 0.0
  %4736 = vmatpush1.msra.mxu0 0.0
  %4737 = vmatprep.subr.mxu0 0.0
  %4738 = vmatpush1.msra.mxu0 0.0
  %4739 = vmatprep.subr.mxu0 0.0
  %4740 = vmatpush1.msra.mxu0 0.0
  %4741 = vmatprep.subr.mxu0 0.0
  %4742 = vmatpush1.msra.mxu0 0.0
  %4743 = vmatprep.mubr.f32.mxu0 0.0
  %4744 = vmatmul.mubr.f32.gmra.mrb[0].mxu0 %v4677
  %v4745 = vpop.f32.mrb[0].mxu0
  %v4746 = vadd.f32 %v4659, %v4745
  %v4747 = vpop.f32.mrb[0].mxu0
  %v4748 = vadd.f32 %v4663, %v4747
  %4749 = vdwg.mxu0
  %4750 = vmatprep.subr.mxu0 %v4593
  %4751 = vmatpush1.msra.mxu0 %v4592
  %4752 = vmatprep.subr.mxu0 %v4597
  %4753 = vmatpush1.msra.mxu0 %v4596
  %4754 = vmatprep.subr.mxu0 %v4601
  %4755 = vmatpush1.msra.mxu0 %v4600
  %4756 = vmatprep.subr.mxu0 %v4605
  %4757 = vmatpush1.msra.mxu0 %v4604
  %4758 = vmatprep.subr.mxu0 %v4609
  %4759 = vmatpush1.msra.mxu0 %v4608
  %4760 = vmatprep.subr.mxu0 %v4613
  %4761 = vmatpush1.msra.mxu0 %v4612
  %4762 = vmatprep.subr.mxu0 %v4617
  %4763 = vmatpush1.msra.mxu0 %v4616
  %4764 = vmatprep.subr.mxu0 %v4621
  %4765 = vmatpush1.msra.mxu0 %v4620
  %4766 = vmatprep.subr.mxu0 %v4625
  %4767 = vmatpush1.msra.mxu0 %v4624
  %4768 = vmatprep.subr.mxu0 %v4629
  %4769 = vmatpush1.msra.mxu0 %v4628
  %4770 = vmatprep.subr.mxu0 %v4633
  %4771 = vmatpush1.msra.mxu0 %v4632
  %4772 = vmatprep.subr.mxu0 %v4637
  %4773 = vmatpush1.msra.mxu0 %v4636
  %4774 = vmatprep.subr.mxu0 %v4641
  %4775 = vmatpush1.msra.mxu0 %v4640
  %4776 = vmatprep.subr.mxu0 %v4645
  %4777 = vmatpush1.msra.mxu0 %v4644
  %4778 = vmatprep.subr.mxu0 %v4649
  %4779 = vmatpush1.msra.mxu0 %v4648
  %4780 = vmatprep.subr.mxu0 %v4653
  %4781 = vmatpush1.msra.mxu0 %v4652
  %4782 = vmatprep.subr.mxu0 0.0
  %4783 = vmatpush1.msra.mxu0 0.0
  %4784 = vmatprep.subr.mxu0 0.0
  %4785 = vmatpush1.msra.mxu0 0.0
  %4786 = vmatprep.subr.mxu0 0.0
  %4787 = vmatpush1.msra.mxu0 0.0
  %4788 = vmatprep.subr.mxu0 0.0
  %4789 = vmatpush1.msra.mxu0 0.0
  %4790 = vmatprep.subr.mxu0 0.0
  %4791 = vmatpush1.msra.mxu0 0.0
  %4792 = vmatprep.subr.mxu0 0.0
  %4793 = vmatpush1.msra.mxu0 0.0
  %4794 = vmatprep.subr.mxu0 0.0
  %4795 = vmatpush1.msra.mxu0 0.0
  %4796 = vmatprep.subr.mxu0 0.0
  %4797 = vmatpush1.msra.mxu0 0.0
  %4798 = vmatprep.subr.mxu0 0.0
  %4799 = vmatpush1.msra.mxu0 0.0
  %4800 = vmatprep.subr.mxu0 0.0
  %4801 = vmatpush1.msra.mxu0 0.0
  %4802 = vmatprep.subr.mxu0 0.0
  %4803 = vmatpush1.msra.mxu0 0.0
  %4804 = vmatprep.subr.mxu0 0.0
  %4805 = vmatpush1.msra.mxu0 0.0
  %4806 = vmatprep.subr.mxu0 0.0
  %4807 = vmatpush1.msra.mxu0 0.0
  %4808 = vmatprep.subr.mxu0 0.0
  %4809 = vmatpush1.msra.mxu0 0.0
  %4810 = vmatprep.subr.mxu0 0.0
  %4811 = vmatpush1.msra.mxu0 0.0
  %4812 = vmatprep.subr.mxu0 0.0
  %4813 = vmatpush1.msra.mxu0 0.0
  %4814 = vmatprep.mubr.f32.mxu0 0.0
  %4815 = vmatmul.mubr.f32.gmra.mrb[0].mxu0 %v4677
  %v4816 = vpop.f32.mrb[0].mxu0
  %v4817 = vadd.f32 %v4667, %v4816
  %v4818 = vpop.f32.mrb[0].mxu0
  %v4819 = vadd.f32 %v4671, %v4818
  %4820 = vdwg.mxu0
  %v4821 = vld [vmem:[%s8] sm:$0xff]
  %v4822 = vld [vmem:[%s8 + $0x8] sm:$0xff]
  %v4823 = vld [vmem:[%s8 + $0x10] sm:$0xff]
  %v4824 = vld [vmem:[%s8 + $0x18] sm:$0xff]
  %v4825 = vld [vmem:[%s8 + $0x20] sm:$0xff]
  %v4826 = vld [vmem:[%s8 + $0x28] sm:$0xff]
  %v4827 = vld [vmem:[%s8 + $0x30] sm:$0xff]
  %v4828 = vld [vmem:[%s8 + $0x38] sm:$0xff]
  %v4829 = vld [vmem:[%s8 + $0x40] sm:$0xff]
  %v4830 = vld [vmem:[%s8 + $0x48] sm:$0xff]
  %v4831 = vld [vmem:[%s8 + $0x50] sm:$0xff]
  %v4832 = vld [vmem:[%s8 + $0x58] sm:$0xff]
  %v4833 = vld [vmem:[%s8 + $0x60] sm:$0xff]
  %v4834 = vld [vmem:[%s8 + $0x68] sm:$0xff]
  %v4835 = vld [vmem:[%s8 + $0x70] sm:$0xff]
  %v4836 = vld [vmem:[%s8 + $0x78] sm:$0xff]
  %v4837 = vld [vmem:[%s8 + $0x80] sm:$0xff]
  %v4838 = vld [vmem:[%s8 + $0x88] sm:$0xff]
  %v4839 = vld [vmem:[%s8 + $0x90] sm:$0xff]
  %v4840 = vld [vmem:[%s8 + $0x98] sm:$0xff]
  %v4841 = vld [vmem:[%s8 + $0xa0] sm:$0xff]
  %v4842 = vld [vmem:[%s8 + $0xa8] sm:$0xff]
  %v4843 = vld [vmem:[%s8 + $0xb0] sm:$0xff]
  %v4844 = vld [vmem:[%s8 + $0xb8] sm:$0xff]
  %v4845 = vld [vmem:[%s8 + $0xc0] sm:$0xff]
  %v4846 = vld [vmem:[%s8 + $0xc8] sm:$0xff]
  %v4847 = vld [vmem:[%s8 + $0xd0] sm:$0xff]
  %v4848 = vld [vmem:[%s8 + $0xd8] sm:$0xff]
  %v4849 = vld [vmem:[%s8 + $0xe0] sm:$0xff]
  %v4850 = vld [vmem:[%s8 + $0xe8] sm:$0xff]
  %v4851 = vld [vmem:[%s8 + $0xf0] sm:$0xff]
  %v4852 = vld [vmem:[%s8 + $0xf8] sm:$0xff]
  %v4853 = vld [vmem:[%s8 + $0x100] sm:$0xff]
  %v4854 = vld [vmem:[%s8 + $0x108] sm:$0xff]
  %v4855 = vld [vmem:[%s8 + $0x110] sm:$0xff]
  %v4856 = vld [vmem:[%s8 + $0x118] sm:$0xff]
  %v4857 = vld [vmem:[%s8 + $0x120] sm:$0xff]
  %v4858 = vld [vmem:[%s8 + $0x128] sm:$0xff]
  %v4859 = vld [vmem:[%s8 + $0x130] sm:$0xff]
  %v4860 = vld [vmem:[%s8 + $0x138] sm:$0xff]
  %v4861 = vld [vmem:[%s8 + $0x140] sm:$0xff]
  %v4862 = vld [vmem:[%s8 + $0x148] sm:$0xff]
  %v4863 = vld [vmem:[%s8 + $0x150] sm:$0xff]
  %v4864 = vld [vmem:[%s8 + $0x158] sm:$0xff]
  %v4865 = vld [vmem:[%s8 + $0x160] sm:$0xff]
  %v4866 = vld [vmem:[%s8 + $0x168] sm:$0xff]
  %v4867 = vld [vmem:[%s8 + $0x170] sm:$0xff]
  %v4868 = vld [vmem:[%s8 + $0x178] sm:$0xff]
  %v4869 = vld [vmem:[%s8 + $0x180] sm:$0xff]
  %v4870 = vld [vmem:[%s8 + $0x188] sm:$0xff]
  %v4871 = vld [vmem:[%s8 + $0x190] sm:$0xff]
  %v4872 = vld [vmem:[%s8 + $0x198] sm:$0xff]
  %v4873 = vld [vmem:[%s8 + $0x1a0] sm:$0xff]
  %v4874 = vld [vmem:[%s8 + $0x1a8] sm:$0xff]
  %v4875 = vld [vmem:[%s8 + $0x1b0] sm:$0xff]
  %v4876 = vld [vmem:[%s8 + $0x1b8] sm:$0xff]
  %v4877 = vld [vmem:[%s8 + $0x1c0] sm:$0xff]
  %v4878 = vld [vmem:[%s8 + $0x1c8] sm:$0xff]
  %v4879 = vld [vmem:[%s8 + $0x1d0] sm:$0xff]
  %v4880 = vld [vmem:[%s8 + $0x1d8] sm:$0xff]
  %v4881 = vld [vmem:[%s8 + $0x1e0] sm:$0xff]
  %v4882 = vld [vmem:[%s8 + $0x1e8] sm:$0xff]
  %v4883 = vld [vmem:[%s8 + $0x1f0] sm:$0xff]
  %v4884 = vld [vmem:[%s8 + $0x1f8] sm:$0xff]
  %4885 = vmatprep.subr.mxu0 %v4822
  %4886 = vmatpush1.msra.mxu0 %v4821
  %4887 = vmatprep.subr.mxu0 %v4826
  %4888 = vmatpush1.msra.mxu0 %v4825
  %4889 = vmatprep.subr.mxu0 %v4830
  %4890 = vmatpush1.msra.mxu0 %v4829
  %4891 = vmatprep.subr.mxu0 %v4834
  %4892 = vmatpush1.msra.mxu0 %v4833
  %4893 = vmatprep.subr.mxu0 %v4838
  %4894 = vmatpush1.msra.mxu0 %v4837
  %4895 = vmatprep.subr.mxu0 %v4842
  %4896 = vmatpush1.msra.mxu0 %v4841
  %4897 = vmatprep.subr.mxu0 %v4846
  %4898 = vmatpush1.msra.mxu0 %v4845
  %4899 = vmatprep.subr.mxu0 %v4850
  %4900 = vmatpush1.msra.mxu0 %v4849
  %4901 = vmatprep.subr.mxu0 %v4854
  %4902 = vmatpush1.msra.mxu0 %v4853
  %4903 = vmatprep.subr.mxu0 %v4858
  %4904 = vmatpush1.msra.mxu0 %v4857
  %4905 = vmatprep.subr.mxu0 %v4862
  %4906 = vmatpush1.msra.mxu0 %v4861
  %4907 = vmatprep.subr.mxu0 %v4866
  %4908 = vmatpush1.msra.mxu0 %v4865
  %4909 = vmatprep.subr.mxu0 %v4870
  %4910 = vmatpush1.msra.mxu0 %v4869
  %4911 = vmatprep.subr.mxu0 %v4874
  %4912 = vmatpush1.msra.mxu0 %v4873
  %4913 = vmatprep.subr.mxu0 %v4878
  %4914 = vmatpush1.msra.mxu0 %v4877
  %4915 = vmatprep.subr.mxu0 %v4882
  %4916 = vmatpush1.msra.mxu0 %v4881
  %4917 = vmatprep.subr.mxu0 0.0
  %4918 = vmatpush1.msra.mxu0 0.0
  %4919 = vmatprep.subr.mxu0 0.0
  %4920 = vmatpush1.msra.mxu0 0.0
  %4921 = vmatprep.subr.mxu0 0.0
  %4922 = vmatpush1.msra.mxu0 0.0
  %4923 = vmatprep.subr.mxu0 0.0
  %4924 = vmatpush1.msra.mxu0 0.0
  %4925 = vmatprep.subr.mxu0 0.0
  %4926 = vmatpush1.msra.mxu0 0.0
  %4927 = vmatprep.subr.mxu0 0.0
  %4928 = vmatpush1.msra.mxu0 0.0
  %4929 = vmatprep.subr.mxu0 0.0
  %4930 = vmatpush1.msra.mxu0 0.0
  %4931 = vmatprep.subr.mxu0 0.0
  %4932 = vmatpush1.msra.mxu0 0.0
  %4933 = vmatprep.subr.mxu0 0.0
  %4934 = vmatpush1.msra.mxu0 0.0
  %4935 = vmatprep.subr.mxu0 0.0
  %4936 = vmatpush1.msra.mxu0 0.0
  %4937 = vmatprep.subr.mxu0 0.0
  %4938 = vmatpush1.msra.mxu0 0.0
  %4939 = vmatprep.subr.mxu0 0.0
  %4940 = vmatpush1.msra.mxu0 0.0
  %4941 = vmatprep.subr.mxu0 0.0
  %4942 = vmatpush1.msra.mxu0 0.0
  %4943 = vmatprep.subr.mxu0 0.0
  %4944 = vmatpush1.msra.mxu0 0.0
  %4945 = vmatprep.subr.mxu0 0.0
  %4946 = vmatpush1.msra.mxu0 0.0
  %4947 = vmatprep.subr.mxu0 0.0
  %4948 = vmatpush1.msra.mxu0 0.0
  %4949 = vmatprep.mubr.f32.mxu0 0.0
  %4950 = vmatmul.mubr.f32.gmra.mrb[0].mxu0 0.0
  %v4951 = vpop.f32.mrb[0].mxu0
  %v4952 = vadd.f32 0.0, %v4951
  %v4953 = vpop.f32.mrb[0].mxu0
  %v4954 = vadd.f32 0.0, %v4953
  %4955 = vdwg.mxu0
  %4956 = vmatprep.subr.mxu0 %v4824
  %4957 = vmatpush1.msra.mxu0 %v4823
  %4958 = vmatprep.subr.mxu0 %v4828
  %4959 = vmatpush1.msra.mxu0 %v4827
  %4960 = vmatprep.subr.mxu0 %v4832
  %4961 = vmatpush1.msra.mxu0 %v4831
  %4962 = vmatprep.subr.mxu0 %v4836
  %4963 = vmatpush1.msra.mxu0 %v4835
  %4964 = vmatprep.subr.mxu0 %v4840
  %4965 = vmatpush1.msra.mxu0 %v4839
  %4966 = vmatprep.subr.mxu0 %v4844
  %4967 = vmatpush1.msra.mxu0 %v4843
  %4968 = vmatprep.subr.mxu0 %v4848
  %4969 = vmatpush1.msra.mxu0 %v4847
  %4970 = vmatprep.subr.mxu0 %v4852
  %4971 = vmatpush1.msra.mxu0 %v4851
  %4972 = vmatprep.subr.mxu0 %v4856
  %4973 = vmatpush1.msra.mxu0 %v4855
  %4974 = vmatprep.subr.mxu0 %v4860
  %4975 = vmatpush1.msra.mxu0 %v4859
  %4976 = vmatprep.subr.mxu0 %v4864
  %4977 = vmatpush1.msra.mxu0 %v4863
  %4978 = vmatprep.subr.mxu0 %v4868
  %4979 = vmatpush1.msra.mxu0 %v4867
  %4980 = vmatprep.subr.mxu0 %v4872
  %4981 = vmatpush1.msra.mxu0 %v4871
  %4982 = vmatprep.subr.mxu0 %v4876
  %4983 = vmatpush1.msra.mxu0 %v4875
  %4984 = vmatprep.subr.mxu0 %v4880
  %4985 = vmatpush1.msra.mxu0 %v4879
  %4986 = vmatprep.subr.mxu0 %v4884
  %4987 = vmatpush1.msra.mxu0 %v4883
  %4988 = vmatprep.subr.mxu0 0.0
  %4989 = vmatpush1.msra.mxu0 0.0
  %4990 = vmatprep.subr.mxu0 0.0
  %4991 = vmatpush1.msra.mxu0 0.0
  %4992 = vmatprep.subr.mxu0 0.0
  %4993 = vmatpush1.msra.mxu0 0.0
  %4994 = vmatprep.subr.mxu0 0.0
  %4995 = vmatpush1.msra.mxu0 0.0
  %4996 = vmatprep.subr.mxu0 0.0
  %4997 = vmatpush1.msra.mxu0 0.0
  %4998 = vmatprep.subr.mxu0 0.0
  %4999 = vmatpush1.msra.mxu0 0.0
  %5000 = vmatprep.subr.mxu0 0.0
  %5001 = vmatpush1.msra.mxu0 0.0
  %5002 = vmatprep.subr.mxu0 0.0
  %5003 = vmatpush1.msra.mxu0 0.0
  %5004 = vmatprep.subr.mxu0 0.0
  %5005 = vmatpush1.msra.mxu0 0.0
  %5006 = vmatprep.subr.mxu0 0.0
  %5007 = vmatpush1.msra.mxu0 0.0
  %5008 = vmatprep.subr.mxu0 0.0
  %5009 = vmatpush1.msra.mxu0 0.0
  %5010 = vmatprep.subr.mxu0 0.0
  %5011 = vmatpush1.msra.mxu0 0.0
  %5012 = vmatprep.subr.mxu0 0.0
  %5013 = vmatpush1.msra.mxu0 0.0
  %5014 = vmatprep.subr.mxu0 0.0
  %5015 = vmatpush1.msra.mxu0 0.0
  %5016 = vmatprep.subr.mxu0 0.0
  %5017 = vmatpush1.msra.mxu0 0.0
  %5018 = vmatprep.subr.mxu0 0.0
  %5019 = vmatpush1.msra.mxu0 0.0
  %5020 = vmatprep.mubr.f32.mxu0 0.0
  %5021 = vmatmul.mubr.f32.gmra.mrb[0].mxu0 0.0
  %v5022 = vpop.f32.mrb[0].mxu0
  %v5023 = vadd.f32 0.0, %v5022
  %v5024 = vpop.f32.mrb[0].mxu0
  %v5025 = vadd.f32 0.0, %v5024
  %5026 = vdwg.mxu0
  %v5027 = vadd.f32 %v4746, %v4952
  %v5028 = vadd.f32 %v4748, %v4954
  %v5029 = vadd.f32 %v4817, %v5023
  %v5030 = vadd.f32 %v4819, %v5025
  %v5031 = vxor.u32 %v5027, 2147483648
  %v5032 = vmul.f32 %v5031, 1.442695
  %v5033 = vpow.pop %v5032
  %v5034 = vadd.f32 %v5033, 1.0
  %v5035 = vrcp.pop %v5034
  %v5036 = vmul.f32 1.0, %v5035
  %v5037 = vxor.u32 %v5028, 2147483648
  %v5038 = vmul.f32 %v5037, 1.442695
  %v5039 = vpow.pop %v5038
  %v5040 = vadd.f32 %v5039, 1.0
  %v5041 = vrcp.pop %v5040
  %v5042 = vmul.f32 1.0, %v5041
  %v5043 = vtanh.pop %v5029
  %v5044 = vxor.u32 %v5030, 2147483648
  %v5045 = vmul.f32 %v5044, 1.442695
  %v5046 = vpow.pop %v5045
  %v5047 = vadd.f32 %v5046, 1.0
  %v5048 = vrcp.pop %v5047
  %v5049 = vmul.f32 1.0, %v5048
  %v5050 = vmul.f32 %v5042, 0.0
  %v5051 = vmul.f32 %v5036, %v5043
  %v5052 = vadd.f32 %v5050, %v5051
  %v5053 = vtanh.pop %v5052
  %v5054 = vmul.f32 %v5049, %v5053
  %5055 = vst [vmem:[#allocation2] sm:$0x3] %v5054
  %v5056 = vld [vmem:[%s8] sm:$0xff]
  %v5057 = vld [vmem:[%s8 + $0x8] sm:$0xff]
  %v5058 = vld [vmem:[%s8 + $0x10] sm:$0xff]
  %v5059 = vld [vmem:[%s8 + $0x18] sm:$0xff]
  %v5060 = vld [vmem:[%s8 + $0x20] sm:$0xff]
  %v5061 = vld [vmem:[%s8 + $0x28] sm:$0xff]
  %v5062 = vld [vmem:[%s8 + $0x30] sm:$0xff]
  %v5063 = vld [vmem:[%s8 + $0x38] sm:$0xff]
  %v5064 = vld [vmem:[%s8 + $0x40] sm:$0xff]
  %v5065 = vld [vmem:[%s8 + $0x48] sm:$0xff]
  %v5066 = vld [vmem:[%s8 + $0x50] sm:$0xff]
  %v5067 = vld [vmem:[%s8 + $0x58] sm:$0xff]
  %v5068 = vld [vmem:[%s8 + $0x60] sm:$0xff]
  %v5069 = vld [vmem:[%s8 + $0x68] sm:$0xff]
  %v5070 = vld [vmem:[%s8 + $0x70] sm:$0xff]
  %v5071 = vld [vmem:[%s8 + $0x78] sm:$0xff]
  %v5072 = vld [vmem:[%s8 + $0x80] sm:$0xff]
  %v5073 = vld [vmem:[%s8 + $0x88] sm:$0xff]
  %v5074 = vld [vmem:[%s8 + $0x90] sm:$0xff]
  %v5075 = vld [vmem:[%s8 + $0x98] sm:$0xff]
  %v5076 = vld [vmem:[%s8 + $0xa0] sm:$0xff]
  %v5077 = vld [vmem:[%s8 + $0xa8] sm:$0xff]
  %v5078 = vld [vmem:[%s8 + $0xb0] sm:$0xff]
  %v5079 = vld [vmem:[%s8 + $0xb8] sm:$0xff]
  %v5080 = vld [vmem:[%s8 + $0xc0] sm:$0xff]
  %v5081 = vld [vmem:[%s8 + $0xc8] sm:$0xff]
  %v5082 = vld [vmem:[%s8 + $0xd0] sm:$0xff]
  %v5083 = vld [vmem:[%s8 + $0xd8] sm:$0xff]
  %v5084 = vld [vmem:[%s8 + $0xe0] sm:$0xff]
  %v5085 = vld [vmem:[%s8 + $0xe8] sm:$0xff]
  %v5086 = vld [vmem:[%s8 + $0xf0] sm:$0xff]
  %v5087 = vld [vmem:[%s8 + $0xf8] sm:$0xff]
  %v5088 = vld [vmem:[%s8 + $0x100] sm:$0xff]
  %v5089 = vld [vmem:[%s8 + $0x108] sm:$0xff]
  %v5090 = vld [vmem:[%s8 + $0x110] sm:$0xff]
  %v5091 = vld [vmem:[%s8 + $0x118] sm:$0xff]
  %v5092 = vld [vmem:[%s8 + $0x120] sm:$0xff]
  %v5093 = vld [vmem:[%s8 + $0x128] sm:$0xff]
  %v5094 = vld [vmem:[%s8 + $0x130] sm:$0xff]
  %v5095 = vld [vmem:[%s8 + $0x138] sm:$0xff]
  %v5096 = vld [vmem:[%s8 + $0x140] sm:$0xff]
  %v5097 = vld [vmem:[%s8 + $0x148] sm:$0xff]
  %v5098 = vld [vmem:[%s8 + $0x150] sm:$0xff]
  %v5099 = vld [vmem:[%s8 + $0x158] sm:$0xff]
  %v5100 = vld [vmem:[%s8 + $0x160] sm:$0xff]
  %v5101 = vld [vmem:[%s8 + $0x168] sm:$0xff]
  %v5102 = vld [vmem:[%s8 + $0x170] sm:$0xff]
  %v5103 = vld [vmem:[%s8 + $0x178] sm:$0xff]
  %v5104 = vld [vmem:[%s8 + $0x180] sm:$0xff]
  %v5105 = vld [vmem:[%s8 + $0x188] sm:$0xff]
  %v5106 = vld [vmem:[%s8 + $0x190] sm:$0xff]
  %v5107 = vld [vmem:[%s8 + $0x198] sm:$0xff]
  %v5108 = vld [vmem:[%s8 + $0x1a0] sm:$0xff]
  %v5109 = vld [vmem:[%s8 + $0x1a8] sm:$0xff]
  %v5110 = vld [vmem:[%s8 + $0x1b0] sm:$0xff]
  %v5111 = vld [vmem:[%s8 + $0x1b8] sm:$0xff]
  %v5112 = vld [vmem:[%s8 + $0x1c0] sm:$0xff]
  %v5113 = vld [vmem:[%s8 + $0x1c8] sm:$0xff]
  %v5114 = vld [vmem:[%s8 + $0x1d0] sm:$0xff]
  %v5115 = vld [vmem:[%s8 + $0x1d8] sm:$0xff]
  %v5116 = vld [vmem:[%s8 + $0x1e0] sm:$0xff]
  %v5117 = vld [vmem:[%s8 + $0x1e8] sm:$0xff]
  %v5118 = vld [vmem:[%s8 + $0x1f0] sm:$0xff]
  %v5119 = vld [vmem:[%s8 + $0x1f8] sm:$0xff]
  %5120 = vmatprep.subr.mxu0 %v5057
  %5121 = vmatpush1.msra.mxu0 %v5056
  %5122 = vmatprep.subr.mxu0 %v5061
  %5123 = vmatpush1.msra.mxu0 %v5060
  %5124 = vmatprep.subr.mxu0 %v5065
  %5125 = vmatpush1.msra.mxu0 %v5064
  %5126 = vmatprep.subr.mxu0 %v5069
  %5127 = vmatpush1.msra.mxu0 %v5068
  %5128 = vmatprep.subr.mxu0 %v5073
  %5129 = vmatpush1.msra.mxu0 %v5072
  %5130 = vmatprep.subr.mxu0 %v5077
  %5131 = vmatpush1.msra.mxu0 %v5076
  %5132 = vmatprep.subr.mxu0 %v5081
  %5133 = vmatpush1.msra.mxu0 %v5080
  %5134 = vmatprep.subr.mxu0 %v5085
  %5135 = vmatpush1.msra.mxu0 %v5084
  %5136 = vmatprep.subr.mxu0 %v5089
  %5137 = vmatpush1.msra.mxu0 %v5088
  %5138 = vmatprep.subr.mxu0 %v5093
  %5139 = vmatpush1.msra.mxu0 %v5092
  %5140 = vmatprep.subr.mxu0 %v5097
  %5141 = vmatpush1.msra.mxu0 %v5096
  %5142 = vmatprep.subr.mxu0 %v5101
  %5143 = vmatpush1.msra.mxu0 %v5100
  %5144 = vmatprep.subr.mxu0 %v5105
  %5145 = vmatpush1.msra.mxu0 %v5104
  %5146 = vmatprep.subr.mxu0 %v5109
  %5147 = vmatpush1.msra.mxu0 %v5108
  %5148 = vmatprep.subr.mxu0 %v5113
  %5149 = vmatpush1.msra.mxu0 %v5112
  %5150 = vmatprep.subr.mxu0 %v5117
  %5151 = vmatpush1.msra.mxu0 %v5116
  %5152 = vmatprep.subr.mxu0 0.0
  %5153 = vmatpush1.msra.mxu0 0.0
  %5154 = vmatprep.subr.mxu0 0.0
  %5155 = vmatpush1.msra.mxu0 0.0
  %5156 = vmatprep.subr.mxu0 0.0
  %5157 = vmatpush1.msra.mxu0 0.0
  %5158 = vmatprep.subr.mxu0 0.0
  %5159 = vmatpush1.msra.mxu0 0.0
  %5160 = vmatprep.subr.mxu0 0.0
  %5161 = vmatpush1.msra.mxu0 0.0
  %5162 = vmatprep.subr.mxu0 0.0
  %5163 = vmatpush1.msra.mxu0 0.0
  %5164 = vmatprep.subr.mxu0 0.0
  %5165 = vmatpush1.msra.mxu0 0.0
  %5166 = vmatprep.subr.mxu0 0.0
  %5167 = vmatpush1.msra.mxu0 0.0
  %5168 = vmatprep.subr.mxu0 0.0
  %5169 = vmatpush1.msra.mxu0 0.0
  %5170 = vmatprep.subr.mxu0 0.0
  %5171 = vmatpush1.msra.mxu0 0.0
  %5172 = vmatprep.subr.mxu0 0.0
  %5173 = vmatpush1.msra.mxu0 0.0
  %5174 = vmatprep.subr.mxu0 0.0
  %5175 = vmatpush1.msra.mxu0 0.0
  %5176 = vmatprep.subr.mxu0 0.0
  %5177 = vmatpush1.msra.mxu0 0.0
  %5178 = vmatprep.subr.mxu0 0.0
  %5179 = vmatpush1.msra.mxu0 0.0
  %5180 = vmatprep.subr.mxu0 0.0
  %5181 = vmatpush1.msra.mxu0 0.0
  %5182 = vmatprep.subr.mxu0 0.0
  %5183 = vmatpush1.msra.mxu0 0.0
  %5184 = vmatprep.mubr.f32.mxu0 0.0
  %5185 = vmatmul.mubr.f32.gmra.mrb[0].mxu0 %v5054
  %v5186 = vpop.f32.mrb[0].mxu0
  %v5187 = vadd.f32 0.0, %v5186
  %v5188 = vpop.f32.mrb[0].mxu0
  %v5189 = vadd.f32 0.0, %v5188
  %5190 = vdwg.mxu0
  %5191 = vmatprep.subr.mxu0 %v5059
  %5192 = vmatpush1.msra.mxu0 %v5058
  %5193 = vmatprep.subr.mxu0 %v5063
  %5194 = vmatpush1.msra.mxu0 %v5062
  %5195 = vmatprep.subr.mxu0 %v5067
  %5196 = vmatpush1.msra.mxu0 %v5066
  %5197 = vmatprep.subr.mxu0 %v5071
  %5198 = vmatpush1.msra.mxu0 %v5070
  %5199 = vmatprep.subr.mxu0 %v5075
  %5200 = vmatpush1.msra.mxu0 %v5074
  %5201 = vmatprep.subr.mxu0 %v5079
  %5202 = vmatpush1.msra.mxu0 %v5078
  %5203 = vmatprep.subr.mxu0 %v5083
  %5204 = vmatpush1.msra.mxu0 %v5082
  %5205 = vmatprep.subr.mxu0 %v5087
  %5206 = vmatpush1.msra.mxu0 %v5086
  %5207 = vmatprep.subr.mxu0 %v5091
  %5208 = vmatpush1.msra.mxu0 %v5090
  %5209 = vmatprep.subr.mxu0 %v5095
  %5210 = vmatpush1.msra.mxu0 %v5094
  %5211 = vmatprep.subr.mxu0 %v5099
  %5212 = vmatpush1.msra.mxu0 %v5098
  %5213 = vmatprep.subr.mxu0 %v5103
  %5214 = vmatpush1.msra.mxu0 %v5102
  %5215 = vmatprep.subr.mxu0 %v5107
  %5216 = vmatpush1.msra.mxu0 %v5106
  %5217 = vmatprep.subr.mxu0 %v5111
  %5218 = vmatpush1.msra.mxu0 %v5110
  %5219 = vmatprep.subr.mxu0 %v5115
  %5220 = vmatpush1.msra.mxu0 %v5114
  %5221 = vmatprep.subr.mxu0 %v5119
  %5222 = vmatpush1.msra.mxu0 %v5118
  %5223 = vmatprep.subr.mxu0 0.0
  %5224 = vmatpush1.msra.mxu0 0.0
  %5225 = vmatprep.subr.mxu0 0.0
  %5226 = vmatpush1.msra.mxu0 0.0
  %5227 = vmatprep.subr.mxu0 0.0
  %5228 = vmatpush1.msra.mxu0 0.0
  %5229 = vmatprep.subr.mxu0 0.0
  %5230 = vmatpush1.msra.mxu0 0.0
  %5231 = vmatprep.subr.mxu0 0.0
  %5232 = vmatpush1.msra.mxu0 0.0
  %5233 = vmatprep.subr.mxu0 0.0
  %5234 = vmatpush1.msra.mxu0 0.0
  %5235 = vmatprep.subr.mxu0 0.0
  %5236 = vmatpush1.msra.mxu0 0.0
  %5237 = vmatprep.subr.mxu0 0.0
  %5238 = vmatpush1.msra.mxu0 0.0
  %5239 = vmatprep.subr.mxu0 0.0
  %5240 = vmatpush1.msra.mxu0 0.0
  %5241 = vmatprep.subr.mxu0 0.0
  %5242 = vmatpush1.msra.mxu0 0.0
  %5243 = vmatprep.subr.mxu0 0.0
  %5244 = vmatpush1.msra.mxu0 0.0
  %5245 = vmatprep.subr.mxu0 0.0
  %5246 = vmatpush1.msra.mxu0 0.0
  %5247 = vmatprep.subr.mxu0 0.0
  %5248 = vmatpush1.msra.mxu0 0.0
  %5249 = vmatprep.subr.mxu0 0.0
  %5250 = vmatpush1.msra.mxu0 0.0
  %5251 = vmatprep.subr.mxu0 0.0
  %5252 = vmatpush1.msra.mxu0 0.0
  %5253 = vmatprep.subr.mxu0 0.0
  %5254 = vmatpush1.msra.mxu0 0.0
  %5255 = vmatprep.mubr.f32.mxu0 0.0
  %5256 = vmatmul.mubr.f32.gmra.mrb[0].mxu0 %v5054
  %v5257 = vpop.f32.mrb[0].mxu0
  %v5258 = vadd.f32 0.0, %v5257
  %v5259 = vpop.f32.mrb[0].mxu0
  %v5260 = vadd.f32 0.0, %v5259
  %5261 = vdwg.mxu0
  %v5262 = vadd.f32 %v4746, %v5187
  %v5263 = vadd.f32 %v4748, %v5189
  %v5264 = vadd.f32 %v4817, %v5258
  %v5265 = vadd.f32 %v4819, %v5260
  %v5266 = vxor.u32 %v5262, 2147483648
  %v5267 = vmul.f32 %v5266, 1.442695
  %v5268 = vpow.pop %v5267
  %v5269 = vadd.f32 %v5268, 1.0
  %v5270 = vrcp.pop %v5269
  %v5271 = vmul.f32 1.0, %v5270
  %v5272 = vxor.u32 %v5263, 2147483648
  %v5273 = vmul.f32 %v5272, 1.442695
  %v5274 = vpow.pop %v5273
  %v5275 = vadd.f32 %v5274, 1.0
  %v5276 = vrcp.pop %v5275
  %v5277 = vmul.f32 1.0, %v5276
  %v5278 = vtanh.pop %v5264
  %v5279 = vxor.u32 %v5265, 2147483648
  %v5280 = vmul.f32 %v5279, 1.442695
  %v5281 = vpow.pop %v5280
  %v5282 = vadd.f32 %v5281, 1.0
  %v5283 = vrcp.pop %v5282
  %v5284 = vmul.f32 1.0, %v5283
  %v5285 = vmul.f32 %v5277, %v5052
  %v5286 = vmul.f32 %v5271, %v5278
  %v5287 = vadd.f32 %v5285, %v5286
  %v5288 = vtanh.pop %v5287
  %v5289 = vmul.f32 %v5284, %v5288
  %5290 = vst [vmem:[#allocation2 + $0x2] sm:$0x3] %v5289
  %v5291 = vld [vmem:[%s8] sm:$0xff]
  %v5292 = vld [vmem:[%s8 + $0x8] sm:$0xff]
  %v5293 = vld [vmem:[%s8 + $0x10] sm:$0xff]
  %v5294 = vld [vmem:[%s8 + $0x18] sm:$0xff]
  %v5295 = vld [vmem:[%s8 + $0x20] sm:$0xff]
  %v5296 = vld [vmem:[%s8 + $0x28] sm:$0xff]
  %v5297 = vld [vmem:[%s8 + $0x30] sm:$0xff]
  %v5298 = vld [vmem:[%s8 + $0x38] sm:$0xff]
  %v5299 = vld [vmem:[%s8 + $0x40] sm:$0xff]
  %v5300 = vld [vmem:[%s8 + $0x48] sm:$0xff]
  %v5301 = vld [vmem:[%s8 + $0x50] sm:$0xff]
  %v5302 = vld [vmem:[%s8 + $0x58] sm:$0xff]
  %v5303 = vld [vmem:[%s8 + $0x60] sm:$0xff]
  %v5304 = vld [vmem:[%s8 + $0x68] sm:$0xff]
  %v5305 = vld [vmem:[%s8 + $0x70] sm:$0xff]
  %v5306 = vld [vmem:[%s8 + $0x78] sm:$0xff]
  %v5307 = vld [vmem:[%s8 + $0x80] sm:$0xff]
  %v5308 = vld [vmem:[%s8 + $0x88] sm:$0xff]
  %v5309 = vld [vmem:[%s8 + $0x90] sm:$0xff]
  %v5310 = vld [vmem:[%s8 + $0x98] sm:$0xff]
  %v5311 = vld [vmem:[%s8 + $0xa0] sm:$0xff]
  %v5312 = vld [vmem:[%s8 + $0xa8] sm:$0xff]
  %v5313 = vld [vmem:[%s8 + $0xb0] sm:$0xff]
  %v5314 = vld [vmem:[%s8 + $0xb8] sm:$0xff]
  %v5315 = vld [vmem:[%s8 + $0xc0] sm:$0xff]
  %v5316 = vld [vmem:[%s8 + $0xc8] sm:$0xff]
  %v5317 = vld [vmem:[%s8 + $0xd0] sm:$0xff]
  %v5318 = vld [vmem:[%s8 + $0xd8] sm:$0xff]
  %v5319 = vld [vmem:[%s8 + $0xe0] sm:$0xff]
  %v5320 = vld [vmem:[%s8 + $0xe8] sm:$0xff]
  %v5321 = vld [vmem:[%s8 + $0xf0] sm:$0xff]
  %v5322 = vld [vmem:[%s8 + $0xf8] sm:$0xff]
  %v5323 = vld [vmem:[%s8 + $0x100] sm:$0xff]
  %v5324 = vld [vmem:[%s8 + $0x108] sm:$0xff]
  %v5325 = vld [vmem:[%s8 + $0x110] sm:$0xff]
  %v5326 = vld [vmem:[%s8 + $0x118] sm:$0xff]
  %v5327 = vld [vmem:[%s8 + $0x120] sm:$0xff]
  %v5328 = vld [vmem:[%s8 + $0x128] sm:$0xff]
  %v5329 = vld [vmem:[%s8 + $0x130] sm:$0xff]
  %v5330 = vld [vmem:[%s8 + $0x138] sm:$0xff]
  %v5331 = vld [vmem:[%s8 + $0x140] sm:$0xff]
  %v5332 = vld [vmem:[%s8 + $0x148] sm:$0xff]
  %v5333 = vld [vmem:[%s8 + $0x150] sm:$0xff]
  %v5334 = vld [vmem:[%s8 + $0x158] sm:$0xff]
  %v5335 = vld [vmem:[%s8 + $0x160] sm:$0xff]
  %v5336 = vld [vmem:[%s8 + $0x168] sm:$0xff]
  %v5337 = vld [vmem:[%s8 + $0x170] sm:$0xff]
  %v5338 = vld [vmem:[%s8 + $0x178] sm:$0xff]
  %v5339 = vld [vmem:[%s8 + $0x180] sm:$0xff]
  %v5340 = vld [vmem:[%s8 + $0x188] sm:$0xff]
  %v5341 = vld [vmem:[%s8 + $0x190] sm:$0xff]
  %v5342 = vld [vmem:[%s8 + $0x198] sm:$0xff]
  %v5343 = vld [vmem:[%s8 + $0x1a0] sm:$0xff]
  %v5344 = vld [vmem:[%s8 + $0x1a8] sm:$0xff]
  %v5345 = vld [vmem:[%s8 + $0x1b0] sm:$0xff]
  %v5346 = vld [vmem:[%s8 + $0x1b8] sm:$0xff]
  %v5347 = vld [vmem:[%s8 + $0x1c0] sm:$0xff]
  %v5348 = vld [vmem:[%s8 + $0x1c8] sm:$0xff]
  %v5349 = vld [vmem:[%s8 + $0x1d0] sm:$0xff]
  %v5350 = vld [vmem:[%s8 + $0x1d8] sm:$0xff]
  %v5351 = vld [vmem:[%s8 + $0x1e0] sm:$0xff]
  %v5352 = vld [vmem:[%s8 + $0x1e8] sm:$0xff]
  %v5353 = vld [vmem:[%s8 + $0x1f0] sm:$0xff]
  %v5354 = vld [vmem:[%s8 + $0x1f8] sm:$0xff]
  %5355 = vmatprep.subr.mxu0 %v5292
  %5356 = vmatpush1.msra.mxu0 %v5291
  %5357 = vmatprep.subr.mxu0 %v5296
  %5358 = vmatpush1.msra.mxu0 %v5295
  %5359 = vmatprep.subr.mxu0 %v5300
  %5360 = vmatpush1.msra.mxu0 %v5299
  %5361 = vmatprep.subr.mxu0 %v5304
  %5362 = vmatpush1.msra.mxu0 %v5303
  %5363 = vmatprep.subr.mxu0 %v5308
  %5364 = vmatpush1.msra.mxu0 %v5307
  %5365 = vmatprep.subr.mxu0 %v5312
  %5366 = vmatpush1.msra.mxu0 %v5311
  %5367 = vmatprep.subr.mxu0 %v5316
  %5368 = vmatpush1.msra.mxu0 %v5315
  %5369 = vmatprep.subr.mxu0 %v5320
  %5370 = vmatpush1.msra.mxu0 %v5319
  %5371 = vmatprep.subr.mxu0 %v5324
  %5372 = vmatpush1.msra.mxu0 %v5323
  %5373 = vmatprep.subr.mxu0 %v5328
  %5374 = vmatpush1.msra.mxu0 %v5327
  %5375 = vmatprep.subr.mxu0 %v5332
  %5376 = vmatpush1.msra.mxu0 %v5331
  %5377 = vmatprep.subr.mxu0 %v5336
  %5378 = vmatpush1.msra.mxu0 %v5335
  %5379 = vmatprep.subr.mxu0 %v5340
  %5380 = vmatpush1.msra.mxu0 %v5339
  %5381 = vmatprep.subr.mxu0 %v5344
  %5382 = vmatpush1.msra.mxu0 %v5343
  %5383 = vmatprep.subr.mxu0 %v5348
  %5384 = vmatpush1.msra.mxu0 %v5347
  %5385 = vmatprep.subr.mxu0 %v5352
  %5386 = vmatpush1.msra.mxu0 %v5351
  %5387 = vmatprep.subr.mxu0 0.0
  %5388 = vmatpush1.msra.mxu0 0.0
  %5389 = vmatprep.subr.mxu0 0.0
  %5390 = vmatpush1.msra.mxu0 0.0
  %5391 = vmatprep.subr.mxu0 0.0
  %5392 = vmatpush1.msra.mxu0 0.0
  %5393 = vmatprep.subr.mxu0 0.0
  %5394 = vmatpush1.msra.mxu0 0.0
  %5395 = vmatprep.subr.mxu0 0.0
  %5396 = vmatpush1.msra.mxu0 0.0
  %5397 = vmatprep.subr.mxu0 0.0
  %5398 = vmatpush1.msra.mxu0 0.0
  %5399 = vmatprep.subr.mxu0 0.0
  %5400 = vmatpush1.msra.mxu0 0.0
  %5401 = vmatprep.subr.mxu0 0.0
  %5402 = vmatpush1.msra.mxu0 0.0
  %5403 = vmatprep.subr.mxu0 0.0
  %5404 = vmatpush1.msra.mxu0 0.0
  %5405 = vmatprep.subr.mxu0 0.0
  %5406 = vmatpush1.msra.mxu0 0.0
  %5407 = vmatprep.subr.mxu0 0.0
  %5408 = vmatpush1.msra.mxu0 0.0
  %5409 = vmatprep.subr.mxu0 0.0
  %5410 = vmatpush1.msra.mxu0 0.0
  %5411 = vmatprep.subr.mxu0 0.0
  %5412 = vmatpush1.msra.mxu0 0.0
  %5413 = vmatprep.subr.mxu0 0.0
  %5414 = vmatpush1.msra.mxu0 0.0
  %5415 = vmatprep.subr.mxu0 0.0
  %5416 = vmatpush1.msra.mxu0 0.0
  %5417 = vmatprep.subr.mxu0 0.0
  %5418 = vmatpush1.msra.mxu0 0.0
  %5419 = vmatprep.mubr.f32.mxu0 0.0
  %5420 = vmatmul.mubr.f32.gmra.mrb[0].mxu0 %v5289
  %v5421 = vpop.f32.mrb[0].mxu0
  %v5422 = vadd.f32 0.0, %v5421
  %v5423 = vpop.f32.mrb[0].mxu0
  %v5424 = vadd.f32 0.0, %v5423
  %5425 = vdwg.mxu0
  %5426 = vmatprep.subr.mxu0 %v5294
  %5427 = vmatpush1.msra.mxu0 %v5293
  %5428 = vmatprep.subr.mxu0 %v5298
  %5429 = vmatpush1.msra.mxu0 %v5297
  %5430 = vmatprep.subr.mxu0 %v5302
  %5431 = vmatpush1.msra.mxu0 %v5301
  %5432 = vmatprep.subr.mxu0 %v5306
  %5433 = vmatpush1.msra.mxu0 %v5305
  %5434 = vmatprep.subr.mxu0 %v5310
  %5435 = vmatpush1.msra.mxu0 %v5309
  %5436 = vmatprep.subr.mxu0 %v5314
  %5437 = vmatpush1.msra.mxu0 %v5313
  %5438 = vmatprep.subr.mxu0 %v5318
  %5439 = vmatpush1.msra.mxu0 %v5317
  %5440 = vmatprep.subr.mxu0 %v5322
  %5441 = vmatpush1.msra.mxu0 %v5321
  %5442 = vmatprep.subr.mxu0 %v5326
  %5443 = vmatpush1.msra.mxu0 %v5325
  %5444 = vmatprep.subr.mxu0 %v5330
  %5445 = vmatpush1.msra.mxu0 %v5329
  %5446 = vmatprep.subr.mxu0 %v5334
  %5447 = vmatpush1.msra.mxu0 %v5333
  %5448 = vmatprep.subr.mxu0 %v5338
  %5449 = vmatpush1.msra.mxu0 %v5337
  %5450 = vmatprep.subr.mxu0 %v5342
  %5451 = vmatpush1.msra.mxu0 %v5341
  %5452 = vmatprep.subr.mxu0 %v5346
  %5453 = vmatpush1.msra.mxu0 %v5345
  %5454 = vmatprep.subr.mxu0 %v5350
  %5455 = vmatpush1.msra.mxu0 %v5349
  %5456 = vmatprep.subr.mxu0 %v5354
  %5457 = vmatpush1.msra.mxu0 %v5353
  %5458 = vmatprep.subr.mxu0 0.0
  %5459 = vmatpush1.msra.mxu0 0.0
  %5460 = vmatprep.subr.mxu0 0.0
  %5461 = vmatpush1.msra.mxu0 0.0
  %5462 = vmatprep.subr.mxu0 0.0
  %5463 = vmatpush1.msra.mxu0 0.0
  %5464 = vmatprep.subr.mxu0 0.0
  %5465 = vmatpush1.msra.mxu0 0.0
  %5466 = vmatprep.subr.mxu0 0.0
  %5467 = vmatpush1.msra.mxu0 0.0
  %5468 = vmatprep.subr.mxu0 0.0
  %5469 = vmatpush1.msra.mxu0 0.0
  %5470 = vmatprep.subr.mxu0 0.0
  %5471 = vmatpush1.msra.mxu0 0.0
  %5472 = vmatprep.subr.mxu0 0.0
  %5473 = vmatpush1.msra.mxu0 0.0
  %5474 = vmatprep.subr.mxu0 0.0
  %5475 = vmatpush1.msra.mxu0 0.0
  %5476 = vmatprep.subr.mxu0 0.0
  %5477 = vmatpush1.msra.mxu0 0.0
  %5478 = vmatprep.subr.mxu0 0.0
  %5479 = vmatpush1.msra.mxu0 0.0
  %5480 = vmatprep.subr.mxu0 0.0
  %5481 = vmatpush1.msra.mxu0 0.0
  %5482 = vmatprep.subr.mxu0 0.0
  %5483 = vmatpush1.msra.mxu0 0.0
  %5484 = vmatprep.subr.mxu0 0.0
  %5485 = vmatpush1.msra.mxu0 0.0
  %5486 = vmatprep.subr.mxu0 0.0
  %5487 = vmatpush1.msra.mxu0 0.0
  %5488 = vmatprep.subr.mxu0 0.0
  %5489 = vmatpush1.msra.mxu0 0.0
  %5490 = vmatprep.mubr.f32.mxu0 0.0
  %5491 = vmatmul.mubr.f32.gmra.mrb[0].mxu0 %v5289
  %v5492 = vpop.f32.mrb[0].mxu0
  %v5493 = vadd.f32 0.0, %v5492
  %v5494 = vpop.f32.mrb[0].mxu0
  %v5495 = vadd.f32 0.0, %v5494
  %5496 = vdwg.mxu0
  %v5497 = vadd.f32 %v4746, %v5422
  %v5498 = vadd.f32 %v4748, %v5424
  %v5499 = vadd.f32 %v4817, %v5493
  %v5500 = vadd.f32 %v4819, %v5495
  %v5501 = vxor.u32 %v5497, 2147483648
  %v5502 = vmul.f32 %v5501, 1.442695
  %v5503 = vpow.pop %v5502
  %v5504 = vadd.f32 %v5503, 1.0
  %v5505 = vrcp.pop %v5504
  %v5506 = vmul.f32 1.0, %v5505
  %v5507 = vxor.u32 %v5498, 2147483648
  %v5508 = vmul.f32 %v5507, 1.442695
  %v5509 = vpow.pop %v5508
  %v5510 = vadd.f32 %v5509, 1.0
  %v5511 = vrcp.pop %v5510
  %v5512 = vmul.f32 1.0, %v5511
  %v5513 = vtanh.pop %v5499
  %v5514 = vxor.u32 %v5500, 2147483648
  %v5515 = vmul.f32 %v5514, 1.442695
  %v5516 = vpow.pop %v5515
  %v5517 = vadd.f32 %v5516, 1.0
  %v5518 = vrcp.pop %v5517
  %v5519 = vmul.f32 1.0, %v5518
  %v5520 = vmul.f32 %v5512, %v5287
  %v5521 = vmul.f32 %v5506, %v5513
  %v5522 = vadd.f32 %v5520, %v5521
  %v5523 = vtanh.pop %v5522
  %v5524 = vmul.f32 %v5519, %v5523
  %5525 = vst [vmem:[#allocation2 + $0x4] sm:$0x3] %v5524
  %v5526 = vld [vmem:[%s8] sm:$0xff]
  %v5527 = vld [vmem:[%s8 + $0x8] sm:$0xff]
  %v5528 = vld [vmem:[%s8 + $0x10] sm:$0xff]
  %v5529 = vld [vmem:[%s8 + $0x18] sm:$0xff]
  %v5530 = vld [vmem:[%s8 + $0x20] sm:$0xff]
  %v5531 = vld [vmem:[%s8 + $0x28] sm:$0xff]
  %v5532 = vld [vmem:[%s8 + $0x30] sm:$0xff]
  %v5533 = vld [vmem:[%s8 + $0x38] sm:$0xff]
  %v5534 = vld [vmem:[%s8 + $0x40] sm:$0xff]
  %v5535 = vld [vmem:[%s8 + $0x48] sm:$0xff]
  %v5536 = vld [vmem:[%s8 + $0x50] sm:$0xff]
  %v5537 = vld [vmem:[%s8 + $0x58] sm:$0xff]
  %v5538 = vld [vmem:[%s8 + $0x60] sm:$0xff]
  %v5539 = vld [vmem:[%s8 + $0x68] sm:$0xff]
  %v5540 = vld [vmem:[%s8 + $0x70] sm:$0xff]
  %v5541 = vld [vmem:[%s8 + $0x78] sm:$0xff]
  %v5542 = vld [vmem:[%s8 + $0x80] sm:$0xff]
  %v5543 = vld [vmem:[%s8 + $0x88] sm:$0xff]
  %v5544 = vld [vmem:[%s8 + $0x90] sm:$0xff]
  %v5545 = vld [vmem:[%s8 + $0x98] sm:$0xff]
  %v5546 = vld [vmem:[%s8 + $0xa0] sm:$0xff]
  %v5547 = vld [vmem:[%s8 + $0xa8] sm:$0xff]
  %v5548 = vld [vmem:[%s8 + $0xb0] sm:$0xff]
  %v5549 = vld [vmem:[%s8 + $0xb8] sm:$0xff]
  %v5550 = vld [vmem:[%s8 + $0xc0] sm:$0xff]
  %v5551 = vld [vmem:[%s8 + $0xc8] sm:$0xff]
  %v5552 = vld [vmem:[%s8 + $0xd0] sm:$0xff]
  %v5553 = vld [vmem:[%s8 + $0xd8] sm:$0xff]
  %v5554 = vld [vmem:[%s8 + $0xe0] sm:$0xff]
  %v5555 = vld [vmem:[%s8 + $0xe8] sm:$0xff]
  %v5556 = vld [vmem:[%s8 + $0xf0] sm:$0xff]
  %v5557 = vld [vmem:[%s8 + $0xf8] sm:$0xff]
  %v5558 = vld [vmem:[%s8 + $0x100] sm:$0xff]
  %v5559 = vld [vmem:[%s8 + $0x108] sm:$0xff]
  %v5560 = vld [vmem:[%s8 + $0x110] sm:$0xff]
  %v5561 = vld [vmem:[%s8 + $0x118] sm:$0xff]
  %v5562 = vld [vmem:[%s8 + $0x120] sm:$0xff]
  %v5563 = vld [vmem:[%s8 + $0x128] sm:$0xff]
  %v5564 = vld [vmem:[%s8 + $0x130] sm:$0xff]
  %v5565 = vld [vmem:[%s8 + $0x138] sm:$0xff]
  %v5566 = vld [vmem:[%s8 + $0x140] sm:$0xff]
  %v5567 = vld [vmem:[%s8 + $0x148] sm:$0xff]
  %v5568 = vld [vmem:[%s8 + $0x150] sm:$0xff]
  %v5569 = vld [vmem:[%s8 + $0x158] sm:$0xff]
  %v5570 = vld [vmem:[%s8 + $0x160] sm:$0xff]
  %v5571 = vld [vmem:[%s8 + $0x168] sm:$0xff]
  %v5572 = vld [vmem:[%s8 + $0x170] sm:$0xff]
  %v5573 = vld [vmem:[%s8 + $0x178] sm:$0xff]
  %v5574 = vld [vmem:[%s8 + $0x180] sm:$0xff]
  %v5575 = vld [vmem:[%s8 + $0x188] sm:$0xff]
  %v5576 = vld [vmem:[%s8 + $0x190] sm:$0xff]
  %v5577 = vld [vmem:[%s8 + $0x198] sm:$0xff]
  %v5578 = vld [vmem:[%s8 + $0x1a0] sm:$0xff]
  %v5579 = vld [vmem:[%s8 + $0x1a8] sm:$0xff]
  %v5580 = vld [vmem:[%s8 + $0x1b0] sm:$0xff]
  %v5581 = vld [vmem:[%s8 + $0x1b8] sm:$0xff]
  %v5582 = vld [vmem:[%s8 + $0x1c0] sm:$0xff]
  %v5583 = vld [vmem:[%s8 + $0x1c8] sm:$0xff]
  %v5584 = vld [vmem:[%s8 + $0x1d0] sm:$0xff]
  %v5585 = vld [vmem:[%s8 + $0x1d8] sm:$0xff]
  %v5586 = vld [vmem:[%s8 + $0x1e0] sm:$0xff]
  %v5587 = vld [vmem:[%s8 + $0x1e8] sm:$0xff]
  %v5588 = vld [vmem:[%s8 + $0x1f0] sm:$0xff]
  %v5589 = vld [vmem:[%s8 + $0x1f8] sm:$0xff]
  %5590 = vmatprep.subr.mxu0 %v5527
  %5591 = vmatpush1.msra.mxu0 %v5526
  %5592 = vmatprep.subr.mxu0 %v5531
  %5593 = vmatpush1.msra.mxu0 %v5530
  %5594 = vmatprep.subr.mxu0 %v5535
  %5595 = vmatpush1.msra.mxu0 %v5534
  %5596 = vmatprep.subr.mxu0 %v5539
  %5597 = vmatpush1.msra.mxu0 %v5538
  %5598 = vmatprep.subr.mxu0 %v5543
  %5599 = vmatpush1.msra.mxu0 %v5542
  %5600 = vmatprep.subr.mxu0 %v5547
  %5601 = vmatpush1.msra.mxu0 %v5546
  %5602 = vmatprep.subr.mxu0 %v5551
  %5603 = vmatpush1.msra.mxu0 %v5550
  %5604 = vmatprep.subr.mxu0 %v5555
  %5605 = vmatpush1.msra.mxu0 %v5554
  %5606 = vmatprep.subr.mxu0 %v5559
  %5607 = vmatpush1.msra.mxu0 %v5558
  %5608 = vmatprep.subr.mxu0 %v5563
  %5609 = vmatpush1.msra.mxu0 %v5562
  %5610 = vmatprep.subr.mxu0 %v5567
  %5611 = vmatpush1.msra.mxu0 %v5566
  %5612 = vmatprep.subr.mxu0 %v5571
  %5613 = vmatpush1.msra.mxu0 %v5570
  %5614 = vmatprep.subr.mxu0 %v5575
  %5615 = vmatpush1.msra.mxu0 %v5574
  %5616 = vmatprep.subr.mxu0 %v5579
  %5617 = vmatpush1.msra.mxu0 %v5578
  %5618 = vmatprep.subr.mxu0 %v5583
  %5619 = vmatpush1.msra.mxu0 %v5582
  %5620 = vmatprep.subr.mxu0 %v5587
  %5621 = vmatpush1.msra.mxu0 %v5586
  %5622 = vmatprep.subr.mxu0 0.0
  %5623 = vmatpush1.msra.mxu0 0.0
  %5624 = vmatprep.subr.mxu0 0.0
  %5625 = vmatpush1.msra.mxu0 0.0
  %5626 = vmatprep.subr.mxu0 0.0
  %5627 = vmatpush1.msra.mxu0 0.0
  %5628 = vmatprep.subr.mxu0 0.0
  %5629 = vmatpush1.msra.mxu0 0.0
  %5630 = vmatprep.subr.mxu0 0.0
  %5631 = vmatpush1.msra.mxu0 0.0
  %5632 = vmatprep.subr.mxu0 0.0
  %5633 = vmatpush1.msra.mxu0 0.0
  %5634 = vmatprep.subr.mxu0 0.0
  %5635 = vmatpush1.msra.mxu0 0.0
  %5636 = vmatprep.subr.mxu0 0.0
  %5637 = vmatpush1.msra.mxu0 0.0
  %5638 = vmatprep.subr.mxu0 0.0
  %5639 = vmatpush1.msra.mxu0 0.0
  %5640 = vmatprep.subr.mxu0 0.0
  %5641 = vmatpush1.msra.mxu0 0.0
  %5642 = vmatprep.subr.mxu0 0.0
  %5643 = vmatpush1.msra.mxu0 0.0
  %5644 = vmatprep.subr.mxu0 0.0
  %5645 = vmatpush1.msra.mxu0 0.0
  %5646 = vmatprep.subr.mxu0 0.0
  %5647 = vmatpush1.msra.mxu0 0.0
  %5648 = vmatprep.subr.mxu0 0.0
  %5649 = vmatpush1.msra.mxu0 0.0
  %5650 = vmatprep.subr.mxu0 0.0
  %5651 = vmatpush1.msra.mxu0 0.0
  %5652 = vmatprep.subr.mxu0 0.0
  %5653 = vmatpush1.msra.mxu0 0.0
  %5654 = vmatprep.mubr.f32.mxu0 0.0
  %5655 = vmatmul.mubr.f32.gmra.mrb[0].mxu0 %v5524
  %v5656 = vpop.f32.mrb[0].mxu0
  %v5657 = vadd.f32 0.0, %v5656
  %v5658 = vpop.f32.mrb[0].mxu0
  %v5659 = vadd.f32 0.0, %v5658
  %5660 = vdwg.mxu0
  %5661 = vmatprep.subr.mxu0 %v5529
  %5662 = vmatpush1.msra.mxu0 %v5528
  %5663 = vmatprep.subr.mxu0 %v5533
  %5664 = vmatpush1.msra.mxu0 %v5532
  %5665 = vmatprep.subr.mxu0 %v5537
  %5666 = vmatpush1.msra.mxu0 %v5536
  %5667 = vmatprep.subr.mxu0 %v5541
  %5668 = vmatpush1.msra.mxu0 %v5540
  %5669 = vmatprep.subr.mxu0 %v5545
  %5670 = vmatpush1.msra.mxu0 %v5544
  %5671 = vmatprep.subr.mxu0 %v5549
  %5672 = vmatpush1.msra.mxu0 %v5548
  %5673 = vmatprep.subr.mxu0 %v5553
  %5674 = vmatpush1.msra.mxu0 %v5552
  %5675 = vmatprep.subr.mxu0 %v5557
  %5676 = vmatpush1.msra.mxu0 %v5556
  %5677 = vmatprep.subr.mxu0 %v5561
  %5678 = vmatpush1.msra.mxu0 %v5560
  %5679 = vmatprep.subr.mxu0 %v5565
  %5680 = vmatpush1.msra.mxu0 %v5564
  %5681 = vmatprep.subr.mxu0 %v5569
  %5682 = vmatpush1.msra.mxu0 %v5568
  %5683 = vmatprep.subr.mxu0 %v5573
  %5684 = vmatpush1.msra.mxu0 %v5572
  %5685 = vmatprep.subr.mxu0 %v5577
  %5686 = vmatpush1.msra.mxu0 %v5576
  %5687 = vmatprep.subr.mxu0 %v5581
  %5688 = vmatpush1.msra.mxu0 %v5580
  %5689 = vmatprep.subr.mxu0 %v5585
  %5690 = vmatpush1.msra.mxu0 %v5584
  %5691 = vmatprep.subr.mxu0 %v5589
  %5692 = vmatpush1.msra.mxu0 %v5588
  %5693 = vmatprep.subr.mxu0 0.0
  %5694 = vmatpush1.msra.mxu0 0.0
  %5695 = vmatprep.subr.mxu0 0.0
  %5696 = vmatpush1.msra.mxu0 0.0
  %5697 = vmatprep.subr.mxu0 0.0
  %5698 = vmatpush1.msra.mxu0 0.0
  %5699 = vmatprep.subr.mxu0 0.0
  %5700 = vmatpush1.msra.mxu0 0.0
  %5701 = vmatprep.subr.mxu0 0.0
  %5702 = vmatpush1.msra.mxu0 0.0
  %5703 = vmatprep.subr.mxu0 0.0
  %5704 = vmatpush1.msra.mxu0 0.0
  %5705 = vmatprep.subr.mxu0 0.0
  %5706 = vmatpush1.msra.mxu0 0.0
  %5707 = vmatprep.subr.mxu0 0.0
  %5708 = vmatpush1.msra.mxu0 0.0
  %5709 = vmatprep.subr.mxu0 0.0
  %5710 = vmatpush1.msra.mxu0 0.0
  %5711 = vmatprep.subr.mxu0 0.0
  %5712 = vmatpush1.msra.mxu0 0.0
  %5713 = vmatprep.subr.mxu0 0.0
  %5714 = vmatpush1.msra.mxu0 0.0
  %5715 = vmatprep.subr.mxu0 0.0
  %5716 = vmatpush1.msra.mxu0 0.0
  %5717 = vmatprep.subr.mxu0 0.0
  %5718 = vmatpush1.msra.mxu0 0.0
  %5719 = vmatprep.subr.mxu0 0.0
  %5720 = vmatpush1.msra.mxu0 0.0
  %5721 = vmatprep.subr.mxu0 0.0
  %5722 = vmatpush1.msra.mxu0 0.0
  %5723 = vmatprep.subr.mxu0 0.0
  %5724 = vmatpush1.msra.mxu0 0.0
  %5725 = vmatprep.mubr.f32.mxu0 0.0
  %5726 = vmatmul.mubr.f32.gmra.mrb[0].mxu0 %v5524
  %v5727 = vpop.f32.mrb[0].mxu0
  %v5728 = vadd.f32 0.0, %v5727
  %v5729 = vpop.f32.mrb[0].mxu0
  %v5730 = vadd.f32 0.0, %v5729
  %5731 = vdwg.mxu0
  %v5732 = vadd.f32 %v4746, %v5657
  %v5733 = vadd.f32 %v4748, %v5659
  %v5734 = vadd.f32 %v4817, %v5728
  %v5735 = vadd.f32 %v4819, %v5730
  %v5736 = vxor.u32 %v5732, 2147483648
  %v5737 = vmul.f32 %v5736, 1.442695
  %v5738 = vpow.pop %v5737
  %v5739 = vadd.f32 %v5738, 1.0
  %v5740 = vrcp.pop %v5739
  %v5741 = vmul.f32 1.0, %v5740
  %v5742 = vxor.u32 %v5733, 2147483648
  %v5743 = vmul.f32 %v5742, 1.442695
  %v5744 = vpow.pop %v5743
  %v5745 = vadd.f32 %v5744, 1.0
  %v5746 = vrcp.pop %v5745
  %v5747 = vmul.f32 1.0, %v5746
  %v5748 = vtanh.pop %v5734
  %v5749 = vxor.u32 %v5735, 2147483648
  %v5750 = vmul.f32 %v5749, 1.442695
  %v5751 = vpow.pop %v5750
  %v5752 = vadd.f32 %v5751, 1.0
  %v5753 = vrcp.pop %v5752
  %v5754 = vmul.f32 1.0, %v5753
  %v5755 = vmul.f32 %v5747, %v5522
  %v5756 = vmul.f32 %v5741, %v5748
  %v5757 = vadd.f32 %v5755, %v5756
  %v5758 = vtanh.pop %v5757
  %v5759 = vmul.f32 %v5754, %v5758
  %5760 = vst [vmem:[#allocation2 + $0x6] sm:$0x3] %v5759
  %v5761 = vld [vmem:[%s8] sm:$0xff]
  %v5762 = vld [vmem:[%s8 + $0x8] sm:$0xff]
  %v5763 = vld [vmem:[%s8 + $0x10] sm:$0xff]
  %v5764 = vld [vmem:[%s8 + $0x18] sm:$0xff]
  %v5765 = vld [vmem:[%s8 + $0x20] sm:$0xff]
  %v5766 = vld [vmem:[%s8 + $0x28] sm:$0xff]
  %v5767 = vld [vmem:[%s8 + $0x30] sm:$0xff]
  %v5768 = vld [vmem:[%s8 + $0x38] sm:$0xff]
  %v5769 = vld [vmem:[%s8 + $0x40] sm:$0xff]
  %v5770 = vld [vmem:[%s8 + $0x48] sm:$0xff]
  %v5771 = vld [vmem:[%s8 + $0x50] sm:$0xff]
  %v5772 = vld [vmem:[%s8 + $0x58] sm:$0xff]
  %v5773 = vld [vmem:[%s8 + $0x60] sm:$0xff]
  %v5774 = vld [vmem:[%s8 + $0x68] sm:$0xff]
  %v5775 = vld [vmem:[%s8 + $0x70] sm:$0xff]
  %v5776 = vld [vmem:[%s8 + $0x78] sm:$0xff]
  %v5777 = vld [vmem:[%s8 + $0x80] sm:$0xff]
  %v5778 = vld [vmem:[%s8 + $0x88] sm:$0xff]
  %v5779 = vld [vmem:[%s8 + $0x90] sm:$0xff]
  %v5780 = vld [vmem:[%s8 + $0x98] sm:$0xff]
  %v5781 = vld [vmem:[%s8 + $0xa0] sm:$0xff]
  %v5782 = vld [vmem:[%s8 + $0xa8] sm:$0xff]
  %v5783 = vld [vmem:[%s8 + $0xb0] sm:$0xff]
  %v5784 = vld [vmem:[%s8 + $0xb8] sm:$0xff]
  %v5785 = vld [vmem:[%s8 + $0xc0] sm:$0xff]
  %v5786 = vld [vmem:[%s8 + $0xc8] sm:$0xff]
  %v5787 = vld [vmem:[%s8 + $0xd0] sm:$0xff]
  %v5788 = vld [vmem:[%s8 + $0xd8] sm:$0xff]
  %v5789 = vld [vmem:[%s8 + $0xe0] sm:$0xff]
  %v5790 = vld [vmem:[%s8 + $0xe8] sm:$0xff]
  %v5791 = vld [vmem:[%s8 + $0xf0] sm:$0xff]
  %v5792 = vld [vmem:[%s8 + $0xf8] sm:$0xff]
  %v5793 = vld [vmem:[%s8 + $0x100] sm:$0xff]
  %v5794 = vld [vmem:[%s8 + $0x108] sm:$0xff]
  %v5795 = vld [vmem:[%s8 + $0x110] sm:$0xff]
  %v5796 = vld [vmem:[%s8 + $0x118] sm:$0xff]
  %v5797 = vld [vmem:[%s8 + $0x120] sm:$0xff]
  %v5798 = vld [vmem:[%s8 + $0x128] sm:$0xff]
  %v5799 = vld [vmem:[%s8 + $0x130] sm:$0xff]
  %v5800 = vld [vmem:[%s8 + $0x138] sm:$0xff]
  %v5801 = vld [vmem:[%s8 + $0x140] sm:$0xff]
  %v5802 = vld [vmem:[%s8 + $0x148] sm:$0xff]
  %v5803 = vld [vmem:[%s8 + $0x150] sm:$0xff]
  %v5804 = vld [vmem:[%s8 + $0x158] sm:$0xff]
  %v5805 = vld [vmem:[%s8 + $0x160] sm:$0xff]
  %v5806 = vld [vmem:[%s8 + $0x168] sm:$0xff]
  %v5807 = vld [vmem:[%s8 + $0x170] sm:$0xff]
  %v5808 = vld [vmem:[%s8 + $0x178] sm:$0xff]
  %v5809 = vld [vmem:[%s8 + $0x180] sm:$0xff]
  %v5810 = vld [vmem:[%s8 + $0x188] sm:$0xff]
  %v5811 = vld [vmem:[%s8 + $0x190] sm:$0xff]
  %v5812 = vld [vmem:[%s8 + $0x198] sm:$0xff]
  %v5813 = vld [vmem:[%s8 + $0x1a0] sm:$0xff]
  %v5814 = vld [vmem:[%s8 + $0x1a8] sm:$0xff]
  %v5815 = vld [vmem:[%s8 + $0x1b0] sm:$0xff]
  %v5816 = vld [vmem:[%s8 + $0x1b8] sm:$0xff]
  %v5817 = vld [vmem:[%s8 + $0x1c0] sm:$0xff]
  %v5818 = vld [vmem:[%s8 + $0x1c8] sm:$0xff]
  %v5819 = vld [vmem:[%s8 + $0x1d0] sm:$0xff]
  %v5820 = vld [vmem:[%s8 + $0x1d8] sm:$0xff]
  %v5821 = vld [vmem:[%s8 + $0x1e0] sm:$0xff]
  %v5822 = vld [vmem:[%s8 + $0x1e8] sm:$0xff]
  %v5823 = vld [vmem:[%s8 + $0x1f0] sm:$0xff]
  %v5824 = vld [vmem:[%s8 + $0x1f8] sm:$0xff]
  %5825 = vmatprep.subr.mxu0 %v5762
  %5826 = vmatpush1.msra.mxu0 %v5761
  %5827 = vmatprep.subr.mxu0 %v5766
  %5828 = vmatpush1.msra.mxu0 %v5765
  %5829 = vmatprep.subr.mxu0 %v5770
  %5830 = vmatpush1.msra.mxu0 %v5769
  %5831 = vmatprep.subr.mxu0 %v5774
  %5832 = vmatpush1.msra.mxu0 %v5773
  %5833 = vmatprep.subr.mxu0 %v5778
  %5834 = vmatpush1.msra.mxu0 %v5777
  %5835 = vmatprep.subr.mxu0 %v5782
  %5836 = vmatpush1.msra.mxu0 %v5781
  %5837 = vmatprep.subr.mxu0 %v5786
  %5838 = vmatpush1.msra.mxu0 %v5785
  %5839 = vmatprep.subr.mxu0 %v5790
  %5840 = vmatpush1.msra.mxu0 %v5789
  %5841 = vmatprep.subr.mxu0 %v5794
  %5842 = vmatpush1.msra.mxu0 %v5793
  %5843 = vmatprep.subr.mxu0 %v5798
  %5844 = vmatpush1.msra.mxu0 %v5797
  %5845 = vmatprep.subr.mxu0 %v5802
  %5846 = vmatpush1.msra.mxu0 %v5801
  %5847 = vmatprep.subr.mxu0 %v5806
  %5848 = vmatpush1.msra.mxu0 %v5805
  %5849 = vmatprep.subr.mxu0 %v5810
  %5850 = vmatpush1.msra.mxu0 %v5809
  %5851 = vmatprep.subr.mxu0 %v5814
  %5852 = vmatpush1.msra.mxu0 %v5813
  %5853 = vmatprep.subr.mxu0 %v5818
  %5854 = vmatpush1.msra.mxu0 %v5817
  %5855 = vmatprep.subr.mxu0 %v5822
  %5856 = vmatpush1.msra.mxu0 %v5821
  %5857 = vmatprep.subr.mxu0 0.0
  %5858 = vmatpush1.msra.mxu0 0.0
  %5859 = vmatprep.subr.mxu0 0.0
  %5860 = vmatpush1.msra.mxu0 0.0
  %5861 = vmatprep.subr.mxu0 0.0
  %5862 = vmatpush1.msra.mxu0 0.0
  %5863 = vmatprep.subr.mxu0 0.0
  %5864 = vmatpush1.msra.mxu0 0.0
  %5865 = vmatprep.subr.mxu0 0.0
  %5866 = vmatpush1.msra.mxu0 0.0
  %5867 = vmatprep.subr.mxu0 0.0
  %5868 = vmatpush1.msra.mxu0 0.0
  %5869 = vmatprep.subr.mxu0 0.0
  %5870 = vmatpush1.msra.mxu0 0.0
  %5871 = vmatprep.subr.mxu0 0.0
  %5872 = vmatpush1.msra.mxu0 0.0
  %5873 = vmatprep.subr.mxu0 0.0
  %5874 = vmatpush1.msra.mxu0 0.0
  %5875 = vmatprep.subr.mxu0 0.0
  %5876 = vmatpush1.msra.mxu0 0.0
  %5877 = vmatprep.subr.mxu0 0.0
  %5878 = vmatpush1.msra.mxu0 0.0
  %5879 = vmatprep.subr.mxu0 0.0
  %5880 = vmatpush1.msra.mxu0 0.0
  %5881 = vmatprep.subr.mxu0 0.0
  %5882 = vmatpush1.msra.mxu0 0.0
  %5883 = vmatprep.subr.mxu0 0.0
  %5884 = vmatpush1.msra.mxu0 0.0
  %5885 = vmatprep.subr.mxu0 0.0
  %5886 = vmatpush1.msra.mxu0 0.0
  %5887 = vmatprep.subr.mxu0 0.0
  %5888 = vmatpush1.msra.mxu0 0.0
  %5889 = vmatprep.mubr.f32.mxu0 0.0
  %5890 = vmatmul.mubr.f32.gmra.mrb[0].mxu0 %v5759
  %v5891 = vpop.f32.mrb[0].mxu0
  %v5892 = vadd.f32 0.0, %v5891
  %v5893 = vpop.f32.mrb[0].mxu0
  %v5894 = vadd.f32 0.0, %v5893
  %5895 = vdwg.mxu0
  %5896 = vmatprep.subr.mxu0 %v5764
  %5897 = vmatpush1.msra.mxu0 %v5763
  %5898 = vmatprep.subr.mxu0 %v5768
  %5899 = vmatpush1.msra.mxu0 %v5767
  %5900 = vmatprep.subr.mxu0 %v5772
  %5901 = vmatpush1.msra.mxu0 %v5771
  %5902 = vmatprep.subr.mxu0 %v5776
  %5903 = vmatpush1.msra.mxu0 %v5775
  %5904 = vmatprep.subr.mxu0 %v5780
  %5905 = vmatpush1.msra.mxu0 %v5779
  %5906 = vmatprep.subr.mxu0 %v5784
  %5907 = vmatpush1.msra.mxu0 %v5783
  %5908 = vmatprep.subr.mxu0 %v5788
  %5909 = vmatpush1.msra.mxu0 %v5787
  %5910 = vmatprep.subr.mxu0 %v5792
  %5911 = vmatpush1.msra.mxu0 %v5791
  %5912 = vmatprep.subr.mxu0 %v5796
  %5913 = vmatpush1.msra.mxu0 %v5795
  %5914 = vmatprep.subr.mxu0 %v5800
  %5915 = vmatpush1.msra.mxu0 %v5799
  %5916 = vmatprep.subr.mxu0 %v5804
  %5917 = vmatpush1.msra.mxu0 %v5803
  %5918 = vmatprep.subr.mxu0 %v5808
  %5919 = vmatpush1.msra.mxu0 %v5807
  %5920 = vmatprep.subr.mxu0 %v5812
  %5921 = vmatpush1.msra.mxu0 %v5811
  %5922 = vmatprep.subr.mxu0 %v5816
  %5923 = vmatpush1.msra.mxu0 %v5815
  %5924 = vmatprep.subr.mxu0 %v5820
  %5925 = vmatpush1.msra.mxu0 %v5819
  %5926 = vmatprep.subr.mxu0 %v5824
  %5927 = vmatpush1.msra.mxu0 %v5823
  %5928 = vmatprep.subr.mxu0 0.0
  %5929 = vmatpush1.msra.mxu0 0.0
  %5930 = vmatprep.subr.mxu0 0.0
  %5931 = vmatpush1.msra.mxu0 0.0
  %5932 = vmatprep.subr.mxu0 0.0
  %5933 = vmatpush1.msra.mxu0 0.0
  %5934 = vmatprep.subr.mxu0 0.0
  %5935 = vmatpush1.msra.mxu0 0.0
  %5936 = vmatprep.subr.mxu0 0.0
  %5937 = vmatpush1.msra.mxu0 0.0
  %5938 = vmatprep.subr.mxu0 0.0
  %5939 = vmatpush1.msra.mxu0 0.0
  %5940 = vmatprep.subr.mxu0 0.0
  %5941 = vmatpush1.msra.mxu0 0.0
  %5942 = vmatprep.subr.mxu0 0.0
  %5943 = vmatpush1.msra.mxu0 0.0
  %5944 = vmatprep.subr.mxu0 0.0
  %5945 = vmatpush1.msra.mxu0 0.0
  %5946 = vmatprep.subr.mxu0 0.0
  %5947 = vmatpush1.msra.mxu0 0.0
  %5948 = vmatprep.subr.mxu0 0.0
  %5949 = vmatpush1.msra.mxu0 0.0
  %5950 = vmatprep.subr.mxu0 0.0
  %5951 = vmatpush1.msra.mxu0 0.0
  %5952 = vmatprep.subr.mxu0 0.0
  %5953 = vmatpush1.msra.mxu0 0.0
  %5954 = vmatprep.subr.mxu0 0.0
  %5955 = vmatpush1.msra.mxu0 0.0
  %5956 = vmatprep.subr.mxu0 0.0
  %5957 = vmatpush1.msra.mxu0 0.0
  %5958 = vmatprep.subr.mxu0 0.0
  %5959 = vmatpush1.msra.mxu0 0.0
  %5960 = vmatprep.mubr.f32.mxu0 0.0
  %5961 = vmatmul.mubr.f32.gmra.mrb[0].mxu0 %v5759
  %v5962 = vpop.f32.mrb[0].mxu0
  %v5963 = vadd.f32 0.0, %v5962
  %v5964 = vpop.f32.mrb[0].mxu0
  %v5965 = vadd.f32 0.0, %v5964
  %5966 = vdwg.mxu0
  %v5967 = vadd.f32 %v4746, %v5892
  %v5968 = vadd.f32 %v4748, %v5894
  %v5969 = vadd.f32 %v4817, %v5963
  %v5970 = vadd.f32 %v4819, %v5965
  %v5971 = vxor.u32 %v5967, 2147483648
  %v5972 = vmul.f32 %v5971, 1.442695
  %v5973 = vpow.pop %v5972
  %v5974 = vadd.f32 %v5973, 1.0
  %v5975 = vrcp.pop %v5974
  %v5976 = vmul.f32 1.0, %v5975
  %v5977 = vxor.u32 %v5968, 2147483648
  %v5978 = vmul.f32 %v5977, 1.442695
  %v5979 = vpow.pop %v5978
  %v5980 = vadd.f32 %v5979, 1.0
  %v5981 = vrcp.pop %v5980
  %v5982 = vmul.f32 1.0, %v5981
  %v5983 = vtanh.pop %v5969
  %v5984 = vxor.u32 %v5970, 2147483648
  %v5985 = vmul.f32 %v5984, 1.442695
  %v5986 = vpow.pop %v5985
  %v5987 = vadd.f32 %v5986, 1.0
  %v5988 = vrcp.pop %v5987
  %v5989 = vmul.f32 1.0, %v5988
  %v5990 = vmul.f32 %v5982, %v5757
  %v5991 = vmul.f32 %v5976, %v5983
  %v5992 = vadd.f32 %v5990, %v5991
  %v5993 = vtanh.pop %v5992
  %v5994 = vmul.f32 %v5989, %v5993
  %5995 = vst [vmem:[#allocation2 + $0x8] sm:$0x3] %v5994
  %v5996 = vld [vmem:[%s8] sm:$0xff]
  %v5997 = vld [vmem:[%s8 + $0x8] sm:$0xff]
  %v5998 = vld [vmem:[%s8 + $0x10] sm:$0xff]
  %v5999 = vld [vmem:[%s8 + $0x18] sm:$0xff]
  %v6000 = vld [vmem:[%s8 + $0x20] sm:$0xff]
  %v6001 = vld [vmem:[%s8 + $0x28] sm:$0xff]
  %v6002 = vld [vmem:[%s8 + $0x30] sm:$0xff]
  %v6003 = vld [vmem:[%s8 + $0x38] sm:$0xff]
  %v6004 = vld [vmem:[%s8 + $0x40] sm:$0xff]
  %v6005 = vld [vmem:[%s8 + $0x48] sm:$0xff]
  %v6006 = vld [vmem:[%s8 + $0x50] sm:$0xff]
  %v6007 = vld [vmem:[%s8 + $0x58] sm:$0xff]
  %v6008 = vld [vmem:[%s8 + $0x60] sm:$0xff]
  %v6009 = vld [vmem:[%s8 + $0x68] sm:$0xff]
  %v6010 = vld [vmem:[%s8 + $0x70] sm:$0xff]
  %v6011 = vld [vmem:[%s8 + $0x78] sm:$0xff]
  %v6012 = vld [vmem:[%s8 + $0x80] sm:$0xff]
  %v6013 = vld [vmem:[%s8 + $0x88] sm:$0xff]
  %v6014 = vld [vmem:[%s8 + $0x90] sm:$0xff]
  %v6015 = vld [vmem:[%s8 + $0x98] sm:$0xff]
  %v6016 = vld [vmem:[%s8 + $0xa0] sm:$0xff]
  %v6017 = vld [vmem:[%s8 + $0xa8] sm:$0xff]
  %v6018 = vld [vmem:[%s8 + $0xb0] sm:$0xff]
  %v6019 = vld [vmem:[%s8 + $0xb8] sm:$0xff]
  %v6020 = vld [vmem:[%s8 + $0xc0] sm:$0xff]
  %v6021 = vld [vmem:[%s8 + $0xc8] sm:$0xff]
  %v6022 = vld [vmem:[%s8 + $0xd0] sm:$0xff]
  %v6023 = vld [vmem:[%s8 + $0xd8] sm:$0xff]
  %v6024 = vld [vmem:[%s8 + $0xe0] sm:$0xff]
  %v6025 = vld [vmem:[%s8 + $0xe8] sm:$0xff]
  %v6026 = vld [vmem:[%s8 + $0xf0] sm:$0xff]
  %v6027 = vld [vmem:[%s8 + $0xf8] sm:$0xff]
  %v6028 = vld [vmem:[%s8 + $0x100] sm:$0xff]
  %v6029 = vld [vmem:[%s8 + $0x108] sm:$0xff]
  %v6030 = vld [vmem:[%s8 + $0x110] sm:$0xff]
  %v6031 = vld [vmem:[%s8 + $0x118] sm:$0xff]
  %v6032 = vld [vmem:[%s8 + $0x120] sm:$0xff]
  %v6033 = vld [vmem:[%s8 + $0x128] sm:$0xff]
  %v6034 = vld [vmem:[%s8 + $0x130] sm:$0xff]
  %v6035 = vld [vmem:[%s8 + $0x138] sm:$0xff]
  %v6036 = vld [vmem:[%s8 + $0x140] sm:$0xff]
  %v6037 = vld [vmem:[%s8 + $0x148] sm:$0xff]
  %v6038 = vld [vmem:[%s8 + $0x150] sm:$0xff]
  %v6039 = vld [vmem:[%s8 + $0x158] sm:$0xff]
  %v6040 = vld [vmem:[%s8 + $0x160] sm:$0xff]
  %v6041 = vld [vmem:[%s8 + $0x168] sm:$0xff]
  %v6042 = vld [vmem:[%s8 + $0x170] sm:$0xff]
  %v6043 = vld [vmem:[%s8 + $0x178] sm:$0xff]
  %v6044 = vld [vmem:[%s8 + $0x180] sm:$0xff]
  %v6045 = vld [vmem:[%s8 + $0x188] sm:$0xff]
  %v6046 = vld [vmem:[%s8 + $0x190] sm:$0xff]
  %v6047 = vld [vmem:[%s8 + $0x198] sm:$0xff]
  %v6048 = vld [vmem:[%s8 + $0x1a0] sm:$0xff]
  %v6049 = vld [vmem:[%s8 + $0x1a8] sm:$0xff]
  %v6050 = vld [vmem:[%s8 + $0x1b0] sm:$0xff]
  %v6051 = vld [vmem:[%s8 + $0x1b8] sm:$0xff]
  %v6052 = vld [vmem:[%s8 + $0x1c0] sm:$0xff]
  %v6053 = vld [vmem:[%s8 + $0x1c8] sm:$0xff]
  %v6054 = vld [vmem:[%s8 + $0x1d0] sm:$0xff]
  %v6055 = vld [vmem:[%s8 + $0x1d8] sm:$0xff]
  %v6056 = vld [vmem:[%s8 + $0x1e0] sm:$0xff]
  %v6057 = vld [vmem:[%s8 + $0x1e8] sm:$0xff]
  %v6058 = vld [vmem:[%s8 + $0x1f0] sm:$0xff]
  %v6059 = vld [vmem:[%s8 + $0x1f8] sm:$0xff]
  %6060 = vmatprep.subr.mxu0 %v5997
  %6061 = vmatpush1.msra.mxu0 %v5996
  %6062 = vmatprep.subr.mxu0 %v6001
  %6063 = vmatpush1.msra.mxu0 %v6000
  %6064 = vmatprep.subr.mxu0 %v6005
  %6065 = vmatpush1.msra.mxu0 %v6004
  %6066 = vmatprep.subr.mxu0 %v6009
  %6067 = vmatpush1.msra.mxu0 %v6008
  %6068 = vmatprep.subr.mxu0 %v6013
  %6069 = vmatpush1.msra.mxu0 %v6012
  %6070 = vmatprep.subr.mxu0 %v6017
  %6071 = vmatpush1.msra.mxu0 %v6016
  %6072 = vmatprep.subr.mxu0 %v6021
  %6073 = vmatpush1.msra.mxu0 %v6020
  %6074 = vmatprep.subr.mxu0 %v6025
  %6075 = vmatpush1.msra.mxu0 %v6024
  %6076 = vmatprep.subr.mxu0 %v6029
  %6077 = vmatpush1.msra.mxu0 %v6028
  %6078 = vmatprep.subr.mxu0 %v6033
  %6079 = vmatpush1.msra.mxu0 %v6032
  %6080 = vmatprep.subr.mxu0 %v6037
  %6081 = vmatpush1.msra.mxu0 %v6036
  %6082 = vmatprep.subr.mxu0 %v6041
  %6083 = vmatpush1.msra.mxu0 %v6040
  %6084 = vmatprep.subr.mxu0 %v6045
  %6085 = vmatpush1.msra.mxu0 %v6044
  %6086 = vmatprep.subr.mxu0 %v6049
  %6087 = vmatpush1.msra.mxu0 %v6048
  %6088 = vmatprep.subr.mxu0 %v6053
  %6089 = vmatpush1.msra.mxu0 %v6052
  %6090 = vmatprep.subr.mxu0 %v6057
  %6091 = vmatpush1.msra.mxu0 %v6056
  %6092 = vmatprep.subr.mxu0 0.0
  %6093 = vmatpush1.msra.mxu0 0.0
  %6094 = vmatprep.subr.mxu0 0.0
  %6095 = vmatpush1.msra.mxu0 0.0
  %6096 = vmatprep.subr.mxu0 0.0
  %6097 = vmatpush1.msra.mxu0 0.0
  %6098 = vmatprep.subr.mxu0 0.0
  %6099 = vmatpush1.msra.mxu0 0.0
  %6100 = vmatprep.subr.mxu0 0.0
  %6101 = vmatpush1.msra.mxu0 0.0
  %6102 = vmatprep.subr.mxu0 0.0
  %6103 = vmatpush1.msra.mxu0 0.0
  %6104 = vmatprep.subr.mxu0 0.0
  %6105 = vmatpush1.msra.mxu0 0.0
  %6106 = vmatprep.subr.mxu0 0.0
  %6107 = vmatpush1.msra.mxu0 0.0
  %6108 = vmatprep.subr.mxu0 0.0
  %6109 = vmatpush1.msra.mxu0 0.0
  %6110 = vmatprep.subr.mxu0 0.0
  %6111 = vmatpush1.msra.mxu0 0.0
  %6112 = vmatprep.subr.mxu0 0.0
  %6113 = vmatpush1.msra.mxu0 0.0
  %6114 = vmatprep.subr.mxu0 0.0
  %6115 = vmatpush1.msra.mxu0 0.0
  %6116 = vmatprep.subr.mxu0 0.0
  %6117 = vmatpush1.msra.mxu0 0.0
  %6118 = vmatprep.subr.mxu0 0.0
  %6119 = vmatpush1.msra.mxu0 0.0
  %6120 = vmatprep.subr.mxu0 0.0
  %6121 = vmatpush1.msra.mxu0 0.0
  %6122 = vmatprep.subr.mxu0 0.0
  %6123 = vmatpush1.msra.mxu0 0.0
  %6124 = vmatprep.mubr.f32.mxu0 0.0
  %6125 = vmatmul.mubr.f32.gmra.mrb[0].mxu0 %v5994
  %v6126 = vpop.f32.mrb[0].mxu0
  %v6127 = vadd.f32 0.0, %v6126
  %v6128 = vpop.f32.mrb[0].mxu0
  %v6129 = vadd.f32 0.0, %v6128
  %6130 = vdwg.mxu0
  %6131 = vmatprep.subr.mxu0 %v5999
  %6132 = vmatpush1.msra.mxu0 %v5998
  %6133 = vmatprep.subr.mxu0 %v6003
  %6134 = vmatpush1.msra.mxu0 %v6002
  %6135 = vmatprep.subr.mxu0 %v6007
  %6136 = vmatpush1.msra.mxu0 %v6006
  %6137 = vmatprep.subr.mxu0 %v6011
  %6138 = vmatpush1.msra.mxu0 %v6010
  %6139 = vmatprep.subr.mxu0 %v6015
  %6140 = vmatpush1.msra.mxu0 %v6014
  %6141 = vmatprep.subr.mxu0 %v6019
  %6142 = vmatpush1.msra.mxu0 %v6018
  %6143 = vmatprep.subr.mxu0 %v6023
  %6144 = vmatpush1.msra.mxu0 %v6022
  %6145 = vmatprep.subr.mxu0 %v6027
  %6146 = vmatpush1.msra.mxu0 %v6026
  %6147 = vmatprep.subr.mxu0 %v6031
  %6148 = vmatpush1.msra.mxu0 %v6030
  %6149 = vmatprep.subr.mxu0 %v6035
  %6150 = vmatpush1.msra.mxu0 %v6034
  %6151 = vmatprep.subr.mxu0 %v6039
  %6152 = vmatpush1.msra.mxu0 %v6038
  %6153 = vmatprep.subr.mxu0 %v6043
  %6154 = vmatpush1.msra.mxu0 %v6042
  %6155 = vmatprep.subr.mxu0 %v6047
  %6156 = vmatpush1.msra.mxu0 %v6046
  %6157 = vmatprep.subr.mxu0 %v6051
  %6158 = vmatpush1.msra.mxu0 %v6050
  %6159 = vmatprep.subr.mxu0 %v6055
  %6160 = vmatpush1.msra.mxu0 %v6054
  %6161 = vmatprep.subr.mxu0 %v6059
  %6162 = vmatpush1.msra.mxu0 %v6058
  %6163 = vmatprep.subr.mxu0 0.0
  %6164 = vmatpush1.msra.mxu0 0.0
  %6165 = vmatprep.subr.mxu0 0.0
  %6166 = vmatpush1.msra.mxu0 0.0
  %6167 = vmatprep.subr.mxu0 0.0
  %6168 = vmatpush1.msra.mxu0 0.0
  %6169 = vmatprep.subr.mxu0 0.0
  %6170 = vmatpush1.msra.mxu0 0.0
  %6171 = vmatprep.subr.mxu0 0.0
  %6172 = vmatpush1.msra.mxu0 0.0
  %6173 = vmatprep.subr.mxu0 0.0
  %6174 = vmatpush1.msra.mxu0 0.0
  %6175 = vmatprep.subr.mxu0 0.0
  %6176 = vmatpush1.msra.mxu0 0.0
  %6177 = vmatprep.subr.mxu0 0.0
  %6178 = vmatpush1.msra.mxu0 0.0
  %6179 = vmatprep.subr.mxu0 0.0
  %6180 = vmatpush1.msra.mxu0 0.0
  %6181 = vmatprep.subr.mxu0 0.0
  %6182 = vmatpush1.msra.mxu0 0.0
  %6183 = vmatprep.subr.mxu0 0.0
  %6184 = vmatpush1.msra.mxu0 0.0
  %6185 = vmatprep.subr.mxu0 0.0
  %6186 = vmatpush1.msra.mxu0 0.0
  %6187 = vmatprep.subr.mxu0 0.0
  %6188 = vmatpush1.msra.mxu0 0.0
  %6189 = vmatprep.subr.mxu0 0.0
  %6190 = vmatpush1.msra.mxu0 0.0
  %6191 = vmatprep.subr.mxu0 0.0
  %6192 = vmatpush1.msra.mxu0 0.0
  %6193 = vmatprep.subr.mxu0 0.0
  %6194 = vmatpush1.msra.mxu0 0.0
  %6195 = vmatprep.mubr.f32.mxu0 0.0
  %6196 = vmatmul.mubr.f32.gmra.mrb[0].mxu0 %v5994
  %v6197 = vpop.f32.mrb[0].mxu0
  %v6198 = vadd.f32 0.0, %v6197
  %v6199 = vpop.f32.mrb[0].mxu0
  %v6200 = vadd.f32 0.0, %v6199
  %6201 = vdwg.mxu0
  %v6202 = vadd.f32 %v4746, %v6127
  %v6203 = vadd.f32 %v4748, %v6129
  %v6204 = vadd.f32 %v4817, %v6198
  %v6205 = vadd.f32 %v4819, %v6200
  %v6206 = vxor.u32 %v6202, 2147483648
  %v6207 = vmul.f32 %v6206, 1.442695
  %v6208 = vpow.pop %v6207
  %v6209 = vadd.f32 %v6208, 1.0
  %v6210 = vrcp.pop %v6209
  %v6211 = vmul.f32 1.0, %v6210
  %v6212 = vxor.u32 %v6203, 2147483648
  %v6213 = vmul.f32 %v6212, 1.442695
  %v6214 = vpow.pop %v6213
  %v6215 = vadd.f32 %v6214, 1.0
  %v6216 = vrcp.pop %v6215
  %v6217 = vmul.f32 1.0, %v6216
  %v6218 = vtanh.pop %v6204
  %v6219 = vxor.u32 %v6205, 2147483648
  %v6220 = vmul.f32 %v6219, 1.442695
  %v6221 = vpow.pop %v6220
  %v6222 = vadd.f32 %v6221, 1.0
  %v6223 = vrcp.pop %v6222
  %v6224 = vmul.f32 1.0, %v6223
  %v6225 = vmul.f32 %v6217, %v5992
  %v6226 = vmul.f32 %v6211, %v6218
  %v6227 = vadd.f32 %v6225, %v6226
  %v6228 = vtanh.pop %v6227
  %v6229 = vmul.f32 %v6224, %v6228
  %6230 = vst [vmem:[#allocation2 + $0xa] sm:$0x3] %v6229
  %v6231 = vld [vmem:[%s8] sm:$0xff]
  %v6232 = vld [vmem:[%s8 + $0x8] sm:$0xff]
  %v6233 = vld [vmem:[%s8 + $0x10] sm:$0xff]
  %v6234 = vld [vmem:[%s8 + $0x18] sm:$0xff]
  %v6235 = vld [vmem:[%s8 + $0x20] sm:$0xff]
  %v6236 = vld [vmem:[%s8 + $0x28] sm:$0xff]
  %v6237 = vld [vmem:[%s8 + $0x30] sm:$0xff]
  %v6238 = vld [vmem:[%s8 + $0x38] sm:$0xff]
  %v6239 = vld [vmem:[%s8 + $0x40] sm:$0xff]
  %v6240 = vld [vmem:[%s8 + $0x48] sm:$0xff]
  %v6241 = vld [vmem:[%s8 + $0x50] sm:$0xff]
  %v6242 = vld [vmem:[%s8 + $0x58] sm:$0xff]
  %v6243 = vld [vmem:[%s8 + $0x60] sm:$0xff]
  %v6244 = vld [vmem:[%s8 + $0x68] sm:$0xff]
  %v6245 = vld [vmem:[%s8 + $0x70] sm:$0xff]
  %v6246 = vld [vmem:[%s8 + $0x78] sm:$0xff]
  %v6247 = vld [vmem:[%s8 + $0x80] sm:$0xff]
  %v6248 = vld [vmem:[%s8 + $0x88] sm:$0xff]
  %v6249 = vld [vmem:[%s8 + $0x90] sm:$0xff]
  %v6250 = vld [vmem:[%s8 + $0x98] sm:$0xff]
  %v6251 = vld [vmem:[%s8 + $0xa0] sm:$0xff]
  %v6252 = vld [vmem:[%s8 + $0xa8] sm:$0xff]
  %v6253 = vld [vmem:[%s8 + $0xb0] sm:$0xff]
  %v6254 = vld [vmem:[%s8 + $0xb8] sm:$0xff]
  %v6255 = vld [vmem:[%s8 + $0xc0] sm:$0xff]
  %v6256 = vld [vmem:[%s8 + $0xc8] sm:$0xff]
  %v6257 = vld [vmem:[%s8 + $0xd0] sm:$0xff]
  %v6258 = vld [vmem:[%s8 + $0xd8] sm:$0xff]
  %v6259 = vld [vmem:[%s8 + $0xe0] sm:$0xff]
  %v6260 = vld [vmem:[%s8 + $0xe8] sm:$0xff]
  %v6261 = vld [vmem:[%s8 + $0xf0] sm:$0xff]
  %v6262 = vld [vmem:[%s8 + $0xf8] sm:$0xff]
  %v6263 = vld [vmem:[%s8 + $0x100] sm:$0xff]
  %v6264 = vld [vmem:[%s8 + $0x108] sm:$0xff]
  %v6265 = vld [vmem:[%s8 + $0x110] sm:$0xff]
  %v6266 = vld [vmem:[%s8 + $0x118] sm:$0xff]
  %v6267 = vld [vmem:[%s8 + $0x120] sm:$0xff]
  %v6268 = vld [vmem:[%s8 + $0x128] sm:$0xff]
  %v6269 = vld [vmem:[%s8 + $0x130] sm:$0xff]
  %v6270 = vld [vmem:[%s8 + $0x138] sm:$0xff]
  %v6271 = vld [vmem:[%s8 + $0x140] sm:$0xff]
  %v6272 = vld [vmem:[%s8 + $0x148] sm:$0xff]
  %v6273 = vld [vmem:[%s8 + $0x150] sm:$0xff]
  %v6274 = vld [vmem:[%s8 + $0x158] sm:$0xff]
  %v6275 = vld [vmem:[%s8 + $0x160] sm:$0xff]
  %v6276 = vld [vmem:[%s8 + $0x168] sm:$0xff]
  %v6277 = vld [vmem:[%s8 + $0x170] sm:$0xff]
  %v6278 = vld [vmem:[%s8 + $0x178] sm:$0xff]
  %v6279 = vld [vmem:[%s8 + $0x180] sm:$0xff]
  %v6280 = vld [vmem:[%s8 + $0x188] sm:$0xff]
  %v6281 = vld [vmem:[%s8 + $0x190] sm:$0xff]
  %v6282 = vld [vmem:[%s8 + $0x198] sm:$0xff]
  %v6283 = vld [vmem:[%s8 + $0x1a0] sm:$0xff]
  %v6284 = vld [vmem:[%s8 + $0x1a8] sm:$0xff]
  %v6285 = vld [vmem:[%s8 + $0x1b0] sm:$0xff]
  %v6286 = vld [vmem:[%s8 + $0x1b8] sm:$0xff]
  %v6287 = vld [vmem:[%s8 + $0x1c0] sm:$0xff]
  %v6288 = vld [vmem:[%s8 + $0x1c8] sm:$0xff]
  %v6289 = vld [vmem:[%s8 + $0x1d0] sm:$0xff]
  %v6290 = vld [vmem:[%s8 + $0x1d8] sm:$0xff]
  %v6291 = vld [vmem:[%s8 + $0x1e0] sm:$0xff]
  %v6292 = vld [vmem:[%s8 + $0x1e8] sm:$0xff]
  %v6293 = vld [vmem:[%s8 + $0x1f0] sm:$0xff]
  %v6294 = vld [vmem:[%s8 + $0x1f8] sm:$0xff]
  %6295 = vmatprep.subr.mxu0 %v6232
  %6296 = vmatpush1.msra.mxu0 %v6231
  %6297 = vmatprep.subr.mxu0 %v6236
  %6298 = vmatpush1.msra.mxu0 %v6235
  %6299 = vmatprep.subr.mxu0 %v6240
  %6300 = vmatpush1.msra.mxu0 %v6239
  %6301 = vmatprep.subr.mxu0 %v6244
  %6302 = vmatpush1.msra.mxu0 %v6243
  %6303 = vmatprep.subr.mxu0 %v6248
  %6304 = vmatpush1.msra.mxu0 %v6247
  %6305 = vmatprep.subr.mxu0 %v6252
  %6306 = vmatpush1.msra.mxu0 %v6251
  %6307 = vmatprep.subr.mxu0 %v6256
  %6308 = vmatpush1.msra.mxu0 %v6255
  %6309 = vmatprep.subr.mxu0 %v6260
  %6310 = vmatpush1.msra.mxu0 %v6259
  %6311 = vmatprep.subr.mxu0 %v6264
  %6312 = vmatpush1.msra.mxu0 %v6263
  %6313 = vmatprep.subr.mxu0 %v6268
  %6314 = vmatpush1.msra.mxu0 %v6267
  %6315 = vmatprep.subr.mxu0 %v6272
  %6316 = vmatpush1.msra.mxu0 %v6271
  %6317 = vmatprep.subr.mxu0 %v6276
  %6318 = vmatpush1.msra.mxu0 %v6275
  %6319 = vmatprep.subr.mxu0 %v6280
  %6320 = vmatpush1.msra.mxu0 %v6279
  %6321 = vmatprep.subr.mxu0 %v6284
  %6322 = vmatpush1.msra.mxu0 %v6283
  %6323 = vmatprep.subr.mxu0 %v6288
  %6324 = vmatpush1.msra.mxu0 %v6287
  %6325 = vmatprep.subr.mxu0 %v6292
  %6326 = vmatpush1.msra.mxu0 %v6291
  %6327 = vmatprep.subr.mxu0 0.0
  %6328 = vmatpush1.msra.mxu0 0.0
  %6329 = vmatprep.subr.mxu0 0.0
  %6330 = vmatpush1.msra.mxu0 0.0
  %6331 = vmatprep.subr.mxu0 0.0
  %6332 = vmatpush1.msra.mxu0 0.0
  %6333 = vmatprep.subr.mxu0 0.0
  %6334 = vmatpush1.msra.mxu0 0.0
  %6335 = vmatprep.subr.mxu0 0.0
  %6336 = vmatpush1.msra.mxu0 0.0
  %6337 = vmatprep.subr.mxu0 0.0
  %6338 = vmatpush1.msra.mxu0 0.0
  %6339 = vmatprep.subr.mxu0 0.0
  %6340 = vmatpush1.msra.mxu0 0.0
  %6341 = vmatprep.subr.mxu0 0.0
  %6342 = vmatpush1.msra.mxu0 0.0
  %6343 = vmatprep.subr.mxu0 0.0
  %6344 = vmatpush1.msra.mxu0 0.0
  %6345 = vmatprep.subr.mxu0 0.0
  %6346 = vmatpush1.msra.mxu0 0.0
  %6347 = vmatprep.subr.mxu0 0.0
  %6348 = vmatpush1.msra.mxu0 0.0
  %6349 = vmatprep.subr.mxu0 0.0
  %6350 = vmatpush1.msra.mxu0 0.0
  %6351 = vmatprep.subr.mxu0 0.0
  %6352 = vmatpush1.msra.mxu0 0.0
  %6353 = vmatprep.subr.mxu0 0.0
  %6354 = vmatpush1.msra.mxu0 0.0
  %6355 = vmatprep.subr.mxu0 0.0
  %6356 = vmatpush1.msra.mxu0 0.0
  %6357 = vmatprep.subr.mxu0 0.0
  %6358 = vmatpush1.msra.mxu0 0.0
  %6359 = vmatprep.mubr.f32.mxu0 0.0
  %6360 = vmatmul.mubr.f32.gmra.mrb[0].mxu0 %v6229
  %v6361 = vpop.f32.mrb[0].mxu0
  %v6362 = vadd.f32 0.0, %v6361
  %v6363 = vpop.f32.mrb[0].mxu0
  %v6364 = vadd.f32 0.0, %v6363
  %6365 = vdwg.mxu0
  %6366 = vmatprep.subr.mxu0 %v6234
  %6367 = vmatpush1.msra.mxu0 %v6233
  %6368 = vmatprep.subr.mxu0 %v6238
  %6369 = vmatpush1.msra.mxu0 %v6237
  %6370 = vmatprep.subr.mxu0 %v6242
  %6371 = vmatpush1.msra.mxu0 %v6241
  %6372 = vmatprep.subr.mxu0 %v6246
  %6373 = vmatpush1.msra.mxu0 %v6245
  %6374 = vmatprep.subr.mxu0 %v6250
  %6375 = vmatpush1.msra.mxu0 %v6249
  %6376 = vmatprep.subr.mxu0 %v6254
  %6377 = vmatpush1.msra.mxu0 %v6253
  %6378 = vmatprep.subr.mxu0 %v6258
  %6379 = vmatpush1.msra.mxu0 %v6257
  %6380 = vmatprep.subr.mxu0 %v6262
  %6381 = vmatpush1.msra.mxu0 %v6261
  %6382 = vmatprep.subr.mxu0 %v6266
  %6383 = vmatpush1.msra.mxu0 %v6265
  %6384 = vmatprep.subr.mxu0 %v6270
  %6385 = vmatpush1.msra.mxu0 %v6269
  %6386 = vmatprep.subr.mxu0 %v6274
  %6387 = vmatpush1.msra.mxu0 %v6273
  %6388 = vmatprep.subr.mxu0 %v6278
  %6389 = vmatpush1.msra.mxu0 %v6277
  %6390 = vmatprep.subr.mxu0 %v6282
  %6391 = vmatpush1.msra.mxu0 %v6281
  %6392 = vmatprep.subr.mxu0 %v6286
  %6393 = vmatpush1.msra.mxu0 %v6285
  %6394 = vmatprep.subr.mxu0 %v6290
  %6395 = vmatpush1.msra.mxu0 %v6289
  %6396 = vmatprep.subr.mxu0 %v6294
  %6397 = vmatpush1.msra.mxu0 %v6293
  %6398 = vmatprep.subr.mxu0 0.0
  %6399 = vmatpush1.msra.mxu0 0.0
  %6400 = vmatprep.subr.mxu0 0.0
  %6401 = vmatpush1.msra.mxu0 0.0
  %6402 = vmatprep.subr.mxu0 0.0
  %6403 = vmatpush1.msra.mxu0 0.0
  %6404 = vmatprep.subr.mxu0 0.0
  %6405 = vmatpush1.msra.mxu0 0.0
  %6406 = vmatprep.subr.mxu0 0.0
  %6407 = vmatpush1.msra.mxu0 0.0
  %6408 = vmatprep.subr.mxu0 0.0
  %6409 = vmatpush1.msra.mxu0 0.0
  %6410 = vmatprep.subr.mxu0 0.0
  %6411 = vmatpush1.msra.mxu0 0.0
  %6412 = vmatprep.subr.mxu0 0.0
  %6413 = vmatpush1.msra.mxu0 0.0
  %6414 = vmatprep.subr.mxu0 0.0
  %6415 = vmatpush1.msra.mxu0 0.0
  %6416 = vmatprep.subr.mxu0 0.0
  %6417 = vmatpush1.msra.mxu0 0.0
  %6418 = vmatprep.subr.mxu0 0.0
  %6419 = vmatpush1.msra.mxu0 0.0
  %6420 = vmatprep.subr.mxu0 0.0
  %6421 = vmatpush1.msra.mxu0 0.0
  %6422 = vmatprep.subr.mxu0 0.0
  %6423 = vmatpush1.msra.mxu0 0.0
  %6424 = vmatprep.subr.mxu0 0.0
  %6425 = vmatpush1.msra.mxu0 0.0
  %6426 = vmatprep.subr.mxu0 0.0
  %6427 = vmatpush1.msra.mxu0 0.0
  %6428 = vmatprep.subr.mxu0 0.0
  %6429 = vmatpush1.msra.mxu0 0.0
  %6430 = vmatprep.mubr.f32.mxu0 0.0
  %6431 = vmatmul.mubr.f32.gmra.mrb[0].mxu0 %v6229
  %v6432 = vpop.f32.mrb[0].mxu0
  %v6433 = vadd.f32 0.0, %v6432
  %v6434 = vpop.f32.mrb[0].mxu0
  %v6435 = vadd.f32 0.0, %v6434
  %6436 = vdwg.mxu0
  %v6437 = vadd.f32 %v4746, %v6362
  %v6438 = vadd.f32 %v4748, %v6364
  %v6439 = vadd.f32 %v4817, %v6433
  %v6440 = vadd.f32 %v4819, %v6435
  %v6441 = vxor.u32 %v6437, 2147483648
  %v6442 = vmul.f32 %v6441, 1.442695
  %v6443 = vpow.pop %v6442
  %v6444 = vadd.f32 %v6443, 1.0
  %v6445 = vrcp.pop %v6444
  %v6446 = vmul.f32 1.0, %v6445
  %v6447 = vxor.u32 %v6438, 2147483648
  %v6448 = vmul.f32 %v6447, 1.442695
  %v6449 = vpow.pop %v6448
  %v6450 = vadd.f32 %v6449, 1.0
  %v6451 = vrcp.pop %v6450
  %v6452 = vmul.f32 1.0, %v6451
  %v6453 = vtanh.pop %v6439
  %v6454 = vxor.u32 %v6440, 2147483648
  %v6455 = vmul.f32 %v6454, 1.442695
  %v6456 = vpow.pop %v6455
  %v6457 = vadd.f32 %v6456, 1.0
  %v6458 = vrcp.pop %v6457
  %v6459 = vmul.f32 1.0, %v6458
  %v6460 = vmul.f32 %v6452, %v6227
  %v6461 = vmul.f32 %v6446, %v6453
  %v6462 = vadd.f32 %v6460, %v6461
  %v6463 = vtanh.pop %v6462
  %v6464 = vmul.f32 %v6459, %v6463
  %6465 = vst [vmem:[#allocation2 + $0xc] sm:$0x3] %v6464
  %v6466 = vld [vmem:[%s8] sm:$0xff]
  %v6467 = vld [vmem:[%s8 + $0x8] sm:$0xff]
  %v6468 = vld [vmem:[%s8 + $0x10] sm:$0xff]
  %v6469 = vld [vmem:[%s8 + $0x18] sm:$0xff]
  %v6470 = vld [vmem:[%s8 + $0x20] sm:$0xff]
  %v6471 = vld [vmem:[%s8 + $0x28] sm:$0xff]
  %v6472 = vld [vmem:[%s8 + $0x30] sm:$0xff]
  %v6473 = vld [vmem:[%s8 + $0x38] sm:$0xff]
  %v6474 = vld [vmem:[%s8 + $0x40] sm:$0xff]
  %v6475 = vld [vmem:[%s8 + $0x48] sm:$0xff]
  %v6476 = vld [vmem:[%s8 + $0x50] sm:$0xff]
  %v6477 = vld [vmem:[%s8 + $0x58] sm:$0xff]
  %v6478 = vld [vmem:[%s8 + $0x60] sm:$0xff]
  %v6479 = vld [vmem:[%s8 + $0x68] sm:$0xff]
  %v6480 = vld [vmem:[%s8 + $0x70] sm:$0xff]
  %v6481 = vld [vmem:[%s8 + $0x78] sm:$0xff]
  %v6482 = vld [vmem:[%s8 + $0x80] sm:$0xff]
  %v6483 = vld [vmem:[%s8 + $0x88] sm:$0xff]
  %v6484 = vld [vmem:[%s8 + $0x90] sm:$0xff]
  %v6485 = vld [vmem:[%s8 + $0x98] sm:$0xff]
  %v6486 = vld [vmem:[%s8 + $0xa0] sm:$0xff]
  %v6487 = vld [vmem:[%s8 + $0xa8] sm:$0xff]
  %v6488 = vld [vmem:[%s8 + $0xb0] sm:$0xff]
  %v6489 = vld [vmem:[%s8 + $0xb8] sm:$0xff]
  %v6490 = vld [vmem:[%s8 + $0xc0] sm:$0xff]
  %v6491 = vld [vmem:[%s8 + $0xc8] sm:$0xff]
  %v6492 = vld [vmem:[%s8 + $0xd0] sm:$0xff]
  %v6493 = vld [vmem:[%s8 + $0xd8] sm:$0xff]
  %v6494 = vld [vmem:[%s8 + $0xe0] sm:$0xff]
  %v6495 = vld [vmem:[%s8 + $0xe8] sm:$0xff]
  %v6496 = vld [vmem:[%s8 + $0xf0] sm:$0xff]
  %v6497 = vld [vmem:[%s8 + $0xf8] sm:$0xff]
  %v6498 = vld [vmem:[%s8 + $0x100] sm:$0xff]
  %v6499 = vld [vmem:[%s8 + $0x108] sm:$0xff]
  %v6500 = vld [vmem:[%s8 + $0x110] sm:$0xff]
  %v6501 = vld [vmem:[%s8 + $0x118] sm:$0xff]
  %v6502 = vld [vmem:[%s8 + $0x120] sm:$0xff]
  %v6503 = vld [vmem:[%s8 + $0x128] sm:$0xff]
  %v6504 = vld [vmem:[%s8 + $0x130] sm:$0xff]
  %v6505 = vld [vmem:[%s8 + $0x138] sm:$0xff]
  %v6506 = vld [vmem:[%s8 + $0x140] sm:$0xff]
  %v6507 = vld [vmem:[%s8 + $0x148] sm:$0xff]
  %v6508 = vld [vmem:[%s8 + $0x150] sm:$0xff]
  %v6509 = vld [vmem:[%s8 + $0x158] sm:$0xff]
  %v6510 = vld [vmem:[%s8 + $0x160] sm:$0xff]
  %v6511 = vld [vmem:[%s8 + $0x168] sm:$0xff]
  %v6512 = vld [vmem:[%s8 + $0x170] sm:$0xff]
  %v6513 = vld [vmem:[%s8 + $0x178] sm:$0xff]
  %v6514 = vld [vmem:[%s8 + $0x180] sm:$0xff]
  %v6515 = vld [vmem:[%s8 + $0x188] sm:$0xff]
  %v6516 = vld [vmem:[%s8 + $0x190] sm:$0xff]
  %v6517 = vld [vmem:[%s8 + $0x198] sm:$0xff]
  %v6518 = vld [vmem:[%s8 + $0x1a0] sm:$0xff]
  %v6519 = vld [vmem:[%s8 + $0x1a8] sm:$0xff]
  %v6520 = vld [vmem:[%s8 + $0x1b0] sm:$0xff]
  %v6521 = vld [vmem:[%s8 + $0x1b8] sm:$0xff]
  %v6522 = vld [vmem:[%s8 + $0x1c0] sm:$0xff]
  %v6523 = vld [vmem:[%s8 + $0x1c8] sm:$0xff]
  %v6524 = vld [vmem:[%s8 + $0x1d0] sm:$0xff]
  %v6525 = vld [vmem:[%s8 + $0x1d8] sm:$0xff]
  %v6526 = vld [vmem:[%s8 + $0x1e0] sm:$0xff]
  %v6527 = vld [vmem:[%s8 + $0x1e8] sm:$0xff]
  %v6528 = vld [vmem:[%s8 + $0x1f0] sm:$0xff]
  %v6529 = vld [vmem:[%s8 + $0x1f8] sm:$0xff]
  %6530 = vmatprep.subr.mxu0 %v6467
  %6531 = vmatpush1.msra.mxu0 %v6466
  %6532 = vmatprep.subr.mxu0 %v6471
  %6533 = vmatpush1.msra.mxu0 %v6470
  %6534 = vmatprep.subr.mxu0 %v6475
  %6535 = vmatpush1.msra.mxu0 %v6474
  %6536 = vmatprep.subr.mxu0 %v6479
  %6537 = vmatpush1.msra.mxu0 %v6478
  %6538 = vmatprep.subr.mxu0 %v6483
  %6539 = vmatpush1.msra.mxu0 %v6482
  %6540 = vmatprep.subr.mxu0 %v6487
  %6541 = vmatpush1.msra.mxu0 %v6486
  %6542 = vmatprep.subr.mxu0 %v6491
  %6543 = vmatpush1.msra.mxu0 %v6490
  %6544 = vmatprep.subr.mxu0 %v6495
  %6545 = vmatpush1.msra.mxu0 %v6494
  %6546 = vmatprep.subr.mxu0 %v6499
  %6547 = vmatpush1.msra.mxu0 %v6498
  %6548 = vmatprep.subr.mxu0 %v6503
  %6549 = vmatpush1.msra.mxu0 %v6502
  %6550 = vmatprep.subr.mxu0 %v6507
  %6551 = vmatpush1.msra.mxu0 %v6506
  %6552 = vmatprep.subr.mxu0 %v6511
  %6553 = vmatpush1.msra.mxu0 %v6510
  %6554 = vmatprep.subr.mxu0 %v6515
  %6555 = vmatpush1.msra.mxu0 %v6514
  %6556 = vmatprep.subr.mxu0 %v6519
  %6557 = vmatpush1.msra.mxu0 %v6518
  %6558 = vmatprep.subr.mxu0 %v6523
  %6559 = vmatpush1.msra.mxu0 %v6522
  %6560 = vmatprep.subr.mxu0 %v6527
  %6561 = vmatpush1.msra.mxu0 %v6526
  %6562 = vmatprep.subr.mxu0 0.0
  %6563 = vmatpush1.msra.mxu0 0.0
  %6564 = vmatprep.subr.mxu0 0.0
  %6565 = vmatpush1.msra.mxu0 0.0
  %6566 = vmatprep.subr.mxu0 0.0
  %6567 = vmatpush1.msra.mxu0 0.0
  %6568 = vmatprep.subr.mxu0 0.0
  %6569 = vmatpush1.msra.mxu0 0.0
  %6570 = vmatprep.subr.mxu0 0.0
  %6571 = vmatpush1.msra.mxu0 0.0
  %6572 = vmatprep.subr.mxu0 0.0
  %6573 = vmatpush1.msra.mxu0 0.0
  %6574 = vmatprep.subr.mxu0 0.0
  %6575 = vmatpush1.msra.mxu0 0.0
  %6576 = vmatprep.subr.mxu0 0.0
  %6577 = vmatpush1.msra.mxu0 0.0
  %6578 = vmatprep.subr.mxu0 0.0
  %6579 = vmatpush1.msra.mxu0 0.0
  %6580 = vmatprep.subr.mxu0 0.0
  %6581 = vmatpush1.msra.mxu0 0.0
  %6582 = vmatprep.subr.mxu0 0.0
  %6583 = vmatpush1.msra.mxu0 0.0
  %6584 = vmatprep.subr.mxu0 0.0
  %6585 = vmatpush1.msra.mxu0 0.0
  %6586 = vmatprep.subr.mxu0 0.0
  %6587 = vmatpush1.msra.mxu0 0.0
  %6588 = vmatprep.subr.mxu0 0.0
  %6589 = vmatpush1.msra.mxu0 0.0
  %6590 = vmatprep.subr.mxu0 0.0
  %6591 = vmatpush1.msra.mxu0 0.0
  %6592 = vmatprep.subr.mxu0 0.0
  %6593 = vmatpush1.msra.mxu0 0.0
  %6594 = vmatprep.mubr.f32.mxu0 0.0
  %6595 = vmatmul.mubr.f32.gmra.mrb[0].mxu0 %v6464
  %v6596 = vpop.f32.mrb[0].mxu0
  %v6597 = vadd.f32 0.0, %v6596
  %v6598 = vpop.f32.mrb[0].mxu0
  %v6599 = vadd.f32 0.0, %v6598
  %6600 = vdwg.mxu0
  %6601 = vmatprep.subr.mxu0 %v6469
  %6602 = vmatpush1.msra.mxu0 %v6468
  %6603 = vmatprep.subr.mxu0 %v6473
  %6604 = vmatpush1.msra.mxu0 %v6472
  %6605 = vmatprep.subr.mxu0 %v6477
  %6606 = vmatpush1.msra.mxu0 %v6476
  %6607 = vmatprep.subr.mxu0 %v6481
  %6608 = vmatpush1.msra.mxu0 %v6480
  %6609 = vmatprep.subr.mxu0 %v6485
  %6610 = vmatpush1.msra.mxu0 %v6484
  %6611 = vmatprep.subr.mxu0 %v6489
  %6612 = vmatpush1.msra.mxu0 %v6488
  %6613 = vmatprep.subr.mxu0 %v6493
  %6614 = vmatpush1.msra.mxu0 %v6492
  %6615 = vmatprep.subr.mxu0 %v6497
  %6616 = vmatpush1.msra.mxu0 %v6496
  %6617 = vmatprep.subr.mxu0 %v6501
  %6618 = vmatpush1.msra.mxu0 %v6500
  %6619 = vmatprep.subr.mxu0 %v6505
  %6620 = vmatpush1.msra.mxu0 %v6504
  %6621 = vmatprep.subr.mxu0 %v6509
  %6622 = vmatpush1.msra.mxu0 %v6508
  %6623 = vmatprep.subr.mxu0 %v6513
  %6624 = vmatpush1.msra.mxu0 %v6512
  %6625 = vmatprep.subr.mxu0 %v6517
  %6626 = vmatpush1.msra.mxu0 %v6516
  %6627 = vmatprep.subr.mxu0 %v6521
  %6628 = vmatpush1.msra.mxu0 %v6520
  %6629 = vmatprep.subr.mxu0 %v6525
  %6630 = vmatpush1.msra.mxu0 %v6524
  %6631 = vmatprep.subr.mxu0 %v6529
  %6632 = vmatpush1.msra.mxu0 %v6528
  %6633 = vmatprep.subr.mxu0 0.0
  %6634 = vmatpush1.msra.mxu0 0.0
  %6635 = vmatprep.subr.mxu0 0.0
  %6636 = vmatpush1.msra.mxu0 0.0
  %6637 = vmatprep.subr.mxu0 0.0
  %6638 = vmatpush1.msra.mxu0 0.0
  %6639 = vmatprep.subr.mxu0 0.0
  %6640 = vmatpush1.msra.mxu0 0.0
  %6641 = vmatprep.subr.mxu0 0.0
  %6642 = vmatpush1.msra.mxu0 0.0
  %6643 = vmatprep.subr.mxu0 0.0
  %6644 = vmatpush1.msra.mxu0 0.0
  %6645 = vmatprep.subr.mxu0 0.0
  %6646 = vmatpush1.msra.mxu0 0.0
  %6647 = vmatprep.subr.mxu0 0.0
  %6648 = vmatpush1.msra.mxu0 0.0
  %6649 = vmatprep.subr.mxu0 0.0
  %6650 = vmatpush1.msra.mxu0 0.0
  %6651 = vmatprep.subr.mxu0 0.0
  %6652 = vmatpush1.msra.mxu0 0.0
  %6653 = vmatprep.subr.mxu0 0.0
  %6654 = vmatpush1.msra.mxu0 0.0
  %6655 = vmatprep.subr.mxu0 0.0
  %6656 = vmatpush1.msra.mxu0 0.0
  %6657 = vmatprep.subr.mxu0 0.0
  %6658 = vmatpush1.msra.mxu0 0.0
  %6659 = vmatprep.subr.mxu0 0.0
  %6660 = vmatpush1.msra.mxu0 0.0
  %6661 = vmatprep.subr.mxu0 0.0
  %6662 = vmatpush1.msra.mxu0 0.0
  %6663 = vmatprep.subr.mxu0 0.0
  %6664 = vmatpush1.msra.mxu0 0.0
  %6665 = vmatprep.mubr.f32.mxu0 0.0
  %6666 = vmatmul.mubr.f32.gmra.mrb[0].mxu0 %v6464
  %v6667 = vpop.f32.mrb[0].mxu0
  %v6668 = vadd.f32 0.0, %v6667
  %v6669 = vpop.f32.mrb[0].mxu0
  %v6670 = vadd.f32 0.0, %v6669
  %6671 = vdwg.mxu0
  %v6672 = vadd.f32 %v4746, %v6597
  %v6673 = vadd.f32 %v4748, %v6599
  %v6674 = vadd.f32 %v4817, %v6668
  %v6675 = vadd.f32 %v4819, %v6670
  %v6676 = vxor.u32 %v6672, 2147483648
  %v6677 = vmul.f32 %v6676, 1.442695
  %v6678 = vpow.pop %v6677
  %v6679 = vadd.f32 %v6678, 1.0
  %v6680 = vrcp.pop %v6679
  %v6681 = vmul.f32 1.0, %v6680
  %v6682 = vxor.u32 %v6673, 2147483648
  %v6683 = vmul.f32 %v6682, 1.442695
  %v6684 = vpow.pop %v6683
  %v6685 = vadd.f32 %v6684, 1.0
  %v6686 = vrcp.pop %v6685
  %v6687 = vmul.f32 1.0, %v6686
  %v6688 = vtanh.pop %v6674
  %v6689 = vxor.u32 %v6675, 2147483648
  %v6690 = vmul.f32 %v6689, 1.442695
  %v6691 = vpow.pop %v6690
  %v6692 = vadd.f32 %v6691, 1.0
  %v6693 = vrcp.pop %v6692
  %v6694 = vmul.f32 1.0, %v6693
  %v6695 = vmul.f32 %v6687, %v6462
  %v6696 = vmul.f32 %v6681, %v6688
  %v6697 = vadd.f32 %v6695, %v6696
  %v6698 = vtanh.pop %v6697
  %v6699 = vmul.f32 %v6694, %v6698
  %6700 = vst [vmem:[#allocation2 + $0xe] sm:$0x3] %v6699
  %v6701 = vld [vmem:[#allocation2] sm:$0xff]
  %v6702 = vld [vmem:[#allocation2 + $0x8] sm:$0xff]
  %v6703 = vld [vmem:[%s10] sm:$0xff]
  %v6704 = vld [vmem:[%s10 + $0x8] sm:$0xff]
  %v6705 = vld [vmem:[%s10 + $0x10] sm:$0xff]
  %v6706 = vld [vmem:[%s10 + $0x18] sm:$0xff]
  %v6707 = vld [vmem:[%s10 + $0x20] sm:$0xff]
  %v6708 = vld [vmem:[%s10 + $0x28] sm:$0xff]
  %v6709 = vld [vmem:[%s10 + $0x30] sm:$0xff]
  %v6710 = vld [vmem:[%s10 + $0x38] sm:$0xff]
  %v6711 = vld [vmem:[%s10 + $0x40] sm:$0xff]
  %v6712 = vld [vmem:[%s10 + $0x48] sm:$0xff]
  %v6713 = vld [vmem:[%s10 + $0x50] sm:$0xff]
  %v6714 = vld [vmem:[%s10 + $0x58] sm:$0xff]
  %v6715 = vld [vmem:[%s10 + $0x60] sm:$0xff]
  %v6716 = vld [vmem:[%s10 + $0x68] sm:$0xff]
  %v6717 = vld [vmem:[%s10 + $0x70] sm:$0xff]
  %v6718 = vld [vmem:[%s10 + $0x78] sm:$0xff]
  %v6719 = vld [vmem:[%s10 + $0x80] sm:$0xff]
  %v6720 = vld [vmem:[%s10 + $0x88] sm:$0xff]
  %v6721 = vld [vmem:[%s10 + $0x90] sm:$0xff]
  %v6722 = vld [vmem:[%s10 + $0x98] sm:$0xff]
  %v6723 = vld [vmem:[%s10 + $0xa0] sm:$0xff]
  %v6724 = vld [vmem:[%s10 + $0xa8] sm:$0xff]
  %v6725 = vld [vmem:[%s10 + $0xb0] sm:$0xff]
  %v6726 = vld [vmem:[%s10 + $0xb8] sm:$0xff]
  %v6727 = vld [vmem:[%s10 + $0xc0] sm:$0xff]
  %v6728 = vld [vmem:[%s10 + $0xc8] sm:$0xff]
  %v6729 = vld [vmem:[%s10 + $0xd0] sm:$0xff]
  %v6730 = vld [vmem:[%s10 + $0xd8] sm:$0xff]
  %v6731 = vld [vmem:[%s10 + $0xe0] sm:$0xff]
  %v6732 = vld [vmem:[%s10 + $0xe8] sm:$0xff]
  %v6733 = vld [vmem:[%s10 + $0xf0] sm:$0xff]
  %v6734 = vld [vmem:[%s10 + $0xf8] sm:$0xff]
  %v6735 = vld [vmem:[%s10 + $0x100] sm:$0xff]
  %v6736 = vld [vmem:[%s10 + $0x108] sm:$0xff]
  %v6737 = vld [vmem:[%s10 + $0x110] sm:$0xff]
  %v6738 = vld [vmem:[%s10 + $0x118] sm:$0xff]
  %v6739 = vld [vmem:[%s10 + $0x120] sm:$0xff]
  %v6740 = vld [vmem:[%s10 + $0x128] sm:$0xff]
  %v6741 = vld [vmem:[%s10 + $0x130] sm:$0xff]
  %v6742 = vld [vmem:[%s10 + $0x138] sm:$0xff]
  %v6743 = vld [vmem:[%s10 + $0x140] sm:$0xff]
  %v6744 = vld [vmem:[%s10 + $0x148] sm:$0xff]
  %v6745 = vld [vmem:[%s10 + $0x150] sm:$0xff]
  %v6746 = vld [vmem:[%s10 + $0x158] sm:$0xff]
  %v6747 = vld [vmem:[%s10 + $0x160] sm:$0xff]
  %v6748 = vld [vmem:[%s10 + $0x168] sm:$0xff]
  %v6749 = vld [vmem:[%s10 + $0x170] sm:$0xff]
  %v6750 = vld [vmem:[%s10 + $0x178] sm:$0xff]
  %v6751 = vld [vmem:[%s10 + $0x180] sm:$0xff]
  %v6752 = vld [vmem:[%s10 + $0x188] sm:$0xff]
  %v6753 = vld [vmem:[%s10 + $0x190] sm:$0xff]
  %v6754 = vld [vmem:[%s10 + $0x198] sm:$0xff]
  %v6755 = vld [vmem:[%s10 + $0x1a0] sm:$0xff]
  %v6756 = vld [vmem:[%s10 + $0x1a8] sm:$0xff]
  %v6757 = vld [vmem:[%s10 + $0x1b0] sm:$0xff]
  %v6758 = vld [vmem:[%s10 + $0x1b8] sm:$0xff]
  %v6759 = vld [vmem:[%s10 + $0x1c0] sm:$0xff]
  %v6760 = vld [vmem:[%s10 + $0x1c8] sm:$0xff]
  %v6761 = vld [vmem:[%s10 + $0x1d0] sm:$0xff]
  %v6762 = vld [vmem:[%s10 + $0x1d8] sm:$0xff]
  %v6763 = vld [vmem:[%s10 + $0x1e0] sm:$0xff]
  %v6764 = vld [vmem:[%s10 + $0x1e8] sm:$0xff]
  %v6765 = vld [vmem:[%s10 + $0x1f0] sm:$0xff]
  %v6766 = vld [vmem:[%s10 + $0x1f8] sm:$0xff]
  %v6767 = vld [vmem:[%s12] sm:$0xf]
  %v6769 = vlaneseq
  %v6770 = vshrl.u32 %v6769, 7
  %v6771 = vsub.s32 0, %v6770
  %v6772 = vrot.slane %v6767, %v6771
  %v6773 = vlaneseq
  %v6774 = vshrl.u32 %v6773, 7
  %v6775 = vsub.s32 1, %v6774
  %v6776 = vrot.slane %v6767, %v6775
  %v6777 = vlaneseq
  %v6778 = vshrl.u32 %v6777, 7
  %v6779 = vsub.s32 2, %v6778
  %v6780 = vrot.slane %v6767, %v6779
  %v6781 = vlaneseq
  %v6782 = vshrl.u32 %v6781, 7
  %v6783 = vsub.s32 3, %v6782
  %v6784 = vrot.slane %v6767, %v6783
  %6789 = vmatprep.subr.mxu0 %v6704
  %6790 = vmatpush1.msra.mxu0 %v6703
  %6791 = vmatprep.subr.mxu0 %v6708
  %6792 = vmatpush1.msra.mxu0 %v6707
  %6793 = vmatprep.subr.mxu0 %v6712
  %6794 = vmatpush1.msra.mxu0 %v6711
  %6795 = vmatprep.subr.mxu0 %v6716
  %6796 = vmatpush1.msra.mxu0 %v6715
  %6797 = vmatprep.subr.mxu0 %v6720
  %6798 = vmatpush1.msra.mxu0 %v6719
  %6799 = vmatprep.subr.mxu0 %v6724
  %6800 = vmatpush1.msra.mxu0 %v6723
  %6801 = vmatprep.subr.mxu0 %v6728
  %6802 = vmatpush1.msra.mxu0 %v6727
  %6803 = vmatprep.subr.mxu0 %v6732
  %6804 = vmatpush1.msra.mxu0 %v6731
  %6805 = vmatprep.subr.mxu0 %v6736
  %6806 = vmatpush1.msra.mxu0 %v6735
  %6807 = vmatprep.subr.mxu0 %v6740
  %6808 = vmatpush1.msra.mxu0 %v6739
  %6809 = vmatprep.subr.mxu0 %v6744
  %6810 = vmatpush1.msra.mxu0 %v6743
  %6811 = vmatprep.subr.mxu0 %v6748
  %6812 = vmatpush1.msra.mxu0 %v6747
  %6813 = vmatprep.subr.mxu0 %v6752
  %6814 = vmatpush1.msra.mxu0 %v6751
  %6815 = vmatprep.subr.mxu0 %v6756
  %6816 = vmatpush1.msra.mxu0 %v6755
  %6817 = vmatprep.subr.mxu0 %v6760
  %6818 = vmatpush1.msra.mxu0 %v6759
  %6819 = vmatprep.subr.mxu0 %v6764
  %6820 = vmatpush1.msra.mxu0 %v6763
  %6821 = vmatprep.subr.mxu0 0.0
  %6822 = vmatpush1.msra.mxu0 0.0
  %6823 = vmatprep.subr.mxu0 0.0
  %6824 = vmatpush1.msra.mxu0 0.0
  %6825 = vmatprep.subr.mxu0 0.0
  %6826 = vmatpush1.msra.mxu0 0.0
  %6827 = vmatprep.subr.mxu0 0.0
  %6828 = vmatpush1.msra.mxu0 0.0
  %6829 = vmatprep.subr.mxu0 0.0
  %6830 = vmatpush1.msra.mxu0 0.0
  %6831 = vmatprep.subr.mxu0 0.0
  %6832 = vmatpush1.msra.mxu0 0.0
  %6833 = vmatprep.subr.mxu0 0.0
  %6834 = vmatpush1.msra.mxu0 0.0
  %6835 = vmatprep.subr.mxu0 0.0
  %6836 = vmatpush1.msra.mxu0 0.0
  %6837 = vmatprep.subr.mxu0 0.0
  %6838 = vmatpush1.msra.mxu0 0.0
  %6839 = vmatprep.subr.mxu0 0.0
  %6840 = vmatpush1.msra.mxu0 0.0
  %6841 = vmatprep.subr.mxu0 0.0
  %6842 = vmatpush1.msra.mxu0 0.0
  %6843 = vmatprep.subr.mxu0 0.0
  %6844 = vmatpush1.msra.mxu0 0.0
  %6845 = vmatprep.subr.mxu0 0.0
  %6846 = vmatpush1.msra.mxu0 0.0
  %6847 = vmatprep.subr.mxu0 0.0
  %6848 = vmatpush1.msra.mxu0 0.0
  %6849 = vmatprep.subr.mxu0 0.0
  %6850 = vmatpush1.msra.mxu0 0.0
  %6851 = vmatprep.subr.mxu0 0.0
  %6852 = vmatpush1.msra.mxu0 0.0
  %6853 = vmatprep.mubr.f32.mxu0 0.0
  %6854 = vmatmul.mubr.f32.gmra.mrb[0].mxu0 %v6701
  %v6855 = vpop.f32.mrb[0].mxu0
  %v6856 = vadd.f32 %v6772, %v6855
  %v6857 = vpop.f32.mrb[0].mxu0
  %v6858 = vadd.f32 %v6776, %v6857
  %6859 = vmatprep.mubr.f32.mxu0 0.0
  %6860 = vmatmul.mubr.f32.gmra.mrb[0].mxu0 %v6702
  %v6861 = vpop.f32.mrb[0].mxu0
  %v6862 = vadd.f32 %v6772, %v6861
  %v6863 = vpop.f32.mrb[0].mxu0
  %v6864 = vadd.f32 %v6776, %v6863
  %6865 = vdwg.mxu0
  %6866 = vmatprep.subr.mxu0 %v6706
  %6867 = vmatpush1.msra.mxu0 %v6705
  %6868 = vmatprep.subr.mxu0 %v6710
  %6869 = vmatpush1.msra.mxu0 %v6709
  %6870 = vmatprep.subr.mxu0 %v6714
  %6871 = vmatpush1.msra.mxu0 %v6713
  %6872 = vmatprep.subr.mxu0 %v6718
  %6873 = vmatpush1.msra.mxu0 %v6717
  %6874 = vmatprep.subr.mxu0 %v6722
  %6875 = vmatpush1.msra.mxu0 %v6721
  %6876 = vmatprep.subr.mxu0 %v6726
  %6877 = vmatpush1.msra.mxu0 %v6725
  %6878 = vmatprep.subr.mxu0 %v6730
  %6879 = vmatpush1.msra.mxu0 %v6729
  %6880 = vmatprep.subr.mxu0 %v6734
  %6881 = vmatpush1.msra.mxu0 %v6733
  %6882 = vmatprep.subr.mxu0 %v6738
  %6883 = vmatpush1.msra.mxu0 %v6737
  %6884 = vmatprep.subr.mxu0 %v6742
  %6885 = vmatpush1.msra.mxu0 %v6741
  %6886 = vmatprep.subr.mxu0 %v6746
  %6887 = vmatpush1.msra.mxu0 %v6745
  %6888 = vmatprep.subr.mxu0 %v6750
  %6889 = vmatpush1.msra.mxu0 %v6749
  %6890 = vmatprep.subr.mxu0 %v6754
  %6891 = vmatpush1.msra.mxu0 %v6753
  %6892 = vmatprep.subr.mxu0 %v6758
  %6893 = vmatpush1.msra.mxu0 %v6757
  %6894 = vmatprep.subr.mxu0 %v6762
  %6895 = vmatpush1.msra.mxu0 %v6761
  %6896 = vmatprep.subr.mxu0 %v6766
  %6897 = vmatpush1.msra.mxu0 %v6765
  %6898 = vmatprep.subr.mxu0 0.0
  %6899 = vmatpush1.msra.mxu0 0.0
  %6900 = vmatprep.subr.mxu0 0.0
  %6901 = vmatpush1.msra.mxu0 0.0
  %6902 = vmatprep.subr.mxu0 0.0
  %6903 = vmatpush1.msra.mxu0 0.0
  %6904 = vmatprep.subr.mxu0 0.0
  %6905 = vmatpush1.msra.mxu0 0.0
  %6906 = vmatprep.subr.mxu0 0.0
  %6907 = vmatpush1.msra.mxu0 0.0
  %6908 = vmatprep.subr.mxu0 0.0
  %6909 = vmatpush1.msra.mxu0 0.0
  %6910 = vmatprep.subr.mxu0 0.0
  %6911 = vmatpush1.msra.mxu0 0.0
  %6912 = vmatprep.subr.mxu0 0.0
  %6913 = vmatpush1.msra.mxu0 0.0
  %6914 = vmatprep.subr.mxu0 0.0
  %6915 = vmatpush1.msra.mxu0 0.0
  %6916 = vmatprep.subr.mxu0 0.0
  %6917 = vmatpush1.msra.mxu0 0.0
  %6918 = vmatprep.subr.mxu0 0.0
  %6919 = vmatpush1.msra.mxu0 0.0
  %6920 = vmatprep.subr.mxu0 0.0
  %6921 = vmatpush1.msra.mxu0 0.0
  %6922 = vmatprep.subr.mxu0 0.0
  %6923 = vmatpush1.msra.mxu0 0.0
  %6924 = vmatprep.subr.mxu0 0.0
  %6925 = vmatpush1.msra.mxu0 0.0
  %6926 = vmatprep.subr.mxu0 0.0
  %6927 = vmatpush1.msra.mxu0 0.0
  %6928 = vmatprep.subr.mxu0 0.0
  %6929 = vmatpush1.msra.mxu0 0.0
  %6930 = vmatprep.mubr.f32.mxu0 0.0
  %6931 = vmatmul.mubr.f32.gmra.mrb[0].mxu0 %v6701
  %v6932 = vpop.f32.mrb[0].mxu0
  %v6933 = vadd.f32 %v6780, %v6932
  %v6934 = vpop.f32.mrb[0].mxu0
  %v6935 = vadd.f32 %v6784, %v6934
  %6936 = vmatprep.mubr.f32.mxu0 0.0
  %6937 = vmatmul.mubr.f32.gmra.mrb[0].mxu0 %v6702
  %v6938 = vpop.f32.mrb[0].mxu0
  %v6939 = vadd.f32 %v6780, %v6938
  %v6940 = vpop.f32.mrb[0].mxu0
  %v6941 = vadd.f32 %v6784, %v6940
  %6942 = vdwg.mxu0
  %6943 = vst [vmem:[#allocation3] sm:$0xff] %v6856
  %6944 = vst [vmem:[#allocation3 + $0x8] sm:$0xff] %v6858
  %6945 = vst [vmem:[#allocation3 + $0x10] sm:$0xff] %v6933
  %6946 = vst [vmem:[#allocation3 + $0x18] sm:$0xff] %v6935
  %6947 = vst [vmem:[#allocation3 + $0x20] sm:$0xff] %v6862
  %6948 = vst [vmem:[#allocation3 + $0x28] sm:$0xff] %v6864
  %6949 = vst [vmem:[#allocation3 + $0x30] sm:$0xff] %v6939
  %6950 = vst [vmem:[#allocation3 + $0x38] sm:$0xff] %v6941
  %v6951 = vld [vmem:[#allocation3] sm:$0x3]
  %v6952 = vld [vmem:[#allocation3 + $0x8] sm:$0x3]
  %v6953 = vld [vmem:[#allocation3 + $0x10] sm:$0x3]
  %v6954 = vld [vmem:[#allocation3 + $0x18] sm:$0x3]
  %v6955 = vld [vmem:[%s11] sm:$0xff]
  %v6956 = vld [vmem:[%s11 + $0x8] sm:$0xff]
  %v6957 = vld [vmem:[%s11 + $0x10] sm:$0xff]
  %v6958 = vld [vmem:[%s11 + $0x18] sm:$0xff]
  %v6959 = vld [vmem:[%s11 + $0x20] sm:$0xff]
  %v6960 = vld [vmem:[%s11 + $0x28] sm:$0xff]
  %v6961 = vld [vmem:[%s11 + $0x30] sm:$0xff]
  %v6962 = vld [vmem:[%s11 + $0x38] sm:$0xff]
  %v6963 = vld [vmem:[%s11 + $0x40] sm:$0xff]
  %v6964 = vld [vmem:[%s11 + $0x48] sm:$0xff]
  %v6965 = vld [vmem:[%s11 + $0x50] sm:$0xff]
  %v6966 = vld [vmem:[%s11 + $0x58] sm:$0xff]
  %v6967 = vld [vmem:[%s11 + $0x60] sm:$0xff]
  %v6968 = vld [vmem:[%s11 + $0x68] sm:$0xff]
  %v6969 = vld [vmem:[%s11 + $0x70] sm:$0xff]
  %v6970 = vld [vmem:[%s11 + $0x78] sm:$0xff]
  %v6971 = vld [vmem:[%s11 + $0x80] sm:$0xff]
  %v6972 = vld [vmem:[%s11 + $0x88] sm:$0xff]
  %v6973 = vld [vmem:[%s11 + $0x90] sm:$0xff]
  %v6974 = vld [vmem:[%s11 + $0x98] sm:$0xff]
  %v6975 = vld [vmem:[%s11 + $0xa0] sm:$0xff]
  %v6976 = vld [vmem:[%s11 + $0xa8] sm:$0xff]
  %v6977 = vld [vmem:[%s11 + $0xb0] sm:$0xff]
  %v6978 = vld [vmem:[%s11 + $0xb8] sm:$0xff]
  %v6979 = vld [vmem:[%s11 + $0xc0] sm:$0xff]
  %v6980 = vld [vmem:[%s11 + $0xc8] sm:$0xff]
  %v6981 = vld [vmem:[%s11 + $0xd0] sm:$0xff]
  %v6982 = vld [vmem:[%s11 + $0xd8] sm:$0xff]
  %v6983 = vld [vmem:[%s11 + $0xe0] sm:$0xff]
  %v6984 = vld [vmem:[%s11 + $0xe8] sm:$0xff]
  %v6985 = vld [vmem:[%s11 + $0xf0] sm:$0xff]
  %v6986 = vld [vmem:[%s11 + $0xf8] sm:$0xff]
  %v6987 = vld [vmem:[%s11 + $0x100] sm:$0xff]
  %v6988 = vld [vmem:[%s11 + $0x108] sm:$0xff]
  %v6989 = vld [vmem:[%s11 + $0x110] sm:$0xff]
  %v6990 = vld [vmem:[%s11 + $0x118] sm:$0xff]
  %v6991 = vld [vmem:[%s11 + $0x120] sm:$0xff]
  %v6992 = vld [vmem:[%s11 + $0x128] sm:$0xff]
  %v6993 = vld [vmem:[%s11 + $0x130] sm:$0xff]
  %v6994 = vld [vmem:[%s11 + $0x138] sm:$0xff]
  %v6995 = vld [vmem:[%s11 + $0x140] sm:$0xff]
  %v6996 = vld [vmem:[%s11 + $0x148] sm:$0xff]
  %v6997 = vld [vmem:[%s11 + $0x150] sm:$0xff]
  %v6998 = vld [vmem:[%s11 + $0x158] sm:$0xff]
  %v6999 = vld [vmem:[%s11 + $0x160] sm:$0xff]
  %v7000 = vld [vmem:[%s11 + $0x168] sm:$0xff]
  %v7001 = vld [vmem:[%s11 + $0x170] sm:$0xff]
  %v7002 = vld [vmem:[%s11 + $0x178] sm:$0xff]
  %v7003 = vld [vmem:[%s11 + $0x180] sm:$0xff]
  %v7004 = vld [vmem:[%s11 + $0x188] sm:$0xff]
  %v7005 = vld [vmem:[%s11 + $0x190] sm:$0xff]
  %v7006 = vld [vmem:[%s11 + $0x198] sm:$0xff]
  %v7007 = vld [vmem:[%s11 + $0x1a0] sm:$0xff]
  %v7008 = vld [vmem:[%s11 + $0x1a8] sm:$0xff]
  %v7009 = vld [vmem:[%s11 + $0x1b0] sm:$0xff]
  %v7010 = vld [vmem:[%s11 + $0x1b8] sm:$0xff]
  %v7011 = vld [vmem:[%s11 + $0x1c0] sm:$0xff]
  %v7012 = vld [vmem:[%s11 + $0x1c8] sm:$0xff]
  %v7013 = vld [vmem:[%s11 + $0x1d0] sm:$0xff]
  %v7014 = vld [vmem:[%s11 + $0x1d8] sm:$0xff]
  %v7015 = vld [vmem:[%s11 + $0x1e0] sm:$0xff]
  %v7016 = vld [vmem:[%s11 + $0x1e8] sm:$0xff]
  %v7017 = vld [vmem:[%s11 + $0x1f0] sm:$0xff]
  %v7018 = vld [vmem:[%s11 + $0x1f8] sm:$0xff]
  %7019 = vmatprep.subr.mxu0 %v6956
  %7020 = vmatpush1.msra.mxu0 %v6955
  %7021 = vmatprep.subr.mxu0 %v6960
  %7022 = vmatpush1.msra.mxu0 %v6959
  %7023 = vmatprep.subr.mxu0 %v6964
  %7024 = vmatpush1.msra.mxu0 %v6963
  %7025 = vmatprep.subr.mxu0 %v6968
  %7026 = vmatpush1.msra.mxu0 %v6967
  %7027 = vmatprep.subr.mxu0 %v6972
  %7028 = vmatpush1.msra.mxu0 %v6971
  %7029 = vmatprep.subr.mxu0 %v6976
  %7030 = vmatpush1.msra.mxu0 %v6975
  %7031 = vmatprep.subr.mxu0 %v6980
  %7032 = vmatpush1.msra.mxu0 %v6979
  %7033 = vmatprep.subr.mxu0 %v6984
  %7034 = vmatpush1.msra.mxu0 %v6983
  %7035 = vmatprep.subr.mxu0 %v6988
  %7036 = vmatpush1.msra.mxu0 %v6987
  %7037 = vmatprep.subr.mxu0 %v6992
  %7038 = vmatpush1.msra.mxu0 %v6991
  %7039 = vmatprep.subr.mxu0 %v6996
  %7040 = vmatpush1.msra.mxu0 %v6995
  %7041 = vmatprep.subr.mxu0 %v7000
  %7042 = vmatpush1.msra.mxu0 %v6999
  %7043 = vmatprep.subr.mxu0 %v7004
  %7044 = vmatpush1.msra.mxu0 %v7003
  %7045 = vmatprep.subr.mxu0 %v7008
  %7046 = vmatpush1.msra.mxu0 %v7007
  %7047 = vmatprep.subr.mxu0 %v7012
  %7048 = vmatpush1.msra.mxu0 %v7011
  %7049 = vmatprep.subr.mxu0 %v7016
  %7050 = vmatpush1.msra.mxu0 %v7015
  %7051 = vmatprep.subr.mxu0 0.0
  %7052 = vmatpush1.msra.mxu0 0.0
  %7053 = vmatprep.subr.mxu0 0.0
  %7054 = vmatpush1.msra.mxu0 0.0
  %7055 = vmatprep.subr.mxu0 0.0
  %7056 = vmatpush1.msra.mxu0 0.0
  %7057 = vmatprep.subr.mxu0 0.0
  %7058 = vmatpush1.msra.mxu0 0.0
  %7059 = vmatprep.subr.mxu0 0.0
  %7060 = vmatpush1.msra.mxu0 0.0
  %7061 = vmatprep.subr.mxu0 0.0
  %7062 = vmatpush1.msra.mxu0 0.0
  %7063 = vmatprep.subr.mxu0 0.0
  %7064 = vmatpush1.msra.mxu0 0.0
  %7065 = vmatprep.subr.mxu0 0.0
  %7066 = vmatpush1.msra.mxu0 0.0
  %7067 = vmatprep.subr.mxu0 0.0
  %7068 = vmatpush1.msra.mxu0 0.0
  %7069 = vmatprep.subr.mxu0 0.0
  %7070 = vmatpush1.msra.mxu0 0.0
  %7071 = vmatprep.subr.mxu0 0.0
  %7072 = vmatpush1.msra.mxu0 0.0
  %7073 = vmatprep.subr.mxu0 0.0
  %7074 = vmatpush1.msra.mxu0 0.0
  %7075 = vmatprep.subr.mxu0 0.0
  %7076 = vmatpush1.msra.mxu0 0.0
  %7077 = vmatprep.subr.mxu0 0.0
  %7078 = vmatpush1.msra.mxu0 0.0
  %7079 = vmatprep.subr.mxu0 0.0
  %7080 = vmatpush1.msra.mxu0 0.0
  %7081 = vmatprep.subr.mxu0 0.0
  %7082 = vmatpush1.msra.mxu0 0.0
  %7083 = vmatprep.mubr.f32.mxu0 0.0
  %7084 = vmatmul.mubr.f32.gmra.mrb[0].mxu0 0.0
  %v7085 = vpop.f32.mrb[0].mxu0
  %v7086 = vadd.f32 0.0, %v7085
  %v7087 = vpop.f32.mrb[0].mxu0
  %v7088 = vadd.f32 0.0, %v7087
  %7089 = vdwg.mxu0
  %7090 = vmatprep.subr.mxu0 %v6958
  %7091 = vmatpush1.msra.mxu0 %v6957
  %7092 = vmatprep.subr.mxu0 %v6962
  %7093 = vmatpush1.msra.mxu0 %v6961
  %7094 = vmatprep.subr.mxu0 %v6966
  %7095 = vmatpush1.msra.mxu0 %v6965
  %7096 = vmatprep.subr.mxu0 %v6970
  %7097 = vmatpush1.msra.mxu0 %v6969
  %7098 = vmatprep.subr.mxu0 %v6974
  %7099 = vmatpush1.msra.mxu0 %v6973
  %7100 = vmatprep.subr.mxu0 %v6978
  %7101 = vmatpush1.msra.mxu0 %v6977
  %7102 = vmatprep.subr.mxu0 %v6982
  %7103 = vmatpush1.msra.mxu0 %v6981
  %7104 = vmatprep.subr.mxu0 %v6986
  %7105 = vmatpush1.msra.mxu0 %v6985
  %7106 = vmatprep.subr.mxu0 %v6990
  %7107 = vmatpush1.msra.mxu0 %v6989
  %7108 = vmatprep.subr.mxu0 %v6994
  %7109 = vmatpush1.msra.mxu0 %v6993
  %7110 = vmatprep.subr.mxu0 %v6998
  %7111 = vmatpush1.msra.mxu0 %v6997
  %7112 = vmatprep.subr.mxu0 %v7002
  %7113 = vmatpush1.msra.mxu0 %v7001
  %7114 = vmatprep.subr.mxu0 %v7006
  %7115 = vmatpush1.msra.mxu0 %v7005
  %7116 = vmatprep.subr.mxu0 %v7010
  %7117 = vmatpush1.msra.mxu0 %v7009
  %7118 = vmatprep.subr.mxu0 %v7014
  %7119 = vmatpush1.msra.mxu0 %v7013
  %7120 = vmatprep.subr.mxu0 %v7018
  %7121 = vmatpush1.msra.mxu0 %v7017
  %7122 = vmatprep.subr.mxu0 0.0
  %7123 = vmatpush1.msra.mxu0 0.0
  %7124 = vmatprep.subr.mxu0 0.0
  %7125 = vmatpush1.msra.mxu0 0.0
  %7126 = vmatprep.subr.mxu0 0.0
  %7127 = vmatpush1.msra.mxu0 0.0
  %7128 = vmatprep.subr.mxu0 0.0
  %7129 = vmatpush1.msra.mxu0 0.0
  %7130 = vmatprep.subr.mxu0 0.0
  %7131 = vmatpush1.msra.mxu0 0.0
  %7132 = vmatprep.subr.mxu0 0.0
  %7133 = vmatpush1.msra.mxu0 0.0
  %7134 = vmatprep.subr.mxu0 0.0
  %7135 = vmatpush1.msra.mxu0 0.0
  %7136 = vmatprep.subr.mxu0 0.0
  %7137 = vmatpush1.msra.mxu0 0.0
  %7138 = vmatprep.subr.mxu0 0.0
  %7139 = vmatpush1.msra.mxu0 0.0
  %7140 = vmatprep.subr.mxu0 0.0
  %7141 = vmatpush1.msra.mxu0 0.0
  %7142 = vmatprep.subr.mxu0 0.0
  %7143 = vmatpush1.msra.mxu0 0.0
  %7144 = vmatprep.subr.mxu0 0.0
  %7145 = vmatpush1.msra.mxu0 0.0
  %7146 = vmatprep.subr.mxu0 0.0
  %7147 = vmatpush1.msra.mxu0 0.0
  %7148 = vmatprep.subr.mxu0 0.0
  %7149 = vmatpush1.msra.mxu0 0.0
  %7150 = vmatprep.subr.mxu0 0.0
  %7151 = vmatpush1.msra.mxu0 0.0
  %7152 = vmatprep.subr.mxu0 0.0
  %7153 = vmatpush1.msra.mxu0 0.0
  %7154 = vmatprep.mubr.f32.mxu0 0.0
  %7155 = vmatmul.mubr.f32.gmra.mrb[0].mxu0 0.0
  %v7156 = vpop.f32.mrb[0].mxu0
  %v7157 = vadd.f32 0.0, %v7156
  %v7158 = vpop.f32.mrb[0].mxu0
  %v7159 = vadd.f32 0.0, %v7158
  %7160 = vdwg.mxu0
  %v7161 = vadd.f32 %v6951, %v7086
  %v7162 = vadd.f32 %v6952, %v7088
  %v7163 = vadd.f32 %v6953, %v7157
  %v7164 = vadd.f32 %v6954, %v7159
  %v7165 = vxor.u32 %v7161, 2147483648
  %v7166 = vmul.f32 %v7165, 1.442695
  %v7167 = vpow.pop %v7166
  %v7168 = vadd.f32 %v7167, 1.0
  %v7169 = vrcp.pop %v7168
  %v7170 = vmul.f32 1.0, %v7169
  %v7171 = vxor.u32 %v7162, 2147483648
  %v7172 = vmul.f32 %v7171, 1.442695
  %v7173 = vpow.pop %v7172
  %v7174 = vadd.f32 %v7173, 1.0
  %v7175 = vrcp.pop %v7174
  %v7176 = vmul.f32 1.0, %v7175
  %v7177 = vtanh.pop %v7163
  %v7178 = vxor.u32 %v7164, 2147483648
  %v7179 = vmul.f32 %v7178, 1.442695
  %v7180 = vpow.pop %v7179
  %v7181 = vadd.f32 %v7180, 1.0
  %v7182 = vrcp.pop %v7181
  %v7183 = vmul.f32 1.0, %v7182
  %v7184 = vmul.f32 %v7176, 0.0
  %v7185 = vmul.f32 %v7170, %v7177
  %v7186 = vadd.f32 %v7184, %v7185
  %v7187 = vtanh.pop %v7186
  %v7188 = vmul.f32 %v7183, %v7187
  %7189 = vst [vmem:[#allocation2] sm:$0x3] %v7188
  %v7190 = vld [vmem:[#allocation3] sm:$0xc]
  %v7191 = vld [vmem:[#allocation3 + $0x8] sm:$0xc]
  %v7192 = vld [vmem:[#allocation3 + $0x10] sm:$0xc]
  %v7193 = vld [vmem:[#allocation3 + $0x18] sm:$0xc]
  %v7194 = vld [vmem:[%s11] sm:$0xff]
  %v7195 = vld [vmem:[%s11 + $0x8] sm:$0xff]
  %v7196 = vld [vmem:[%s11 + $0x10] sm:$0xff]
  %v7197 = vld [vmem:[%s11 + $0x18] sm:$0xff]
  %v7198 = vld [vmem:[%s11 + $0x20] sm:$0xff]
  %v7199 = vld [vmem:[%s11 + $0x28] sm:$0xff]
  %v7200 = vld [vmem:[%s11 + $0x30] sm:$0xff]
  %v7201 = vld [vmem:[%s11 + $0x38] sm:$0xff]
  %v7202 = vld [vmem:[%s11 + $0x40] sm:$0xff]
  %v7203 = vld [vmem:[%s11 + $0x48] sm:$0xff]
  %v7204 = vld [vmem:[%s11 + $0x50] sm:$0xff]
  %v7205 = vld [vmem:[%s11 + $0x58] sm:$0xff]
  %v7206 = vld [vmem:[%s11 + $0x60] sm:$0xff]
  %v7207 = vld [vmem:[%s11 + $0x68] sm:$0xff]
  %v7208 = vld [vmem:[%s11 + $0x70] sm:$0xff]
  %v7209 = vld [vmem:[%s11 + $0x78] sm:$0xff]
  %v7210 = vld [vmem:[%s11 + $0x80] sm:$0xff]
  %v7211 = vld [vmem:[%s11 + $0x88] sm:$0xff]
  %v7212 = vld [vmem:[%s11 + $0x90] sm:$0xff]
  %v7213 = vld [vmem:[%s11 + $0x98] sm:$0xff]
  %v7214 = vld [vmem:[%s11 + $0xa0] sm:$0xff]
  %v7215 = vld [vmem:[%s11 + $0xa8] sm:$0xff]
  %v7216 = vld [vmem:[%s11 + $0xb0] sm:$0xff]
  %v7217 = vld [vmem:[%s11 + $0xb8] sm:$0xff]
  %v7218 = vld [vmem:[%s11 + $0xc0] sm:$0xff]
  %v7219 = vld [vmem:[%s11 + $0xc8] sm:$0xff]
  %v7220 = vld [vmem:[%s11 + $0xd0] sm:$0xff]
  %v7221 = vld [vmem:[%s11 + $0xd8] sm:$0xff]
  %v7222 = vld [vmem:[%s11 + $0xe0] sm:$0xff]
  %v7223 = vld [vmem:[%s11 + $0xe8] sm:$0xff]
  %v7224 = vld [vmem:[%s11 + $0xf0] sm:$0xff]
  %v7225 = vld [vmem:[%s11 + $0xf8] sm:$0xff]
  %v7226 = vld [vmem:[%s11 + $0x100] sm:$0xff]
  %v7227 = vld [vmem:[%s11 + $0x108] sm:$0xff]
  %v7228 = vld [vmem:[%s11 + $0x110] sm:$0xff]
  %v7229 = vld [vmem:[%s11 + $0x118] sm:$0xff]
  %v7230 = vld [vmem:[%s11 + $0x120] sm:$0xff]
  %v7231 = vld [vmem:[%s11 + $0x128] sm:$0xff]
  %v7232 = vld [vmem:[%s11 + $0x130] sm:$0xff]
  %v7233 = vld [vmem:[%s11 + $0x138] sm:$0xff]
  %v7234 = vld [vmem:[%s11 + $0x140] sm:$0xff]
  %v7235 = vld [vmem:[%s11 + $0x148] sm:$0xff]
  %v7236 = vld [vmem:[%s11 + $0x150] sm:$0xff]
  %v7237 = vld [vmem:[%s11 + $0x158] sm:$0xff]
  %v7238 = vld [vmem:[%s11 + $0x160] sm:$0xff]
  %v7239 = vld [vmem:[%s11 + $0x168] sm:$0xff]
  %v7240 = vld [vmem:[%s11 + $0x170] sm:$0xff]
  %v7241 = vld [vmem:[%s11 + $0x178] sm:$0xff]
  %v7242 = vld [vmem:[%s11 + $0x180] sm:$0xff]
  %v7243 = vld [vmem:[%s11 + $0x188] sm:$0xff]
  %v7244 = vld [vmem:[%s11 + $0x190] sm:$0xff]
  %v7245 = vld [vmem:[%s11 + $0x198] sm:$0xff]
  %v7246 = vld [vmem:[%s11 + $0x1a0] sm:$0xff]
  %v7247 = vld [vmem:[%s11 + $0x1a8] sm:$0xff]
  %v7248 = vld [vmem:[%s11 + $0x1b0] sm:$0xff]
  %v7249 = vld [vmem:[%s11 + $0x1b8] sm:$0xff]
  %v7250 = vld [vmem:[%s11 + $0x1c0] sm:$0xff]
  %v7251 = vld [vmem:[%s11 + $0x1c8] sm:$0xff]
  %v7252 = vld [vmem:[%s11 + $0x1d0] sm:$0xff]
  %v7253 = vld [vmem:[%s11 + $0x1d8] sm:$0xff]
  %v7254 = vld [vmem:[%s11 + $0x1e0] sm:$0xff]
  %v7255 = vld [vmem:[%s11 + $0x1e8] sm:$0xff]
  %v7256 = vld [vmem:[%s11 + $0x1f0] sm:$0xff]
  %v7257 = vld [vmem:[%s11 + $0x1f8] sm:$0xff]
  %7258 = vmatprep.subr.mxu0 %v7195
  %7259 = vmatpush1.msra.mxu0 %v7194
  %7260 = vmatprep.subr.mxu0 %v7199
  %7261 = vmatpush1.msra.mxu0 %v7198
  %7262 = vmatprep.subr.mxu0 %v7203
  %7263 = vmatpush1.msra.mxu0 %v7202
  %7264 = vmatprep.subr.mxu0 %v7207
  %7265 = vmatpush1.msra.mxu0 %v7206
  %7266 = vmatprep.subr.mxu0 %v7211
  %7267 = vmatpush1.msra.mxu0 %v7210
  %7268 = vmatprep.subr.mxu0 %v7215
  %7269 = vmatpush1.msra.mxu0 %v7214
  %7270 = vmatprep.subr.mxu0 %v7219
  %7271 = vmatpush1.msra.mxu0 %v7218
  %7272 = vmatprep.subr.mxu0 %v7223
  %7273 = vmatpush1.msra.mxu0 %v7222
  %7274 = vmatprep.subr.mxu0 %v7227
  %7275 = vmatpush1.msra.mxu0 %v7226
  %7276 = vmatprep.subr.mxu0 %v7231
  %7277 = vmatpush1.msra.mxu0 %v7230
  %7278 = vmatprep.subr.mxu0 %v7235
  %7279 = vmatpush1.msra.mxu0 %v7234
  %7280 = vmatprep.subr.mxu0 %v7239
  %7281 = vmatpush1.msra.mxu0 %v7238
  %7282 = vmatprep.subr.mxu0 %v7243
  %7283 = vmatpush1.msra.mxu0 %v7242
  %7284 = vmatprep.subr.mxu0 %v7247
  %7285 = vmatpush1.msra.mxu0 %v7246
  %7286 = vmatprep.subr.mxu0 %v7251
  %7287 = vmatpush1.msra.mxu0 %v7250
  %7288 = vmatprep.subr.mxu0 %v7255
  %7289 = vmatpush1.msra.mxu0 %v7254
  %7290 = vmatprep.subr.mxu0 0.0
  %7291 = vmatpush1.msra.mxu0 0.0
  %7292 = vmatprep.subr.mxu0 0.0
  %7293 = vmatpush1.msra.mxu0 0.0
  %7294 = vmatprep.subr.mxu0 0.0
  %7295 = vmatpush1.msra.mxu0 0.0
  %7296 = vmatprep.subr.mxu0 0.0
  %7297 = vmatpush1.msra.mxu0 0.0
  %7298 = vmatprep.subr.mxu0 0.0
  %7299 = vmatpush1.msra.mxu0 0.0
  %7300 = vmatprep.subr.mxu0 0.0
  %7301 = vmatpush1.msra.mxu0 0.0
  %7302 = vmatprep.subr.mxu0 0.0
  %7303 = vmatpush1.msra.mxu0 0.0
  %7304 = vmatprep.subr.mxu0 0.0
  %7305 = vmatpush1.msra.mxu0 0.0
  %7306 = vmatprep.subr.mxu0 0.0
  %7307 = vmatpush1.msra.mxu0 0.0
  %7308 = vmatprep.subr.mxu0 0.0
  %7309 = vmatpush1.msra.mxu0 0.0
  %7310 = vmatprep.subr.mxu0 0.0
  %7311 = vmatpush1.msra.mxu0 0.0
  %7312 = vmatprep.subr.mxu0 0.0
  %7313 = vmatpush1.msra.mxu0 0.0
  %7314 = vmatprep.subr.mxu0 0.0
  %7315 = vmatpush1.msra.mxu0 0.0
  %7316 = vmatprep.subr.mxu0 0.0
  %7317 = vmatpush1.msra.mxu0 0.0
  %7318 = vmatprep.subr.mxu0 0.0
  %7319 = vmatpush1.msra.mxu0 0.0
  %7320 = vmatprep.subr.mxu0 0.0
  %7321 = vmatpush1.msra.mxu0 0.0
  %7322 = vmatprep.mubr.f32.mxu0 0.0
  %7323 = vmatmul.mubr.f32.gmra.mrb[0].mxu0 %v7188
  %v7324 = vpop.f32.mrb[0].mxu0
  %v7325 = vadd.f32 0.0, %v7324
  %v7326 = vpop.f32.mrb[0].mxu0
  %v7327 = vadd.f32 0.0, %v7326
  %7328 = vdwg.mxu0
  %7329 = vmatprep.subr.mxu0 %v7197
  %7330 = vmatpush1.msra.mxu0 %v7196
  %7331 = vmatprep.subr.mxu0 %v7201
  %7332 = vmatpush1.msra.mxu0 %v7200
  %7333 = vmatprep.subr.mxu0 %v7205
  %7334 = vmatpush1.msra.mxu0 %v7204
  %7335 = vmatprep.subr.mxu0 %v7209
  %7336 = vmatpush1.msra.mxu0 %v7208
  %7337 = vmatprep.subr.mxu0 %v7213
  %7338 = vmatpush1.msra.mxu0 %v7212
  %7339 = vmatprep.subr.mxu0 %v7217
  %7340 = vmatpush1.msra.mxu0 %v7216
  %7341 = vmatprep.subr.mxu0 %v7221
  %7342 = vmatpush1.msra.mxu0 %v7220
  %7343 = vmatprep.subr.mxu0 %v7225
  %7344 = vmatpush1.msra.mxu0 %v7224
  %7345 = vmatprep.subr.mxu0 %v7229
  %7346 = vmatpush1.msra.mxu0 %v7228
  %7347 = vmatprep.subr.mxu0 %v7233
  %7348 = vmatpush1.msra.mxu0 %v7232
  %7349 = vmatprep.subr.mxu0 %v7237
  %7350 = vmatpush1.msra.mxu0 %v7236
  %7351 = vmatprep.subr.mxu0 %v7241
  %7352 = vmatpush1.msra.mxu0 %v7240
  %7353 = vmatprep.subr.mxu0 %v7245
  %7354 = vmatpush1.msra.mxu0 %v7244
  %7355 = vmatprep.subr.mxu0 %v7249
  %7356 = vmatpush1.msra.mxu0 %v7248
  %7357 = vmatprep.subr.mxu0 %v7253
  %7358 = vmatpush1.msra.mxu0 %v7252
  %7359 = vmatprep.subr.mxu0 %v7257
  %7360 = vmatpush1.msra.mxu0 %v7256
  %7361 = vmatprep.subr.mxu0 0.0
  %7362 = vmatpush1.msra.mxu0 0.0
  %7363 = vmatprep.subr.mxu0 0.0
  %7364 = vmatpush1.msra.mxu0 0.0
  %7365 = vmatprep.subr.mxu0 0.0
  %7366 = vmatpush1.msra.mxu0 0.0
  %7367 = vmatprep.subr.mxu0 0.0
  %7368 = vmatpush1.msra.mxu0 0.0
  %7369 = vmatprep.subr.mxu0 0.0
  %7370 = vmatpush1.msra.mxu0 0.0
  %7371 = vmatprep.subr.mxu0 0.0
  %7372 = vmatpush1.msra.mxu0 0.0
  %7373 = vmatprep.subr.mxu0 0.0
  %7374 = vmatpush1.msra.mxu0 0.0
  %7375 = vmatprep.subr.mxu0 0.0
  %7376 = vmatpush1.msra.mxu0 0.0
  %7377 = vmatprep.subr.mxu0 0.0
  %7378 = vmatpush1.msra.mxu0 0.0
  %7379 = vmatprep.subr.mxu0 0.0
  %7380 = vmatpush1.msra.mxu0 0.0
  %7381 = vmatprep.subr.mxu0 0.0
  %7382 = vmatpush1.msra.mxu0 0.0
  %7383 = vmatprep.subr.mxu0 0.0
  %7384 = vmatpush1.msra.mxu0 0.0
  %7385 = vmatprep.subr.mxu0 0.0
  %7386 = vmatpush1.msra.mxu0 0.0
  %7387 = vmatprep.subr.mxu0 0.0
  %7388 = vmatpush1.msra.mxu0 0.0
  %7389 = vmatprep.subr.mxu0 0.0
  %7390 = vmatpush1.msra.mxu0 0.0
  %7391 = vmatprep.subr.mxu0 0.0
  %7392 = vmatpush1.msra.mxu0 0.0
  %7393 = vmatprep.mubr.f32.mxu0 0.0
  %7394 = vmatmul.mubr.f32.gmra.mrb[0].mxu0 %v7188
  %v7395 = vpop.f32.mrb[0].mxu0
  %v7396 = vadd.f32 0.0, %v7395
  %v7397 = vpop.f32.mrb[0].mxu0
  %v7398 = vadd.f32 0.0, %v7397
  %7399 = vdwg.mxu0
  %v7404 = vrot.slane %v7325, 6
  %v7405 = vrot.slane %v7327, 6
  %v7406 = vrot.slane %v7396, 6
  %v7407 = vrot.slane %v7398, 6
  %v7412 = vadd.f32 %v7190, %v7404
  %v7413 = vadd.f32 %v7191, %v7405
  %v7414 = vadd.f32 %v7192, %v7406
  %v7415 = vadd.f32 %v7193, %v7407
  %v7416 = vxor.u32 %v7412, 2147483648
  %v7417 = vmul.f32 %v7416, 1.442695
  %v7418 = vpow.pop %v7417
  %v7419 = vadd.f32 %v7418, 1.0
  %v7420 = vrcp.pop %v7419
  %v7421 = vmul.f32 1.0, %v7420
  %v7422 = vxor.u32 %v7413, 2147483648
  %v7423 = vmul.f32 %v7422, 1.442695
  %v7424 = vpow.pop %v7423
  %v7425 = vadd.f32 %v7424, 1.0
  %v7426 = vrcp.pop %v7425
  %v7427 = vmul.f32 1.0, %v7426
  %v7428 = vtanh.pop %v7414
  %v7429 = vxor.u32 %v7415, 2147483648
  %v7430 = vmul.f32 %v7429, 1.442695
  %v7431 = vpow.pop %v7430
  %v7432 = vadd.f32 %v7431, 1.0
  %v7433 = vrcp.pop %v7432
  %v7434 = vmul.f32 1.0, %v7433
  %v7436 = vrot.slane %v7186, 6
  %v7438 = vmul.f32 %v7427, %v7436
  %v7439 = vmul.f32 %v7421, %v7428
  %v7440 = vadd.f32 %v7438, %v7439
  %v7441 = vtanh.pop %v7440
  %v7442 = vmul.f32 %v7434, %v7441
  %7443 = vst [vmem:[#allocation2] sm:$0xc] %v7442
  %v7444 = vld [vmem:[#allocation3] sm:$0x30]
  %v7445 = vld [vmem:[#allocation3 + $0x8] sm:$0x30]
  %v7446 = vld [vmem:[#allocation3 + $0x10] sm:$0x30]
  %v7447 = vld [vmem:[#allocation3 + $0x18] sm:$0x30]
  %v7448 = vld [vmem:[%s11] sm:$0xff]
  %v7449 = vld [vmem:[%s11 + $0x8] sm:$0xff]
  %v7450 = vld [vmem:[%s11 + $0x10] sm:$0xff]
  %v7451 = vld [vmem:[%s11 + $0x18] sm:$0xff]
  %v7452 = vld [vmem:[%s11 + $0x20] sm:$0xff]
  %v7453 = vld [vmem:[%s11 + $0x28] sm:$0xff]
  %v7454 = vld [vmem:[%s11 + $0x30] sm:$0xff]
  %v7455 = vld [vmem:[%s11 + $0x38] sm:$0xff]
  %v7456 = vld [vmem:[%s11 + $0x40] sm:$0xff]
  %v7457 = vld [vmem:[%s11 + $0x48] sm:$0xff]
  %v7458 = vld [vmem:[%s11 + $0x50] sm:$0xff]
  %v7459 = vld [vmem:[%s11 + $0x58] sm:$0xff]
  %v7460 = vld [vmem:[%s11 + $0x60] sm:$0xff]
  %v7461 = vld [vmem:[%s11 + $0x68] sm:$0xff]
  %v7462 = vld [vmem:[%s11 + $0x70] sm:$0xff]
  %v7463 = vld [vmem:[%s11 + $0x78] sm:$0xff]
  %v7464 = vld [vmem:[%s11 + $0x80] sm:$0xff]
  %v7465 = vld [vmem:[%s11 + $0x88] sm:$0xff]
  %v7466 = vld [vmem:[%s11 + $0x90] sm:$0xff]
  %v7467 = vld [vmem:[%s11 + $0x98] sm:$0xff]
  %v7468 = vld [vmem:[%s11 + $0xa0] sm:$0xff]
  %v7469 = vld [vmem:[%s11 + $0xa8] sm:$0xff]
  %v7470 = vld [vmem:[%s11 + $0xb0] sm:$0xff]
  %v7471 = vld [vmem:[%s11 + $0xb8] sm:$0xff]
  %v7472 = vld [vmem:[%s11 + $0xc0] sm:$0xff]
  %v7473 = vld [vmem:[%s11 + $0xc8] sm:$0xff]
  %v7474 = vld [vmem:[%s11 + $0xd0] sm:$0xff]
  %v7475 = vld [vmem:[%s11 + $0xd8] sm:$0xff]
  %v7476 = vld [vmem:[%s11 + $0xe0] sm:$0xff]
  %v7477 = vld [vmem:[%s11 + $0xe8] sm:$0xff]
  %v7478 = vld [vmem:[%s11 + $0xf0] sm:$0xff]
  %v7479 = vld [vmem:[%s11 + $0xf8] sm:$0xff]
  %v7480 = vld [vmem:[%s11 + $0x100] sm:$0xff]
  %v7481 = vld [vmem:[%s11 + $0x108] sm:$0xff]
  %v7482 = vld [vmem:[%s11 + $0x110] sm:$0xff]
  %v7483 = vld [vmem:[%s11 + $0x118] sm:$0xff]
  %v7484 = vld [vmem:[%s11 + $0x120] sm:$0xff]
  %v7485 = vld [vmem:[%s11 + $0x128] sm:$0xff]
  %v7486 = vld [vmem:[%s11 + $0x130] sm:$0xff]
  %v7487 = vld [vmem:[%s11 + $0x138] sm:$0xff]
  %v7488 = vld [vmem:[%s11 + $0x140] sm:$0xff]
  %v7489 = vld [vmem:[%s11 + $0x148] sm:$0xff]
  %v7490 = vld [vmem:[%s11 + $0x150] sm:$0xff]
  %v7491 = vld [vmem:[%s11 + $0x158] sm:$0xff]
  %v7492 = vld [vmem:[%s11 + $0x160] sm:$0xff]
  %v7493 = vld [vmem:[%s11 + $0x168] sm:$0xff]
  %v7494 = vld [vmem:[%s11 + $0x170] sm:$0xff]
  %v7495 = vld [vmem:[%s11 + $0x178] sm:$0xff]
  %v7496 = vld [vmem:[%s11 + $0x180] sm:$0xff]
  %v7497 = vld [vmem:[%s11 + $0x188] sm:$0xff]
  %v7498 = vld [vmem:[%s11 + $0x190] sm:$0xff]
  %v7499 = vld [vmem:[%s11 + $0x198] sm:$0xff]
  %v7500 = vld [vmem:[%s11 + $0x1a0] sm:$0xff]
  %v7501 = vld [vmem:[%s11 + $0x1a8] sm:$0xff]
  %v7502 = vld [vmem:[%s11 + $0x1b0] sm:$0xff]
  %v7503 = vld [vmem:[%s11 + $0x1b8] sm:$0xff]
  %v7504 = vld [vmem:[%s11 + $0x1c0] sm:$0xff]
  %v7505 = vld [vmem:[%s11 + $0x1c8] sm:$0xff]
  %v7506 = vld [vmem:[%s11 + $0x1d0] sm:$0xff]
  %v7507 = vld [vmem:[%s11 + $0x1d8] sm:$0xff]
  %v7508 = vld [vmem:[%s11 + $0x1e0] sm:$0xff]
  %v7509 = vld [vmem:[%s11 + $0x1e8] sm:$0xff]
  %v7510 = vld [vmem:[%s11 + $0x1f0] sm:$0xff]
  %v7511 = vld [vmem:[%s11 + $0x1f8] sm:$0xff]
  %v7513 = vrot.slane %v7442, 2
  %7515 = vmatprep.subr.mxu0 %v7449
  %7516 = vmatpush1.msra.mxu0 %v7448
  %7517 = vmatprep.subr.mxu0 %v7453
  %7518 = vmatpush1.msra.mxu0 %v7452
  %7519 = vmatprep.subr.mxu0 %v7457
  %7520 = vmatpush1.msra.mxu0 %v7456
  %7521 = vmatprep.subr.mxu0 %v7461
  %7522 = vmatpush1.msra.mxu0 %v7460
  %7523 = vmatprep.subr.mxu0 %v7465
  %7524 = vmatpush1.msra.mxu0 %v7464
  %7525 = vmatprep.subr.mxu0 %v7469
  %7526 = vmatpush1.msra.mxu0 %v7468
  %7527 = vmatprep.subr.mxu0 %v7473
  %7528 = vmatpush1.msra.mxu0 %v7472
  %7529 = vmatprep.subr.mxu0 %v7477
  %7530 = vmatpush1.msra.mxu0 %v7476
  %7531 = vmatprep.subr.mxu0 %v7481
  %7532 = vmatpush1.msra.mxu0 %v7480
  %7533 = vmatprep.subr.mxu0 %v7485
  %7534 = vmatpush1.msra.mxu0 %v7484
  %7535 = vmatprep.subr.mxu0 %v7489
  %7536 = vmatpush1.msra.mxu0 %v7488
  %7537 = vmatprep.subr.mxu0 %v7493
  %7538 = vmatpush1.msra.mxu0 %v7492
  %7539 = vmatprep.subr.mxu0 %v7497
  %7540 = vmatpush1.msra.mxu0 %v7496
  %7541 = vmatprep.subr.mxu0 %v7501
  %7542 = vmatpush1.msra.mxu0 %v7500
  %7543 = vmatprep.subr.mxu0 %v7505
  %7544 = vmatpush1.msra.mxu0 %v7504
  %7545 = vmatprep.subr.mxu0 %v7509
  %7546 = vmatpush1.msra.mxu0 %v7508
  %7547 = vmatprep.subr.mxu0 0.0
  %7548 = vmatpush1.msra.mxu0 0.0
  %7549 = vmatprep.subr.mxu0 0.0
  %7550 = vmatpush1.msra.mxu0 0.0
  %7551 = vmatprep.subr.mxu0 0.0
  %7552 = vmatpush1.msra.mxu0 0.0
  %7553 = vmatprep.subr.mxu0 0.0
  %7554 = vmatpush1.msra.mxu0 0.0
  %7555 = vmatprep.subr.mxu0 0.0
  %7556 = vmatpush1.msra.mxu0 0.0
  %7557 = vmatprep.subr.mxu0 0.0
  %7558 = vmatpush1.msra.mxu0 0.0
  %7559 = vmatprep.subr.mxu0 0.0
  %7560 = vmatpush1.msra.mxu0 0.0
  %7561 = vmatprep.subr.mxu0 0.0
  %7562 = vmatpush1.msra.mxu0 0.0
  %7563 = vmatprep.subr.mxu0 0.0
  %7564 = vmatpush1.msra.mxu0 0.0
  %7565 = vmatprep.subr.mxu0 0.0
  %7566 = vmatpush1.msra.mxu0 0.0
  %7567 = vmatprep.subr.mxu0 0.0
  %7568 = vmatpush1.msra.mxu0 0.0
  %7569 = vmatprep.subr.mxu0 0.0
  %7570 = vmatpush1.msra.mxu0 0.0
  %7571 = vmatprep.subr.mxu0 0.0
  %7572 = vmatpush1.msra.mxu0 0.0
  %7573 = vmatprep.subr.mxu0 0.0
  %7574 = vmatpush1.msra.mxu0 0.0
  %7575 = vmatprep.subr.mxu0 0.0
  %7576 = vmatpush1.msra.mxu0 0.0
  %7577 = vmatprep.subr.mxu0 0.0
  %7578 = vmatpush1.msra.mxu0 0.0
  %7579 = vmatprep.mubr.f32.mxu0 0.0
  %7580 = vmatmul.mubr.f32.gmra.mrb[0].mxu0 %v7513
  %v7581 = vpop.f32.mrb[0].mxu0
  %v7582 = vadd.f32 0.0, %v7581
  %v7583 = vpop.f32.mrb[0].mxu0
  %v7584 = vadd.f32 0.0, %v7583
  %7585 = vdwg.mxu0
  %7586 = vmatprep.subr.mxu0 %v7451
  %7587 = vmatpush1.msra.mxu0 %v7450
  %7588 = vmatprep.subr.mxu0 %v7455
  %7589 = vmatpush1.msra.mxu0 %v7454
  %7590 = vmatprep.subr.mxu0 %v7459
  %7591 = vmatpush1.msra.mxu0 %v7458
  %7592 = vmatprep.subr.mxu0 %v7463
  %7593 = vmatpush1.msra.mxu0 %v7462
  %7594 = vmatprep.subr.mxu0 %v7467
  %7595 = vmatpush1.msra.mxu0 %v7466
  %7596 = vmatprep.subr.mxu0 %v7471
  %7597 = vmatpush1.msra.mxu0 %v7470
  %7598 = vmatprep.subr.mxu0 %v7475
  %7599 = vmatpush1.msra.mxu0 %v7474
  %7600 = vmatprep.subr.mxu0 %v7479
  %7601 = vmatpush1.msra.mxu0 %v7478
  %7602 = vmatprep.subr.mxu0 %v7483
  %7603 = vmatpush1.msra.mxu0 %v7482
  %7604 = vmatprep.subr.mxu0 %v7487
  %7605 = vmatpush1.msra.mxu0 %v7486
  %7606 = vmatprep.subr.mxu0 %v7491
  %7607 = vmatpush1.msra.mxu0 %v7490
  %7608 = vmatprep.subr.mxu0 %v7495
  %7609 = vmatpush1.msra.mxu0 %v7494
  %7610 = vmatprep.subr.mxu0 %v7499
  %7611 = vmatpush1.msra.mxu0 %v7498
  %7612 = vmatprep.subr.mxu0 %v7503
  %7613 = vmatpush1.msra.mxu0 %v7502
  %7614 = vmatprep.subr.mxu0 %v7507
  %7615 = vmatpush1.msra.mxu0 %v7506
  %7616 = vmatprep.subr.mxu0 %v7511
  %7617 = vmatpush1.msra.mxu0 %v7510
  %7618 = vmatprep.subr.mxu0 0.0
  %7619 = vmatpush1.msra.mxu0 0.0
  %7620 = vmatprep.subr.mxu0 0.0
  %7621 = vmatpush1.msra.mxu0 0.0
  %7622 = vmatprep.subr.mxu0 0.0
  %7623 = vmatpush1.msra.mxu0 0.0
  %7624 = vmatprep.subr.mxu0 0.0
  %7625 = vmatpush1.msra.mxu0 0.0
  %7626 = vmatprep.subr.mxu0 0.0
  %7627 = vmatpush1.msra.mxu0 0.0
  %7628 = vmatprep.subr.mxu0 0.0
  %7629 = vmatpush1.msra.mxu0 0.0
  %7630 = vmatprep.subr.mxu0 0.0
  %7631 = vmatpush1.msra.mxu0 0.0
  %7632 = vmatprep.subr.mxu0 0.0
  %7633 = vmatpush1.msra.mxu0 0.0
  %7634 = vmatprep.subr.mxu0 0.0
  %7635 = vmatpush1.msra.mxu0 0.0
  %7636 = vmatprep.subr.mxu0 0.0
  %7637 = vmatpush1.msra.mxu0 0.0
  %7638 = vmatprep.subr.mxu0 0.0
  %7639 = vmatpush1.msra.mxu0 0.0
  %7640 = vmatprep.subr.mxu0 0.0
  %7641 = vmatpush1.msra.mxu0 0.0
  %7642 = vmatprep.subr.mxu0 0.0
  %7643 = vmatpush1.msra.mxu0 0.0
  %7644 = vmatprep.subr.mxu0 0.0
  %7645 = vmatpush1.msra.mxu0 0.0
  %7646 = vmatprep.subr.mxu0 0.0
  %7647 = vmatpush1.msra.mxu0 0.0
  %7648 = vmatprep.subr.mxu0 0.0
  %7649 = vmatpush1.msra.mxu0 0.0
  %7650 = vmatprep.mubr.f32.mxu0 0.0
  %7651 = vmatmul.mubr.f32.gmra.mrb[0].mxu0 %v7513
  %v7652 = vpop.f32.mrb[0].mxu0
  %v7653 = vadd.f32 0.0, %v7652
  %v7654 = vpop.f32.mrb[0].mxu0
  %v7655 = vadd.f32 0.0, %v7654
  %7656 = vdwg.mxu0
  %v7661 = vrot.slane %v7582, 4
  %v7662 = vrot.slane %v7584, 4
  %v7663 = vrot.slane %v7653, 4
  %v7664 = vrot.slane %v7655, 4
  %v7669 = vadd.f32 %v7444, %v7661
  %v7670 = vadd.f32 %v7445, %v7662
  %v7671 = vadd.f32 %v7446, %v7663
  %v7672 = vadd.f32 %v7447, %v7664
  %v7673 = vxor.u32 %v7669, 2147483648
  %v7674 = vmul.f32 %v7673, 1.442695
  %v7675 = vpow.pop %v7674
  %v7676 = vadd.f32 %v7675, 1.0
  %v7677 = vrcp.pop %v7676
  %v7678 = vmul.f32 1.0, %v7677
  %v7679 = vxor.u32 %v7670, 2147483648
  %v7680 = vmul.f32 %v7679, 1.442695
  %v7681 = vpow.pop %v7680
  %v7682 = vadd.f32 %v7681, 1.0
  %v7683 = vrcp.pop %v7682
  %v7684 = vmul.f32 1.0, %v7683
  %v7685 = vtanh.pop %v7671
  %v7686 = vxor.u32 %v7672, 2147483648
  %v7687 = vmul.f32 %v7686, 1.442695
  %v7688 = vpow.pop %v7687
  %v7689 = vadd.f32 %v7688, 1.0
  %v7690 = vrcp.pop %v7689
  %v7691 = vmul.f32 1.0, %v7690
  %v7693 = vrot.slane %v7440, 6
  %v7695 = vmul.f32 %v7684, %v7693
  %v7696 = vmul.f32 %v7678, %v7685
  %v7697 = vadd.f32 %v7695, %v7696
  %v7698 = vtanh.pop %v7697
  %v7699 = vmul.f32 %v7691, %v7698
  %7700 = vst [vmem:[#allocation2] sm:$0x30] %v7699
  %v7701 = vld [vmem:[#allocation3] sm:$0xc0]
  %v7702 = vld [vmem:[#allocation3 + $0x8] sm:$0xc0]
  %v7703 = vld [vmem:[#allocation3 + $0x10] sm:$0xc0]
  %v7704 = vld [vmem:[#allocation3 + $0x18] sm:$0xc0]
  %v7705 = vld [vmem:[%s11] sm:$0xff]
  %v7706 = vld [vmem:[%s11 + $0x8] sm:$0xff]
  %v7707 = vld [vmem:[%s11 + $0x10] sm:$0xff]
  %v7708 = vld [vmem:[%s11 + $0x18] sm:$0xff]
  %v7709 = vld [vmem:[%s11 + $0x20] sm:$0xff]
  %v7710 = vld [vmem:[%s11 + $0x28] sm:$0xff]
  %v7711 = vld [vmem:[%s11 + $0x30] sm:$0xff]
  %v7712 = vld [vmem:[%s11 + $0x38] sm:$0xff]
  %v7713 = vld [vmem:[%s11 + $0x40] sm:$0xff]
  %v7714 = vld [vmem:[%s11 + $0x48] sm:$0xff]
  %v7715 = vld [vmem:[%s11 + $0x50] sm:$0xff]
  %v7716 = vld [vmem:[%s11 + $0x58] sm:$0xff]
  %v7717 = vld [vmem:[%s11 + $0x60] sm:$0xff]
  %v7718 = vld [vmem:[%s11 + $0x68] sm:$0xff]
  %v7719 = vld [vmem:[%s11 + $0x70] sm:$0xff]
  %v7720 = vld [vmem:[%s11 + $0x78] sm:$0xff]
  %v7721 = vld [vmem:[%s11 + $0x80] sm:$0xff]
  %v7722 = vld [vmem:[%s11 + $0x88] sm:$0xff]
  %v7723 = vld [vmem:[%s11 + $0x90] sm:$0xff]
  %v7724 = vld [vmem:[%s11 + $0x98] sm:$0xff]
  %v7725 = vld [vmem:[%s11 + $0xa0] sm:$0xff]
  %v7726 = vld [vmem:[%s11 + $0xa8] sm:$0xff]
  %v7727 = vld [vmem:[%s11 + $0xb0] sm:$0xff]
  %v7728 = vld [vmem:[%s11 + $0xb8] sm:$0xff]
  %v7729 = vld [vmem:[%s11 + $0xc0] sm:$0xff]
  %v7730 = vld [vmem:[%s11 + $0xc8] sm:$0xff]
  %v7731 = vld [vmem:[%s11 + $0xd0] sm:$0xff]
  %v7732 = vld [vmem:[%s11 + $0xd8] sm:$0xff]
  %v7733 = vld [vmem:[%s11 + $0xe0] sm:$0xff]
  %v7734 = vld [vmem:[%s11 + $0xe8] sm:$0xff]
  %v7735 = vld [vmem:[%s11 + $0xf0] sm:$0xff]
  %v7736 = vld [vmem:[%s11 + $0xf8] sm:$0xff]
  %v7737 = vld [vmem:[%s11 + $0x100] sm:$0xff]
  %v7738 = vld [vmem:[%s11 + $0x108] sm:$0xff]
  %v7739 = vld [vmem:[%s11 + $0x110] sm:$0xff]
  %v7740 = vld [vmem:[%s11 + $0x118] sm:$0xff]
  %v7741 = vld [vmem:[%s11 + $0x120] sm:$0xff]
  %v7742 = vld [vmem:[%s11 + $0x128] sm:$0xff]
  %v7743 = vld [vmem:[%s11 + $0x130] sm:$0xff]
  %v7744 = vld [vmem:[%s11 + $0x138] sm:$0xff]
  %v7745 = vld [vmem:[%s11 + $0x140] sm:$0xff]
  %v7746 = vld [vmem:[%s11 + $0x148] sm:$0xff]
  %v7747 = vld [vmem:[%s11 + $0x150] sm:$0xff]
  %v7748 = vld [vmem:[%s11 + $0x158] sm:$0xff]
  %v7749 = vld [vmem:[%s11 + $0x160] sm:$0xff]
  %v7750 = vld [vmem:[%s11 + $0x168] sm:$0xff]
  %v7751 = vld [vmem:[%s11 + $0x170] sm:$0xff]
  %v7752 = vld [vmem:[%s11 + $0x178] sm:$0xff]
  %v7753 = vld [vmem:[%s11 + $0x180] sm:$0xff]
  %v7754 = vld [vmem:[%s11 + $0x188] sm:$0xff]
  %v7755 = vld [vmem:[%s11 + $0x190] sm:$0xff]
  %v7756 = vld [vmem:[%s11 + $0x198] sm:$0xff]
  %v7757 = vld [vmem:[%s11 + $0x1a0] sm:$0xff]
  %v7758 = vld [vmem:[%s11 + $0x1a8] sm:$0xff]
  %v7759 = vld [vmem:[%s11 + $0x1b0] sm:$0xff]
  %v7760 = vld [vmem:[%s11 + $0x1b8] sm:$0xff]
  %v7761 = vld [vmem:[%s11 + $0x1c0] sm:$0xff]
  %v7762 = vld [vmem:[%s11 + $0x1c8] sm:$0xff]
  %v7763 = vld [vmem:[%s11 + $0x1d0] sm:$0xff]
  %v7764 = vld [vmem:[%s11 + $0x1d8] sm:$0xff]
  %v7765 = vld [vmem:[%s11 + $0x1e0] sm:$0xff]
  %v7766 = vld [vmem:[%s11 + $0x1e8] sm:$0xff]
  %v7767 = vld [vmem:[%s11 + $0x1f0] sm:$0xff]
  %v7768 = vld [vmem:[%s11 + $0x1f8] sm:$0xff]
  %v7770 = vrot.slane %v7699, 4
  %7772 = vmatprep.subr.mxu0 %v7706
  %7773 = vmatpush1.msra.mxu0 %v7705
  %7774 = vmatprep.subr.mxu0 %v7710
  %7775 = vmatpush1.msra.mxu0 %v7709
  %7776 = vmatprep.subr.mxu0 %v7714
  %7777 = vmatpush1.msra.mxu0 %v7713
  %7778 = vmatprep.subr.mxu0 %v7718
  %7779 = vmatpush1.msra.mxu0 %v7717
  %7780 = vmatprep.subr.mxu0 %v7722
  %7781 = vmatpush1.msra.mxu0 %v7721
  %7782 = vmatprep.subr.mxu0 %v7726
  %7783 = vmatpush1.msra.mxu0 %v7725
  %7784 = vmatprep.subr.mxu0 %v7730
  %7785 = vmatpush1.msra.mxu0 %v7729
  %7786 = vmatprep.subr.mxu0 %v7734
  %7787 = vmatpush1.msra.mxu0 %v7733
  %7788 = vmatprep.subr.mxu0 %v7738
  %7789 = vmatpush1.msra.mxu0 %v7737
  %7790 = vmatprep.subr.mxu0 %v7742
  %7791 = vmatpush1.msra.mxu0 %v7741
  %7792 = vmatprep.subr.mxu0 %v7746
  %7793 = vmatpush1.msra.mxu0 %v7745
  %7794 = vmatprep.subr.mxu0 %v7750
  %7795 = vmatpush1.msra.mxu0 %v7749
  %7796 = vmatprep.subr.mxu0 %v7754
  %7797 = vmatpush1.msra.mxu0 %v7753
  %7798 = vmatprep.subr.mxu0 %v7758
  %7799 = vmatpush1.msra.mxu0 %v7757
  %7800 = vmatprep.subr.mxu0 %v7762
  %7801 = vmatpush1.msra.mxu0 %v7761
  %7802 = vmatprep.subr.mxu0 %v7766
  %7803 = vmatpush1.msra.mxu0 %v7765
  %7804 = vmatprep.subr.mxu0 0.0
  %7805 = vmatpush1.msra.mxu0 0.0
  %7806 = vmatprep.subr.mxu0 0.0
  %7807 = vmatpush1.msra.mxu0 0.0
  %7808 = vmatprep.subr.mxu0 0.0
  %7809 = vmatpush1.msra.mxu0 0.0
  %7810 = vmatprep.subr.mxu0 0.0
  %7811 = vmatpush1.msra.mxu0 0.0
  %7812 = vmatprep.subr.mxu0 0.0
  %7813 = vmatpush1.msra.mxu0 0.0
  %7814 = vmatprep.subr.mxu0 0.0
  %7815 = vmatpush1.msra.mxu0 0.0
  %7816 = vmatprep.subr.mxu0 0.0
  %7817 = vmatpush1.msra.mxu0 0.0
  %7818 = vmatprep.subr.mxu0 0.0
  %7819 = vmatpush1.msra.mxu0 0.0
  %7820 = vmatprep.subr.mxu0 0.0
  %7821 = vmatpush1.msra.mxu0 0.0
  %7822 = vmatprep.subr.mxu0 0.0
  %7823 = vmatpush1.msra.mxu0 0.0
  %7824 = vmatprep.subr.mxu0 0.0
  %7825 = vmatpush1.msra.mxu0 0.0
  %7826 = vmatprep.subr.mxu0 0.0
  %7827 = vmatpush1.msra.mxu0 0.0
  %7828 = vmatprep.subr.mxu0 0.0
  %7829 = vmatpush1.msra.mxu0 0.0
  %7830 = vmatprep.subr.mxu0 0.0
  %7831 = vmatpush1.msra.mxu0 0.0
  %7832 = vmatprep.subr.mxu0 0.0
  %7833 = vmatpush1.msra.mxu0 0.0
  %7834 = vmatprep.subr.mxu0 0.0
  %7835 = vmatpush1.msra.mxu0 0.0
  %7836 = vmatprep.mubr.f32.mxu0 0.0
  %7837 = vmatmul.mubr.f32.gmra.mrb[0].mxu0 %v7770
  %v7838 = vpop.f32.mrb[0].mxu0
  %v7839 = vadd.f32 0.0, %v7838
  %v7840 = vpop.f32.mrb[0].mxu0
  %v7841 = vadd.f32 0.0, %v7840
  %7842 = vdwg.mxu0
  %7843 = vmatprep.subr.mxu0 %v7708
  %7844 = vmatpush1.msra.mxu0 %v7707
  %7845 = vmatprep.subr.mxu0 %v7712
  %7846 = vmatpush1.msra.mxu0 %v7711
  %7847 = vmatprep.subr.mxu0 %v7716
  %7848 = vmatpush1.msra.mxu0 %v7715
  %7849 = vmatprep.subr.mxu0 %v7720
  %7850 = vmatpush1.msra.mxu0 %v7719
  %7851 = vmatprep.subr.mxu0 %v7724
  %7852 = vmatpush1.msra.mxu0 %v7723
  %7853 = vmatprep.subr.mxu0 %v7728
  %7854 = vmatpush1.msra.mxu0 %v7727
  %7855 = vmatprep.subr.mxu0 %v7732
  %7856 = vmatpush1.msra.mxu0 %v7731
  %7857 = vmatprep.subr.mxu0 %v7736
  %7858 = vmatpush1.msra.mxu0 %v7735
  %7859 = vmatprep.subr.mxu0 %v7740
  %7860 = vmatpush1.msra.mxu0 %v7739
  %7861 = vmatprep.subr.mxu0 %v7744
  %7862 = vmatpush1.msra.mxu0 %v7743
  %7863 = vmatprep.subr.mxu0 %v7748
  %7864 = vmatpush1.msra.mxu0 %v7747
  %7865 = vmatprep.subr.mxu0 %v7752
  %7866 = vmatpush1.msra.mxu0 %v7751
  %7867 = vmatprep.subr.mxu0 %v7756
  %7868 = vmatpush1.msra.mxu0 %v7755
  %7869 = vmatprep.subr.mxu0 %v7760
  %7870 = vmatpush1.msra.mxu0 %v7759
  %7871 = vmatprep.subr.mxu0 %v7764
  %7872 = vmatpush1.msra.mxu0 %v7763
  %7873 = vmatprep.subr.mxu0 %v7768
  %7874 = vmatpush1.msra.mxu0 %v7767
  %7875 = vmatprep.subr.mxu0 0.0
  %7876 = vmatpush1.msra.mxu0 0.0
  %7877 = vmatprep.subr.mxu0 0.0
  %7878 = vmatpush1.msra.mxu0 0.0
  %7879 = vmatprep.subr.mxu0 0.0
  %7880 = vmatpush1.msra.mxu0 0.0
  %7881 = vmatprep.subr.mxu0 0.0
  %7882 = vmatpush1.msra.mxu0 0.0
  %7883 = vmatprep.subr.mxu0 0.0
  %7884 = vmatpush1.msra.mxu0 0.0
  %7885 = vmatprep.subr.mxu0 0.0
  %7886 = vmatpush1.msra.mxu0 0.0
  %7887 = vmatprep.subr.mxu0 0.0
  %7888 = vmatpush1.msra.mxu0 0.0
  %7889 = vmatprep.subr.mxu0 0.0
  %7890 = vmatpush1.msra.mxu0 0.0
  %7891 = vmatprep.subr.mxu0 0.0
  %7892 = vmatpush1.msra.mxu0 0.0
  %7893 = vmatprep.subr.mxu0 0.0
  %7894 = vmatpush1.msra.mxu0 0.0
  %7895 = vmatprep.subr.mxu0 0.0
  %7896 = vmatpush1.msra.mxu0 0.0
  %7897 = vmatprep.subr.mxu0 0.0
  %7898 = vmatpush1.msra.mxu0 0.0
  %7899 = vmatprep.subr.mxu0 0.0
  %7900 = vmatpush1.msra.mxu0 0.0
  %7901 = vmatprep.subr.mxu0 0.0
  %7902 = vmatpush1.msra.mxu0 0.0
  %7903 = vmatprep.subr.mxu0 0.0
  %7904 = vmatpush1.msra.mxu0 0.0
  %7905 = vmatprep.subr.mxu0 0.0
  %7906 = vmatpush1.msra.mxu0 0.0
  %7907 = vmatprep.mubr.f32.mxu0 0.0
  %7908 = vmatmul.mubr.f32.gmra.mrb[0].mxu0 %v7770
  %v7909 = vpop.f32.mrb[0].mxu0
  %v7910 = vadd.f32 0.0, %v7909
  %v7911 = vpop.f32.mrb[0].mxu0
  %v7912 = vadd.f32 0.0, %v7911
  %7913 = vdwg.mxu0
  %v7918 = vrot.slane %v7839, 2
  %v7919 = vrot.slane %v7841, 2
  %v7920 = vrot.slane %v7910, 2
  %v7921 = vrot.slane %v7912, 2
  %v7926 = vadd.f32 %v7701, %v7918
  %v7927 = vadd.f32 %v7702, %v7919
  %v7928 = vadd.f32 %v7703, %v7920
  %v7929 = vadd.f32 %v7704, %v7921
  %v7930 = vxor.u32 %v7926, 2147483648
  %v7931 = vmul.f32 %v7930, 1.442695
  %v7932 = vpow.pop %v7931
  %v7933 = vadd.f32 %v7932, 1.0
  %v7934 = vrcp.pop %v7933
  %v7935 = vmul.f32 1.0, %v7934
  %v7936 = vxor.u32 %v7927, 2147483648
  %v7937 = vmul.f32 %v7936, 1.442695
  %v7938 = vpow.pop %v7937
  %v7939 = vadd.f32 %v7938, 1.0
  %v7940 = vrcp.pop %v7939
  %v7941 = vmul.f32 1.0, %v7940
  %v7942 = vtanh.pop %v7928
  %v7943 = vxor.u32 %v7929, 2147483648
  %v7944 = vmul.f32 %v7943, 1.442695
  %v7945 = vpow.pop %v7944
  %v7946 = vadd.f32 %v7945, 1.0
  %v7947 = vrcp.pop %v7946
  %v7948 = vmul.f32 1.0, %v7947
  %v7950 = vrot.slane %v7697, 6
  %v7952 = vmul.f32 %v7941, %v7950
  %v7953 = vmul.f32 %v7935, %v7942
  %v7954 = vadd.f32 %v7952, %v7953
  %v7955 = vtanh.pop %v7954
  %v7956 = vmul.f32 %v7948, %v7955
  %7957 = vst [vmem:[#allocation2] sm:$0xc0] %v7956
  %v7958 = vld [vmem:[#allocation3 + $0x20] sm:$0x3]
  %v7959 = vld [vmem:[#allocation3 + $0x28] sm:$0x3]
  %v7960 = vld [vmem:[#allocation3 + $0x30] sm:$0x3]
  %v7961 = vld [vmem:[#allocation3 + $0x38] sm:$0x3]
  %v7962 = vld [vmem:[%s11] sm:$0xff]
  %v7963 = vld [vmem:[%s11 + $0x8] sm:$0xff]
  %v7964 = vld [vmem:[%s11 + $0x10] sm:$0xff]
  %v7965 = vld [vmem:[%s11 + $0x18] sm:$0xff]
  %v7966 = vld [vmem:[%s11 + $0x20] sm:$0xff]
  %v7967 = vld [vmem:[%s11 + $0x28] sm:$0xff]
  %v7968 = vld [vmem:[%s11 + $0x30] sm:$0xff]
  %v7969 = vld [vmem:[%s11 + $0x38] sm:$0xff]
  %v7970 = vld [vmem:[%s11 + $0x40] sm:$0xff]
  %v7971 = vld [vmem:[%s11 + $0x48] sm:$0xff]
  %v7972 = vld [vmem:[%s11 + $0x50] sm:$0xff]
  %v7973 = vld [vmem:[%s11 + $0x58] sm:$0xff]
  %v7974 = vld [vmem:[%s11 + $0x60] sm:$0xff]
  %v7975 = vld [vmem:[%s11 + $0x68] sm:$0xff]
  %v7976 = vld [vmem:[%s11 + $0x70] sm:$0xff]
  %v7977 = vld [vmem:[%s11 + $0x78] sm:$0xff]
  %v7978 = vld [vmem:[%s11 + $0x80] sm:$0xff]
  %v7979 = vld [vmem:[%s11 + $0x88] sm:$0xff]
  %v7980 = vld [vmem:[%s11 + $0x90] sm:$0xff]
  %v7981 = vld [vmem:[%s11 + $0x98] sm:$0xff]
  %v7982 = vld [vmem:[%s11 + $0xa0] sm:$0xff]
  %v7983 = vld [vmem:[%s11 + $0xa8] sm:$0xff]
  %v7984 = vld [vmem:[%s11 + $0xb0] sm:$0xff]
  %v7985 = vld [vmem:[%s11 + $0xb8] sm:$0xff]
  %v7986 = vld [vmem:[%s11 + $0xc0] sm:$0xff]
  %v7987 = vld [vmem:[%s11 + $0xc8] sm:$0xff]
  %v7988 = vld [vmem:[%s11 + $0xd0] sm:$0xff]
  %v7989 = vld [vmem:[%s11 + $0xd8] sm:$0xff]
  %v7990 = vld [vmem:[%s11 + $0xe0] sm:$0xff]
  %v7991 = vld [vmem:[%s11 + $0xe8] sm:$0xff]
  %v7992 = vld [vmem:[%s11 + $0xf0] sm:$0xff]
  %v7993 = vld [vmem:[%s11 + $0xf8] sm:$0xff]
  %v7994 = vld [vmem:[%s11 + $0x100] sm:$0xff]
  %v7995 = vld [vmem:[%s11 + $0x108] sm:$0xff]
  %v7996 = vld [vmem:[%s11 + $0x110] sm:$0xff]
  %v7997 = vld [vmem:[%s11 + $0x118] sm:$0xff]
  %v7998 = vld [vmem:[%s11 + $0x120] sm:$0xff]
  %v7999 = vld [vmem:[%s11 + $0x128] sm:$0xff]
  %v8000 = vld [vmem:[%s11 + $0x130] sm:$0xff]
  %v8001 = vld [vmem:[%s11 + $0x138] sm:$0xff]
  %v8002 = vld [vmem:[%s11 + $0x140] sm:$0xff]
  %v8003 = vld [vmem:[%s11 + $0x148] sm:$0xff]
  %v8004 = vld [vmem:[%s11 + $0x150] sm:$0xff]
  %v8005 = vld [vmem:[%s11 + $0x158] sm:$0xff]
  %v8006 = vld [vmem:[%s11 + $0x160] sm:$0xff]
  %v8007 = vld [vmem:[%s11 + $0x168] sm:$0xff]
  %v8008 = vld [vmem:[%s11 + $0x170] sm:$0xff]
  %v8009 = vld [vmem:[%s11 + $0x178] sm:$0xff]
  %v8010 = vld [vmem:[%s11 + $0x180] sm:$0xff]
  %v8011 = vld [vmem:[%s11 + $0x188] sm:$0xff]
  %v8012 = vld [vmem:[%s11 + $0x190] sm:$0xff]
  %v8013 = vld [vmem:[%s11 + $0x198] sm:$0xff]
  %v8014 = vld [vmem:[%s11 + $0x1a0] sm:$0xff]
  %v8015 = vld [vmem:[%s11 + $0x1a8] sm:$0xff]
  %v8016 = vld [vmem:[%s11 + $0x1b0] sm:$0xff]
  %v8017 = vld [vmem:[%s11 + $0x1b8] sm:$0xff]
  %v8018 = vld [vmem:[%s11 + $0x1c0] sm:$0xff]
  %v8019 = vld [vmem:[%s11 + $0x1c8] sm:$0xff]
  %v8020 = vld [vmem:[%s11 + $0x1d0] sm:$0xff]
  %v8021 = vld [vmem:[%s11 + $0x1d8] sm:$0xff]
  %v8022 = vld [vmem:[%s11 + $0x1e0] sm:$0xff]
  %v8023 = vld [vmem:[%s11 + $0x1e8] sm:$0xff]
  %v8024 = vld [vmem:[%s11 + $0x1f0] sm:$0xff]
  %v8025 = vld [vmem:[%s11 + $0x1f8] sm:$0xff]
  %v8027 = vrot.slane %v7956, 6
  %8029 = vmatprep.subr.mxu0 %v7963
  %8030 = vmatpush1.msra.mxu0 %v7962
  %8031 = vmatprep.subr.mxu0 %v7967
  %8032 = vmatpush1.msra.mxu0 %v7966
  %8033 = vmatprep.subr.mxu0 %v7971
  %8034 = vmatpush1.msra.mxu0 %v7970
  %8035 = vmatprep.subr.mxu0 %v7975
  %8036 = vmatpush1.msra.mxu0 %v7974
  %8037 = vmatprep.subr.mxu0 %v7979
  %8038 = vmatpush1.msra.mxu0 %v7978
  %8039 = vmatprep.subr.mxu0 %v7983
  %8040 = vmatpush1.msra.mxu0 %v7982
  %8041 = vmatprep.subr.mxu0 %v7987
  %8042 = vmatpush1.msra.mxu0 %v7986
  %8043 = vmatprep.subr.mxu0 %v7991
  %8044 = vmatpush1.msra.mxu0 %v7990
  %8045 = vmatprep.subr.mxu0 %v7995
  %8046 = vmatpush1.msra.mxu0 %v7994
  %8047 = vmatprep.subr.mxu0 %v7999
  %8048 = vmatpush1.msra.mxu0 %v7998
  %8049 = vmatprep.subr.mxu0 %v8003
  %8050 = vmatpush1.msra.mxu0 %v8002
  %8051 = vmatprep.subr.mxu0 %v8007
  %8052 = vmatpush1.msra.mxu0 %v8006
  %8053 = vmatprep.subr.mxu0 %v8011
  %8054 = vmatpush1.msra.mxu0 %v8010
  %8055 = vmatprep.subr.mxu0 %v8015
  %8056 = vmatpush1.msra.mxu0 %v8014
  %8057 = vmatprep.subr.mxu0 %v8019
  %8058 = vmatpush1.msra.mxu0 %v8018
  %8059 = vmatprep.subr.mxu0 %v8023
  %8060 = vmatpush1.msra.mxu0 %v8022
  %8061 = vmatprep.subr.mxu0 0.0
  %8062 = vmatpush1.msra.mxu0 0.0
  %8063 = vmatprep.subr.mxu0 0.0
  %8064 = vmatpush1.msra.mxu0 0.0
  %8065 = vmatprep.subr.mxu0 0.0
  %8066 = vmatpush1.msra.mxu0 0.0
  %8067 = vmatprep.subr.mxu0 0.0
  %8068 = vmatpush1.msra.mxu0 0.0
  %8069 = vmatprep.subr.mxu0 0.0
  %8070 = vmatpush1.msra.mxu0 0.0
  %8071 = vmatprep.subr.mxu0 0.0
  %8072 = vmatpush1.msra.mxu0 0.0
  %8073 = vmatprep.subr.mxu0 0.0
  %8074 = vmatpush1.msra.mxu0 0.0
  %8075 = vmatprep.subr.mxu0 0.0
  %8076 = vmatpush1.msra.mxu0 0.0
  %8077 = vmatprep.subr.mxu0 0.0
  %8078 = vmatpush1.msra.mxu0 0.0
  %8079 = vmatprep.subr.mxu0 0.0
  %8080 = vmatpush1.msra.mxu0 0.0
  %8081 = vmatprep.subr.mxu0 0.0
  %8082 = vmatpush1.msra.mxu0 0.0
  %8083 = vmatprep.subr.mxu0 0.0
  %8084 = vmatpush1.msra.mxu0 0.0
  %8085 = vmatprep.subr.mxu0 0.0
  %8086 = vmatpush1.msra.mxu0 0.0
  %8087 = vmatprep.subr.mxu0 0.0
  %8088 = vmatpush1.msra.mxu0 0.0
  %8089 = vmatprep.subr.mxu0 0.0
  %8090 = vmatpush1.msra.mxu0 0.0
  %8091 = vmatprep.subr.mxu0 0.0
  %8092 = vmatpush1.msra.mxu0 0.0
  %8093 = vmatprep.mubr.f32.mxu0 0.0
  %8094 = vmatmul.mubr.f32.gmra.mrb[0].mxu0 %v8027
  %v8095 = vpop.f32.mrb[0].mxu0
  %v8096 = vadd.f32 0.0, %v8095
  %v8097 = vpop.f32.mrb[0].mxu0
  %v8098 = vadd.f32 0.0, %v8097
  %8099 = vdwg.mxu0
  %8100 = vmatprep.subr.mxu0 %v7965
  %8101 = vmatpush1.msra.mxu0 %v7964
  %8102 = vmatprep.subr.mxu0 %v7969
  %8103 = vmatpush1.msra.mxu0 %v7968
  %8104 = vmatprep.subr.mxu0 %v7973
  %8105 = vmatpush1.msra.mxu0 %v7972
  %8106 = vmatprep.subr.mxu0 %v7977
  %8107 = vmatpush1.msra.mxu0 %v7976
  %8108 = vmatprep.subr.mxu0 %v7981
  %8109 = vmatpush1.msra.mxu0 %v7980
  %8110 = vmatprep.subr.mxu0 %v7985
  %8111 = vmatpush1.msra.mxu0 %v7984
  %8112 = vmatprep.subr.mxu0 %v7989
  %8113 = vmatpush1.msra.mxu0 %v7988
  %8114 = vmatprep.subr.mxu0 %v7993
  %8115 = vmatpush1.msra.mxu0 %v7992
  %8116 = vmatprep.subr.mxu0 %v7997
  %8117 = vmatpush1.msra.mxu0 %v7996
  %8118 = vmatprep.subr.mxu0 %v8001
  %8119 = vmatpush1.msra.mxu0 %v8000
  %8120 = vmatprep.subr.mxu0 %v8005
  %8121 = vmatpush1.msra.mxu0 %v8004
  %8122 = vmatprep.subr.mxu0 %v8009
  %8123 = vmatpush1.msra.mxu0 %v8008
  %8124 = vmatprep.subr.mxu0 %v8013
  %8125 = vmatpush1.msra.mxu0 %v8012
  %8126 = vmatprep.subr.mxu0 %v8017
  %8127 = vmatpush1.msra.mxu0 %v8016
  %8128 = vmatprep.subr.mxu0 %v8021
  %8129 = vmatpush1.msra.mxu0 %v8020
  %8130 = vmatprep.subr.mxu0 %v8025
  %8131 = vmatpush1.msra.mxu0 %v8024
  %8132 = vmatprep.subr.mxu0 0.0
  %8133 = vmatpush1.msra.mxu0 0.0
  %8134 = vmatprep.subr.mxu0 0.0
  %8135 = vmatpush1.msra.mxu0 0.0
  %8136 = vmatprep.subr.mxu0 0.0
  %8137 = vmatpush1.msra.mxu0 0.0
  %8138 = vmatprep.subr.mxu0 0.0
  %8139 = vmatpush1.msra.mxu0 0.0
  %8140 = vmatprep.subr.mxu0 0.0
  %8141 = vmatpush1.msra.mxu0 0.0
  %8142 = vmatprep.subr.mxu0 0.0
  %8143 = vmatpush1.msra.mxu0 0.0
  %8144 = vmatprep.subr.mxu0 0.0
  %8145 = vmatpush1.msra.mxu0 0.0
  %8146 = vmatprep.subr.mxu0 0.0
  %8147 = vmatpush1.msra.mxu0 0.0
  %8148 = vmatprep.subr.mxu0 0.0
  %8149 = vmatpush1.msra.mxu0 0.0
  %8150 = vmatprep.subr.mxu0 0.0
  %8151 = vmatpush1.msra.mxu0 0.0
  %8152 = vmatprep.subr.mxu0 0.0
  %8153 = vmatpush1.msra.mxu0 0.0
  %8154 = vmatprep.subr.mxu0 0.0
  %8155 = vmatpush1.msra.mxu0 0.0
  %8156 = vmatprep.subr.mxu0 0.0
  %8157 = vmatpush1.msra.mxu0 0.0
  %8158 = vmatprep.subr.mxu0 0.0
  %8159 = vmatpush1.msra.mxu0 0.0
  %8160 = vmatprep.subr.mxu0 0.0
  %8161 = vmatpush1.msra.mxu0 0.0
  %8162 = vmatprep.subr.mxu0 0.0
  %8163 = vmatpush1.msra.mxu0 0.0
  %8164 = vmatprep.mubr.f32.mxu0 0.0
  %8165 = vmatmul.mubr.f32.gmra.mrb[0].mxu0 %v8027
  %v8166 = vpop.f32.mrb[0].mxu0
  %v8167 = vadd.f32 0.0, %v8166
  %v8168 = vpop.f32.mrb[0].mxu0
  %v8169 = vadd.f32 0.0, %v8168
  %8170 = vdwg.mxu0
  %v8171 = vadd.f32 %v7958, %v8096
  %v8172 = vadd.f32 %v7959, %v8098
  %v8173 = vadd.f32 %v7960, %v8167
  %v8174 = vadd.f32 %v7961, %v8169
  %v8175 = vxor.u32 %v8171, 2147483648
  %v8176 = vmul.f32 %v8175, 1.442695
  %v8177 = vpow.pop %v8176
  %v8178 = vadd.f32 %v8177, 1.0
  %v8179 = vrcp.pop %v8178
  %v8180 = vmul.f32 1.0, %v8179
  %v8181 = vxor.u32 %v8172, 2147483648
  %v8182 = vmul.f32 %v8181, 1.442695
  %v8183 = vpow.pop %v8182
  %v8184 = vadd.f32 %v8183, 1.0
  %v8185 = vrcp.pop %v8184
  %v8186 = vmul.f32 1.0, %v8185
  %v8187 = vtanh.pop %v8173
  %v8188 = vxor.u32 %v8174, 2147483648
  %v8189 = vmul.f32 %v8188, 1.442695
  %v8190 = vpow.pop %v8189
  %v8191 = vadd.f32 %v8190, 1.0
  %v8192 = vrcp.pop %v8191
  %v8193 = vmul.f32 1.0, %v8192
  %v8195 = vrot.slane %v7954, 6
  %v8197 = vmul.f32 %v8186, %v8195
  %v8198 = vmul.f32 %v8180, %v8187
  %v8199 = vadd.f32 %v8197, %v8198
  %v8200 = vtanh.pop %v8199
  %v8201 = vmul.f32 %v8193, %v8200
  %8202 = vst [vmem:[#allocation2 + $0x8] sm:$0x3] %v8201
  %v8203 = vld [vmem:[#allocation3 + $0x20] sm:$0xc]
  %v8204 = vld [vmem:[#allocation3 + $0x28] sm:$0xc]
  %v8205 = vld [vmem:[#allocation3 + $0x30] sm:$0xc]
  %v8206 = vld [vmem:[#allocation3 + $0x38] sm:$0xc]
  %v8207 = vld [vmem:[%s11] sm:$0xff]
  %v8208 = vld [vmem:[%s11 + $0x8] sm:$0xff]
  %v8209 = vld [vmem:[%s11 + $0x10] sm:$0xff]
  %v8210 = vld [vmem:[%s11 + $0x18] sm:$0xff]
  %v8211 = vld [vmem:[%s11 + $0x20] sm:$0xff]
  %v8212 = vld [vmem:[%s11 + $0x28] sm:$0xff]
  %v8213 = vld [vmem:[%s11 + $0x30] sm:$0xff]
  %v8214 = vld [vmem:[%s11 + $0x38] sm:$0xff]
  %v8215 = vld [vmem:[%s11 + $0x40] sm:$0xff]
  %v8216 = vld [vmem:[%s11 + $0x48] sm:$0xff]
  %v8217 = vld [vmem:[%s11 + $0x50] sm:$0xff]
  %v8218 = vld [vmem:[%s11 + $0x58] sm:$0xff]
  %v8219 = vld [vmem:[%s11 + $0x60] sm:$0xff]
  %v8220 = vld [vmem:[%s11 + $0x68] sm:$0xff]
  %v8221 = vld [vmem:[%s11 + $0x70] sm:$0xff]
  %v8222 = vld [vmem:[%s11 + $0x78] sm:$0xff]
  %v8223 = vld [vmem:[%s11 + $0x80] sm:$0xff]
  %v8224 = vld [vmem:[%s11 + $0x88] sm:$0xff]
  %v8225 = vld [vmem:[%s11 + $0x90] sm:$0xff]
  %v8226 = vld [vmem:[%s11 + $0x98] sm:$0xff]
  %v8227 = vld [vmem:[%s11 + $0xa0] sm:$0xff]
  %v8228 = vld [vmem:[%s11 + $0xa8] sm:$0xff]
  %v8229 = vld [vmem:[%s11 + $0xb0] sm:$0xff]
  %v8230 = vld [vmem:[%s11 + $0xb8] sm:$0xff]
  %v8231 = vld [vmem:[%s11 + $0xc0] sm:$0xff]
  %v8232 = vld [vmem:[%s11 + $0xc8] sm:$0xff]
  %v8233 = vld [vmem:[%s11 + $0xd0] sm:$0xff]
  %v8234 = vld [vmem:[%s11 + $0xd8] sm:$0xff]
  %v8235 = vld [vmem:[%s11 + $0xe0] sm:$0xff]
  %v8236 = vld [vmem:[%s11 + $0xe8] sm:$0xff]
  %v8237 = vld [vmem:[%s11 + $0xf0] sm:$0xff]
  %v8238 = vld [vmem:[%s11 + $0xf8] sm:$0xff]
  %v8239 = vld [vmem:[%s11 + $0x100] sm:$0xff]
  %v8240 = vld [vmem:[%s11 + $0x108] sm:$0xff]
  %v8241 = vld [vmem:[%s11 + $0x110] sm:$0xff]
  %v8242 = vld [vmem:[%s11 + $0x118] sm:$0xff]
  %v8243 = vld [vmem:[%s11 + $0x120] sm:$0xff]
  %v8244 = vld [vmem:[%s11 + $0x128] sm:$0xff]
  %v8245 = vld [vmem:[%s11 + $0x130] sm:$0xff]
  %v8246 = vld [vmem:[%s11 + $0x138] sm:$0xff]
  %v8247 = vld [vmem:[%s11 + $0x140] sm:$0xff]
  %v8248 = vld [vmem:[%s11 + $0x148] sm:$0xff]
  %v8249 = vld [vmem:[%s11 + $0x150] sm:$0xff]
  %v8250 = vld [vmem:[%s11 + $0x158] sm:$0xff]
  %v8251 = vld [vmem:[%s11 + $0x160] sm:$0xff]
  %v8252 = vld [vmem:[%s11 + $0x168] sm:$0xff]
  %v8253 = vld [vmem:[%s11 + $0x170] sm:$0xff]
  %v8254 = vld [vmem:[%s11 + $0x178] sm:$0xff]
  %v8255 = vld [vmem:[%s11 + $0x180] sm:$0xff]
  %v8256 = vld [vmem:[%s11 + $0x188] sm:$0xff]
  %v8257 = vld [vmem:[%s11 + $0x190] sm:$0xff]
  %v8258 = vld [vmem:[%s11 + $0x198] sm:$0xff]
  %v8259 = vld [vmem:[%s11 + $0x1a0] sm:$0xff]
  %v8260 = vld [vmem:[%s11 + $0x1a8] sm:$0xff]
  %v8261 = vld [vmem:[%s11 + $0x1b0] sm:$0xff]
  %v8262 = vld [vmem:[%s11 + $0x1b8] sm:$0xff]
  %v8263 = vld [vmem:[%s11 + $0x1c0] sm:$0xff]
  %v8264 = vld [vmem:[%s11 + $0x1c8] sm:$0xff]
  %v8265 = vld [vmem:[%s11 + $0x1d0] sm:$0xff]
  %v8266 = vld [vmem:[%s11 + $0x1d8] sm:$0xff]
  %v8267 = vld [vmem:[%s11 + $0x1e0] sm:$0xff]
  %v8268 = vld [vmem:[%s11 + $0x1e8] sm:$0xff]
  %v8269 = vld [vmem:[%s11 + $0x1f0] sm:$0xff]
  %v8270 = vld [vmem:[%s11 + $0x1f8] sm:$0xff]
  %8271 = vmatprep.subr.mxu0 %v8208
  %8272 = vmatpush1.msra.mxu0 %v8207
  %8273 = vmatprep.subr.mxu0 %v8212
  %8274 = vmatpush1.msra.mxu0 %v8211
  %8275 = vmatprep.subr.mxu0 %v8216
  %8276 = vmatpush1.msra.mxu0 %v8215
  %8277 = vmatprep.subr.mxu0 %v8220
  %8278 = vmatpush1.msra.mxu0 %v8219
  %8279 = vmatprep.subr.mxu0 %v8224
  %8280 = vmatpush1.msra.mxu0 %v8223
  %8281 = vmatprep.subr.mxu0 %v8228
  %8282 = vmatpush1.msra.mxu0 %v8227
  %8283 = vmatprep.subr.mxu0 %v8232
  %8284 = vmatpush1.msra.mxu0 %v8231
  %8285 = vmatprep.subr.mxu0 %v8236
  %8286 = vmatpush1.msra.mxu0 %v8235
  %8287 = vmatprep.subr.mxu0 %v8240
  %8288 = vmatpush1.msra.mxu0 %v8239
  %8289 = vmatprep.subr.mxu0 %v8244
  %8290 = vmatpush1.msra.mxu0 %v8243
  %8291 = vmatprep.subr.mxu0 %v8248
  %8292 = vmatpush1.msra.mxu0 %v8247
  %8293 = vmatprep.subr.mxu0 %v8252
  %8294 = vmatpush1.msra.mxu0 %v8251
  %8295 = vmatprep.subr.mxu0 %v8256
  %8296 = vmatpush1.msra.mxu0 %v8255
  %8297 = vmatprep.subr.mxu0 %v8260
  %8298 = vmatpush1.msra.mxu0 %v8259
  %8299 = vmatprep.subr.mxu0 %v8264
  %8300 = vmatpush1.msra.mxu0 %v8263
  %8301 = vmatprep.subr.mxu0 %v8268
  %8302 = vmatpush1.msra.mxu0 %v8267
  %8303 = vmatprep.subr.mxu0 0.0
  %8304 = vmatpush1.msra.mxu0 0.0
  %8305 = vmatprep.subr.mxu0 0.0
  %8306 = vmatpush1.msra.mxu0 0.0
  %8307 = vmatprep.subr.mxu0 0.0
  %8308 = vmatpush1.msra.mxu0 0.0
  %8309 = vmatprep.subr.mxu0 0.0
  %8310 = vmatpush1.msra.mxu0 0.0
  %8311 = vmatprep.subr.mxu0 0.0
  %8312 = vmatpush1.msra.mxu0 0.0
  %8313 = vmatprep.subr.mxu0 0.0
  %8314 = vmatpush1.msra.mxu0 0.0
  %8315 = vmatprep.subr.mxu0 0.0
  %8316 = vmatpush1.msra.mxu0 0.0
  %8317 = vmatprep.subr.mxu0 0.0
  %8318 = vmatpush1.msra.mxu0 0.0
  %8319 = vmatprep.subr.mxu0 0.0
  %8320 = vmatpush1.msra.mxu0 0.0
  %8321 = vmatprep.subr.mxu0 0.0
  %8322 = vmatpush1.msra.mxu0 0.0
  %8323 = vmatprep.subr.mxu0 0.0
  %8324 = vmatpush1.msra.mxu0 0.0
  %8325 = vmatprep.subr.mxu0 0.0
  %8326 = vmatpush1.msra.mxu0 0.0
  %8327 = vmatprep.subr.mxu0 0.0
  %8328 = vmatpush1.msra.mxu0 0.0
  %8329 = vmatprep.subr.mxu0 0.0
  %8330 = vmatpush1.msra.mxu0 0.0
  %8331 = vmatprep.subr.mxu0 0.0
  %8332 = vmatpush1.msra.mxu0 0.0
  %8333 = vmatprep.subr.mxu0 0.0
  %8334 = vmatpush1.msra.mxu0 0.0
  %8335 = vmatprep.mubr.f32.mxu0 0.0
  %8336 = vmatmul.mubr.f32.gmra.mrb[0].mxu0 %v8201
  %v8337 = vpop.f32.mrb[0].mxu0
  %v8338 = vadd.f32 0.0, %v8337
  %v8339 = vpop.f32.mrb[0].mxu0
  %v8340 = vadd.f32 0.0, %v8339
  %8341 = vdwg.mxu0
  %8342 = vmatprep.subr.mxu0 %v8210
  %8343 = vmatpush1.msra.mxu0 %v8209
  %8344 = vmatprep.subr.mxu0 %v8214
  %8345 = vmatpush1.msra.mxu0 %v8213
  %8346 = vmatprep.subr.mxu0 %v8218
  %8347 = vmatpush1.msra.mxu0 %v8217
  %8348 = vmatprep.subr.mxu0 %v8222
  %8349 = vmatpush1.msra.mxu0 %v8221
  %8350 = vmatprep.subr.mxu0 %v8226
  %8351 = vmatpush1.msra.mxu0 %v8225
  %8352 = vmatprep.subr.mxu0 %v8230
  %8353 = vmatpush1.msra.mxu0 %v8229
  %8354 = vmatprep.subr.mxu0 %v8234
  %8355 = vmatpush1.msra.mxu0 %v8233
  %8356 = vmatprep.subr.mxu0 %v8238
  %8357 = vmatpush1.msra.mxu0 %v8237
  %8358 = vmatprep.subr.mxu0 %v8242
  %8359 = vmatpush1.msra.mxu0 %v8241
  %8360 = vmatprep.subr.mxu0 %v8246
  %8361 = vmatpush1.msra.mxu0 %v8245
  %8362 = vmatprep.subr.mxu0 %v8250
  %8363 = vmatpush1.msra.mxu0 %v8249
  %8364 = vmatprep.subr.mxu0 %v8254
  %8365 = vmatpush1.msra.mxu0 %v8253
  %8366 = vmatprep.subr.mxu0 %v8258
  %8367 = vmatpush1.msra.mxu0 %v8257
  %8368 = vmatprep.subr.mxu0 %v8262
  %8369 = vmatpush1.msra.mxu0 %v8261
  %8370 = vmatprep.subr.mxu0 %v8266
  %8371 = vmatpush1.msra.mxu0 %v8265
  %8372 = vmatprep.subr.mxu0 %v8270
  %8373 = vmatpush1.msra.mxu0 %v8269
  %8374 = vmatprep.subr.mxu0 0.0
  %8375 = vmatpush1.msra.mxu0 0.0
  %8376 = vmatprep.subr.mxu0 0.0
  %8377 = vmatpush1.msra.mxu0 0.0
  %8378 = vmatprep.subr.mxu0 0.0
  %8379 = vmatpush1.msra.mxu0 0.0
  %8380 = vmatprep.subr.mxu0 0.0
  %8381 = vmatpush1.msra.mxu0 0.0
  %8382 = vmatprep.subr.mxu0 0.0
  %8383 = vmatpush1.msra.mxu0 0.0
  %8384 = vmatprep.subr.mxu0 0.0
  %8385 = vmatpush1.msra.mxu0 0.0
  %8386 = vmatprep.subr.mxu0 0.0
  %8387 = vmatpush1.msra.mxu0 0.0
  %8388 = vmatprep.subr.mxu0 0.0
  %8389 = vmatpush1.msra.mxu0 0.0
  %8390 = vmatprep.subr.mxu0 0.0
  %8391 = vmatpush1.msra.mxu0 0.0
  %8392 = vmatprep.subr.mxu0 0.0
  %8393 = vmatpush1.msra.mxu0 0.0
  %8394 = vmatprep.subr.mxu0 0.0
  %8395 = vmatpush1.msra.mxu0 0.0
  %8396 = vmatprep.subr.mxu0 0.0
  %8397 = vmatpush1.msra.mxu0 0.0
  %8398 = vmatprep.subr.mxu0 0.0
  %8399 = vmatpush1.msra.mxu0 0.0
  %8400 = vmatprep.subr.mxu0 0.0
  %8401 = vmatpush1.msra.mxu0 0.0
  %8402 = vmatprep.subr.mxu0 0.0
  %8403 = vmatpush1.msra.mxu0 0.0
  %8404 = vmatprep.subr.mxu0 0.0
  %8405 = vmatpush1.msra.mxu0 0.0
  %8406 = vmatprep.mubr.f32.mxu0 0.0
  %8407 = vmatmul.mubr.f32.gmra.mrb[0].mxu0 %v8201
  %v8408 = vpop.f32.mrb[0].mxu0
  %v8409 = vadd.f32 0.0, %v8408
  %v8410 = vpop.f32.mrb[0].mxu0
  %v8411 = vadd.f32 0.0, %v8410
  %8412 = vdwg.mxu0
  %v8417 = vrot.slane %v8338, 6
  %v8418 = vrot.slane %v8340, 6
  %v8419 = vrot.slane %v8409, 6
  %v8420 = vrot.slane %v8411, 6
  %v8425 = vadd.f32 %v8203, %v8417
  %v8426 = vadd.f32 %v8204, %v8418
  %v8427 = vadd.f32 %v8205, %v8419
  %v8428 = vadd.f32 %v8206, %v8420
  %v8429 = vxor.u32 %v8425, 2147483648
  %v8430 = vmul.f32 %v8429, 1.442695
  %v8431 = vpow.pop %v8430
  %v8432 = vadd.f32 %v8431, 1.0
  %v8433 = vrcp.pop %v8432
  %v8434 = vmul.f32 1.0, %v8433
  %v8435 = vxor.u32 %v8426, 2147483648
  %v8436 = vmul.f32 %v8435, 1.442695
  %v8437 = vpow.pop %v8436
  %v8438 = vadd.f32 %v8437, 1.0
  %v8439 = vrcp.pop %v8438
  %v8440 = vmul.f32 1.0, %v8439
  %v8441 = vtanh.pop %v8427
  %v8442 = vxor.u32 %v8428, 2147483648
  %v8443 = vmul.f32 %v8442, 1.442695
  %v8444 = vpow.pop %v8443
  %v8445 = vadd.f32 %v8444, 1.0
  %v8446 = vrcp.pop %v8445
  %v8447 = vmul.f32 1.0, %v8446
  %v8449 = vrot.slane %v8199, 6
  %v8451 = vmul.f32 %v8440, %v8449
  %v8452 = vmul.f32 %v8434, %v8441
  %v8453 = vadd.f32 %v8451, %v8452
  %v8454 = vtanh.pop %v8453
  %v8455 = vmul.f32 %v8447, %v8454
  %8456 = vst [vmem:[#allocation2 + $0x8] sm:$0xc] %v8455
  %v8457 = vld [vmem:[#allocation3 + $0x20] sm:$0x30]
  %v8458 = vld [vmem:[#allocation3 + $0x28] sm:$0x30]
  %v8459 = vld [vmem:[#allocation3 + $0x30] sm:$0x30]
  %v8460 = vld [vmem:[#allocation3 + $0x38] sm:$0x30]
  %v8461 = vld [vmem:[%s11] sm:$0xff]
  %v8462 = vld [vmem:[%s11 + $0x8] sm:$0xff]
  %v8463 = vld [vmem:[%s11 + $0x10] sm:$0xff]
  %v8464 = vld [vmem:[%s11 + $0x18] sm:$0xff]
  %v8465 = vld [vmem:[%s11 + $0x20] sm:$0xff]
  %v8466 = vld [vmem:[%s11 + $0x28] sm:$0xff]
  %v8467 = vld [vmem:[%s11 + $0x30] sm:$0xff]
  %v8468 = vld [vmem:[%s11 + $0x38] sm:$0xff]
  %v8469 = vld [vmem:[%s11 + $0x40] sm:$0xff]
  %v8470 = vld [vmem:[%s11 + $0x48] sm:$0xff]
  %v8471 = vld [vmem:[%s11 + $0x50] sm:$0xff]
  %v8472 = vld [vmem:[%s11 + $0x58] sm:$0xff]
  %v8473 = vld [vmem:[%s11 + $0x60] sm:$0xff]
  %v8474 = vld [vmem:[%s11 + $0x68] sm:$0xff]
  %v8475 = vld [vmem:[%s11 + $0x70] sm:$0xff]
  %v8476 = vld [vmem:[%s11 + $0x78] sm:$0xff]
  %v8477 = vld [vmem:[%s11 + $0x80] sm:$0xff]
  %v8478 = vld [vmem:[%s11 + $0x88] sm:$0xff]
  %v8479 = vld [vmem:[%s11 + $0x90] sm:$0xff]
  %v8480 = vld [vmem:[%s11 + $0x98] sm:$0xff]
  %v8481 = vld [vmem:[%s11 + $0xa0] sm:$0xff]
  %v8482 = vld [vmem:[%s11 + $0xa8] sm:$0xff]
  %v8483 = vld [vmem:[%s11 + $0xb0] sm:$0xff]
  %v8484 = vld [vmem:[%s11 + $0xb8] sm:$0xff]
  %v8485 = vld [vmem:[%s11 + $0xc0] sm:$0xff]
  %v8486 = vld [vmem:[%s11 + $0xc8] sm:$0xff]
  %v8487 = vld [vmem:[%s11 + $0xd0] sm:$0xff]
  %v8488 = vld [vmem:[%s11 + $0xd8] sm:$0xff]
  %v8489 = vld [vmem:[%s11 + $0xe0] sm:$0xff]
  %v8490 = vld [vmem:[%s11 + $0xe8] sm:$0xff]
  %v8491 = vld [vmem:[%s11 + $0xf0] sm:$0xff]
  %v8492 = vld [vmem:[%s11 + $0xf8] sm:$0xff]
  %v8493 = vld [vmem:[%s11 + $0x100] sm:$0xff]
  %v8494 = vld [vmem:[%s11 + $0x108] sm:$0xff]
  %v8495 = vld [vmem:[%s11 + $0x110] sm:$0xff]
  %v8496 = vld [vmem:[%s11 + $0x118] sm:$0xff]
  %v8497 = vld [vmem:[%s11 + $0x120] sm:$0xff]
  %v8498 = vld [vmem:[%s11 + $0x128] sm:$0xff]
  %v8499 = vld [vmem:[%s11 + $0x130] sm:$0xff]
  %v8500 = vld [vmem:[%s11 + $0x138] sm:$0xff]
  %v8501 = vld [vmem:[%s11 + $0x140] sm:$0xff]
  %v8502 = vld [vmem:[%s11 + $0x148] sm:$0xff]
  %v8503 = vld [vmem:[%s11 + $0x150] sm:$0xff]
  %v8504 = vld [vmem:[%s11 + $0x158] sm:$0xff]
  %v8505 = vld [vmem:[%s11 + $0x160] sm:$0xff]
  %v8506 = vld [vmem:[%s11 + $0x168] sm:$0xff]
  %v8507 = vld [vmem:[%s11 + $0x170] sm:$0xff]
  %v8508 = vld [vmem:[%s11 + $0x178] sm:$0xff]
  %v8509 = vld [vmem:[%s11 + $0x180] sm:$0xff]
  %v8510 = vld [vmem:[%s11 + $0x188] sm:$0xff]
  %v8511 = vld [vmem:[%s11 + $0x190] sm:$0xff]
  %v8512 = vld [vmem:[%s11 + $0x198] sm:$0xff]
  %v8513 = vld [vmem:[%s11 + $0x1a0] sm:$0xff]
  %v8514 = vld [vmem:[%s11 + $0x1a8] sm:$0xff]
  %v8515 = vld [vmem:[%s11 + $0x1b0] sm:$0xff]
  %v8516 = vld [vmem:[%s11 + $0x1b8] sm:$0xff]
  %v8517 = vld [vmem:[%s11 + $0x1c0] sm:$0xff]
  %v8518 = vld [vmem:[%s11 + $0x1c8] sm:$0xff]
  %v8519 = vld [vmem:[%s11 + $0x1d0] sm:$0xff]
  %v8520 = vld [vmem:[%s11 + $0x1d8] sm:$0xff]
  %v8521 = vld [vmem:[%s11 + $0x1e0] sm:$0xff]
  %v8522 = vld [vmem:[%s11 + $0x1e8] sm:$0xff]
  %v8523 = vld [vmem:[%s11 + $0x1f0] sm:$0xff]
  %v8524 = vld [vmem:[%s11 + $0x1f8] sm:$0xff]
  %v8526 = vrot.slane %v8455, 2
  %8528 = vmatprep.subr.mxu0 %v8462
  %8529 = vmatpush1.msra.mxu0 %v8461
  %8530 = vmatprep.subr.mxu0 %v8466
  %8531 = vmatpush1.msra.mxu0 %v8465
  %8532 = vmatprep.subr.mxu0 %v8470
  %8533 = vmatpush1.msra.mxu0 %v8469
  %8534 = vmatprep.subr.mxu0 %v8474
  %8535 = vmatpush1.msra.mxu0 %v8473
  %8536 = vmatprep.subr.mxu0 %v8478
  %8537 = vmatpush1.msra.mxu0 %v8477
  %8538 = vmatprep.subr.mxu0 %v8482
  %8539 = vmatpush1.msra.mxu0 %v8481
  %8540 = vmatprep.subr.mxu0 %v8486
  %8541 = vmatpush1.msra.mxu0 %v8485
  %8542 = vmatprep.subr.mxu0 %v8490
  %8543 = vmatpush1.msra.mxu0 %v8489
  %8544 = vmatprep.subr.mxu0 %v8494
  %8545 = vmatpush1.msra.mxu0 %v8493
  %8546 = vmatprep.subr.mxu0 %v8498
  %8547 = vmatpush1.msra.mxu0 %v8497
  %8548 = vmatprep.subr.mxu0 %v8502
  %8549 = vmatpush1.msra.mxu0 %v8501
  %8550 = vmatprep.subr.mxu0 %v8506
  %8551 = vmatpush1.msra.mxu0 %v8505
  %8552 = vmatprep.subr.mxu0 %v8510
  %8553 = vmatpush1.msra.mxu0 %v8509
  %8554 = vmatprep.subr.mxu0 %v8514
  %8555 = vmatpush1.msra.mxu0 %v8513
  %8556 = vmatprep.subr.mxu0 %v8518
  %8557 = vmatpush1.msra.mxu0 %v8517
  %8558 = vmatprep.subr.mxu0 %v8522
  %8559 = vmatpush1.msra.mxu0 %v8521
  %8560 = vmatprep.subr.mxu0 0.0
  %8561 = vmatpush1.msra.mxu0 0.0
  %8562 = vmatprep.subr.mxu0 0.0
  %8563 = vmatpush1.msra.mxu0 0.0
  %8564 = vmatprep.subr.mxu0 0.0
  %8565 = vmatpush1.msra.mxu0 0.0
  %8566 = vmatprep.subr.mxu0 0.0
  %8567 = vmatpush1.msra.mxu0 0.0
  %8568 = vmatprep.subr.mxu0 0.0
  %8569 = vmatpush1.msra.mxu0 0.0
  %8570 = vmatprep.subr.mxu0 0.0
  %8571 = vmatpush1.msra.mxu0 0.0
  %8572 = vmatprep.subr.mxu0 0.0
  %8573 = vmatpush1.msra.mxu0 0.0
  %8574 = vmatprep.subr.mxu0 0.0
  %8575 = vmatpush1.msra.mxu0 0.0
  %8576 = vmatprep.subr.mxu0 0.0
  %8577 = vmatpush1.msra.mxu0 0.0
  %8578 = vmatprep.subr.mxu0 0.0
  %8579 = vmatpush1.msra.mxu0 0.0
  %8580 = vmatprep.subr.mxu0 0.0
  %8581 = vmatpush1.msra.mxu0 0.0
  %8582 = vmatprep.subr.mxu0 0.0
  %8583 = vmatpush1.msra.mxu0 0.0
  %8584 = vmatprep.subr.mxu0 0.0
  %8585 = vmatpush1.msra.mxu0 0.0
  %8586 = vmatprep.subr.mxu0 0.0
  %8587 = vmatpush1.msra.mxu0 0.0
  %8588 = vmatprep.subr.mxu0 0.0
  %8589 = vmatpush1.msra.mxu0 0.0
  %8590 = vmatprep.subr.mxu0 0.0
  %8591 = vmatpush1.msra.mxu0 0.0
  %8592 = vmatprep.mubr.f32.mxu0 0.0
  %8593 = vmatmul.mubr.f32.gmra.mrb[0].mxu0 %v8526
  %v8594 = vpop.f32.mrb[0].mxu0
  %v8595 = vadd.f32 0.0, %v8594
  %v8596 = vpop.f32.mrb[0].mxu0
  %v8597 = vadd.f32 0.0, %v8596
  %8598 = vdwg.mxu0
  %8599 = vmatprep.subr.mxu0 %v8464
  %8600 = vmatpush1.msra.mxu0 %v8463
  %8601 = vmatprep.subr.mxu0 %v8468
  %8602 = vmatpush1.msra.mxu0 %v8467
  %8603 = vmatprep.subr.mxu0 %v8472
  %8604 = vmatpush1.msra.mxu0 %v8471
  %8605 = vmatprep.subr.mxu0 %v8476
  %8606 = vmatpush1.msra.mxu0 %v8475
  %8607 = vmatprep.subr.mxu0 %v8480
  %8608 = vmatpush1.msra.mxu0 %v8479
  %8609 = vmatprep.subr.mxu0 %v8484
  %8610 = vmatpush1.msra.mxu0 %v8483
  %8611 = vmatprep.subr.mxu0 %v8488
  %8612 = vmatpush1.msra.mxu0 %v8487
  %8613 = vmatprep.subr.mxu0 %v8492
  %8614 = vmatpush1.msra.mxu0 %v8491
  %8615 = vmatprep.subr.mxu0 %v8496
  %8616 = vmatpush1.msra.mxu0 %v8495
  %8617 = vmatprep.subr.mxu0 %v8500
  %8618 = vmatpush1.msra.mxu0 %v8499
  %8619 = vmatprep.subr.mxu0 %v8504
  %8620 = vmatpush1.msra.mxu0 %v8503
  %8621 = vmatprep.subr.mxu0 %v8508
  %8622 = vmatpush1.msra.mxu0 %v8507
  %8623 = vmatprep.subr.mxu0 %v8512
  %8624 = vmatpush1.msra.mxu0 %v8511
  %8625 = vmatprep.subr.mxu0 %v8516
  %8626 = vmatpush1.msra.mxu0 %v8515
  %8627 = vmatprep.subr.mxu0 %v8520
  %8628 = vmatpush1.msra.mxu0 %v8519
  %8629 = vmatprep.subr.mxu0 %v8524
  %8630 = vmatpush1.msra.mxu0 %v8523
  %8631 = vmatprep.subr.mxu0 0.0
  %8632 = vmatpush1.msra.mxu0 0.0
  %8633 = vmatprep.subr.mxu0 0.0
  %8634 = vmatpush1.msra.mxu0 0.0
  %8635 = vmatprep.subr.mxu0 0.0
  %8636 = vmatpush1.msra.mxu0 0.0
  %8637 = vmatprep.subr.mxu0 0.0
  %8638 = vmatpush1.msra.mxu0 0.0
  %8639 = vmatprep.subr.mxu0 0.0
  %8640 = vmatpush1.msra.mxu0 0.0
  %8641 = vmatprep.subr.mxu0 0.0
  %8642 = vmatpush1.msra.mxu0 0.0
  %8643 = vmatprep.subr.mxu0 0.0
  %8644 = vmatpush1.msra.mxu0 0.0
  %8645 = vmatprep.subr.mxu0 0.0
  %8646 = vmatpush1.msra.mxu0 0.0
  %8647 = vmatprep.subr.mxu0 0.0
  %8648 = vmatpush1.msra.mxu0 0.0
  %8649 = vmatprep.subr.mxu0 0.0
  %8650 = vmatpush1.msra.mxu0 0.0
  %8651 = vmatprep.subr.mxu0 0.0
  %8652 = vmatpush1.msra.mxu0 0.0
  %8653 = vmatprep.subr.mxu0 0.0
  %8654 = vmatpush1.msra.mxu0 0.0
  %8655 = vmatprep.subr.mxu0 0.0
  %8656 = vmatpush1.msra.mxu0 0.0
  %8657 = vmatprep.subr.mxu0 0.0
  %8658 = vmatpush1.msra.mxu0 0.0
  %8659 = vmatprep.subr.mxu0 0.0
  %8660 = vmatpush1.msra.mxu0 0.0
  %8661 = vmatprep.subr.mxu0 0.0
  %8662 = vmatpush1.msra.mxu0 0.0
  %8663 = vmatprep.mubr.f32.mxu0 0.0
  %8664 = vmatmul.mubr.f32.gmra.mrb[0].mxu0 %v8526
  %v8665 = vpop.f32.mrb[0].mxu0
  %v8666 = vadd.f32 0.0, %v8665
  %v8667 = vpop.f32.mrb[0].mxu0
  %v8668 = vadd.f32 0.0, %v8667
  %8669 = vdwg.mxu0
  %v8674 = vrot.slane %v8595, 4
  %v8675 = vrot.slane %v8597, 4
  %v8676 = vrot.slane %v8666, 4
  %v8677 = vrot.slane %v8668, 4
  %v8682 = vadd.f32 %v8457, %v8674
  %v8683 = vadd.f32 %v8458, %v8675
  %v8684 = vadd.f32 %v8459, %v8676
  %v8685 = vadd.f32 %v8460, %v8677
  %v8686 = vxor.u32 %v8682, 2147483648
  %v8687 = vmul.f32 %v8686, 1.442695
  %v8688 = vpow.pop %v8687
  %v8689 = vadd.f32 %v8688, 1.0
  %v8690 = vrcp.pop %v8689
  %v8691 = vmul.f32 1.0, %v8690
  %v8692 = vxor.u32 %v8683, 2147483648
  %v8693 = vmul.f32 %v8692, 1.442695
  %v8694 = vpow.pop %v8693
  %v8695 = vadd.f32 %v8694, 1.0
  %v8696 = vrcp.pop %v8695
  %v8697 = vmul.f32 1.0, %v8696
  %v8698 = vtanh.pop %v8684
  %v8699 = vxor.u32 %v8685, 2147483648
  %v8700 = vmul.f32 %v8699, 1.442695
  %v8701 = vpow.pop %v8700
  %v8702 = vadd.f32 %v8701, 1.0
  %v8703 = vrcp.pop %v8702
  %v8704 = vmul.f32 1.0, %v8703
  %v8706 = vrot.slane %v8453, 6
  %v8708 = vmul.f32 %v8697, %v8706
  %v8709 = vmul.f32 %v8691, %v8698
  %v8710 = vadd.f32 %v8708, %v8709
  %v8711 = vtanh.pop %v8710
  %v8712 = vmul.f32 %v8704, %v8711
  %8713 = vst [vmem:[#allocation2 + $0x8] sm:$0x30] %v8712
  %v8714 = vld [vmem:[#allocation3 + $0x20] sm:$0xc0]
  %v8715 = vld [vmem:[#allocation3 + $0x28] sm:$0xc0]
  %v8716 = vld [vmem:[#allocation3 + $0x30] sm:$0xc0]
  %v8717 = vld [vmem:[#allocation3 + $0x38] sm:$0xc0]
  %v8718 = vld [vmem:[%s11] sm:$0xff]
  %v8719 = vld [vmem:[%s11 + $0x8] sm:$0xff]
  %v8720 = vld [vmem:[%s11 + $0x10] sm:$0xff]
  %v8721 = vld [vmem:[%s11 + $0x18] sm:$0xff]
  %v8722 = vld [vmem:[%s11 + $0x20] sm:$0xff]
  %v8723 = vld [vmem:[%s11 + $0x28] sm:$0xff]
  %v8724 = vld [vmem:[%s11 + $0x30] sm:$0xff]
  %v8725 = vld [vmem:[%s11 + $0x38] sm:$0xff]
  %v8726 = vld [vmem:[%s11 + $0x40] sm:$0xff]
  %v8727 = vld [vmem:[%s11 + $0x48] sm:$0xff]
  %v8728 = vld [vmem:[%s11 + $0x50] sm:$0xff]
  %v8729 = vld [vmem:[%s11 + $0x58] sm:$0xff]
  %v8730 = vld [vmem:[%s11 + $0x60] sm:$0xff]
  %v8731 = vld [vmem:[%s11 + $0x68] sm:$0xff]
  %v8732 = vld [vmem:[%s11 + $0x70] sm:$0xff]
  %v8733 = vld [vmem:[%s11 + $0x78] sm:$0xff]
  %v8734 = vld [vmem:[%s11 + $0x80] sm:$0xff]
  %v8735 = vld [vmem:[%s11 + $0x88] sm:$0xff]
  %v8736 = vld [vmem:[%s11 + $0x90] sm:$0xff]
  %v8737 = vld [vmem:[%s11 + $0x98] sm:$0xff]
  %v8738 = vld [vmem:[%s11 + $0xa0] sm:$0xff]
  %v8739 = vld [vmem:[%s11 + $0xa8] sm:$0xff]
  %v8740 = vld [vmem:[%s11 + $0xb0] sm:$0xff]
  %v8741 = vld [vmem:[%s11 + $0xb8] sm:$0xff]
  %v8742 = vld [vmem:[%s11 + $0xc0] sm:$0xff]
  %v8743 = vld [vmem:[%s11 + $0xc8] sm:$0xff]
  %v8744 = vld [vmem:[%s11 + $0xd0] sm:$0xff]
  %v8745 = vld [vmem:[%s11 + $0xd8] sm:$0xff]
  %v8746 = vld [vmem:[%s11 + $0xe0] sm:$0xff]
  %v8747 = vld [vmem:[%s11 + $0xe8] sm:$0xff]
  %v8748 = vld [vmem:[%s11 + $0xf0] sm:$0xff]
  %v8749 = vld [vmem:[%s11 + $0xf8] sm:$0xff]
  %v8750 = vld [vmem:[%s11 + $0x100] sm:$0xff]
  %v8751 = vld [vmem:[%s11 + $0x108] sm:$0xff]
  %v8752 = vld [vmem:[%s11 + $0x110] sm:$0xff]
  %v8753 = vld [vmem:[%s11 + $0x118] sm:$0xff]
  %v8754 = vld [vmem:[%s11 + $0x120] sm:$0xff]
  %v8755 = vld [vmem:[%s11 + $0x128] sm:$0xff]
  %v8756 = vld [vmem:[%s11 + $0x130] sm:$0xff]
  %v8757 = vld [vmem:[%s11 + $0x138] sm:$0xff]
  %v8758 = vld [vmem:[%s11 + $0x140] sm:$0xff]
  %v8759 = vld [vmem:[%s11 + $0x148] sm:$0xff]
  %v8760 = vld [vmem:[%s11 + $0x150] sm:$0xff]
  %v8761 = vld [vmem:[%s11 + $0x158] sm:$0xff]
  %v8762 = vld [vmem:[%s11 + $0x160] sm:$0xff]
  %v8763 = vld [vmem:[%s11 + $0x168] sm:$0xff]
  %v8764 = vld [vmem:[%s11 + $0x170] sm:$0xff]
  %v8765 = vld [vmem:[%s11 + $0x178] sm:$0xff]
  %v8766 = vld [vmem:[%s11 + $0x180] sm:$0xff]
  %v8767 = vld [vmem:[%s11 + $0x188] sm:$0xff]
  %v8768 = vld [vmem:[%s11 + $0x190] sm:$0xff]
  %v8769 = vld [vmem:[%s11 + $0x198] sm:$0xff]
  %v8770 = vld [vmem:[%s11 + $0x1a0] sm:$0xff]
  %v8771 = vld [vmem:[%s11 + $0x1a8] sm:$0xff]
  %v8772 = vld [vmem:[%s11 + $0x1b0] sm:$0xff]
  %v8773 = vld [vmem:[%s11 + $0x1b8] sm:$0xff]
  %v8774 = vld [vmem:[%s11 + $0x1c0] sm:$0xff]
  %v8775 = vld [vmem:[%s11 + $0x1c8] sm:$0xff]
  %v8776 = vld [vmem:[%s11 + $0x1d0] sm:$0xff]
  %v8777 = vld [vmem:[%s11 + $0x1d8] sm:$0xff]
  %v8778 = vld [vmem:[%s11 + $0x1e0] sm:$0xff]
  %v8779 = vld [vmem:[%s11 + $0x1e8] sm:$0xff]
  %v8780 = vld [vmem:[%s11 + $0x1f0] sm:$0xff]
  %v8781 = vld [vmem:[%s11 + $0x1f8] sm:$0xff]
  %v8783 = vrot.slane %v8712, 4
  %8785 = vmatprep.subr.mxu0 %v8719
  %8786 = vmatpush1.msra.mxu0 %v8718
  %8787 = vmatprep.subr.mxu0 %v8723
  %8788 = vmatpush1.msra.mxu0 %v8722
  %8789 = vmatprep.subr.mxu0 %v8727
  %8790 = vmatpush1.msra.mxu0 %v8726
  %8791 = vmatprep.subr.mxu0 %v8731
  %8792 = vmatpush1.msra.mxu0 %v8730
  %8793 = vmatprep.subr.mxu0 %v8735
  %8794 = vmatpush1.msra.mxu0 %v8734
  %8795 = vmatprep.subr.mxu0 %v8739
  %8796 = vmatpush1.msra.mxu0 %v8738
  %8797 = vmatprep.subr.mxu0 %v8743
  %8798 = vmatpush1.msra.mxu0 %v8742
  %8799 = vmatprep.subr.mxu0 %v8747
  %8800 = vmatpush1.msra.mxu0 %v8746
  %8801 = vmatprep.subr.mxu0 %v8751
  %8802 = vmatpush1.msra.mxu0 %v8750
  %8803 = vmatprep.subr.mxu0 %v8755
  %8804 = vmatpush1.msra.mxu0 %v8754
  %8805 = vmatprep.subr.mxu0 %v8759
  %8806 = vmatpush1.msra.mxu0 %v8758
  %8807 = vmatprep.subr.mxu0 %v8763
  %8808 = vmatpush1.msra.mxu0 %v8762
  %8809 = vmatprep.subr.mxu0 %v8767
  %8810 = vmatpush1.msra.mxu0 %v8766
  %8811 = vmatprep.subr.mxu0 %v8771
  %8812 = vmatpush1.msra.mxu0 %v8770
  %8813 = vmatprep.subr.mxu0 %v8775
  %8814 = vmatpush1.msra.mxu0 %v8774
  %8815 = vmatprep.subr.mxu0 %v8779
  %8816 = vmatpush1.msra.mxu0 %v8778
  %8817 = vmatprep.subr.mxu0 0.0
  %8818 = vmatpush1.msra.mxu0 0.0
  %8819 = vmatprep.subr.mxu0 0.0
  %8820 = vmatpush1.msra.mxu0 0.0
  %8821 = vmatprep.subr.mxu0 0.0
  %8822 = vmatpush1.msra.mxu0 0.0
  %8823 = vmatprep.subr.mxu0 0.0
  %8824 = vmatpush1.msra.mxu0 0.0
  %8825 = vmatprep.subr.mxu0 0.0
  %8826 = vmatpush1.msra.mxu0 0.0
  %8827 = vmatprep.subr.mxu0 0.0
  %8828 = vmatpush1.msra.mxu0 0.0
  %8829 = vmatprep.subr.mxu0 0.0
  %8830 = vmatpush1.msra.mxu0 0.0
  %8831 = vmatprep.subr.mxu0 0.0
  %8832 = vmatpush1.msra.mxu0 0.0
  %8833 = vmatprep.subr.mxu0 0.0
  %8834 = vmatpush1.msra.mxu0 0.0
  %8835 = vmatprep.subr.mxu0 0.0
  %8836 = vmatpush1.msra.mxu0 0.0
  %8837 = vmatprep.subr.mxu0 0.0
  %8838 = vmatpush1.msra.mxu0 0.0
  %8839 = vmatprep.subr.mxu0 0.0
  %8840 = vmatpush1.msra.mxu0 0.0
  %8841 = vmatprep.subr.mxu0 0.0
  %8842 = vmatpush1.msra.mxu0 0.0
  %8843 = vmatprep.subr.mxu0 0.0
  %8844 = vmatpush1.msra.mxu0 0.0
  %8845 = vmatprep.subr.mxu0 0.0
  %8846 = vmatpush1.msra.mxu0 0.0
  %8847 = vmatprep.subr.mxu0 0.0
  %8848 = vmatpush1.msra.mxu0 0.0
  %8849 = vmatprep.mubr.f32.mxu0 0.0
  %8850 = vmatmul.mubr.f32.gmra.mrb[0].mxu0 %v8783
  %v8851 = vpop.f32.mrb[0].mxu0
  %v8852 = vadd.f32 0.0, %v8851
  %v8853 = vpop.f32.mrb[0].mxu0
  %v8854 = vadd.f32 0.0, %v8853
  %8855 = vdwg.mxu0
  %8856 = vmatprep.subr.mxu0 %v8721
  %8857 = vmatpush1.msra.mxu0 %v8720
  %8858 = vmatprep.subr.mxu0 %v8725
  %8859 = vmatpush1.msra.mxu0 %v8724
  %8860 = vmatprep.subr.mxu0 %v8729
  %8861 = vmatpush1.msra.mxu0 %v8728
  %8862 = vmatprep.subr.mxu0 %v8733
  %8863 = vmatpush1.msra.mxu0 %v8732
  %8864 = vmatprep.subr.mxu0 %v8737
  %8865 = vmatpush1.msra.mxu0 %v8736
  %8866 = vmatprep.subr.mxu0 %v8741
  %8867 = vmatpush1.msra.mxu0 %v8740
  %8868 = vmatprep.subr.mxu0 %v8745
  %8869 = vmatpush1.msra.mxu0 %v8744
  %8870 = vmatprep.subr.mxu0 %v8749
  %8871 = vmatpush1.msra.mxu0 %v8748
  %8872 = vmatprep.subr.mxu0 %v8753
  %8873 = vmatpush1.msra.mxu0 %v8752
  %8874 = vmatprep.subr.mxu0 %v8757
  %8875 = vmatpush1.msra.mxu0 %v8756
  %8876 = vmatprep.subr.mxu0 %v8761
  %8877 = vmatpush1.msra.mxu0 %v8760
  %8878 = vmatprep.subr.mxu0 %v8765
  %8879 = vmatpush1.msra.mxu0 %v8764
  %8880 = vmatprep.subr.mxu0 %v8769
  %8881 = vmatpush1.msra.mxu0 %v8768
  %8882 = vmatprep.subr.mxu0 %v8773
  %8883 = vmatpush1.msra.mxu0 %v8772
  %8884 = vmatprep.subr.mxu0 %v8777
  %8885 = vmatpush1.msra.mxu0 %v8776
  %8886 = vmatprep.subr.mxu0 %v8781
  %8887 = vmatpush1.msra.mxu0 %v8780
  %8888 = vmatprep.subr.mxu0 0.0
  %8889 = vmatpush1.msra.mxu0 0.0
  %8890 = vmatprep.subr.mxu0 0.0
  %8891 = vmatpush1.msra.mxu0 0.0
  %8892 = vmatprep.subr.mxu0 0.0
  %8893 = vmatpush1.msra.mxu0 0.0
  %8894 = vmatprep.subr.mxu0 0.0
  %8895 = vmatpush1.msra.mxu0 0.0
  %8896 = vmatprep.subr.mxu0 0.0
  %8897 = vmatpush1.msra.mxu0 0.0
  %8898 = vmatprep.subr.mxu0 0.0
  %8899 = vmatpush1.msra.mxu0 0.0
  %8900 = vmatprep.subr.mxu0 0.0
  %8901 = vmatpush1.msra.mxu0 0.0
  %8902 = vmatprep.subr.mxu0 0.0
  %8903 = vmatpush1.msra.mxu0 0.0
  %8904 = vmatprep.subr.mxu0 0.0
  %8905 = vmatpush1.msra.mxu0 0.0
  %8906 = vmatprep.subr.mxu0 0.0
  %8907 = vmatpush1.msra.mxu0 0.0
  %8908 = vmatprep.subr.mxu0 0.0
  %8909 = vmatpush1.msra.mxu0 0.0
  %8910 = vmatprep.subr.mxu0 0.0
  %8911 = vmatpush1.msra.mxu0 0.0
  %8912 = vmatprep.subr.mxu0 0.0
  %8913 = vmatpush1.msra.mxu0 0.0
  %8914 = vmatprep.subr.mxu0 0.0
  %8915 = vmatpush1.msra.mxu0 0.0
  %8916 = vmatprep.subr.mxu0 0.0
  %8917 = vmatpush1.msra.mxu0 0.0
  %8918 = vmatprep.subr.mxu0 0.0
  %8919 = vmatpush1.msra.mxu0 0.0
  %8920 = vmatprep.mubr.f32.mxu0 0.0
  %8921 = vmatmul.mubr.f32.gmra.mrb[0].mxu0 %v8783
  %v8922 = vpop.f32.mrb[0].mxu0
  %v8923 = vadd.f32 0.0, %v8922
  %v8924 = vpop.f32.mrb[0].mxu0
  %v8925 = vadd.f32 0.0, %v8924
  %8926 = vdwg.mxu0
  %v8931 = vrot.slane %v8852, 2
  %v8932 = vrot.slane %v8854, 2
  %v8933 = vrot.slane %v8923, 2
  %v8934 = vrot.slane %v8925, 2
  %v8939 = vadd.f32 %v8714, %v8931
  %v8940 = vadd.f32 %v8715, %v8932
  %v8941 = vadd.f32 %v8716, %v8933
  %v8942 = vadd.f32 %v8717, %v8934
  %v8943 = vxor.u32 %v8939, 2147483648
  %v8944 = vmul.f32 %v8943, 1.442695
  %v8945 = vpow.pop %v8944
  %v8946 = vadd.f32 %v8945, 1.0
  %v8947 = vrcp.pop %v8946
  %v8948 = vmul.f32 1.0, %v8947
  %v8949 = vxor.u32 %v8940, 2147483648
  %v8950 = vmul.f32 %v8949, 1.442695
  %v8951 = vpow.pop %v8950
  %v8952 = vadd.f32 %v8951, 1.0
  %v8953 = vrcp.pop %v8952
  %v8954 = vmul.f32 1.0, %v8953
  %v8955 = vtanh.pop %v8941
  %v8956 = vxor.u32 %v8942, 2147483648
  %v8957 = vmul.f32 %v8956, 1.442695
  %v8958 = vpow.pop %v8957
  %v8959 = vadd.f32 %v8958, 1.0
  %v8960 = vrcp.pop %v8959
  %v8961 = vmul.f32 1.0, %v8960
  %v8963 = vrot.slane %v8710, 6
  %v8965 = vmul.f32 %v8954, %v8963
  %v8966 = vmul.f32 %v8948, %v8955
  %v8967 = vadd.f32 %v8965, %v8966
  %v8968 = vtanh.pop %v8967
  %v8969 = vmul.f32 %v8961, %v8968
  %8970 = vst [vmem:[#allocation2 + $0x8] sm:$0xc0] %v8969
  %v8971 = vld [vmem:[#allocation2] sm:$0xff]
  %v8972 = vld [vmem:[#allocation2 + $0x8] sm:$0xff]
  %v8973 = vld [vmem:[%s13] sm:$0xff]
  %v8974 = vld [vmem:[%s13 + $0x8] sm:$0xff]
  %v8975 = vld [vmem:[%s13 + $0x10] sm:$0xff]
  %v8976 = vld [vmem:[%s13 + $0x18] sm:$0xff]
  %v8977 = vld [vmem:[%s13 + $0x20] sm:$0xff]
  %v8978 = vld [vmem:[%s13 + $0x28] sm:$0xff]
  %v8979 = vld [vmem:[%s13 + $0x30] sm:$0xff]
  %v8980 = vld [vmem:[%s13 + $0x38] sm:$0xff]
  %v8981 = vld [vmem:[%s13 + $0x40] sm:$0xff]
  %v8982 = vld [vmem:[%s13 + $0x48] sm:$0xff]
  %v8983 = vld [vmem:[%s13 + $0x50] sm:$0xff]
  %v8984 = vld [vmem:[%s13 + $0x58] sm:$0xff]
  %v8985 = vld [vmem:[%s13 + $0x60] sm:$0xff]
  %v8986 = vld [vmem:[%s13 + $0x68] sm:$0xff]
  %v8987 = vld [vmem:[%s13 + $0x70] sm:$0xff]
  %v8988 = vld [vmem:[%s13 + $0x78] sm:$0xff]
  %v8989 = vld [vmem:[%s14] sm:$0x1]
  %v8991 = vlaneseq
  %v8992 = vshrl.u32 %v8991, 7
  %v8993 = vsub.s32 0, %v8992
  %v8994 = vrot.slane %v8989, %v8993
  %8996 = vmatprep.subr.mxu0 0.0
  %8997 = vmatpush1.msra.mxu0 %v8973
  %8998 = vmatprep.subr.mxu0 0.0
  %8999 = vmatpush1.msra.mxu0 %v8974
  %9000 = vmatprep.subr.mxu0 0.0
  %9001 = vmatpush1.msra.mxu0 %v8975
  %9002 = vmatprep.subr.mxu0 0.0
  %9003 = vmatpush1.msra.mxu0 %v8976
  %9004 = vmatprep.subr.mxu0 0.0
  %9005 = vmatpush1.msra.mxu0 %v8977
  %9006 = vmatprep.subr.mxu0 0.0
  %9007 = vmatpush1.msra.mxu0 %v8978
  %9008 = vmatprep.subr.mxu0 0.0
  %9009 = vmatpush1.msra.mxu0 %v8979
  %9010 = vmatprep.subr.mxu0 0.0
  %9011 = vmatpush1.msra.mxu0 %v8980
  %9012 = vmatprep.subr.mxu0 0.0
  %9013 = vmatpush1.msra.mxu0 %v8981
  %9014 = vmatprep.subr.mxu0 0.0
  %9015 = vmatpush1.msra.mxu0 %v8982
  %9016 = vmatprep.subr.mxu0 0.0
  %9017 = vmatpush1.msra.mxu0 %v8983
  %9018 = vmatprep.subr.mxu0 0.0
  %9019 = vmatpush1.msra.mxu0 %v8984
  %9020 = vmatprep.subr.mxu0 0.0
  %9021 = vmatpush1.msra.mxu0 %v8985
  %9022 = vmatprep.subr.mxu0 0.0
  %9023 = vmatpush1.msra.mxu0 %v8986
  %9024 = vmatprep.subr.mxu0 0.0
  %9025 = vmatpush1.msra.mxu0 %v8987
  %9026 = vmatprep.subr.mxu0 0.0
  %9027 = vmatpush1.msra.mxu0 %v8988
  %9028 = vmatprep.subr.mxu0 0.0
  %9029 = vmatpush1.msra.mxu0 0.0
  %9030 = vmatprep.subr.mxu0 0.0
  %9031 = vmatpush1.msra.mxu0 0.0
  %9032 = vmatprep.subr.mxu0 0.0
  %9033 = vmatpush1.msra.mxu0 0.0
  %9034 = vmatprep.subr.mxu0 0.0
  %9035 = vmatpush1.msra.mxu0 0.0
  %9036 = vmatprep.subr.mxu0 0.0
  %9037 = vmatpush1.msra.mxu0 0.0
  %9038 = vmatprep.subr.mxu0 0.0
  %9039 = vmatpush1.msra.mxu0 0.0
  %9040 = vmatprep.subr.mxu0 0.0
  %9041 = vmatpush1.msra.mxu0 0.0
  %9042 = vmatprep.subr.mxu0 0.0
  %9043 = vmatpush1.msra.mxu0 0.0
  %9044 = vmatprep.subr.mxu0 0.0
  %9045 = vmatpush1.msra.mxu0 0.0
  %9046 = vmatprep.subr.mxu0 0.0
  %9047 = vmatpush1.msra.mxu0 0.0
  %9048 = vmatprep.subr.mxu0 0.0
  %9049 = vmatpush1.msra.mxu0 0.0
  %9050 = vmatprep.subr.mxu0 0.0
  %9051 = vmatpush1.msra.mxu0 0.0
  %9052 = vmatprep.subr.mxu0 0.0
  %9053 = vmatpush1.msra.mxu0 0.0
  %9054 = vmatprep.subr.mxu0 0.0
  %9055 = vmatpush1.msra.mxu0 0.0
  %9056 = vmatprep.subr.mxu0 0.0
  %9057 = vmatpush1.msra.mxu0 0.0
  %9058 = vmatprep.subr.mxu0 0.0
  %9059 = vmatpush1.msra.mxu0 0.0
  %9060 = vmatprep.mubr.f32.mxu0 0.0
  %9061 = vmatmul.mubr.f32.gmra.mrb[0].mxu0 %v8971
  %v9062 = vpop.f32.mrb[0].mxu0
  %v9063 = vadd.f32 %v8994, %v9062
  %v9064 = vpop.f32.mrb[0].mxu0
  %9065 = vmatprep.mubr.f32.mxu0 0.0
  %9066 = vmatmul.mubr.f32.gmra.mrb[0].mxu0 %v8972
  %v9067 = vpop.f32.mrb[0].mxu0
  %v9068 = vadd.f32 %v8994, %v9067
  %v9069 = vpop.f32.mrb[0].mxu0
  %9070 = vdwg.mxu0
  %9071 = vst [vmem:[%s15] sm:$0xff] %v9063
  %9072 = vst [vmem:[%s15 + $0x8] sm:$0xff] %v9068
  // Predicated region
  $region62: #{recurrent_autoencoder_forward.1} parent=0 // pred_check
    _
  $region63: #{recurrent_autoencoder_forward.1} parent=0 // pred_check_branch
    %9074 = sbr.rel (0) target = $region65
  $region64: #{recurrent_autoencoder_forward.1} parent=0 // pred_region
    _
  $region65: #{recurrent_autoencoder_forward.1} parent=0 // pred_fallthru
    _
  // Predicated region
  $region66: #{recurrent_autoencoder_forward.1} parent=0 // pred_check
    _
  $region67: #{recurrent_autoencoder_forward.1} parent=0 // pred_check_branch
    %9076 = sbr.rel (0) target = $region69
  $region68: #{recurrent_autoencoder_forward.1} parent=0 // pred_region
    _
  $region69: #{recurrent_autoencoder_forward.1} parent=0 // pred_fallthru
    _

</llo_original>
